<compile_context>
chip_gen: v5e
topology: v5e:2x2
jax: 0.10.0
libtpu: 0.0.40
codegen_flags: <defaults>
</compile_context>

<pallas_src>
import functools

import jax
import jax.numpy as jnp
from jax.experimental import pallas as pl
from jax.experimental.pallas import tpu as pltpu  # noqa: F401  (kept for parity)

# ----------------------------- model config ---------------------------------
IMG_SIZE = 32        # small synthetic image size (must be divisible by PATCH)
PATCH = 16           # mae_vit_base_patch16 -> patch size 16
IN_CH = 3            # RGB (normalize uses 3-channel ImageNet stats)
EMBED = 128          # lane-dense synthetic embed dim (ViT-base would be 768)
DEPTH = 2            # small synthetic depth (ViT-base would be 12)
HEADS = 2
HEAD_DIM = EMBED // HEADS
MLP_HIDDEN = 4 * EMBED
NUM_PATCHES = (IMG_SIZE // PATCH) ** 2
PATCH_DIM = IN_CH * PATCH * PATCH        # 768 = 6 * 128  (lane-dense)
MASK_RATIO = 0.5
T_PAD = 8                                # tokens per sequence, padded to sublane mult
assert (T_PAD & (T_PAD - 1)) == 0, "T_PAD must be a power of two (bitmask modulo)"

NORM_MEAN = jnp.array([0.485, 0.456, 0.406], jnp.float32)
NORM_STD = jnp.array([0.229, 0.224, 0.225], jnp.float32)


# ----------------------------- fused Pallas kernel ---------------------------
def _fused_loss_kernel(
    r_ref, g_ref,                 # (N, C*H*W) raw images (for L1), exact tiles
    slab_ref,                     # (2N*T_PAD, PATCH_DIM) bf16 kept patches, zero cls/pad rows
    add_ref,                      # (2N*T_PAD, EMBED) f32: cls+pos_cls / pos+patch_b / 0
    pw_ref,                       # (PATCH_DIM, EMBED) bf16, normalization folded in
    ln1_g_ref, ln1_b_ref,         # (DEPTH, 1, EMBED) f32
    qkv_w_ref, qkv_b_ref,         # (DEPTH, EMBED, 3*EMBED) bf16, (DEPTH, 1, 3*EMBED) f32
    proj_w_ref, proj_b_ref,       # (DEPTH, EMBED, EMBED) bf16, (DEPTH, 1, EMBED) f32
    ln2_g_ref, ln2_b_ref,         # (DEPTH, 1, EMBED) f32
    fc1_w_ref, fc1_b_ref,         # (DEPTH, EMBED, MLP) bf16, (DEPTH, 1, MLP) f32
    fc2_w_ref, fc2_b_ref,         # (DEPTH, MLP, EMBED) bf16, (DEPTH, 1, EMBED) f32
    nrm_g_ref, nrm_b_ref,         # (1, EMBED) f32
    out_ref,                      # (1, EMBED) f32: lane 0 = L1, lane 1 = MSE
    *, n_img, t_pad, t_real, heads, depth, embed,
):
    f32 = jnp.float32
    bf16 = jnp.bfloat16

    # ---- L1 loss on raw (un-normalized) images, mean reduction -------------
    d = jnp.abs(r_ref[...] - g_ref[...])
    l1 = jnp.sum(d) * (1.0 / float(d.size))

    # ---- patch-embed (normalization folded into weights) + cls/pos add -----
    # cls/pad rows of the slab are zero, so their embeddings come purely from
    # add_ref (cls token + its pos embed, or zero for pad rows).
    x = (jnp.dot(slab_ref[...], pw_ref[...], preferred_element_type=f32)
         + add_ref[...])                                   # (rows, EMBED) f32

    n_seq = 2 * n_img
    rows = n_seq * t_pad
    dh = embed // heads
    scale = 1.0 / (dh ** 0.5)

    # additive key-validity mask: pad key columns get a large negative score
    key_pos = jax.lax.broadcasted_iota(jnp.int32, (t_pad, t_pad), 1)
    key_bias = jnp.where(key_pos < t_real, 0.0, -1e30).astype(f32)   # (T, T)

    def layernorm(y, gamma, beta):
        mu = jnp.mean(y, axis=-1, keepdims=True)
        var = jnp.mean((y - mu) ** 2, axis=-1, keepdims=True)
        # eps = 1e-6 matches MAE/timm ViT LayerNorm.
        return (y - mu) * jax.lax.rsqrt(var + 1e-6) * gamma + beta

    for i in range(depth):
        # ----------------- attention -----------------
        h = layernorm(x, ln1_g_ref[i], ln1_b_ref[i]).astype(bf16)
        qkv = (jnp.dot(h, qkv_w_ref[i], preferred_element_type=f32)
               + qkv_b_ref[i])                              # (rows, 3*EMBED) f32
        q = qkv[:, 0:embed].reshape(n_seq, t_pad, embed)
        k = qkv[:, embed:2 * embed].reshape(n_seq, t_pad, embed)
        v = qkv[:, 2 * embed:3 * embed].reshape(n_seq, t_pad, embed)

        head_outs = []
        for hh in range(heads):
            sl = slice(hh * dh, (hh + 1) * dh)
            qh = q[:, :, sl].astype(bf16)
            kh = k[:, :, sl].astype(bf16)
            vh = v[:, :, sl].astype(bf16)
            s = jnp.einsum('nqd,nkd->nqk', qh, kh,
                           preferred_element_type=f32) * scale
            s = s + key_bias                                # mask pad keys
            s = s - jnp.max(s, axis=-1, keepdims=True)
            p = jnp.exp(s)
            p = p * pl.reciprocal(jnp.sum(p, axis=-1, keepdims=True))  # exact
            head_outs.append(
                jnp.einsum('nqk,nkd->nqd', p.astype(bf16), vh,
                           preferred_element_type=f32))
        attn = jnp.concatenate(head_outs, axis=-1).reshape(rows, embed)
        attn = jnp.dot(attn.astype(bf16), proj_w_ref[i],
                       preferred_element_type=f32)          # single proj matmul
        x = x + attn + proj_b_ref[i]

        # ----------------- MLP -----------------
        h = layernorm(x, ln2_g_ref[i], ln2_b_ref[i]).astype(bf16)
        h = (jnp.dot(h, fc1_w_ref[i], preferred_element_type=f32)
             + fc1_b_ref[i])
        h = jax.nn.gelu(h, approximate=True)   # TODO(synk): timm MLP uses exact erf GELU
        h = (jnp.dot(h.astype(bf16), fc2_w_ref[i], preferred_element_type=f32)
             + fc2_b_ref[i])
        x = x + h

    x = layernorm(x, nrm_g_ref[...], nrm_b_ref[...])

    # ---- perceptual term: mean MSE between the two images' embeddings ------
    # pad rows (token index >= t_real within each sequence) are masked out.
    half = n_img * t_pad
    row_ids = jax.lax.broadcasted_iota(jnp.int32, (half, embed), 0)
    valid = ((row_ids & (t_pad - 1)) < t_real).astype(f32)
    diff = (x[0:half, :] - x[half:2 * half, :]) * valid
    mse = jnp.sum(diff * diff) * (1.0 / float(n_img * t_real * embed))

    # ---- pack both scalars into one lane-dense output row ------------------
    lane = jax.lax.broadcasted_iota(jnp.int32, (1, embed), 1)
    out_ref[...] = (jnp.where(lane == 0, l1, 0.0)
                    + jnp.where(lane == 1, mse, 0.0)).astype(f32)


# ----------------------------- synthetic MAE params --------------------------
def init_mae_params(key):
    keys = jax.random.split(key, 7)

    def w(k, shape, scale=0.02):
        return scale * jax.random.normal(k, shape, dtype=jnp.float32)

    # per-block weights stacked along a leading DEPTH axis so the fused kernel
    # can index them with a static Python loop (no per-block pallas_call).
    return {
        "patch_w": w(keys[0], (PATCH_DIM, EMBED)),
        "patch_b": jnp.zeros((EMBED,), jnp.float32),
        "pos_embed": w(keys[1], (1, NUM_PATCHES + 1, EMBED)),
        "cls": w(keys[2], (1, 1, EMBED)),
        "norm_g": jnp.ones((EMBED,), jnp.float32),
        "norm_b": jnp.zeros((EMBED,), jnp.float32),
        "ln1_g": jnp.ones((DEPTH, 1, EMBED), jnp.float32),
        "ln1_b": jnp.zeros((DEPTH, 1, EMBED), jnp.float32),
        "qkv_w": w(keys[3], (DEPTH, EMBED, 3 * EMBED)),
        "qkv_b": jnp.zeros((DEPTH, 1, 3 * EMBED), jnp.float32),
        "proj_w": w(keys[4], (DEPTH, EMBED, EMBED)),
        "proj_b": jnp.zeros((DEPTH, 1, EMBED), jnp.float32),
        "ln2_g": jnp.ones((DEPTH, 1, EMBED), jnp.float32),
        "ln2_b": jnp.zeros((DEPTH, 1, EMBED), jnp.float32),
        "fc1_w": w(keys[5], (DEPTH, EMBED, MLP_HIDDEN)),
        "fc1_b": jnp.zeros((DEPTH, 1, MLP_HIDDEN), jnp.float32),
        "fc2_w": w(keys[6], (DEPTH, MLP_HIDDEN, EMBED)),
        "fc2_b": jnp.zeros((DEPTH, 1, EMBED), jnp.float32),
    }


def patchify(img, p):
    # NCHW -> (N, L, C*p*p) with (C, ph, pw) inner order (matches Conv2d patch_embed)
    n, c, h, w = img.shape
    x = img.reshape(n, c, h // p, p, w // p, p)
    x = jnp.transpose(x, (0, 2, 4, 1, 3, 5))
    return x.reshape(n, (h // p) * (w // p), c * p * p)


# --------------------------- full loss forward -------------------------------
def reconstruct_perceptual_loss(params, recover_img, gt, mask_key):
    # TODO(synk): original mae_vit_base_patch16 custom forward(recover, gt, ratio)
    # and selfPerceptualLoss sources unavailable; implemented as MAE-style
    # shared-mask encoding of both images + mean-MSE(embeddings) * 0.1.
    n, c, h, w = recover_img.shape
    L = NUM_PATCHES
    len_keep = int(L * (1 - MASK_RATIO))
    t_real = len_keep + 1                       # cls + kept tokens
    assert t_real <= T_PAD
    pad_cols = T_PAD - 1 - len_keep

    # ---- L1 operands: exact-tile (N, C*H*W) layout (N mult of 8, lanes mult 128)
    r2d = recover_img.reshape(n, c * h * w).astype(jnp.float32)
    g2d = gt.reshape(n, c * h * w).astype(jnp.float32)

    # ---- patchify RAW images; normalization is folded into the patch weights
    p1 = patchify(recover_img, PATCH).astype(jnp.float32)
    p2 = patchify(gt, PATCH).astype(jnp.float32)

    # shared random masking (same kept ids for both images), as in MAE
    noise = jax.random.uniform(mask_key, (n, L))
    ids_shuffle = jnp.argsort(noise, axis=1)
    ids_keep = ids_shuffle[:, :len_keep].astype(jnp.int32)          # (n, keep)

    # ---- fold ImageNet normalization into the patch-embed weights (exact) ---
    mean_vec = jnp.repeat(NORM_MEAN, PATCH * PATCH)                 # (PATCH_DIM,)
    inv_std_vec = jnp.repeat(1.0 / NORM_STD, PATCH * PATCH)         # (PATCH_DIM,)
    pw = params["patch_w"]
    pw_adj = (inv_std_vec[:, None] * pw)                            # row-scaled W
    pb_adj = params["patch_b"] - (mean_vec * inv_std_vec) @ pw      # adjusted bias
    pw_bf = pw_adj.astype(jnp.bfloat16)

    # ---- pre-assembled token slab: zero rows at cls/pad positions -----------
    patch_table = jnp.concatenate(
        [p1.reshape(n * L, PATCH_DIM), p2.reshape(n * L, PATCH_DIM),
         jnp.zeros((1, PATCH_DIM), jnp.float32)], axis=0)
    zero_idx = 2 * n * L

    def seq_row_idx(img_off):
        kept = (img_off + jnp.arange(n, dtype=jnp.int32)[:, None] * L
                + ids_keep)                                         # (n, keep)
        return jnp.concatenate(
            [jnp.full((n, 1), zero_idx, jnp.int32),
             kept,
             jnp.full((n, pad_cols), zero_idx, jnp.int32)], axis=1)  # (n, T_PAD)

    row_idx = jnp.concatenate([seq_row_idx(0), seq_row_idx(n * L)],
                              axis=0).reshape(-1)                    # (2n*T_PAD,)
    slab = jnp.take(patch_table, row_idx, axis=0).astype(jnp.bfloat16)

    # ---- additive tensor: cls+pos_cls / pos+patch_b / 0 per row -------------
    pos_patches = params["pos_embed"][0, 1:, :]                      # (L, EMBED)
    cls_pos = params["cls"][0, 0] + params["pos_embed"][0, 0]        # (EMBED,)
    add_table = jnp.concatenate(
        [cls_pos[None, :],
         pos_patches + pb_adj[None, :],
         jnp.zeros((1, EMBED), jnp.float32)], axis=0)                # (L+2, EMBED)
    aidx = jnp.concatenate(
        [jnp.zeros((n, 1), jnp.int32),
         (1 + ids_keep),
         jnp.full((n, pad_cols), L + 1, jnp.int32)], axis=1)         # (n, T_PAD)
    add_idx = jnp.concatenate([aidx, aidx], axis=0).reshape(-1)
    add = jnp.take(add_table, add_idx, axis=0)                       # (2n*T_PAD, E)

    # ---- bf16 weight copies for the MXU --------------------------------------
    qkv_w_bf = params["qkv_w"].astype(jnp.bfloat16)
    proj_w_bf = params["proj_w"].astype(jnp.bfloat16)
    fc1_w_bf = params["fc1_w"].astype(jnp.bfloat16)
    fc2_w_bf = params["fc2_w"].astype(jnp.bfloat16)

    kern = functools.partial(
        _fused_loss_kernel, n_img=n, t_pad=T_PAD, t_real=t_real,
        heads=HEADS, depth=DEPTH, embed=EMBED)

    out = pl.pallas_call(
        kern,
        out_shape=jax.ShapeDtypeStruct((1, EMBED), jnp.float32),
    )(r2d, g2d, slab, add, pw_bf,
      params["ln1_g"], params["ln1_b"], qkv_w_bf, params["qkv_b"],
      proj_w_bf, params["proj_b"], params["ln2_g"], params["ln2_b"],
      fc1_w_bf, params["fc1_b"], fc2_w_bf, params["fc2_b"],
      params["norm_g"].reshape(1, EMBED), params["norm_b"].reshape(1, EMBED))

    loss_l1 = out[0, 0]
    contrast_loss = out[0, 1] * 0.1
    return {
        "l1": loss_l1,
        "Perceptual": contrast_loss,
        "total_loss": contrast_loss + loss_l1,
    }


# --------------------------------- main --------------------------------------
if __name__ == "__main__":
    key = jax.random.PRNGKey(0)
    k_img1, k_img2, k_params, k_mask = jax.random.split(key, 4)

    # 8 image pairs so encoder rows = 2*N*T_PAD = 128 (fills the MXU row dim)
    N_IMG = 8
    recover_img = 0.5 + 0.25 * jax.random.normal(
        k_img1, (N_IMG, IN_CH, IMG_SIZE, IMG_SIZE), dtype=jnp.float32)
    gt = 0.5 + 0.25 * jax.random.normal(
        k_img2, (N_IMG, IN_CH, IMG_SIZE, IMG_SIZE), dtype=jnp.float32)
    params = init_mae_params(k_params)

    losses = jax.jit(reconstruct_perceptual_loss)(params, recover_img, gt, k_mask)
    jax.block_until_ready(losses["total_loss"])

    assert jnp.isfinite(losses["l1"])
    assert jnp.isfinite(losses["Perceptual"])
    assert jnp.isfinite(losses["total_loss"])
    print("KERNEL_OK")
</pallas_src>

<mosaic_0001>
module attributes {stable_mosaic.version = 11 : i64} {
  func.func @_fused_loss_kernel(%arg0: memref<8x3072xf32, #tpu.memory_space<vmem>>, %arg1: memref<8x3072xf32, #tpu.memory_space<vmem>>, %arg2: memref<128x768xbf16, #tpu.memory_space<vmem>>, %arg3: memref<128x128xf32, #tpu.memory_space<vmem>>, %arg4: memref<768x128xbf16, #tpu.memory_space<vmem>>, %arg5: memref<2x1x128xf32, #tpu.memory_space<vmem>>, %arg6: memref<2x1x128xf32, #tpu.memory_space<vmem>>, %arg7: memref<2x128x384xbf16, #tpu.memory_space<vmem>>, %arg8: memref<2x1x384xf32, #tpu.memory_space<vmem>>, %arg9: memref<2x128x128xbf16, #tpu.memory_space<vmem>>, %arg10: memref<2x1x128xf32, #tpu.memory_space<vmem>>, %arg11: memref<2x1x128xf32, #tpu.memory_space<vmem>>, %arg12: memref<2x1x128xf32, #tpu.memory_space<vmem>>, %arg13: memref<2x128x512xbf16, #tpu.memory_space<vmem>>, %arg14: memref<2x1x512xf32, #tpu.memory_space<vmem>>, %arg15: memref<2x512x128xbf16, #tpu.memory_space<vmem>>, %arg16: memref<2x1x128xf32, #tpu.memory_space<vmem>>, %arg17: memref<1x128xf32, #tpu.memory_space<vmem>>, %arg18: memref<1x128xf32, #tpu.memory_space<vmem>>, %arg19: memref<1x128xf32, #tpu.memory_space<vmem>>) attributes {dimension_semantics = [], scalar_prefetch = 0 : i64, scratch_operands = 0 : i64, tpu.core_type = #tpu.core_type<tc>} {
    %c0 = arith.constant 0 : index
    %c0_0 = arith.constant 0 : index
    %0 = vector.load %arg0[%c0, %c0_0] : memref<8x3072xf32, #tpu.memory_space<vmem>>, vector<8x3072xf32>
    %c0_1 = arith.constant 0 : index
    %c0_2 = arith.constant 0 : index
    %1 = vector.load %arg1[%c0_1, %c0_2] : memref<8x3072xf32, #tpu.memory_space<vmem>>, vector<8x3072xf32>
    %2 = arith.subf %0, %1 : vector<8x3072xf32>
    %3 = math.absf %2 : vector<8x3072xf32>
    %4 = vector.shape_cast %3 : vector<8x3072xf32> to vector<1x8x3072xf32>
    %cst = arith.constant dense<0.000000e+00> : vector<1xf32>
    %5 = vector.multi_reduction <add>, %4, %cst [1, 2] : vector<1x8x3072xf32> to vector<1xf32>
    %6 = vector.shape_cast %5 : vector<1xf32> to vector<1x1x1xf32>
    %7 = vector.extract %6[0, 0, 0] : f32 from vector<1x1x1xf32>
    %cst_3 = arith.constant 4.06901054E-5 : f32
    %8 = arith.mulf %7, %cst_3 : f32
    %c0_4 = arith.constant 0 : index
    %c0_5 = arith.constant 0 : index
    %9 = vector.load %arg2[%c0_4, %c0_5] : memref<128x768xbf16, #tpu.memory_space<vmem>>, vector<128x768xbf16>
    %c0_6 = arith.constant 0 : index
    %c0_7 = arith.constant 0 : index
    %10 = vector.load %arg4[%c0_6, %c0_7] : memref<768x128xbf16, #tpu.memory_space<vmem>>, vector<768x128xbf16>
    %cst_8 = arith.constant dense<0.000000e+00> : vector<128x128xf32>
    %11 = tpu.matmul %9, %10, %cst_8 {dimension_numbers = #tpu.dot_dimension_numbers<[1], [0], [0], [1], [0, 0, 1, 1], [], []>} : vector<128x768xbf16>, vector<768x128xbf16>, vector<128x128xf32> -> vector<128x128xf32>
    %c0_9 = arith.constant 0 : index
    %c0_10 = arith.constant 0 : index
    %12 = vector.load %arg3[%c0_9, %c0_10] : memref<128x128xf32, #tpu.memory_space<vmem>>, vector<128x128xf32>
    %13 = arith.addf %11, %12 : vector<128x128xf32>
    %14 = tpu.iota {dimensions = array<i32: 1>} : vector<8x8xi32>
    %c3_i32 = arith.constant 3 : i32
    %15 = vector.broadcast %c3_i32 : i32 to vector<8x8xi32>
    %16 = arith.cmpi slt, %14, %15 : vector<8x8xi32>
    %cst_11 = arith.constant 0.000000e+00 : f32
    %cst_12 = arith.constant -1.000000e+30 : f32
    %17 = vector.broadcast %cst_11 : f32 to vector<8x8xf32>
    %18 = vector.broadcast %cst_12 : f32 to vector<8x8xf32>
    %19 = arith.select %16, %17, %18 : vector<8x8xi1>, vector<8x8xf32>
    %c0_13 = arith.constant 0 : index
    %c0_14 = arith.constant 0 : index
    %c0_15 = arith.constant 0 : index
    %20 = vector.load %arg5[%c0_13, %c0_14, %c0_15] : memref<2x1x128xf32, #tpu.memory_space<vmem>>, vector<1x1x128xf32>
    %21 = vector.shape_cast %20 : vector<1x1x128xf32> to vector<1x128xf32>
    %c0_16 = arith.constant 0 : index
    %c0_17 = arith.constant 0 : index
    %c0_18 = arith.constant 0 : index
    %22 = vector.load %arg6[%c0_16, %c0_17, %c0_18] : memref<2x1x128xf32, #tpu.memory_space<vmem>>, vector<1x1x128xf32>
    %23 = vector.shape_cast %22 : vector<1x1x128xf32> to vector<1x128xf32>
    %cst_19 = arith.constant dense<0.000000e+00> : vector<128xf32>
    %24 = vector.multi_reduction <add>, %13, %cst_19 [1] : vector<128x128xf32> to vector<128xf32>
    %25 = vector.shape_cast %24 : vector<128xf32> to vector<128x1xf32>
    %cst_20 = arith.constant 1.280000e+02 : f32
    %26 = vector.broadcast %cst_20 : f32 to vector<128x1xf32>
    %27 = arith.divf %25, %26 : vector<128x1xf32>
    %28 = vector.broadcast %27 : vector<128x1xf32> to vector<128x128xf32>
    %29 = arith.subf %13, %28 : vector<128x128xf32>
    %30 = arith.mulf %29, %29 : vector<128x128xf32>
    %cst_21 = arith.constant dense<0.000000e+00> : vector<128xf32>
    %31 = vector.multi_reduction <add>, %30, %cst_21 [1] : vector<128x128xf32> to vector<128xf32>
    %32 = vector.shape_cast %31 : vector<128xf32> to vector<128x1xf32>
    %cst_22 = arith.constant 1.280000e+02 : f32
    %33 = vector.broadcast %cst_22 : f32 to vector<128x1xf32>
    %34 = arith.divf %32, %33 : vector<128x1xf32>
    %35 = vector.broadcast %27 : vector<128x1xf32> to vector<128x128xf32>
    %36 = arith.subf %13, %35 : vector<128x128xf32>
    %cst_23 = arith.constant 9.99999997E-7 : f32
    %37 = vector.broadcast %cst_23 : f32 to vector<128x1xf32>
    %38 = arith.addf %34, %37 : vector<128x1xf32>
    %39 = math.rsqrt %38 : vector<128x1xf32>
    %40 = vector.broadcast %39 : vector<128x1xf32> to vector<128x128xf32>
    %41 = arith.mulf %36, %40 : vector<128x128xf32>
    %42 = vector.broadcast %21 : vector<1x128xf32> to vector<128x128xf32>
    %43 = arith.mulf %41, %42 : vector<128x128xf32>
    %44 = vector.broadcast %23 : vector<1x128xf32> to vector<128x128xf32>
    %45 = arith.addf %43, %44 : vector<128x128xf32>
    %46 = arith.truncf %45 : vector<128x128xf32> to vector<128x128xbf16>
    %c0_24 = arith.constant 0 : index
    %c0_25 = arith.constant 0 : index
    %c0_26 = arith.constant 0 : index
    %47 = vector.load %arg7[%c0_24, %c0_25, %c0_26] : memref<2x128x384xbf16, #tpu.memory_space<vmem>>, vector<1x128x384xbf16>
    %48 = vector.shape_cast %47 : vector<1x128x384xbf16> to vector<128x384xbf16>
    %cst_27 = arith.constant dense<0.000000e+00> : vector<128x384xf32>
    %49 = tpu.matmul %46, %48, %cst_27 {dimension_numbers = #tpu.dot_dimension_numbers<[1], [0], [0], [1], [0, 0, 1, 1], [], []>} : vector<128x128xbf16>, vector<128x384xbf16>, vector<128x384xf32> -> vector<128x384xf32>
    %c0_28 = arith.constant 0 : index
    %c0_29 = arith.constant 0 : index
    %c0_30 = arith.constant 0 : index
    %50 = vector.load %arg8[%c0_28, %c0_29, %c0_30] : memref<2x1x384xf32, #tpu.memory_space<vmem>>, vector<1x1x384xf32>
    %51 = vector.shape_cast %50 : vector<1x1x384xf32> to vector<1x384xf32>
    %52 = vector.broadcast %51 : vector<1x384xf32> to vector<128x384xf32>
    %53 = arith.addf %49, %52 : vector<128x384xf32>
    %54 = vector.extract_strided_slice %53 {offsets = [0, 0], sizes = [128, 128], strides = [1, 1]} : vector<128x384xf32> to vector<128x128xf32>
    %55 = vector.shape_cast %54 : vector<128x128xf32> to vector<16x8x128xf32>
    %56 = vector.extract_strided_slice %53 {offsets = [0, 128], sizes = [128, 128], strides = [1, 1]} : vector<128x384xf32> to vector<128x128xf32>
    %57 = vector.shape_cast %56 : vector<128x128xf32> to vector<16x8x128xf32>
    %58 = vector.extract_strided_slice %53 {offsets = [0, 256], sizes = [128, 128], strides = [1, 1]} : vector<128x384xf32> to vector<128x128xf32>
    %59 = vector.shape_cast %58 : vector<128x128xf32> to vector<16x8x128xf32>
    %60 = vector.extract_strided_slice %55 {offsets = [0, 0, 0], sizes = [16, 8, 64], strides = [1, 1, 1]} : vector<16x8x128xf32> to vector<16x8x64xf32>
    %61 = arith.truncf %60 : vector<16x8x64xf32> to vector<16x8x64xbf16>
    %62 = vector.extract_strided_slice %57 {offsets = [0, 0, 0], sizes = [16, 8, 64], strides = [1, 1, 1]} : vector<16x8x128xf32> to vector<16x8x64xf32>
    %63 = arith.truncf %62 : vector<16x8x64xf32> to vector<16x8x64xbf16>
    %64 = vector.extract_strided_slice %59 {offsets = [0, 0, 0], sizes = [16, 8, 64], strides = [1, 1, 1]} : vector<16x8x128xf32> to vector<16x8x64xf32>
    %65 = arith.truncf %64 : vector<16x8x64xf32> to vector<16x8x64xbf16>
    "tpu.trace_start"() <{level = 10 : i32, message = "nqd,nkd->nqk"}> : () -> ()
    %cst_31 = arith.constant dense<0.000000e+00> : vector<16x8x8xf32>
    %66 = tpu.matmul %61, %63, %cst_31 {dimension_numbers = #tpu.dot_dimension_numbers<[2], [2], [1], [1], [0, 0, 0, 1, 1, 1], [0], [0]>} : vector<16x8x64xbf16>, vector<16x8x64xbf16>, vector<16x8x8xf32> -> vector<16x8x8xf32>
    "tpu.trace_stop"() : () -> ()
    %cst_32 = arith.constant 1.250000e-01 : f32
    %67 = vector.broadcast %cst_32 : f32 to vector<16x8x8xf32>
    %68 = arith.mulf %66, %67 : vector<16x8x8xf32>
    %69 = vector.shape_cast %19 : vector<8x8xf32> to vector<1x8x8xf32>
    %70 = vector.broadcast %69 : vector<1x8x8xf32> to vector<16x8x8xf32>
    %71 = arith.addf %68, %70 : vector<16x8x8xf32>
    %cst_33 = arith.constant dense<0xFF800000> : vector<16x8xf32>
    %72 = vector.multi_reduction <maximumf>, %71, %cst_33 [2] : vector<16x8x8xf32> to vector<16x8xf32>
    %73 = vector.shape_cast %72 : vector<16x8xf32> to vector<16x8x1xf32>
    %74 = vector.broadcast %73 : vector<16x8x1xf32> to vector<16x8x8xf32>
    %75 = arith.subf %71, %74 : vector<16x8x8xf32>
    %76 = math.exp %75 : vector<16x8x8xf32>
    %cst_34 = arith.constant dense<0.000000e+00> : vector<16x8xf32>
    %77 = vector.multi_reduction <add>, %76, %cst_34 [2] : vector<16x8x8xf32> to vector<16x8xf32>
    %78 = vector.shape_cast %77 : vector<16x8xf32> to vector<16x8x1xf32>
    %79 = tpu.reciprocal %78 : vector<16x8x1xf32> -> vector<16x8x1xf32>
    %80 = vector.broadcast %79 : vector<16x8x1xf32> to vector<16x8x8xf32>
    %81 = arith.mulf %76, %80 : vector<16x8x8xf32>
    %82 = arith.truncf %81 : vector<16x8x8xf32> to vector<16x8x8xbf16>
    "tpu.trace_start"() <{level = 10 : i32, message = "nqk,nkd->nqd"}> : () -> ()
    %cst_35 = arith.constant dense<0.000000e+00> : vector<16x8x64xf32>
    %83 = tpu.matmul %82, %65, %cst_35 {dimension_numbers = #tpu.dot_dimension_numbers<[2], [1], [1], [2], [0, 0, 0, 1, 1, 2], [0], [0]>} : vector<16x8x8xbf16>, vector<16x8x64xbf16>, vector<16x8x64xf32> -> vector<16x8x64xf32>
    "tpu.trace_stop"() : () -> ()
    %84 = vector.extract_strided_slice %55 {offsets = [0, 0, 64], sizes = [16, 8, 64], strides = [1, 1, 1]} : vector<16x8x128xf32> to vector<16x8x64xf32>
    %85 = arith.truncf %84 : vector<16x8x64xf32> to vector<16x8x64xbf16>
    %86 = vector.extract_strided_slice %57 {offsets = [0, 0, 64], sizes = [16, 8, 64], strides = [1, 1, 1]} : vector<16x8x128xf32> to vector<16x8x64xf32>
    %87 = arith.truncf %86 : vector<16x8x64xf32> to vector<16x8x64xbf16>
    %88 = vector.extract_strided_slice %59 {offsets = [0, 0, 64], sizes = [16, 8, 64], strides = [1, 1, 1]} : vector<16x8x128xf32> to vector<16x8x64xf32>
    %89 = arith.truncf %88 : vector<16x8x64xf32> to vector<16x8x64xbf16>
    "tpu.trace_start"() <{level = 10 : i32, message = "nqd,nkd->nqk"}> : () -> ()
    %cst_36 = arith.constant dense<0.000000e+00> : vector<16x8x8xf32>
    %90 = tpu.matmul %85, %87, %cst_36 {dimension_numbers = #tpu.dot_dimension_numbers<[2], [2], [1], [1], [0, 0, 0, 1, 1, 1], [0], [0]>} : vector<16x8x64xbf16>, vector<16x8x64xbf16>, vector<16x8x8xf32> -> vector<16x8x8xf32>
    "tpu.trace_stop"() : () -> ()
    %cst_37 = arith.constant 1.250000e-01 : f32
    %91 = vector.broadcast %cst_37 : f32 to vector<16x8x8xf32>
    %92 = arith.mulf %90, %91 : vector<16x8x8xf32>
    %93 = vector.shape_cast %19 : vector<8x8xf32> to vector<1x8x8xf32>
    %94 = vector.broadcast %93 : vector<1x8x8xf32> to vector<16x8x8xf32>
    %95 = arith.addf %92, %94 : vector<16x8x8xf32>
    %cst_38 = arith.constant dense<0xFF800000> : vector<16x8xf32>
    %96 = vector.multi_reduction <maximumf>, %95, %cst_38 [2] : vector<16x8x8xf32> to vector<16x8xf32>
    %97 = vector.shape_cast %96 : vector<16x8xf32> to vector<16x8x1xf32>
    %98 = vector.broadcast %97 : vector<16x8x1xf32> to vector<16x8x8xf32>
    %99 = arith.subf %95, %98 : vector<16x8x8xf32>
    %100 = math.exp %99 : vector<16x8x8xf32>
    %cst_39 = arith.constant dense<0.000000e+00> : vector<16x8xf32>
    %101 = vector.multi_reduction <add>, %100, %cst_39 [2] : vector<16x8x8xf32> to vector<16x8xf32>
    %102 = vector.shape_cast %101 : vector<16x8xf32> to vector<16x8x1xf32>
    %103 = tpu.reciprocal %102 : vector<16x8x1xf32> -> vector<16x8x1xf32>
    %104 = vector.broadcast %103 : vector<16x8x1xf32> to vector<16x8x8xf32>
    %105 = arith.mulf %100, %104 : vector<16x8x8xf32>
    %106 = arith.truncf %105 : vector<16x8x8xf32> to vector<16x8x8xbf16>
    "tpu.trace_start"() <{level = 10 : i32, message = "nqk,nkd->nqd"}> : () -> ()
    %cst_40 = arith.constant dense<0.000000e+00> : vector<16x8x64xf32>
    %107 = tpu.matmul %106, %89, %cst_40 {dimension_numbers = #tpu.dot_dimension_numbers<[2], [1], [1], [2], [0, 0, 0, 1, 1, 2], [0], [0]>} : vector<16x8x8xbf16>, vector<16x8x64xbf16>, vector<16x8x64xf32> -> vector<16x8x64xf32>
    "tpu.trace_stop"() : () -> ()
    %108 = tpu.concatenate %83, %107 in 2 : vector<16x8x64xf32>, vector<16x8x64xf32> -> vector<16x8x128xf32>
    %109 = vector.shape_cast %108 : vector<16x8x128xf32> to vector<128x128xf32>
    %110 = arith.truncf %109 : vector<128x128xf32> to vector<128x128xbf16>
    %c0_41 = arith.constant 0 : index
    %c0_42 = arith.constant 0 : index
    %c0_43 = arith.constant 0 : index
    %111 = vector.load %arg9[%c0_41, %c0_42, %c0_43] : memref<2x128x128xbf16, #tpu.memory_space<vmem>>, vector<1x128x128xbf16>
    %112 = vector.shape_cast %111 : vector<1x128x128xbf16> to vector<128x128xbf16>
    %cst_44 = arith.constant dense<0.000000e+00> : vector<128x128xf32>
    %113 = tpu.matmul %110, %112, %cst_44 {dimension_numbers = #tpu.dot_dimension_numbers<[1], [0], [0], [1], [0, 0, 1, 1], [], []>} : vector<128x128xbf16>, vector<128x128xbf16>, vector<128x128xf32> -> vector<128x128xf32>
    %114 = arith.addf %13, %113 : vector<128x128xf32>
    %c0_45 = arith.constant 0 : index
    %c0_46 = arith.constant 0 : index
    %c0_47 = arith.constant 0 : index
    %115 = vector.load %arg10[%c0_45, %c0_46, %c0_47] : memref<2x1x128xf32, #tpu.memory_space<vmem>>, vector<1x1x128xf32>
    %116 = vector.shape_cast %115 : vector<1x1x128xf32> to vector<1x128xf32>
    %117 = vector.broadcast %116 : vector<1x128xf32> to vector<128x128xf32>
    %118 = arith.addf %114, %117 : vector<128x128xf32>
    %c0_48 = arith.constant 0 : index
    %c0_49 = arith.constant 0 : index
    %c0_50 = arith.constant 0 : index
    %119 = vector.load %arg11[%c0_48, %c0_49, %c0_50] : memref<2x1x128xf32, #tpu.memory_space<vmem>>, vector<1x1x128xf32>
    %120 = vector.shape_cast %119 : vector<1x1x128xf32> to vector<1x128xf32>
    %c0_51 = arith.constant 0 : index
    %c0_52 = arith.constant 0 : index
    %c0_53 = arith.constant 0 : index
    %121 = vector.load %arg12[%c0_51, %c0_52, %c0_53] : memref<2x1x128xf32, #tpu.memory_space<vmem>>, vector<1x1x128xf32>
    %122 = vector.shape_cast %121 : vector<1x1x128xf32> to vector<1x128xf32>
    %cst_54 = arith.constant dense<0.000000e+00> : vector<128xf32>
    %123 = vector.multi_reduction <add>, %118, %cst_54 [1] : vector<128x128xf32> to vector<128xf32>
    %124 = vector.shape_cast %123 : vector<128xf32> to vector<128x1xf32>
    %cst_55 = arith.constant 1.280000e+02 : f32
    %125 = vector.broadcast %cst_55 : f32 to vector<128x1xf32>
    %126 = arith.divf %124, %125 : vector<128x1xf32>
    %127 = vector.broadcast %126 : vector<128x1xf32> to vector<128x128xf32>
    %128 = arith.subf %118, %127 : vector<128x128xf32>
    %129 = arith.mulf %128, %128 : vector<128x128xf32>
    %cst_56 = arith.constant dense<0.000000e+00> : vector<128xf32>
    %130 = vector.multi_reduction <add>, %129, %cst_56 [1] : vector<128x128xf32> to vector<128xf32>
    %131 = vector.shape_cast %130 : vector<128xf32> to vector<128x1xf32>
    %cst_57 = arith.constant 1.280000e+02 : f32
    %132 = vector.broadcast %cst_57 : f32 to vector<128x1xf32>
    %133 = arith.divf %131, %132 : vector<128x1xf32>
    %134 = vector.broadcast %126 : vector<128x1xf32> to vector<128x128xf32>
    %135 = arith.subf %118, %134 : vector<128x128xf32>
    %cst_58 = arith.constant 9.99999997E-7 : f32
    %136 = vector.broadcast %cst_58 : f32 to vector<128x1xf32>
    %137 = arith.addf %133, %136 : vector<128x1xf32>
    %138 = math.rsqrt %137 : vector<128x1xf32>
    %139 = vector.broadcast %138 : vector<128x1xf32> to vector<128x128xf32>
    %140 = arith.mulf %135, %139 : vector<128x128xf32>
    %141 = vector.broadcast %120 : vector<1x128xf32> to vector<128x128xf32>
    %142 = arith.mulf %140, %141 : vector<128x128xf32>
    %143 = vector.broadcast %122 : vector<1x128xf32> to vector<128x128xf32>
    %144 = arith.addf %142, %143 : vector<128x128xf32>
    %145 = arith.truncf %144 : vector<128x128xf32> to vector<128x128xbf16>
    %c0_59 = arith.constant 0 : index
    %c0_60 = arith.constant 0 : index
    %c0_61 = arith.constant 0 : index
    %146 = vector.load %arg13[%c0_59, %c0_60, %c0_61] : memref<2x128x512xbf16, #tpu.memory_space<vmem>>, vector<1x128x512xbf16>
    %147 = vector.shape_cast %146 : vector<1x128x512xbf16> to vector<128x512xbf16>
    %cst_62 = arith.constant dense<0.000000e+00> : vector<128x512xf32>
    %148 = tpu.matmul %145, %147, %cst_62 {dimension_numbers = #tpu.dot_dimension_numbers<[1], [0], [0], [1], [0, 0, 1, 1], [], []>} : vector<128x128xbf16>, vector<128x512xbf16>, vector<128x512xf32> -> vector<128x512xf32>
    %c0_63 = arith.constant 0 : index
    %c0_64 = arith.constant 0 : index
    %c0_65 = arith.constant 0 : index
    %149 = vector.load %arg14[%c0_63, %c0_64, %c0_65] : memref<2x1x512xf32, #tpu.memory_space<vmem>>, vector<1x1x512xf32>
    %150 = vector.shape_cast %149 : vector<1x1x512xf32> to vector<1x512xf32>
    %151 = vector.broadcast %150 : vector<1x512xf32> to vector<128x512xf32>
    %152 = arith.addf %148, %151 : vector<128x512xf32>
    %153 = arith.mulf %152, %152 : vector<128x512xf32>
    %154 = arith.mulf %152, %153 : vector<128x512xf32>
    %cst_66 = arith.constant 4.471500e-02 : f32
    %155 = vector.broadcast %cst_66 : f32 to vector<128x512xf32>
    %156 = arith.mulf %155, %154 : vector<128x512xf32>
    %157 = arith.addf %152, %156 : vector<128x512xf32>
    %cst_67 = arith.constant 0.797884583 : f32
    %158 = vector.broadcast %cst_67 : f32 to vector<128x512xf32>
    %159 = arith.mulf %158, %157 : vector<128x512xf32>
    %160 = math.tanh %159 : vector<128x512xf32>
    %cst_68 = arith.constant 1.000000e+00 : f32
    %161 = vector.broadcast %cst_68 : f32 to vector<128x512xf32>
    %162 = arith.addf %161, %160 : vector<128x512xf32>
    %cst_69 = arith.constant 5.000000e-01 : f32
    %163 = vector.broadcast %cst_69 : f32 to vector<128x512xf32>
    %164 = arith.mulf %163, %162 : vector<128x512xf32>
    %165 = arith.mulf %152, %164 : vector<128x512xf32>
    %166 = arith.truncf %165 : vector<128x512xf32> to vector<128x512xbf16>
    %c0_70 = arith.constant 0 : index
    %c0_71 = arith.constant 0 : index
    %c0_72 = arith.constant 0 : index
    %167 = vector.load %arg15[%c0_70, %c0_71, %c0_72] : memref<2x512x128xbf16, #tpu.memory_space<vmem>>, vector<1x512x128xbf16>
    %168 = vector.shape_cast %167 : vector<1x512x128xbf16> to vector<512x128xbf16>
    %cst_73 = arith.constant dense<0.000000e+00> : vector<128x128xf32>
    %169 = tpu.matmul %166, %168, %cst_73 {dimension_numbers = #tpu.dot_dimension_numbers<[1], [0], [0], [1], [0, 0, 1, 1], [], []>} : vector<128x512xbf16>, vector<512x128xbf16>, vector<128x128xf32> -> vector<128x128xf32>
    %c0_74 = arith.constant 0 : index
    %c0_75 = arith.constant 0 : index
    %c0_76 = arith.constant 0 : index
    %170 = vector.load %arg16[%c0_74, %c0_75, %c0_76] : memref<2x1x128xf32, #tpu.memory_space<vmem>>, vector<1x1x128xf32>
    %171 = vector.shape_cast %170 : vector<1x1x128xf32> to vector<1x128xf32>
    %172 = vector.broadcast %171 : vector<1x128xf32> to vector<128x128xf32>
    %173 = arith.addf %169, %172 : vector<128x128xf32>
    %174 = arith.addf %118, %173 : vector<128x128xf32>
    %c1 = arith.constant 1 : index
    %c0_77 = arith.constant 0 : index
    %c0_78 = arith.constant 0 : index
    %175 = vector.load %arg5[%c1, %c0_77, %c0_78] : memref<2x1x128xf32, #tpu.memory_space<vmem>>, vector<1x1x128xf32>
    %176 = vector.shape_cast %175 : vector<1x1x128xf32> to vector<1x128xf32>
    %c1_79 = arith.constant 1 : index
    %c0_80 = arith.constant 0 : index
    %c0_81 = arith.constant 0 : index
    %177 = vector.load %arg6[%c1_79, %c0_80, %c0_81] : memref<2x1x128xf32, #tpu.memory_space<vmem>>, vector<1x1x128xf32>
    %178 = vector.shape_cast %177 : vector<1x1x128xf32> to vector<1x128xf32>
    %cst_82 = arith.constant dense<0.000000e+00> : vector<128xf32>
    %179 = vector.multi_reduction <add>, %174, %cst_82 [1] : vector<128x128xf32> to vector<128xf32>
    %180 = vector.shape_cast %179 : vector<128xf32> to vector<128x1xf32>
    %cst_83 = arith.constant 1.280000e+02 : f32
    %181 = vector.broadcast %cst_83 : f32 to vector<128x1xf32>
    %182 = arith.divf %180, %181 : vector<128x1xf32>
    %183 = vector.broadcast %182 : vector<128x1xf32> to vector<128x128xf32>
    %184 = arith.subf %174, %183 : vector<128x128xf32>
    %185 = arith.mulf %184, %184 : vector<128x128xf32>
    %cst_84 = arith.constant dense<0.000000e+00> : vector<128xf32>
    %186 = vector.multi_reduction <add>, %185, %cst_84 [1] : vector<128x128xf32> to vector<128xf32>
    %187 = vector.shape_cast %186 : vector<128xf32> to vector<128x1xf32>
    %cst_85 = arith.constant 1.280000e+02 : f32
    %188 = vector.broadcast %cst_85 : f32 to vector<128x1xf32>
    %189 = arith.divf %187, %188 : vector<128x1xf32>
    %190 = vector.broadcast %182 : vector<128x1xf32> to vector<128x128xf32>
    %191 = arith.subf %174, %190 : vector<128x128xf32>
    %cst_86 = arith.constant 9.99999997E-7 : f32
    %192 = vector.broadcast %cst_86 : f32 to vector<128x1xf32>
    %193 = arith.addf %189, %192 : vector<128x1xf32>
    %194 = math.rsqrt %193 : vector<128x1xf32>
    %195 = vector.broadcast %194 : vector<128x1xf32> to vector<128x128xf32>
    %196 = arith.mulf %191, %195 : vector<128x128xf32>
    %197 = vector.broadcast %176 : vector<1x128xf32> to vector<128x128xf32>
    %198 = arith.mulf %196, %197 : vector<128x128xf32>
    %199 = vector.broadcast %178 : vector<1x128xf32> to vector<128x128xf32>
    %200 = arith.addf %198, %199 : vector<128x128xf32>
    %201 = arith.truncf %200 : vector<128x128xf32> to vector<128x128xbf16>
    %c1_87 = arith.constant 1 : index
    %c0_88 = arith.constant 0 : index
    %c0_89 = arith.constant 0 : index
    %202 = vector.load %arg7[%c1_87, %c0_88, %c0_89] : memref<2x128x384xbf16, #tpu.memory_space<vmem>>, vector<1x128x384xbf16>
    %203 = vector.shape_cast %202 : vector<1x128x384xbf16> to vector<128x384xbf16>
    %cst_90 = arith.constant dense<0.000000e+00> : vector<128x384xf32>
    %204 = tpu.matmul %201, %203, %cst_90 {dimension_numbers = #tpu.dot_dimension_numbers<[1], [0], [0], [1], [0, 0, 1, 1], [], []>} : vector<128x128xbf16>, vector<128x384xbf16>, vector<128x384xf32> -> vector<128x384xf32>
    %c1_91 = arith.constant 1 : index
    %c0_92 = arith.constant 0 : index
    %c0_93 = arith.constant 0 : index
    %205 = vector.load %arg8[%c1_91, %c0_92, %c0_93] : memref<2x1x384xf32, #tpu.memory_space<vmem>>, vector<1x1x384xf32>
    %206 = vector.shape_cast %205 : vector<1x1x384xf32> to vector<1x384xf32>
    %207 = vector.broadcast %206 : vector<1x384xf32> to vector<128x384xf32>
    %208 = arith.addf %204, %207 : vector<128x384xf32>
    %209 = vector.extract_strided_slice %208 {offsets = [0, 0], sizes = [128, 128], strides = [1, 1]} : vector<128x384xf32> to vector<128x128xf32>
    %210 = vector.shape_cast %209 : vector<128x128xf32> to vector<16x8x128xf32>
    %211 = vector.extract_strided_slice %208 {offsets = [0, 128], sizes = [128, 128], strides = [1, 1]} : vector<128x384xf32> to vector<128x128xf32>
    %212 = vector.shape_cast %211 : vector<128x128xf32> to vector<16x8x128xf32>
    %213 = vector.extract_strided_slice %208 {offsets = [0, 256], sizes = [128, 128], strides = [1, 1]} : vector<128x384xf32> to vector<128x128xf32>
    %214 = vector.shape_cast %213 : vector<128x128xf32> to vector<16x8x128xf32>
    %215 = vector.extract_strided_slice %210 {offsets = [0, 0, 0], sizes = [16, 8, 64], strides = [1, 1, 1]} : vector<16x8x128xf32> to vector<16x8x64xf32>
    %216 = arith.truncf %215 : vector<16x8x64xf32> to vector<16x8x64xbf16>
    %217 = vector.extract_strided_slice %212 {offsets = [0, 0, 0], sizes = [16, 8, 64], strides = [1, 1, 1]} : vector<16x8x128xf32> to vector<16x8x64xf32>
    %218 = arith.truncf %217 : vector<16x8x64xf32> to vector<16x8x64xbf16>
    %219 = vector.extract_strided_slice %214 {offsets = [0, 0, 0], sizes = [16, 8, 64], strides = [1, 1, 1]} : vector<16x8x128xf32> to vector<16x8x64xf32>
    %220 = arith.truncf %219 : vector<16x8x64xf32> to vector<16x8x64xbf16>
    "tpu.trace_start"() <{level = 10 : i32, message = "nqd,nkd->nqk"}> : () -> ()
    %cst_94 = arith.constant dense<0.000000e+00> : vector<16x8x8xf32>
    %221 = tpu.matmul %216, %218, %cst_94 {dimension_numbers = #tpu.dot_dimension_numbers<[2], [2], [1], [1], [0, 0, 0, 1, 1, 1], [0], [0]>} : vector<16x8x64xbf16>, vector<16x8x64xbf16>, vector<16x8x8xf32> -> vector<16x8x8xf32>
    "tpu.trace_stop"() : () -> ()
    %cst_95 = arith.constant 1.250000e-01 : f32
    %222 = vector.broadcast %cst_95 : f32 to vector<16x8x8xf32>
    %223 = arith.mulf %221, %222 : vector<16x8x8xf32>
    %224 = vector.shape_cast %19 : vector<8x8xf32> to vector<1x8x8xf32>
    %225 = vector.broadcast %224 : vector<1x8x8xf32> to vector<16x8x8xf32>
    %226 = arith.addf %223, %225 : vector<16x8x8xf32>
    %cst_96 = arith.constant dense<0xFF800000> : vector<16x8xf32>
    %227 = vector.multi_reduction <maximumf>, %226, %cst_96 [2] : vector<16x8x8xf32> to vector<16x8xf32>
    %228 = vector.shape_cast %227 : vector<16x8xf32> to vector<16x8x1xf32>
    %229 = vector.broadcast %228 : vector<16x8x1xf32> to vector<16x8x8xf32>
    %230 = arith.subf %226, %229 : vector<16x8x8xf32>
    %231 = math.exp %230 : vector<16x8x8xf32>
    %cst_97 = arith.constant dense<0.000000e+00> : vector<16x8xf32>
    %232 = vector.multi_reduction <add>, %231, %cst_97 [2] : vector<16x8x8xf32> to vector<16x8xf32>
    %233 = vector.shape_cast %232 : vector<16x8xf32> to vector<16x8x1xf32>
    %234 = tpu.reciprocal %233 : vector<16x8x1xf32> -> vector<16x8x1xf32>
    %235 = vector.broadcast %234 : vector<16x8x1xf32> to vector<16x8x8xf32>
    %236 = arith.mulf %231, %235 : vector<16x8x8xf32>
    %237 = arith.truncf %236 : vector<16x8x8xf32> to vector<16x8x8xbf16>
    "tpu.trace_start"() <{level = 10 : i32, message = "nqk,nkd->nqd"}> : () -> ()
    %cst_98 = arith.constant dense<0.000000e+00> : vector<16x8x64xf32>
    %238 = tpu.matmul %237, %220, %cst_98 {dimension_numbers = #tpu.dot_dimension_numbers<[2], [1], [1], [2], [0, 0, 0, 1, 1, 2], [0], [0]>} : vector<16x8x8xbf16>, vector<16x8x64xbf16>, vector<16x8x64xf32> -> vector<16x8x64xf32>
    "tpu.trace_stop"() : () -> ()
    %239 = vector.extract_strided_slice %210 {offsets = [0, 0, 64], sizes = [16, 8, 64], strides = [1, 1, 1]} : vector<16x8x128xf32> to vector<16x8x64xf32>
    %240 = arith.truncf %239 : vector<16x8x64xf32> to vector<16x8x64xbf16>
    %241 = vector.extract_strided_slice %212 {offsets = [0, 0, 64], sizes = [16, 8, 64], strides = [1, 1, 1]} : vector<16x8x128xf32> to vector<16x8x64xf32>
    %242 = arith.truncf %241 : vector<16x8x64xf32> to vector<16x8x64xbf16>
    %243 = vector.extract_strided_slice %214 {offsets = [0, 0, 64], sizes = [16, 8, 64], strides = [1, 1, 1]} : vector<16x8x128xf32> to vector<16x8x64xf32>
    %244 = arith.truncf %243 : vector<16x8x64xf32> to vector<16x8x64xbf16>
    "tpu.trace_start"() <{level = 10 : i32, message = "nqd,nkd->nqk"}> : () -> ()
    %cst_99 = arith.constant dense<0.000000e+00> : vector<16x8x8xf32>
    %245 = tpu.matmul %240, %242, %cst_99 {dimension_numbers = #tpu.dot_dimension_numbers<[2], [2], [1], [1], [0, 0, 0, 1, 1, 1], [0], [0]>} : vector<16x8x64xbf16>, vector<16x8x64xbf16>, vector<16x8x8xf32> -> vector<16x8x8xf32>
    "tpu.trace_stop"() : () -> ()
    %cst_100 = arith.constant 1.250000e-01 : f32
    %246 = vector.broadcast %cst_100 : f32 to vector<16x8x8xf32>
    %247 = arith.mulf %245, %246 : vector<16x8x8xf32>
    %248 = vector.shape_cast %19 : vector<8x8xf32> to vector<1x8x8xf32>
    %249 = vector.broadcast %248 : vector<1x8x8xf32> to vector<16x8x8xf32>
    %250 = arith.addf %247, %249 : vector<16x8x8xf32>
    %cst_101 = arith.constant dense<0xFF800000> : vector<16x8xf32>
    %251 = vector.multi_reduction <maximumf>, %250, %cst_101 [2] : vector<16x8x8xf32> to vector<16x8xf32>
    %252 = vector.shape_cast %251 : vector<16x8xf32> to vector<16x8x1xf32>
    %253 = vector.broadcast %252 : vector<16x8x1xf32> to vector<16x8x8xf32>
    %254 = arith.subf %250, %253 : vector<16x8x8xf32>
    %255 = math.exp %254 : vector<16x8x8xf32>
    %cst_102 = arith.constant dense<0.000000e+00> : vector<16x8xf32>
    %256 = vector.multi_reduction <add>, %255, %cst_102 [2] : vector<16x8x8xf32> to vector<16x8xf32>
    %257 = vector.shape_cast %256 : vector<16x8xf32> to vector<16x8x1xf32>
    %258 = tpu.reciprocal %257 : vector<16x8x1xf32> -> vector<16x8x1xf32>
    %259 = vector.broadcast %258 : vector<16x8x1xf32> to vector<16x8x8xf32>
    %260 = arith.mulf %255, %259 : vector<16x8x8xf32>
    %261 = arith.truncf %260 : vector<16x8x8xf32> to vector<16x8x8xbf16>
    "tpu.trace_start"() <{level = 10 : i32, message = "nqk,nkd->nqd"}> : () -> ()
    %cst_103 = arith.constant dense<0.000000e+00> : vector<16x8x64xf32>
    %262 = tpu.matmul %261, %244, %cst_103 {dimension_numbers = #tpu.dot_dimension_numbers<[2], [1], [1], [2], [0, 0, 0, 1, 1, 2], [0], [0]>} : vector<16x8x8xbf16>, vector<16x8x64xbf16>, vector<16x8x64xf32> -> vector<16x8x64xf32>
    "tpu.trace_stop"() : () -> ()
    %263 = tpu.concatenate %238, %262 in 2 : vector<16x8x64xf32>, vector<16x8x64xf32> -> vector<16x8x128xf32>
    %264 = vector.shape_cast %263 : vector<16x8x128xf32> to vector<128x128xf32>
    %265 = arith.truncf %264 : vector<128x128xf32> to vector<128x128xbf16>
    %c1_104 = arith.constant 1 : index
    %c0_105 = arith.constant 0 : index
    %c0_106 = arith.constant 0 : index
    %266 = vector.load %arg9[%c1_104, %c0_105, %c0_106] : memref<2x128x128xbf16, #tpu.memory_space<vmem>>, vector<1x128x128xbf16>
    %267 = vector.shape_cast %266 : vector<1x128x128xbf16> to vector<128x128xbf16>
    %cst_107 = arith.constant dense<0.000000e+00> : vector<128x128xf32>
    %268 = tpu.matmul %265, %267, %cst_107 {dimension_numbers = #tpu.dot_dimension_numbers<[1], [0], [0], [1], [0, 0, 1, 1], [], []>} : vector<128x128xbf16>, vector<128x128xbf16>, vector<128x128xf32> -> vector<128x128xf32>
    %269 = arith.addf %174, %268 : vector<128x128xf32>
    %c1_108 = arith.constant 1 : index
    %c0_109 = arith.constant 0 : index
    %c0_110 = arith.constant 0 : index
    %270 = vector.load %arg10[%c1_108, %c0_109, %c0_110] : memref<2x1x128xf32, #tpu.memory_space<vmem>>, vector<1x1x128xf32>
    %271 = vector.shape_cast %270 : vector<1x1x128xf32> to vector<1x128xf32>
    %272 = vector.broadcast %271 : vector<1x128xf32> to vector<128x128xf32>
    %273 = arith.addf %269, %272 : vector<128x128xf32>
    %c1_111 = arith.constant 1 : index
    %c0_112 = arith.constant 0 : index
    %c0_113 = arith.constant 0 : index
    %274 = vector.load %arg11[%c1_111, %c0_112, %c0_113] : memref<2x1x128xf32, #tpu.memory_space<vmem>>, vector<1x1x128xf32>
    %275 = vector.shape_cast %274 : vector<1x1x128xf32> to vector<1x128xf32>
    %c1_114 = arith.constant 1 : index
    %c0_115 = arith.constant 0 : index
    %c0_116 = arith.constant 0 : index
    %276 = vector.load %arg12[%c1_114, %c0_115, %c0_116] : memref<2x1x128xf32, #tpu.memory_space<vmem>>, vector<1x1x128xf32>
    %277 = vector.shape_cast %276 : vector<1x1x128xf32> to vector<1x128xf32>
    %cst_117 = arith.constant dense<0.000000e+00> : vector<128xf32>
    %278 = vector.multi_reduction <add>, %273, %cst_117 [1] : vector<128x128xf32> to vector<128xf32>
    %279 = vector.shape_cast %278 : vector<128xf32> to vector<128x1xf32>
    %cst_118 = arith.constant 1.280000e+02 : f32
    %280 = vector.broadcast %cst_118 : f32 to vector<128x1xf32>
    %281 = arith.divf %279, %280 : vector<128x1xf32>
    %282 = vector.broadcast %281 : vector<128x1xf32> to vector<128x128xf32>
    %283 = arith.subf %273, %282 : vector<128x128xf32>
    %284 = arith.mulf %283, %283 : vector<128x128xf32>
    %cst_119 = arith.constant dense<0.000000e+00> : vector<128xf32>
    %285 = vector.multi_reduction <add>, %284, %cst_119 [1] : vector<128x128xf32> to vector<128xf32>
    %286 = vector.shape_cast %285 : vector<128xf32> to vector<128x1xf32>
    %cst_120 = arith.constant 1.280000e+02 : f32
    %287 = vector.broadcast %cst_120 : f32 to vector<128x1xf32>
    %288 = arith.divf %286, %287 : vector<128x1xf32>
    %289 = vector.broadcast %281 : vector<128x1xf32> to vector<128x128xf32>
    %290 = arith.subf %273, %289 : vector<128x128xf32>
    %cst_121 = arith.constant 9.99999997E-7 : f32
    %291 = vector.broadcast %cst_121 : f32 to vector<128x1xf32>
    %292 = arith.addf %288, %291 : vector<128x1xf32>
    %293 = math.rsqrt %292 : vector<128x1xf32>
    %294 = vector.broadcast %293 : vector<128x1xf32> to vector<128x128xf32>
    %295 = arith.mulf %290, %294 : vector<128x128xf32>
    %296 = vector.broadcast %275 : vector<1x128xf32> to vector<128x128xf32>
    %297 = arith.mulf %295, %296 : vector<128x128xf32>
    %298 = vector.broadcast %277 : vector<1x128xf32> to vector<128x128xf32>
    %299 = arith.addf %297, %298 : vector<128x128xf32>
    %300 = arith.truncf %299 : vector<128x128xf32> to vector<128x128xbf16>
    %c1_122 = arith.constant 1 : index
    %c0_123 = arith.constant 0 : index
    %c0_124 = arith.constant 0 : index
    %301 = vector.load %arg13[%c1_122, %c0_123, %c0_124] : memref<2x128x512xbf16, #tpu.memory_space<vmem>>, vector<1x128x512xbf16>
    %302 = vector.shape_cast %301 : vector<1x128x512xbf16> to vector<128x512xbf16>
    %cst_125 = arith.constant dense<0.000000e+00> : vector<128x512xf32>
    %303 = tpu.matmul %300, %302, %cst_125 {dimension_numbers = #tpu.dot_dimension_numbers<[1], [0], [0], [1], [0, 0, 1, 1], [], []>} : vector<128x128xbf16>, vector<128x512xbf16>, vector<128x512xf32> -> vector<128x512xf32>
    %c1_126 = arith.constant 1 : index
    %c0_127 = arith.constant 0 : index
    %c0_128 = arith.constant 0 : index
    %304 = vector.load %arg14[%c1_126, %c0_127, %c0_128] : memref<2x1x512xf32, #tpu.memory_space<vmem>>, vector<1x1x512xf32>
    %305 = vector.shape_cast %304 : vector<1x1x512xf32> to vector<1x512xf32>
    %306 = vector.broadcast %305 : vector<1x512xf32> to vector<128x512xf32>
    %307 = arith.addf %303, %306 : vector<128x512xf32>
    %308 = arith.mulf %307, %307 : vector<128x512xf32>
    %309 = arith.mulf %307, %308 : vector<128x512xf32>
    %cst_129 = arith.constant 4.471500e-02 : f32
    %310 = vector.broadcast %cst_129 : f32 to vector<128x512xf32>
    %311 = arith.mulf %310, %309 : vector<128x512xf32>
    %312 = arith.addf %307, %311 : vector<128x512xf32>
    %cst_130 = arith.constant 0.797884583 : f32
    %313 = vector.broadcast %cst_130 : f32 to vector<128x512xf32>
    %314 = arith.mulf %313, %312 : vector<128x512xf32>
    %315 = math.tanh %314 : vector<128x512xf32>
    %cst_131 = arith.constant 1.000000e+00 : f32
    %316 = vector.broadcast %cst_131 : f32 to vector<128x512xf32>
    %317 = arith.addf %316, %315 : vector<128x512xf32>
    %cst_132 = arith.constant 5.000000e-01 : f32
    %318 = vector.broadcast %cst_132 : f32 to vector<128x512xf32>
    %319 = arith.mulf %318, %317 : vector<128x512xf32>
    %320 = arith.mulf %307, %319 : vector<128x512xf32>
    %321 = arith.truncf %320 : vector<128x512xf32> to vector<128x512xbf16>
    %c1_133 = arith.constant 1 : index
    %c0_134 = arith.constant 0 : index
    %c0_135 = arith.constant 0 : index
    %322 = vector.load %arg15[%c1_133, %c0_134, %c0_135] : memref<2x512x128xbf16, #tpu.memory_space<vmem>>, vector<1x512x128xbf16>
    %323 = vector.shape_cast %322 : vector<1x512x128xbf16> to vector<512x128xbf16>
    %cst_136 = arith.constant dense<0.000000e+00> : vector<128x128xf32>
    %324 = tpu.matmul %321, %323, %cst_136 {dimension_numbers = #tpu.dot_dimension_numbers<[1], [0], [0], [1], [0, 0, 1, 1], [], []>} : vector<128x512xbf16>, vector<512x128xbf16>, vector<128x128xf32> -> vector<128x128xf32>
    %c1_137 = arith.constant 1 : index
    %c0_138 = arith.constant 0 : index
    %c0_139 = arith.constant 0 : index
    %325 = vector.load %arg16[%c1_137, %c0_138, %c0_139] : memref<2x1x128xf32, #tpu.memory_space<vmem>>, vector<1x1x128xf32>
    %326 = vector.shape_cast %325 : vector<1x1x128xf32> to vector<1x128xf32>
    %327 = vector.broadcast %326 : vector<1x128xf32> to vector<128x128xf32>
    %328 = arith.addf %324, %327 : vector<128x128xf32>
    %329 = arith.addf %273, %328 : vector<128x128xf32>
    %c0_140 = arith.constant 0 : index
    %c0_141 = arith.constant 0 : index
    %330 = vector.load %arg17[%c0_140, %c0_141] : memref<1x128xf32, #tpu.memory_space<vmem>>, vector<1x128xf32>
    %c0_142 = arith.constant 0 : index
    %c0_143 = arith.constant 0 : index
    %331 = vector.load %arg18[%c0_142, %c0_143] : memref<1x128xf32, #tpu.memory_space<vmem>>, vector<1x128xf32>
    %cst_144 = arith.constant dense<0.000000e+00> : vector<128xf32>
    %332 = vector.multi_reduction <add>, %329, %cst_144 [1] : vector<128x128xf32> to vector<128xf32>
    %333 = vector.shape_cast %332 : vector<128xf32> to vector<128x1xf32>
    %cst_145 = arith.constant 1.280000e+02 : f32
    %334 = vector.broadcast %cst_145 : f32 to vector<128x1xf32>
    %335 = arith.divf %333, %334 : vector<128x1xf32>
    %336 = vector.broadcast %335 : vector<128x1xf32> to vector<128x128xf32>
    %337 = arith.subf %329, %336 : vector<128x128xf32>
    %338 = arith.mulf %337, %337 : vector<128x128xf32>
    %cst_146 = arith.constant dense<0.000000e+00> : vector<128xf32>
    %339 = vector.multi_reduction <add>, %338, %cst_146 [1] : vector<128x128xf32> to vector<128xf32>
    %340 = vector.shape_cast %339 : vector<128xf32> to vector<128x1xf32>
    %cst_147 = arith.constant 1.280000e+02 : f32
    %341 = vector.broadcast %cst_147 : f32 to vector<128x1xf32>
    %342 = arith.divf %340, %341 : vector<128x1xf32>
    %343 = vector.broadcast %335 : vector<128x1xf32> to vector<128x128xf32>
    %344 = arith.subf %329, %343 : vector<128x128xf32>
    %cst_148 = arith.constant 9.99999997E-7 : f32
    %345 = vector.broadcast %cst_148 : f32 to vector<128x1xf32>
    %346 = arith.addf %342, %345 : vector<128x1xf32>
    %347 = math.rsqrt %346 : vector<128x1xf32>
    %348 = vector.broadcast %347 : vector<128x1xf32> to vector<128x128xf32>
    %349 = arith.mulf %344, %348 : vector<128x128xf32>
    %350 = vector.broadcast %330 : vector<1x128xf32> to vector<128x128xf32>
    %351 = arith.mulf %349, %350 : vector<128x128xf32>
    %352 = vector.broadcast %331 : vector<1x128xf32> to vector<128x128xf32>
    %353 = arith.addf %351, %352 : vector<128x128xf32>
    %354 = tpu.iota {dimensions = array<i32: 0>} : vector<64x128xi32>
    %c7_i32 = arith.constant 7 : i32
    %355 = vector.broadcast %c7_i32 : i32 to vector<64x128xi32>
    %356 = arith.andi %354, %355 : vector<64x128xi32>
    %c3_i32_149 = arith.constant 3 : i32
    %357 = vector.broadcast %c3_i32_149 : i32 to vector<64x128xi32>
    %358 = arith.cmpi slt, %356, %357 : vector<64x128xi32>
    %359 = arith.extui %358 : vector<64x128xi1> to vector<64x128xi32>
    %360 = arith.sitofp %359 : vector<64x128xi32> to vector<64x128xf32>
    %361 = vector.extract_strided_slice %353 {offsets = [0, 0], sizes = [64, 128], strides = [1, 1]} : vector<128x128xf32> to vector<64x128xf32>
    %362 = vector.extract_strided_slice %353 {offsets = [64, 0], sizes = [64, 128], strides = [1, 1]} : vector<128x128xf32> to vector<64x128xf32>
    %363 = arith.subf %361, %362 : vector<64x128xf32>
    %364 = arith.mulf %363, %360 : vector<64x128xf32>
    %365 = arith.mulf %364, %364 : vector<64x128xf32>
    %366 = vector.shape_cast %365 : vector<64x128xf32> to vector<1x64x128xf32>
    %cst_150 = arith.constant dense<0.000000e+00> : vector<1xf32>
    %367 = vector.multi_reduction <add>, %366, %cst_150 [1, 2] : vector<1x64x128xf32> to vector<1xf32>
    %368 = vector.shape_cast %367 : vector<1xf32> to vector<1x1x1xf32>
    %369 = vector.extract %368[0, 0, 0] : f32 from vector<1x1x1xf32>
    %cst_151 = arith.constant 3.25520843E-4 : f32
    %370 = arith.mulf %369, %cst_151 : f32
    %371 = tpu.iota {dimensions = array<i32: 1>} : vector<1x128xi32>
    %c0_i32 = arith.constant 0 : i32
    %372 = vector.broadcast %c0_i32 : i32 to vector<1x128xi32>
    %373 = arith.cmpi eq, %371, %372 : vector<1x128xi32>
    %cst_152 = arith.constant 0.000000e+00 : f32
    %374 = vector.broadcast %8 : f32 to vector<1x128xf32>
    %375 = vector.broadcast %cst_152 : f32 to vector<1x128xf32>
    %376 = arith.select %373, %374, %375 : vector<1x128xi1>, vector<1x128xf32>
    %c1_i32 = arith.constant 1 : i32
    %377 = vector.broadcast %c1_i32 : i32 to vector<1x128xi32>
    %378 = arith.cmpi eq, %371, %377 : vector<1x128xi32>
    %cst_153 = arith.constant 0.000000e+00 : f32
    %379 = vector.broadcast %370 : f32 to vector<1x128xf32>
    %380 = vector.broadcast %cst_153 : f32 to vector<1x128xf32>
    %381 = arith.select %378, %379, %380 : vector<1x128xi1>, vector<1x128xf32>
    %382 = arith.addf %376, %381 : vector<1x128xf32>
    %c0_154 = arith.constant 0 : index
    %c0_155 = arith.constant 0 : index
    %383 = vector.load %arg19[%c0_154, %c0_155] : memref<1x128xf32, #tpu.memory_space<vmem>>, vector<1x128xf32>
    tpu.vector_store %arg19[%c0_154, %c0_155], %382 {strides = array<i32>} : memref<1x128xf32, #tpu.memory_space<vmem>>, vector<1x128xf32>,
    return
  }
}

</mosaic_0001>

<llo_original>
// kernel: mul.20
$region0: #{mul.20}
  #allocation0 [shape = 's32[1]{0}', space=sflag, size = 0x4, scoped, tag = 'scoped memory for mul.20']
  %s0 = inlined_call_operand.vmem [shape: f32[768], index: 0, kind: input, shape index: {}]
  %s1 = inlined_call_operand.vmem [shape: f32[768], index: 1, kind: input, shape index: {}]
  %s2 = inlined_call_operand.vmem [shape: f32[768], index: 2, kind: output, shape index: {}]
  %v3 = vld [vmem:[%s0] sm:$0x3f]
  %v4 = vld [vmem:[%s1] sm:$0x3f]
  %5 = xla_tuple %v3, %v4
  %6 = xla_tuple %5
  %v7 = vmul.f32 %v3, %v4
  %8 = xla_tuple %v7
  %9 = vst [vmem:[%s2] sm:$0xff] %v7

// kernel: sub.7
$region0: #{sub.7}
  #allocation0 [shape = 's32[1]{0}', space=sflag, size = 0x4, scoped, tag = 'scoped memory for sub.7']
  %s0 = inlined_call_operand.vmem [shape: f32[128], index: 0, kind: input, shape index: {}]
  %s1 = inlined_call_operand.vmem [shape: f32[128], index: 1, kind: input, shape index: {}]
  %s2 = inlined_call_operand.vmem [shape: f32[128], index: 2, kind: output, shape index: {}]
  %v3 = vld [vmem:[%s0] sm:$0x1]
  %v4 = vld [vmem:[%s1] sm:$0x1]
  %5 = xla_tuple %v3, %v4
  %6 = xla_tuple %5
  %v7 = vsub.f32 %v3, %v4
  %8 = xla_tuple %v7
  %9 = vst [vmem:[%s2] sm:$0x1] %v7

// kernel: reconstruct_perceptual_loss.1
$region0: #{reconstruct_perceptual_loss.1}
  #allocation0 [shape = 'u32[]', space=smem, size = 0x4, offset = 0x4, fixed_abs, tag = 'smem constant byte address 0x4 - core index']
  #allocation1 [shape = 'u32[72,128]{1,0:T(1,128)}', space=vmem, size = 0x9000, scoped, tag = 'internal scratch']
  %s0 = inlined_call_operand.vmem [shape: f32[8,3072], index: 0, kind: input, shape index: {}]
  %s1 = inlined_call_operand.vmem [shape: f32[8,3072], index: 1, kind: input, shape index: {}]
  %s2 = inlined_call_operand.vmem [shape: bf16[128,768], index: 2, kind: input, shape index: {}]
  %s3 = inlined_call_operand.vmem [shape: f32[128,128], index: 3, kind: input, shape index: {}]
  %s4 = inlined_call_operand.vmem [shape: bf16[768,128], index: 4, kind: input, shape index: {}]
  %s5 = inlined_call_operand.vmem [shape: f32[2,1,128], index: 5, kind: input, shape index: {}]
  %s6 = inlined_call_operand.vmem [shape: f32[2,1,128], index: 6, kind: input, shape index: {}]
  %s7 = inlined_call_operand.vmem [shape: bf16[2,128,384], index: 7, kind: input, shape index: {}]
  %s8 = inlined_call_operand.vmem [shape: f32[2,1,384], index: 8, kind: input, shape index: {}]
  %s9 = inlined_call_operand.vmem [shape: bf16[2,128,128], index: 9, kind: input, shape index: {}]
  %s10 = inlined_call_operand.vmem [shape: f32[2,1,128], index: 10, kind: input, shape index: {}]
  %s11 = inlined_call_operand.vmem [shape: f32[2,1,128], index: 11, kind: input, shape index: {}]
  %s12 = inlined_call_operand.vmem [shape: f32[2,1,128], index: 12, kind: input, shape index: {}]
  %s13 = inlined_call_operand.vmem [shape: bf16[2,128,512], index: 13, kind: input, shape index: {}]
  %s14 = inlined_call_operand.vmem [shape: f32[2,1,512], index: 14, kind: input, shape index: {}]
  %s15 = inlined_call_operand.vmem [shape: bf16[2,512,128], index: 15, kind: input, shape index: {}]
  %s16 = inlined_call_operand.vmem [shape: f32[2,1,128], index: 16, kind: input, shape index: {}]
  %s17 = inlined_call_operand.vmem [shape: f32[1,128], index: 17, kind: input, shape index: {}]
  %s18 = inlined_call_operand.vmem [shape: f32[1,128], index: 18, kind: input, shape index: {}]
  %s19 = inlined_call_operand.vmem [shape: f32[1,128], index: 19, kind: output, shape index: {}]
  %s20 = sld [smem:[#allocation0]]
  $region86: #{reconstruct_perceptual_loss.1} parent=0
    _
  %s22 = ssub.s32 1, %s20
  %s23 = scalar_select 0, %s22, %s20
  // Predicated region
  $region2: #{reconstruct_perceptual_loss.1} parent=0 // pred_check
    _
  $region3: #{reconstruct_perceptual_loss.1} parent=0 // pred_check_branch
    %25 = sbr.rel (0) target = $region5
  $region4: #{reconstruct_perceptual_loss.1} parent=0 // pred_region
    _
  $region5: #{reconstruct_perceptual_loss.1} parent=0 // pred_fallthru
    _
  // Predicated region
  $region6: #{reconstruct_perceptual_loss.1} parent=0 // pred_check
    _
  $region7: #{reconstruct_perceptual_loss.1} parent=0 // pred_check_branch
    %27 = sbr.rel (0) target = $region9
  $region8: #{reconstruct_perceptual_loss.1} parent=0 // pred_region
    _
  $region9: #{reconstruct_perceptual_loss.1} parent=0 // pred_fallthru
    _
  // Predicated region
  $region10: #{reconstruct_perceptual_loss.1} parent=0 // pred_check
    _
  $region11: #{reconstruct_perceptual_loss.1} parent=0 // pred_check_branch
    %29 = sbr.rel (0) target = $region13
  $region12: #{reconstruct_perceptual_loss.1} parent=0 // pred_region
    _
  $region13: #{reconstruct_perceptual_loss.1} parent=0 // pred_fallthru
    _
  // Predicated region
  $region14: #{reconstruct_perceptual_loss.1} parent=0 // pred_check
    _
  $region15: #{reconstruct_perceptual_loss.1} parent=0 // pred_check_branch
    %31 = sbr.rel (0) target = $region17
  $region16: #{reconstruct_perceptual_loss.1} parent=0 // pred_region
    _
  $region17: #{reconstruct_perceptual_loss.1} parent=0 // pred_fallthru
    _
  // Predicated region
  $region18: #{reconstruct_perceptual_loss.1} parent=0 // pred_check
    _
  $region19: #{reconstruct_perceptual_loss.1} parent=0 // pred_check_branch
    %33 = sbr.rel (0) target = $region21
  $region20: #{reconstruct_perceptual_loss.1} parent=0 // pred_region
    _
  $region21: #{reconstruct_perceptual_loss.1} parent=0 // pred_fallthru
    _
  // Predicated region
  $region22: #{reconstruct_perceptual_loss.1} parent=0 // pred_check
    _
  $region23: #{reconstruct_perceptual_loss.1} parent=0 // pred_check_branch
    %35 = sbr.rel (0) target = $region25
  $region24: #{reconstruct_perceptual_loss.1} parent=0 // pred_region
    _
  $region25: #{reconstruct_perceptual_loss.1} parent=0 // pred_fallthru
    _
  // Predicated region
  $region26: #{reconstruct_perceptual_loss.1} parent=0 // pred_check
    _
  $region27: #{reconstruct_perceptual_loss.1} parent=0 // pred_check_branch
    %37 = sbr.rel (0) target = $region29
  $region28: #{reconstruct_perceptual_loss.1} parent=0 // pred_region
    _
  $region29: #{reconstruct_perceptual_loss.1} parent=0 // pred_fallthru
    _
  // Predicated region
  $region30: #{reconstruct_perceptual_loss.1} parent=0 // pred_check
    _
  $region31: #{reconstruct_perceptual_loss.1} parent=0 // pred_check_branch
    %39 = sbr.rel (0) target = $region33
  $region32: #{reconstruct_perceptual_loss.1} parent=0 // pred_region
    _
  $region33: #{reconstruct_perceptual_loss.1} parent=0 // pred_fallthru
    _
  // Predicated region
  $region34: #{reconstruct_perceptual_loss.1} parent=0 // pred_check
    _
  $region35: #{reconstruct_perceptual_loss.1} parent=0 // pred_check_branch
    %41 = sbr.rel (0) target = $region37
  $region36: #{reconstruct_perceptual_loss.1} parent=0 // pred_region
    _
  $region37: #{reconstruct_perceptual_loss.1} parent=0 // pred_fallthru
    _
  // Predicated region
  $region38: #{reconstruct_perceptual_loss.1} parent=0 // pred_check
    _
  $region39: #{reconstruct_perceptual_loss.1} parent=0 // pred_check_branch
    %43 = sbr.rel (0) target = $region41
  $region40: #{reconstruct_perceptual_loss.1} parent=0 // pred_region
    _
  $region41: #{reconstruct_perceptual_loss.1} parent=0 // pred_fallthru
    _
  // Predicated region
  $region42: #{reconstruct_perceptual_loss.1} parent=0 // pred_check
    _
  $region43: #{reconstruct_perceptual_loss.1} parent=0 // pred_check_branch
    %45 = sbr.rel (0) target = $region45
  $region44: #{reconstruct_perceptual_loss.1} parent=0 // pred_region
    _
  $region45: #{reconstruct_perceptual_loss.1} parent=0 // pred_fallthru
    _
  // Predicated region
  $region46: #{reconstruct_perceptual_loss.1} parent=0 // pred_check
    _
  $region47: #{reconstruct_perceptual_loss.1} parent=0 // pred_check_branch
    %47 = sbr.rel (0) target = $region49
  $region48: #{reconstruct_perceptual_loss.1} parent=0 // pred_region
    _
  $region49: #{reconstruct_perceptual_loss.1} parent=0 // pred_fallthru
    _
  // Predicated region
  $region50: #{reconstruct_perceptual_loss.1} parent=0 // pred_check
    _
  $region51: #{reconstruct_perceptual_loss.1} parent=0 // pred_check_branch
    %49 = sbr.rel (0) target = $region53
  $region52: #{reconstruct_perceptual_loss.1} parent=0 // pred_region
    _
  $region53: #{reconstruct_perceptual_loss.1} parent=0 // pred_fallthru
    _
  // Predicated region
  $region54: #{reconstruct_perceptual_loss.1} parent=0 // pred_check
    _
  $region55: #{reconstruct_perceptual_loss.1} parent=0 // pred_check_branch
    %51 = sbr.rel (0) target = $region57
  $region56: #{reconstruct_perceptual_loss.1} parent=0 // pred_region
    _
  $region57: #{reconstruct_perceptual_loss.1} parent=0 // pred_fallthru
    _
  // Predicated region
  $region58: #{reconstruct_perceptual_loss.1} parent=0 // pred_check
    _
  $region59: #{reconstruct_perceptual_loss.1} parent=0 // pred_check_branch
    %53 = sbr.rel (0) target = $region61
  $region60: #{reconstruct_perceptual_loss.1} parent=0 // pred_region
    _
  $region61: #{reconstruct_perceptual_loss.1} parent=0 // pred_fallthru
    _
  // Predicated region
  $region62: #{reconstruct_perceptual_loss.1} parent=0 // pred_check
    _
  $region63: #{reconstruct_perceptual_loss.1} parent=0 // pred_check_branch
    %55 = sbr.rel (0) target = $region65
  $region64: #{reconstruct_perceptual_loss.1} parent=0 // pred_region
    _
  $region65: #{reconstruct_perceptual_loss.1} parent=0 // pred_fallthru
    _
  // Predicated region
  $region66: #{reconstruct_perceptual_loss.1} parent=0 // pred_check
    _
  $region67: #{reconstruct_perceptual_loss.1} parent=0 // pred_check_branch
    %57 = sbr.rel (0) target = $region69
  $region68: #{reconstruct_perceptual_loss.1} parent=0 // pred_region
    _
  $region69: #{reconstruct_perceptual_loss.1} parent=0 // pred_fallthru
    _
  // Predicated region
  $region70: #{reconstruct_perceptual_loss.1} parent=0 // pred_check
    _
  $region71: #{reconstruct_perceptual_loss.1} parent=0 // pred_check_branch
    %59 = sbr.rel (0) target = $region73
  $region72: #{reconstruct_perceptual_loss.1} parent=0 // pred_region
    _
  $region73: #{reconstruct_perceptual_loss.1} parent=0 // pred_fallthru
    _
  // Predicated region
  $region74: #{reconstruct_perceptual_loss.1} parent=0 // pred_check
    _
  $region75: #{reconstruct_perceptual_loss.1} parent=0 // pred_check_branch
    %61 = sbr.rel (0) target = $region77
  $region76: #{reconstruct_perceptual_loss.1} parent=0 // pred_region
    _
  $region77: #{reconstruct_perceptual_loss.1} parent=0 // pred_fallthru
    _
  %v63 = vld [vmem:[%s0] sm:$0xff]
  %v64 = vld [vmem:[%s0 + $0x8] sm:$0xff]
  %v65 = vld [vmem:[%s0 + $0x10] sm:$0xff]
  %v66 = vld [vmem:[%s0 + $0x18] sm:$0xff]
  %v67 = vld [vmem:[%s0 + $0x20] sm:$0xff]
  %v68 = vld [vmem:[%s0 + $0x28] sm:$0xff]
  %v69 = vld [vmem:[%s0 + $0x30] sm:$0xff]
  %v70 = vld [vmem:[%s0 + $0x38] sm:$0xff]
  %v71 = vld [vmem:[%s0 + $0x40] sm:$0xff]
  %v72 = vld [vmem:[%s0 + $0x48] sm:$0xff]
  %v73 = vld [vmem:[%s0 + $0x50] sm:$0xff]
  %v74 = vld [vmem:[%s0 + $0x58] sm:$0xff]
  %v75 = vld [vmem:[%s0 + $0x60] sm:$0xff]
  %v76 = vld [vmem:[%s0 + $0x68] sm:$0xff]
  %v77 = vld [vmem:[%s0 + $0x70] sm:$0xff]
  %v78 = vld [vmem:[%s0 + $0x78] sm:$0xff]
  %v79 = vld [vmem:[%s0 + $0x80] sm:$0xff]
  %v80 = vld [vmem:[%s0 + $0x88] sm:$0xff]
  %v81 = vld [vmem:[%s0 + $0x90] sm:$0xff]
  %v82 = vld [vmem:[%s0 + $0x98] sm:$0xff]
  %v83 = vld [vmem:[%s0 + $0xa0] sm:$0xff]
  %v84 = vld [vmem:[%s0 + $0xa8] sm:$0xff]
  %v85 = vld [vmem:[%s0 + $0xb0] sm:$0xff]
  %v86 = vld [vmem:[%s0 + $0xb8] sm:$0xff]
  %v87 = vld [vmem:[%s1] sm:$0xff]
  %v88 = vld [vmem:[%s1 + $0x8] sm:$0xff]
  %v89 = vld [vmem:[%s1 + $0x10] sm:$0xff]
  %v90 = vld [vmem:[%s1 + $0x18] sm:$0xff]
  %v91 = vld [vmem:[%s1 + $0x20] sm:$0xff]
  %v92 = vld [vmem:[%s1 + $0x28] sm:$0xff]
  %v93 = vld [vmem:[%s1 + $0x30] sm:$0xff]
  %v94 = vld [vmem:[%s1 + $0x38] sm:$0xff]
  %v95 = vld [vmem:[%s1 + $0x40] sm:$0xff]
  %v96 = vld [vmem:[%s1 + $0x48] sm:$0xff]
  %v97 = vld [vmem:[%s1 + $0x50] sm:$0xff]
  %v98 = vld [vmem:[%s1 + $0x58] sm:$0xff]
  %v99 = vld [vmem:[%s1 + $0x60] sm:$0xff]
  %v100 = vld [vmem:[%s1 + $0x68] sm:$0xff]
  %v101 = vld [vmem:[%s1 + $0x70] sm:$0xff]
  %v102 = vld [vmem:[%s1 + $0x78] sm:$0xff]
  %v103 = vld [vmem:[%s1 + $0x80] sm:$0xff]
  %v104 = vld [vmem:[%s1 + $0x88] sm:$0xff]
  %v105 = vld [vmem:[%s1 + $0x90] sm:$0xff]
  %v106 = vld [vmem:[%s1 + $0x98] sm:$0xff]
  %v107 = vld [vmem:[%s1 + $0xa0] sm:$0xff]
  %v108 = vld [vmem:[%s1 + $0xa8] sm:$0xff]
  %v109 = vld [vmem:[%s1 + $0xb0] sm:$0xff]
  %v110 = vld [vmem:[%s1 + $0xb8] sm:$0xff]
  %v111 = vsub.f32 %v63, %v87
  %v112 = vsub.f32 %v64, %v88
  %v113 = vsub.f32 %v65, %v89
  %v114 = vsub.f32 %v66, %v90
  %v115 = vsub.f32 %v67, %v91
  %v116 = vsub.f32 %v68, %v92
  %v117 = vsub.f32 %v69, %v93
  %v118 = vsub.f32 %v70, %v94
  %v119 = vsub.f32 %v71, %v95
  %v120 = vsub.f32 %v72, %v96
  %v121 = vsub.f32 %v73, %v97
  %v122 = vsub.f32 %v74, %v98
  %v123 = vsub.f32 %v75, %v99
  %v124 = vsub.f32 %v76, %v100
  %v125 = vsub.f32 %v77, %v101
  %v126 = vsub.f32 %v78, %v102
  %v127 = vsub.f32 %v79, %v103
  %v128 = vsub.f32 %v80, %v104
  %v129 = vsub.f32 %v81, %v105
  %v130 = vsub.f32 %v82, %v106
  %v131 = vsub.f32 %v83, %v107
  %v132 = vsub.f32 %v84, %v108
  %v133 = vsub.f32 %v85, %v109
  %v134 = vsub.f32 %v86, %v110
  %v135 = vand.u32 2147483647, %v111
  %v136 = vand.u32 2147483647, %v112
  %v137 = vand.u32 2147483647, %v113
  %v138 = vand.u32 2147483647, %v114
  %v139 = vand.u32 2147483647, %v115
  %v140 = vand.u32 2147483647, %v116
  %v141 = vand.u32 2147483647, %v117
  %v142 = vand.u32 2147483647, %v118
  %v143 = vand.u32 2147483647, %v119
  %v144 = vand.u32 2147483647, %v120
  %v145 = vand.u32 2147483647, %v121
  %v146 = vand.u32 2147483647, %v122
  %v147 = vand.u32 2147483647, %v123
  %v148 = vand.u32 2147483647, %v124
  %v149 = vand.u32 2147483647, %v125
  %v150 = vand.u32 2147483647, %v126
  %v151 = vand.u32 2147483647, %v127
  %v152 = vand.u32 2147483647, %v128
  %v153 = vand.u32 2147483647, %v129
  %v154 = vand.u32 2147483647, %v130
  %v155 = vand.u32 2147483647, %v131
  %v156 = vand.u32 2147483647, %v132
  %v157 = vand.u32 2147483647, %v133
  %v158 = vand.u32 2147483647, %v134
  %v159 = vadd.f32 %v135, %v136
  %v160 = vadd.f32 %v159, %v137
  %v161 = vadd.f32 %v160, %v138
  %v162 = vadd.f32 %v161, %v139
  %v163 = vadd.f32 %v162, %v140
  %v164 = vadd.f32 %v163, %v141
  %v165 = vadd.f32 %v164, %v142
  %v166 = vadd.f32 %v165, %v143
  %v167 = vadd.f32 %v166, %v144
  %v168 = vadd.f32 %v167, %v145
  %v169 = vadd.f32 %v168, %v146
  %v170 = vadd.f32 %v169, %v147
  %v171 = vadd.f32 %v170, %v148
  %v172 = vadd.f32 %v171, %v149
  %v173 = vadd.f32 %v172, %v150
  %v174 = vadd.f32 %v173, %v151
  %v175 = vadd.f32 %v174, %v152
  %v176 = vadd.f32 %v175, %v153
  %v177 = vadd.f32 %v176, %v154
  %v178 = vadd.f32 %v177, %v155
  %v179 = vadd.f32 %v178, %v156
  %v180 = vadd.f32 %v179, %v157
  %v181 = vadd.f32 %v180, %v158
  %182 = vadd.xlane.f32.xlu0 %v181
  %v183 = vpop.xlane.xlu0 %182
  %v184 = vrot.slane %v183, 4
  %v185 = vadd.f32 %v183, %v184
  %v186 = vrot.slane %v185, 2
  %v187 = vadd.f32 %v185, %v186
  %v188 = vrot.slane %v187, 1
  %v189 = vadd.f32 %v187, %v188
  %s190 = vtos %v189
  %s191 = smul.f32 %s190, 4.0690105e-05
  %v192 = vld [vmem:[%s2] sm:$0xff]
  %v193 = vld [vmem:[%s2 + $0x8] sm:$0xff]
  %v194 = vld [vmem:[%s2 + $0x10] sm:$0xff]
  %v195 = vld [vmem:[%s2 + $0x18] sm:$0xff]
  %v196 = vld [vmem:[%s2 + $0x20] sm:$0xff]
  %v197 = vld [vmem:[%s2 + $0x28] sm:$0xff]
  %v198 = vld [vmem:[%s2 + $0x30] sm:$0xff]
  %v199 = vld [vmem:[%s2 + $0x38] sm:$0xff]
  %v200 = vld [vmem:[%s2 + $0x40] sm:$0xff]
  %v201 = vld [vmem:[%s2 + $0x48] sm:$0xff]
  %v202 = vld [vmem:[%s2 + $0x50] sm:$0xff]
  %v203 = vld [vmem:[%s2 + $0x58] sm:$0xff]
  %v204 = vld [vmem:[%s2 + $0x60] sm:$0xff]
  %v205 = vld [vmem:[%s2 + $0x68] sm:$0xff]
  %v206 = vld [vmem:[%s2 + $0x70] sm:$0xff]
  %v207 = vld [vmem:[%s2 + $0x78] sm:$0xff]
  %v208 = vld [vmem:[%s2 + $0x80] sm:$0xff]
  %v209 = vld [vmem:[%s2 + $0x88] sm:$0xff]
  %v210 = vld [vmem:[%s2 + $0x90] sm:$0xff]
  %v211 = vld [vmem:[%s2 + $0x98] sm:$0xff]
  %v212 = vld [vmem:[%s2 + $0xa0] sm:$0xff]
  %v213 = vld [vmem:[%s2 + $0xa8] sm:$0xff]
  %v214 = vld [vmem:[%s2 + $0xb0] sm:$0xff]
  %v215 = vld [vmem:[%s2 + $0xb8] sm:$0xff]
  %v216 = vld [vmem:[%s2 + $0xc0] sm:$0xff]
  %v217 = vld [vmem:[%s2 + $0xc8] sm:$0xff]
  %v218 = vld [vmem:[%s2 + $0xd0] sm:$0xff]
  %v219 = vld [vmem:[%s2 + $0xd8] sm:$0xff]
  %v220 = vld [vmem:[%s2 + $0xe0] sm:$0xff]
  %v221 = vld [vmem:[%s2 + $0xe8] sm:$0xff]
  %v222 = vld [vmem:[%s2 + $0xf0] sm:$0xff]
  %v223 = vld [vmem:[%s2 + $0xf8] sm:$0xff]
  %v224 = vld [vmem:[%s2 + $0x100] sm:$0xff]
  %v225 = vld [vmem:[%s2 + $0x108] sm:$0xff]
  %v226 = vld [vmem:[%s2 + $0x110] sm:$0xff]
  %v227 = vld [vmem:[%s2 + $0x118] sm:$0xff]
  %v228 = vld [vmem:[%s2 + $0x120] sm:$0xff]
  %v229 = vld [vmem:[%s2 + $0x128] sm:$0xff]
  %v230 = vld [vmem:[%s2 + $0x130] sm:$0xff]
  %v231 = vld [vmem:[%s2 + $0x138] sm:$0xff]
  %v232 = vld [vmem:[%s2 + $0x140] sm:$0xff]
  %v233 = vld [vmem:[%s2 + $0x148] sm:$0xff]
  %v234 = vld [vmem:[%s2 + $0x150] sm:$0xff]
  %v235 = vld [vmem:[%s2 + $0x158] sm:$0xff]
  %v236 = vld [vmem:[%s2 + $0x160] sm:$0xff]
  %v237 = vld [vmem:[%s2 + $0x168] sm:$0xff]
  %v238 = vld [vmem:[%s2 + $0x170] sm:$0xff]
  %v239 = vld [vmem:[%s2 + $0x178] sm:$0xff]
  %v240 = vld [vmem:[%s4] sm:$0xf]
  %v241 = vld [vmem:[%s4 + $0x4] sm:$0xf]
  %v242 = vld [vmem:[%s4 + $0x8] sm:$0xf]
  %v243 = vld [vmem:[%s4 + $0xc] sm:$0xf]
  %v244 = vld [vmem:[%s4 + $0x10] sm:$0xf]
  %v245 = vld [vmem:[%s4 + $0x14] sm:$0xf]
  %v246 = vld [vmem:[%s4 + $0x18] sm:$0xf]
  %v247 = vld [vmem:[%s4 + $0x1c] sm:$0xf]
  %v248 = vld [vmem:[%s4 + $0x20] sm:$0xf]
  %v249 = vld [vmem:[%s4 + $0x24] sm:$0xf]
  %v250 = vld [vmem:[%s4 + $0x28] sm:$0xf]
  %v251 = vld [vmem:[%s4 + $0x2c] sm:$0xf]
  %v252 = vld [vmem:[%s4 + $0x30] sm:$0xf]
  %v253 = vld [vmem:[%s4 + $0x34] sm:$0xf]
  %v254 = vld [vmem:[%s4 + $0x38] sm:$0xf]
  %v255 = vld [vmem:[%s4 + $0x3c] sm:$0xf]
  %v256 = vld [vmem:[%s4 + $0x40] sm:$0xf]
  %v257 = vld [vmem:[%s4 + $0x44] sm:$0xf]
  %v258 = vld [vmem:[%s4 + $0x48] sm:$0xf]
  %v259 = vld [vmem:[%s4 + $0x4c] sm:$0xf]
  %v260 = vld [vmem:[%s4 + $0x50] sm:$0xf]
  %v261 = vld [vmem:[%s4 + $0x54] sm:$0xf]
  %v262 = vld [vmem:[%s4 + $0x58] sm:$0xf]
  %v263 = vld [vmem:[%s4 + $0x5c] sm:$0xf]
  %v264 = vld [vmem:[%s4 + $0x60] sm:$0xf]
  %v265 = vld [vmem:[%s4 + $0x64] sm:$0xf]
  %v266 = vld [vmem:[%s4 + $0x68] sm:$0xf]
  %v267 = vld [vmem:[%s4 + $0x6c] sm:$0xf]
  %v268 = vld [vmem:[%s4 + $0x70] sm:$0xf]
  %v269 = vld [vmem:[%s4 + $0x74] sm:$0xf]
  %v270 = vld [vmem:[%s4 + $0x78] sm:$0xf]
  %v271 = vld [vmem:[%s4 + $0x7c] sm:$0xf]
  %v272 = vld [vmem:[%s4 + $0x80] sm:$0xf]
  %v273 = vld [vmem:[%s4 + $0x84] sm:$0xf]
  %v274 = vld [vmem:[%s4 + $0x88] sm:$0xf]
  %v275 = vld [vmem:[%s4 + $0x8c] sm:$0xf]
  %v276 = vld [vmem:[%s4 + $0x90] sm:$0xf]
  %v277 = vld [vmem:[%s4 + $0x94] sm:$0xf]
  %v278 = vld [vmem:[%s4 + $0x98] sm:$0xf]
  %v279 = vld [vmem:[%s4 + $0x9c] sm:$0xf]
  %v280 = vld [vmem:[%s4 + $0xa0] sm:$0xf]
  %v281 = vld [vmem:[%s4 + $0xa4] sm:$0xf]
  %v282 = vld [vmem:[%s4 + $0xa8] sm:$0xf]
  %v283 = vld [vmem:[%s4 + $0xac] sm:$0xf]
  %v284 = vld [vmem:[%s4 + $0xb0] sm:$0xf]
  %v285 = vld [vmem:[%s4 + $0xb4] sm:$0xf]
  %v286 = vld [vmem:[%s4 + $0xb8] sm:$0xf]
  %v287 = vld [vmem:[%s4 + $0xbc] sm:$0xf]
  %v288 = vld [vmem:[%s4 + $0xc0] sm:$0xf]
  %v289 = vld [vmem:[%s4 + $0xc4] sm:$0xf]
  %v290 = vld [vmem:[%s4 + $0xc8] sm:$0xf]
  %v291 = vld [vmem:[%s4 + $0xcc] sm:$0xf]
  %v292 = vld [vmem:[%s4 + $0xd0] sm:$0xf]
  %v293 = vld [vmem:[%s4 + $0xd4] sm:$0xf]
  %v294 = vld [vmem:[%s4 + $0xd8] sm:$0xf]
  %v295 = vld [vmem:[%s4 + $0xdc] sm:$0xf]
  %v296 = vld [vmem:[%s4 + $0xe0] sm:$0xf]
  %v297 = vld [vmem:[%s4 + $0xe4] sm:$0xf]
  %v298 = vld [vmem:[%s4 + $0xe8] sm:$0xf]
  %v299 = vld [vmem:[%s4 + $0xec] sm:$0xf]
  %v300 = vld [vmem:[%s4 + $0xf0] sm:$0xf]
  %v301 = vld [vmem:[%s4 + $0xf4] sm:$0xf]
  %v302 = vld [vmem:[%s4 + $0xf8] sm:$0xf]
  %v303 = vld [vmem:[%s4 + $0xfc] sm:$0xf]
  %v304 = vld [vmem:[%s4 + $0x100] sm:$0xf]
  %v305 = vld [vmem:[%s4 + $0x104] sm:$0xf]
  %v306 = vld [vmem:[%s4 + $0x108] sm:$0xf]
  %v307 = vld [vmem:[%s4 + $0x10c] sm:$0xf]
  %v308 = vld [vmem:[%s4 + $0x110] sm:$0xf]
  %v309 = vld [vmem:[%s4 + $0x114] sm:$0xf]
  %v310 = vld [vmem:[%s4 + $0x118] sm:$0xf]
  %v311 = vld [vmem:[%s4 + $0x11c] sm:$0xf]
  %v312 = vld [vmem:[%s4 + $0x120] sm:$0xf]
  %v313 = vld [vmem:[%s4 + $0x124] sm:$0xf]
  %v314 = vld [vmem:[%s4 + $0x128] sm:$0xf]
  %v315 = vld [vmem:[%s4 + $0x12c] sm:$0xf]
  %v316 = vld [vmem:[%s4 + $0x130] sm:$0xf]
  %v317 = vld [vmem:[%s4 + $0x134] sm:$0xf]
  %v318 = vld [vmem:[%s4 + $0x138] sm:$0xf]
  %v319 = vld [vmem:[%s4 + $0x13c] sm:$0xf]
  %v320 = vld [vmem:[%s4 + $0x140] sm:$0xf]
  %v321 = vld [vmem:[%s4 + $0x144] sm:$0xf]
  %v322 = vld [vmem:[%s4 + $0x148] sm:$0xf]
  %v323 = vld [vmem:[%s4 + $0x14c] sm:$0xf]
  %v324 = vld [vmem:[%s4 + $0x150] sm:$0xf]
  %v325 = vld [vmem:[%s4 + $0x154] sm:$0xf]
  %v326 = vld [vmem:[%s4 + $0x158] sm:$0xf]
  %v327 = vld [vmem:[%s4 + $0x15c] sm:$0xf]
  %v328 = vld [vmem:[%s4 + $0x160] sm:$0xf]
  %v329 = vld [vmem:[%s4 + $0x164] sm:$0xf]
  %v330 = vld [vmem:[%s4 + $0x168] sm:$0xf]
  %v331 = vld [vmem:[%s4 + $0x16c] sm:$0xf]
  %v332 = vld [vmem:[%s4 + $0x170] sm:$0xf]
  %v333 = vld [vmem:[%s4 + $0x174] sm:$0xf]
  %v334 = vld [vmem:[%s4 + $0x178] sm:$0xf]
  %v335 = vld [vmem:[%s4 + $0x17c] sm:$0xf]
  %v336 = vld [vmem:[%s3] sm:$0xff]
  %v337 = vld [vmem:[%s3 + $0x8] sm:$0xff]
  %v338 = vld [vmem:[%s3 + $0x10] sm:$0xff]
  %v339 = vld [vmem:[%s3 + $0x18] sm:$0xff]
  %v340 = vld [vmem:[%s3 + $0x20] sm:$0xff]
  %v341 = vld [vmem:[%s3 + $0x28] sm:$0xff]
  %v342 = vld [vmem:[%s3 + $0x30] sm:$0xff]
  %v343 = vld [vmem:[%s3 + $0x38] sm:$0xff]
  %v344 = vld [vmem:[%s3 + $0x40] sm:$0xff]
  %v345 = vld [vmem:[%s3 + $0x48] sm:$0xff]
  %v346 = vld [vmem:[%s3 + $0x50] sm:$0xff]
  %v347 = vld [vmem:[%s3 + $0x58] sm:$0xff]
  %v348 = vld [vmem:[%s3 + $0x60] sm:$0xff]
  %v349 = vld [vmem:[%s3 + $0x68] sm:$0xff]
  %v350 = vld [vmem:[%s3 + $0x70] sm:$0xff]
  %v351 = vld [vmem:[%s3 + $0x78] sm:$0xff]
  %v400 = vunpack.c.l.b16 %v192
  %v401 = vunpack.c.h.b16 %v192
  %v402 = vunpack.c.l.b16 %v193
  %v403 = vunpack.c.h.b16 %v193
  %v404 = vunpack.c.l.b16 %v194
  %v405 = vunpack.c.h.b16 %v194
  %v406 = vunpack.c.l.b16 %v195
  %v407 = vunpack.c.h.b16 %v195
  %v408 = vunpack.c.l.b16 %v196
  %v409 = vunpack.c.h.b16 %v196
  %v410 = vunpack.c.l.b16 %v197
  %v411 = vunpack.c.h.b16 %v197
  %v412 = vunpack.c.l.b16 %v198
  %v413 = vunpack.c.h.b16 %v198
  %v414 = vunpack.c.l.b16 %v199
  %v415 = vunpack.c.h.b16 %v199
  %v416 = vunpack.c.l.b16 %v200
  %v417 = vunpack.c.h.b16 %v200
  %v418 = vunpack.c.l.b16 %v201
  %v419 = vunpack.c.h.b16 %v201
  %v420 = vunpack.c.l.b16 %v202
  %v421 = vunpack.c.h.b16 %v202
  %v422 = vunpack.c.l.b16 %v203
  %v423 = vunpack.c.h.b16 %v203
  %v424 = vunpack.c.l.b16 %v204
  %v425 = vunpack.c.h.b16 %v204
  %v426 = vunpack.c.l.b16 %v205
  %v427 = vunpack.c.h.b16 %v205
  %v428 = vunpack.c.l.b16 %v206
  %v429 = vunpack.c.h.b16 %v206
  %v430 = vunpack.c.l.b16 %v207
  %v431 = vunpack.c.h.b16 %v207
  %v432 = vunpack.c.l.b16 %v208
  %v433 = vunpack.c.h.b16 %v208
  %v434 = vunpack.c.l.b16 %v209
  %v435 = vunpack.c.h.b16 %v209
  %v436 = vunpack.c.l.b16 %v210
  %v437 = vunpack.c.h.b16 %v210
  %v438 = vunpack.c.l.b16 %v211
  %v439 = vunpack.c.h.b16 %v211
  %v440 = vunpack.c.l.b16 %v212
  %v441 = vunpack.c.h.b16 %v212
  %v442 = vunpack.c.l.b16 %v213
  %v443 = vunpack.c.h.b16 %v213
  %v444 = vunpack.c.l.b16 %v214
  %v445 = vunpack.c.h.b16 %v214
  %v446 = vunpack.c.l.b16 %v215
  %v447 = vunpack.c.h.b16 %v215
  %v448 = vunpack.c.l.b16 %v216
  %v449 = vunpack.c.h.b16 %v216
  %v450 = vunpack.c.l.b16 %v217
  %v451 = vunpack.c.h.b16 %v217
  %v452 = vunpack.c.l.b16 %v218
  %v453 = vunpack.c.h.b16 %v218
  %v454 = vunpack.c.l.b16 %v219
  %v455 = vunpack.c.h.b16 %v219
  %v456 = vunpack.c.l.b16 %v220
  %v457 = vunpack.c.h.b16 %v220
  %v458 = vunpack.c.l.b16 %v221
  %v459 = vunpack.c.h.b16 %v221
  %v460 = vunpack.c.l.b16 %v222
  %v461 = vunpack.c.h.b16 %v222
  %v462 = vunpack.c.l.b16 %v223
  %v463 = vunpack.c.h.b16 %v223
  %v464 = vunpack.c.l.b16 %v224
  %v465 = vunpack.c.h.b16 %v224
  %v466 = vunpack.c.l.b16 %v225
  %v467 = vunpack.c.h.b16 %v225
  %v468 = vunpack.c.l.b16 %v226
  %v469 = vunpack.c.h.b16 %v226
  %v470 = vunpack.c.l.b16 %v227
  %v471 = vunpack.c.h.b16 %v227
  %v472 = vunpack.c.l.b16 %v228
  %v473 = vunpack.c.h.b16 %v228
  %v474 = vunpack.c.l.b16 %v229
  %v475 = vunpack.c.h.b16 %v229
  %v476 = vunpack.c.l.b16 %v230
  %v477 = vunpack.c.h.b16 %v230
  %v478 = vunpack.c.l.b16 %v231
  %v479 = vunpack.c.h.b16 %v231
  %v480 = vunpack.c.l.b16 %v232
  %v481 = vunpack.c.h.b16 %v232
  %v482 = vunpack.c.l.b16 %v233
  %v483 = vunpack.c.h.b16 %v233
  %v484 = vunpack.c.l.b16 %v234
  %v485 = vunpack.c.h.b16 %v234
  %v486 = vunpack.c.l.b16 %v235
  %v487 = vunpack.c.h.b16 %v235
  %v488 = vunpack.c.l.b16 %v236
  %v489 = vunpack.c.h.b16 %v236
  %v490 = vunpack.c.l.b16 %v237
  %v491 = vunpack.c.h.b16 %v237
  %v492 = vunpack.c.l.b16 %v238
  %v493 = vunpack.c.h.b16 %v238
  %v494 = vunpack.c.l.b16 %v239
  %v495 = vunpack.c.h.b16 %v239
  %v496 = vpack.c.b16 %v406, %v400
  %v497 = vpack.c.b16 %v407, %v401
  %v498 = vpack.c.b16 %v408, %v402
  %v499 = vpack.c.b16 %v409, %v403
  %v500 = vpack.c.b16 %v410, %v404
  %v501 = vpack.c.b16 %v411, %v405
  %v502 = vpack.c.b16 %v418, %v412
  %v503 = vpack.c.b16 %v419, %v413
  %v504 = vpack.c.b16 %v420, %v414
  %v505 = vpack.c.b16 %v421, %v415
  %v506 = vpack.c.b16 %v422, %v416
  %v507 = vpack.c.b16 %v423, %v417
  %v508 = vpack.c.b16 %v430, %v424
  %v509 = vpack.c.b16 %v431, %v425
  %v510 = vpack.c.b16 %v432, %v426
  %v511 = vpack.c.b16 %v433, %v427
  %v512 = vpack.c.b16 %v434, %v428
  %v513 = vpack.c.b16 %v435, %v429
  %v514 = vpack.c.b16 %v442, %v436
  %v515 = vpack.c.b16 %v443, %v437
  %v516 = vpack.c.b16 %v444, %v438
  %v517 = vpack.c.b16 %v445, %v439
  %v518 = vpack.c.b16 %v446, %v440
  %v519 = vpack.c.b16 %v447, %v441
  %v520 = vpack.c.b16 %v454, %v448
  %v521 = vpack.c.b16 %v455, %v449
  %v522 = vpack.c.b16 %v456, %v450
  %v523 = vpack.c.b16 %v457, %v451
  %v524 = vpack.c.b16 %v458, %v452
  %v525 = vpack.c.b16 %v459, %v453
  %v526 = vpack.c.b16 %v466, %v460
  %v527 = vpack.c.b16 %v467, %v461
  %v528 = vpack.c.b16 %v468, %v462
  %v529 = vpack.c.b16 %v469, %v463
  %v530 = vpack.c.b16 %v470, %v464
  %v531 = vpack.c.b16 %v471, %v465
  %v532 = vpack.c.b16 %v478, %v472
  %v533 = vpack.c.b16 %v479, %v473
  %v534 = vpack.c.b16 %v480, %v474
  %v535 = vpack.c.b16 %v481, %v475
  %v536 = vpack.c.b16 %v482, %v476
  %v537 = vpack.c.b16 %v483, %v477
  %v538 = vpack.c.b16 %v490, %v484
  %v539 = vpack.c.b16 %v491, %v485
  %v540 = vpack.c.b16 %v492, %v486
  %v541 = vpack.c.b16 %v493, %v487
  %v542 = vpack.c.b16 %v494, %v488
  %v543 = vpack.c.b16 %v495, %v489
  %v688 = vunpack.c.l.b16 %v240
  %v689 = vunpack.c.l.b16 %v241
  %v690 = vunpack.c.l.b16 %v242
  %v691 = vunpack.c.l.b16 %v243
  %v692 = vunpack.c.l.b16 %v244
  %v693 = vunpack.c.l.b16 %v245
  %v694 = vunpack.c.l.b16 %v246
  %v695 = vunpack.c.l.b16 %v247
  %v696 = vunpack.c.l.b16 %v248
  %v697 = vunpack.c.l.b16 %v249
  %v698 = vunpack.c.l.b16 %v250
  %v699 = vunpack.c.l.b16 %v251
  %v700 = vunpack.c.l.b16 %v252
  %v701 = vunpack.c.l.b16 %v253
  %v702 = vunpack.c.l.b16 %v254
  %v703 = vunpack.c.l.b16 %v255
  %v704 = vunpack.c.l.b16 %v256
  %v705 = vunpack.c.l.b16 %v257
  %v706 = vunpack.c.l.b16 %v258
  %v707 = vunpack.c.l.b16 %v259
  %v708 = vunpack.c.l.b16 %v260
  %v709 = vunpack.c.l.b16 %v261
  %v710 = vunpack.c.l.b16 %v262
  %v711 = vunpack.c.l.b16 %v263
  %v712 = vunpack.c.l.b16 %v264
  %v713 = vunpack.c.l.b16 %v265
  %v714 = vunpack.c.l.b16 %v266
  %v715 = vunpack.c.l.b16 %v267
  %v716 = vunpack.c.l.b16 %v268
  %v717 = vunpack.c.l.b16 %v269
  %v718 = vunpack.c.l.b16 %v270
  %v719 = vunpack.c.l.b16 %v271
  %v720 = vunpack.c.l.b16 %v272
  %v721 = vunpack.c.l.b16 %v273
  %v722 = vunpack.c.l.b16 %v274
  %v723 = vunpack.c.l.b16 %v275
  %v724 = vunpack.c.l.b16 %v276
  %v725 = vunpack.c.l.b16 %v277
  %v726 = vunpack.c.l.b16 %v278
  %v727 = vunpack.c.l.b16 %v279
  %v728 = vunpack.c.l.b16 %v280
  %v729 = vunpack.c.l.b16 %v281
  %v730 = vunpack.c.l.b16 %v282
  %v731 = vunpack.c.l.b16 %v283
  %v732 = vunpack.c.l.b16 %v284
  %v733 = vunpack.c.l.b16 %v285
  %v734 = vunpack.c.l.b16 %v286
  %v735 = vunpack.c.l.b16 %v287
  %v736 = vunpack.c.l.b16 %v288
  %v737 = vunpack.c.l.b16 %v289
  %v738 = vunpack.c.l.b16 %v290
  %v739 = vunpack.c.l.b16 %v291
  %v740 = vunpack.c.l.b16 %v292
  %v741 = vunpack.c.l.b16 %v293
  %v742 = vunpack.c.l.b16 %v294
  %v743 = vunpack.c.l.b16 %v295
  %v744 = vunpack.c.l.b16 %v296
  %v745 = vunpack.c.l.b16 %v297
  %v746 = vunpack.c.l.b16 %v298
  %v747 = vunpack.c.l.b16 %v299
  %v748 = vunpack.c.l.b16 %v300
  %v749 = vunpack.c.l.b16 %v301
  %v750 = vunpack.c.l.b16 %v302
  %v751 = vunpack.c.l.b16 %v303
  %v752 = vunpack.c.l.b16 %v304
  %v753 = vunpack.c.l.b16 %v305
  %v754 = vunpack.c.l.b16 %v306
  %v755 = vunpack.c.l.b16 %v307
  %v756 = vunpack.c.l.b16 %v308
  %v757 = vunpack.c.l.b16 %v309
  %v758 = vunpack.c.l.b16 %v310
  %v759 = vunpack.c.l.b16 %v311
  %v760 = vunpack.c.l.b16 %v312
  %v761 = vunpack.c.l.b16 %v313
  %v762 = vunpack.c.l.b16 %v314
  %v763 = vunpack.c.l.b16 %v315
  %v764 = vunpack.c.l.b16 %v316
  %v765 = vunpack.c.l.b16 %v317
  %v766 = vunpack.c.l.b16 %v318
  %v767 = vunpack.c.l.b16 %v319
  %v768 = vunpack.c.l.b16 %v320
  %v769 = vunpack.c.l.b16 %v321
  %v770 = vunpack.c.l.b16 %v322
  %v771 = vunpack.c.l.b16 %v323
  %v772 = vunpack.c.l.b16 %v324
  %v773 = vunpack.c.l.b16 %v325
  %v774 = vunpack.c.l.b16 %v326
  %v775 = vunpack.c.l.b16 %v327
  %v776 = vunpack.c.l.b16 %v328
  %v777 = vunpack.c.l.b16 %v329
  %v778 = vunpack.c.l.b16 %v330
  %v779 = vunpack.c.l.b16 %v331
  %v780 = vunpack.c.l.b16 %v332
  %v781 = vunpack.c.l.b16 %v333
  %v782 = vunpack.c.l.b16 %v334
  %v783 = vunpack.c.l.b16 %v335
  %v784 = vpack.c.b16 %v689, %v688
  %v785 = vpack.c.b16 %v691, %v690
  %v786 = vpack.c.b16 %v693, %v692
  %v787 = vpack.c.b16 %v695, %v694
  %v788 = vpack.c.b16 %v697, %v696
  %v789 = vpack.c.b16 %v699, %v698
  %v790 = vpack.c.b16 %v701, %v700
  %v791 = vpack.c.b16 %v703, %v702
  %v792 = vpack.c.b16 %v705, %v704
  %v793 = vpack.c.b16 %v707, %v706
  %v794 = vpack.c.b16 %v709, %v708
  %v795 = vpack.c.b16 %v711, %v710
  %v796 = vpack.c.b16 %v713, %v712
  %v797 = vpack.c.b16 %v715, %v714
  %v798 = vpack.c.b16 %v717, %v716
  %v799 = vpack.c.b16 %v719, %v718
  %v800 = vpack.c.b16 %v721, %v720
  %v801 = vpack.c.b16 %v723, %v722
  %v802 = vpack.c.b16 %v725, %v724
  %v803 = vpack.c.b16 %v727, %v726
  %v804 = vpack.c.b16 %v729, %v728
  %v805 = vpack.c.b16 %v731, %v730
  %v806 = vpack.c.b16 %v733, %v732
  %v807 = vpack.c.b16 %v735, %v734
  %v808 = vpack.c.b16 %v737, %v736
  %v809 = vpack.c.b16 %v739, %v738
  %v810 = vpack.c.b16 %v741, %v740
  %v811 = vpack.c.b16 %v743, %v742
  %v812 = vpack.c.b16 %v745, %v744
  %v813 = vpack.c.b16 %v747, %v746
  %v814 = vpack.c.b16 %v749, %v748
  %v815 = vpack.c.b16 %v751, %v750
  %v816 = vpack.c.b16 %v753, %v752
  %v817 = vpack.c.b16 %v755, %v754
  %v818 = vpack.c.b16 %v757, %v756
  %v819 = vpack.c.b16 %v759, %v758
  %v820 = vpack.c.b16 %v761, %v760
  %v821 = vpack.c.b16 %v763, %v762
  %v822 = vpack.c.b16 %v765, %v764
  %v823 = vpack.c.b16 %v767, %v766
  %v824 = vpack.c.b16 %v769, %v768
  %v825 = vpack.c.b16 %v771, %v770
  %v826 = vpack.c.b16 %v773, %v772
  %v827 = vpack.c.b16 %v775, %v774
  %v828 = vpack.c.b16 %v777, %v776
  %v829 = vpack.c.b16 %v779, %v778
  %v830 = vpack.c.b16 %v781, %v780
  %v831 = vpack.c.b16 %v783, %v782
  %880 = vmatpush.bf16.msra.mxu0 %v791
  %881 = vmatpush.bf16.msra.mxu0 %v790
  %882 = vmatpush.bf16.msra.mxu0 %v789
  %883 = vmatpush.bf16.msra.mxu0 %v788
  %884 = vmatpush.bf16.msra.mxu0 %v787
  %885 = vmatpush.bf16.msra.mxu0 %v786
  %886 = vmatpush.bf16.msra.mxu0 %v785
  %887 = vmatpush.bf16.msra.mxu0 %v784
  %888 = vmatmul.bf16.gmra.mxu0 %v496
  %v889 = vpop.f32.mrf.mxu0
  %v890 = vadd.f32 %v336, %v889
  %v891 = vpop.f32.mrf.mxu0
  %v892 = vadd.f32 %v337, %v891
  %893 = vmatmul.bf16.gmra.mxu0 %v502
  %v894 = vpop.f32.mrf.mxu0
  %v895 = vadd.f32 %v338, %v894
  %v896 = vpop.f32.mrf.mxu0
  %v897 = vadd.f32 %v339, %v896
  %898 = vmatmul.bf16.gmra.mxu0 %v508
  %v899 = vpop.f32.mrf.mxu0
  %v900 = vadd.f32 %v340, %v899
  %v901 = vpop.f32.mrf.mxu0
  %v902 = vadd.f32 %v341, %v901
  %903 = vmatmul.bf16.gmra.mxu0 %v514
  %v904 = vpop.f32.mrf.mxu0
  %v905 = vadd.f32 %v342, %v904
  %v906 = vpop.f32.mrf.mxu0
  %v907 = vadd.f32 %v343, %v906
  %908 = vmatmul.bf16.gmra.mxu0 %v520
  %v909 = vpop.f32.mrf.mxu0
  %v910 = vadd.f32 %v344, %v909
  %v911 = vpop.f32.mrf.mxu0
  %v912 = vadd.f32 %v345, %v911
  %913 = vmatmul.bf16.gmra.mxu0 %v526
  %v914 = vpop.f32.mrf.mxu0
  %v915 = vadd.f32 %v346, %v914
  %v916 = vpop.f32.mrf.mxu0
  %v917 = vadd.f32 %v347, %v916
  %918 = vmatmul.bf16.gmra.mxu0 %v532
  %v919 = vpop.f32.mrf.mxu0
  %v920 = vadd.f32 %v348, %v919
  %v921 = vpop.f32.mrf.mxu0
  %v922 = vadd.f32 %v349, %v921
  %923 = vmatmul.bf16.gmra.mxu0 %v538
  %v924 = vpop.f32.mrf.mxu0
  %v925 = vadd.f32 %v350, %v924
  %v926 = vpop.f32.mrf.mxu0
  %v927 = vadd.f32 %v351, %v926
  %928 = vdwg.mxu0
  %929 = vmatpush.bf16.msra.mxu0 %v799
  %930 = vmatpush.bf16.msra.mxu0 %v798
  %931 = vmatpush.bf16.msra.mxu0 %v797
  %932 = vmatpush.bf16.msra.mxu0 %v796
  %933 = vmatpush.bf16.msra.mxu0 %v795
  %934 = vmatpush.bf16.msra.mxu0 %v794
  %935 = vmatpush.bf16.msra.mxu0 %v793
  %936 = vmatpush.bf16.msra.mxu0 %v792
  %937 = vmatmul.bf16.gmra.mxu0 %v497
  %v938 = vpop.f32.mrf.mxu0
  %v939 = vadd.f32 %v890, %v938
  %v940 = vpop.f32.mrf.mxu0
  %v941 = vadd.f32 %v892, %v940
  %942 = vmatmul.bf16.gmra.mxu0 %v503
  %v943 = vpop.f32.mrf.mxu0
  %v944 = vadd.f32 %v895, %v943
  %v945 = vpop.f32.mrf.mxu0
  %v946 = vadd.f32 %v897, %v945
  %947 = vmatmul.bf16.gmra.mxu0 %v509
  %v948 = vpop.f32.mrf.mxu0
  %v949 = vadd.f32 %v900, %v948
  %v950 = vpop.f32.mrf.mxu0
  %v951 = vadd.f32 %v902, %v950
  %952 = vmatmul.bf16.gmra.mxu0 %v515
  %v953 = vpop.f32.mrf.mxu0
  %v954 = vadd.f32 %v905, %v953
  %v955 = vpop.f32.mrf.mxu0
  %v956 = vadd.f32 %v907, %v955
  %957 = vmatmul.bf16.gmra.mxu0 %v521
  %v958 = vpop.f32.mrf.mxu0
  %v959 = vadd.f32 %v910, %v958
  %v960 = vpop.f32.mrf.mxu0
  %v961 = vadd.f32 %v912, %v960
  %962 = vmatmul.bf16.gmra.mxu0 %v527
  %v963 = vpop.f32.mrf.mxu0
  %v964 = vadd.f32 %v915, %v963
  %v965 = vpop.f32.mrf.mxu0
  %v966 = vadd.f32 %v917, %v965
  %967 = vmatmul.bf16.gmra.mxu0 %v533
  %v968 = vpop.f32.mrf.mxu0
  %v969 = vadd.f32 %v920, %v968
  %v970 = vpop.f32.mrf.mxu0
  %v971 = vadd.f32 %v922, %v970
  %972 = vmatmul.bf16.gmra.mxu0 %v539
  %v973 = vpop.f32.mrf.mxu0
  %v974 = vadd.f32 %v925, %v973
  %v975 = vpop.f32.mrf.mxu0
  %v976 = vadd.f32 %v927, %v975
  %977 = vdwg.mxu0
  %978 = vmatpush.bf16.msra.mxu0 %v807
  %979 = vmatpush.bf16.msra.mxu0 %v806
  %980 = vmatpush.bf16.msra.mxu0 %v805
  %981 = vmatpush.bf16.msra.mxu0 %v804
  %982 = vmatpush.bf16.msra.mxu0 %v803
  %983 = vmatpush.bf16.msra.mxu0 %v802
  %984 = vmatpush.bf16.msra.mxu0 %v801
  %985 = vmatpush.bf16.msra.mxu0 %v800
  %986 = vmatmul.bf16.gmra.mxu0 %v498
  %v987 = vpop.f32.mrf.mxu0
  %v988 = vadd.f32 %v939, %v987
  %v989 = vpop.f32.mrf.mxu0
  %v990 = vadd.f32 %v941, %v989
  %991 = vmatmul.bf16.gmra.mxu0 %v504
  %v992 = vpop.f32.mrf.mxu0
  %v993 = vadd.f32 %v944, %v992
  %v994 = vpop.f32.mrf.mxu0
  %v995 = vadd.f32 %v946, %v994
  %996 = vmatmul.bf16.gmra.mxu0 %v510
  %v997 = vpop.f32.mrf.mxu0
  %v998 = vadd.f32 %v949, %v997
  %v999 = vpop.f32.mrf.mxu0
  %v1000 = vadd.f32 %v951, %v999
  %1001 = vmatmul.bf16.gmra.mxu0 %v516
  %v1002 = vpop.f32.mrf.mxu0
  %v1003 = vadd.f32 %v954, %v1002
  %v1004 = vpop.f32.mrf.mxu0
  %v1005 = vadd.f32 %v956, %v1004
  %1006 = vmatmul.bf16.gmra.mxu0 %v522
  %v1007 = vpop.f32.mrf.mxu0
  %v1008 = vadd.f32 %v959, %v1007
  %v1009 = vpop.f32.mrf.mxu0
  %v1010 = vadd.f32 %v961, %v1009
  %1011 = vmatmul.bf16.gmra.mxu0 %v528
  %v1012 = vpop.f32.mrf.mxu0
  %v1013 = vadd.f32 %v964, %v1012
  %v1014 = vpop.f32.mrf.mxu0
  %v1015 = vadd.f32 %v966, %v1014
  %1016 = vmatmul.bf16.gmra.mxu0 %v534
  %v1017 = vpop.f32.mrf.mxu0
  %v1018 = vadd.f32 %v969, %v1017
  %v1019 = vpop.f32.mrf.mxu0
  %v1020 = vadd.f32 %v971, %v1019
  %1021 = vmatmul.bf16.gmra.mxu0 %v540
  %v1022 = vpop.f32.mrf.mxu0
  %v1023 = vadd.f32 %v974, %v1022
  %v1024 = vpop.f32.mrf.mxu0
  %v1025 = vadd.f32 %v976, %v1024
  %1026 = vdwg.mxu0
  %1027 = vmatpush.bf16.msra.mxu0 %v815
  %1028 = vmatpush.bf16.msra.mxu0 %v814
  %1029 = vmatpush.bf16.msra.mxu0 %v813
  %1030 = vmatpush.bf16.msra.mxu0 %v812
  %1031 = vmatpush.bf16.msra.mxu0 %v811
  %1032 = vmatpush.bf16.msra.mxu0 %v810
  %1033 = vmatpush.bf16.msra.mxu0 %v809
  %1034 = vmatpush.bf16.msra.mxu0 %v808
  %1035 = vmatmul.bf16.gmra.mxu0 %v499
  %v1036 = vpop.f32.mrf.mxu0
  %v1037 = vadd.f32 %v988, %v1036
  %v1038 = vpop.f32.mrf.mxu0
  %v1039 = vadd.f32 %v990, %v1038
  %1040 = vmatmul.bf16.gmra.mxu0 %v505
  %v1041 = vpop.f32.mrf.mxu0
  %v1042 = vadd.f32 %v993, %v1041
  %v1043 = vpop.f32.mrf.mxu0
  %v1044 = vadd.f32 %v995, %v1043
  %1045 = vmatmul.bf16.gmra.mxu0 %v511
  %v1046 = vpop.f32.mrf.mxu0
  %v1047 = vadd.f32 %v998, %v1046
  %v1048 = vpop.f32.mrf.mxu0
  %v1049 = vadd.f32 %v1000, %v1048
  %1050 = vmatmul.bf16.gmra.mxu0 %v517
  %v1051 = vpop.f32.mrf.mxu0
  %v1052 = vadd.f32 %v1003, %v1051
  %v1053 = vpop.f32.mrf.mxu0
  %v1054 = vadd.f32 %v1005, %v1053
  %1055 = vmatmul.bf16.gmra.mxu0 %v523
  %v1056 = vpop.f32.mrf.mxu0
  %v1057 = vadd.f32 %v1008, %v1056
  %v1058 = vpop.f32.mrf.mxu0
  %v1059 = vadd.f32 %v1010, %v1058
  %1060 = vmatmul.bf16.gmra.mxu0 %v529
  %v1061 = vpop.f32.mrf.mxu0
  %v1062 = vadd.f32 %v1013, %v1061
  %v1063 = vpop.f32.mrf.mxu0
  %v1064 = vadd.f32 %v1015, %v1063
  %1065 = vmatmul.bf16.gmra.mxu0 %v535
  %v1066 = vpop.f32.mrf.mxu0
  %v1067 = vadd.f32 %v1018, %v1066
  %v1068 = vpop.f32.mrf.mxu0
  %v1069 = vadd.f32 %v1020, %v1068
  %1070 = vmatmul.bf16.gmra.mxu0 %v541
  %v1071 = vpop.f32.mrf.mxu0
  %v1072 = vadd.f32 %v1023, %v1071
  %v1073 = vpop.f32.mrf.mxu0
  %v1074 = vadd.f32 %v1025, %v1073
  %1075 = vdwg.mxu0
  %1076 = vmatpush.bf16.msra.mxu0 %v823
  %1077 = vmatpush.bf16.msra.mxu0 %v822
  %1078 = vmatpush.bf16.msra.mxu0 %v821
  %1079 = vmatpush.bf16.msra.mxu0 %v820
  %1080 = vmatpush.bf16.msra.mxu0 %v819
  %1081 = vmatpush.bf16.msra.mxu0 %v818
  %1082 = vmatpush.bf16.msra.mxu0 %v817
  %1083 = vmatpush.bf16.msra.mxu0 %v816
  %1084 = vmatmul.bf16.gmra.mxu0 %v500
  %v1085 = vpop.f32.mrf.mxu0
  %v1086 = vadd.f32 %v1037, %v1085
  %v1087 = vpop.f32.mrf.mxu0
  %v1088 = vadd.f32 %v1039, %v1087
  %1089 = vmatmul.bf16.gmra.mxu0 %v506
  %v1090 = vpop.f32.mrf.mxu0
  %v1091 = vadd.f32 %v1042, %v1090
  %v1092 = vpop.f32.mrf.mxu0
  %v1093 = vadd.f32 %v1044, %v1092
  %1094 = vmatmul.bf16.gmra.mxu0 %v512
  %v1095 = vpop.f32.mrf.mxu0
  %v1096 = vadd.f32 %v1047, %v1095
  %v1097 = vpop.f32.mrf.mxu0
  %v1098 = vadd.f32 %v1049, %v1097
  %1099 = vmatmul.bf16.gmra.mxu0 %v518
  %v1100 = vpop.f32.mrf.mxu0
  %v1101 = vadd.f32 %v1052, %v1100
  %v1102 = vpop.f32.mrf.mxu0
  %v1103 = vadd.f32 %v1054, %v1102
  %1104 = vmatmul.bf16.gmra.mxu0 %v524
  %v1105 = vpop.f32.mrf.mxu0
  %v1106 = vadd.f32 %v1057, %v1105
  %v1107 = vpop.f32.mrf.mxu0
  %v1108 = vadd.f32 %v1059, %v1107
  %1109 = vmatmul.bf16.gmra.mxu0 %v530
  %v1110 = vpop.f32.mrf.mxu0
  %v1111 = vadd.f32 %v1062, %v1110
  %v1112 = vpop.f32.mrf.mxu0
  %v1113 = vadd.f32 %v1064, %v1112
  %1114 = vmatmul.bf16.gmra.mxu0 %v536
  %v1115 = vpop.f32.mrf.mxu0
  %v1116 = vadd.f32 %v1067, %v1115
  %v1117 = vpop.f32.mrf.mxu0
  %v1118 = vadd.f32 %v1069, %v1117
  %1119 = vmatmul.bf16.gmra.mxu0 %v542
  %v1120 = vpop.f32.mrf.mxu0
  %v1121 = vadd.f32 %v1072, %v1120
  %v1122 = vpop.f32.mrf.mxu0
  %v1123 = vadd.f32 %v1074, %v1122
  %1124 = vdwg.mxu0
  %1125 = vmatpush.bf16.msra.mxu0 %v831
  %1126 = vmatpush.bf16.msra.mxu0 %v830
  %1127 = vmatpush.bf16.msra.mxu0 %v829
  %1128 = vmatpush.bf16.msra.mxu0 %v828
  %1129 = vmatpush.bf16.msra.mxu0 %v827
  %1130 = vmatpush.bf16.msra.mxu0 %v826
  %1131 = vmatpush.bf16.msra.mxu0 %v825
  %1132 = vmatpush.bf16.msra.mxu0 %v824
  %1133 = vmatmul.bf16.gmra.mxu0 %v501
  %v1134 = vpop.f32.mrf.mxu0
  %v1135 = vadd.f32 %v1086, %v1134
  %v1136 = vpop.f32.mrf.mxu0
  %v1137 = vadd.f32 %v1088, %v1136
  %1138 = vmatmul.bf16.gmra.mxu0 %v507
  %v1139 = vpop.f32.mrf.mxu0
  %v1140 = vadd.f32 %v1091, %v1139
  %v1141 = vpop.f32.mrf.mxu0
  %v1142 = vadd.f32 %v1093, %v1141
  %1143 = vmatmul.bf16.gmra.mxu0 %v513
  %v1144 = vpop.f32.mrf.mxu0
  %v1145 = vadd.f32 %v1096, %v1144
  %v1146 = vpop.f32.mrf.mxu0
  %v1147 = vadd.f32 %v1098, %v1146
  %1148 = vmatmul.bf16.gmra.mxu0 %v519
  %v1149 = vpop.f32.mrf.mxu0
  %v1150 = vadd.f32 %v1101, %v1149
  %v1151 = vpop.f32.mrf.mxu0
  %v1152 = vadd.f32 %v1103, %v1151
  %1153 = vmatmul.bf16.gmra.mxu0 %v525
  %v1154 = vpop.f32.mrf.mxu0
  %v1155 = vadd.f32 %v1106, %v1154
  %v1156 = vpop.f32.mrf.mxu0
  %v1157 = vadd.f32 %v1108, %v1156
  %1158 = vmatmul.bf16.gmra.mxu0 %v531
  %v1159 = vpop.f32.mrf.mxu0
  %v1160 = vadd.f32 %v1111, %v1159
  %v1161 = vpop.f32.mrf.mxu0
  %v1162 = vadd.f32 %v1113, %v1161
  %1163 = vmatmul.bf16.gmra.mxu0 %v537
  %v1164 = vpop.f32.mrf.mxu0
  %v1165 = vadd.f32 %v1116, %v1164
  %v1166 = vpop.f32.mrf.mxu0
  %v1167 = vadd.f32 %v1118, %v1166
  %1168 = vmatmul.bf16.gmra.mxu0 %v543
  %v1169 = vpop.f32.mrf.mxu0
  %v1170 = vadd.f32 %v1121, %v1169
  %v1171 = vpop.f32.mrf.mxu0
  %v1172 = vadd.f32 %v1123, %v1171
  %1173 = vdwg.mxu0
  %v1174 = vlaneseq
  %v1175 = vand.u32 %v1174, 127
  %vm1176 = vcmp.lt.s32.totalorder %v1175, 3
  %v1177 = vsel %vm1176, 0.0, -1e+30
  %v1178 = vld [vmem:[%s5] sm:$0x1]
  %v1179 = vld [vmem:[%s6] sm:$0x1]
  %1180 = vadd.xlane.f32.xlu0 %v1135
  %v1181 = vpop.xlane.xlu0 %1180
  %1182 = vadd.xlane.f32.xlu0 %v1137
  %v1183 = vpop.xlane.xlu0 %1182
  %1184 = vadd.xlane.f32.xlu0 %v1140
  %v1185 = vpop.xlane.xlu0 %1184
  %1186 = vadd.xlane.f32.xlu0 %v1142
  %v1187 = vpop.xlane.xlu0 %1186
  %1188 = vadd.xlane.f32.xlu0 %v1145
  %v1189 = vpop.xlane.xlu0 %1188
  %1190 = vadd.xlane.f32.xlu0 %v1147
  %v1191 = vpop.xlane.xlu0 %1190
  %1192 = vadd.xlane.f32.xlu0 %v1150
  %v1193 = vpop.xlane.xlu0 %1192
  %1194 = vadd.xlane.f32.xlu0 %v1152
  %v1195 = vpop.xlane.xlu0 %1194
  %1196 = vadd.xlane.f32.xlu0 %v1155
  %v1197 = vpop.xlane.xlu0 %1196
  %1198 = vadd.xlane.f32.xlu0 %v1157
  %v1199 = vpop.xlane.xlu0 %1198
  %1200 = vadd.xlane.f32.xlu0 %v1160
  %v1201 = vpop.xlane.xlu0 %1200
  %1202 = vadd.xlane.f32.xlu0 %v1162
  %v1203 = vpop.xlane.xlu0 %1202
  %1204 = vadd.xlane.f32.xlu0 %v1165
  %v1205 = vpop.xlane.xlu0 %1204
  %1206 = vadd.xlane.f32.xlu0 %v1167
  %v1207 = vpop.xlane.xlu0 %1206
  %1208 = vadd.xlane.f32.xlu0 %v1170
  %v1209 = vpop.xlane.xlu0 %1208
  %1210 = vadd.xlane.f32.xlu0 %v1172
  %v1211 = vpop.xlane.xlu0 %1210
  %v1212 = vrcp.pop 128.0
  %v1213 = vmul.f32 128.0, %v1212
  %v1214 = vsub.f32 1.0, %v1213
  %v1215 = vmul.f32 %v1212, %v1214
  %v1216 = vadd.f32 %v1212, %v1215
  %vm1217 = vweird.f32 %v1212
  %v1218 = vsel %vm1217, %v1212, %v1216
  %v1219 = vmul.f32 %v1181, %v1218
  %v1220 = vmul.f32 %v1183, %v1218
  %v1221 = vmul.f32 %v1185, %v1218
  %v1222 = vmul.f32 %v1187, %v1218
  %v1223 = vmul.f32 %v1189, %v1218
  %v1224 = vmul.f32 %v1191, %v1218
  %v1225 = vmul.f32 %v1193, %v1218
  %v1226 = vmul.f32 %v1195, %v1218
  %v1227 = vmul.f32 %v1197, %v1218
  %v1228 = vmul.f32 %v1199, %v1218
  %v1229 = vmul.f32 %v1201, %v1218
  %v1230 = vmul.f32 %v1203, %v1218
  %v1231 = vmul.f32 %v1205, %v1218
  %v1232 = vmul.f32 %v1207, %v1218
  %v1233 = vmul.f32 %v1209, %v1218
  %v1234 = vmul.f32 %v1211, %v1218
  %v1235 = vsub.f32 %v1135, %v1219
  %v1236 = vsub.f32 %v1137, %v1220
  %v1237 = vsub.f32 %v1140, %v1221
  %v1238 = vsub.f32 %v1142, %v1222
  %v1239 = vsub.f32 %v1145, %v1223
  %v1240 = vsub.f32 %v1147, %v1224
  %v1241 = vsub.f32 %v1150, %v1225
  %v1242 = vsub.f32 %v1152, %v1226
  %v1243 = vsub.f32 %v1155, %v1227
  %v1244 = vsub.f32 %v1157, %v1228
  %v1245 = vsub.f32 %v1160, %v1229
  %v1246 = vsub.f32 %v1162, %v1230
  %v1247 = vsub.f32 %v1165, %v1231
  %v1248 = vsub.f32 %v1167, %v1232
  %v1249 = vsub.f32 %v1170, %v1233
  %v1250 = vsub.f32 %v1172, %v1234
  %v1251 = vmul.f32 %v1235, %v1235
  %v1252 = vmul.f32 %v1236, %v1236
  %v1253 = vmul.f32 %v1237, %v1237
  %v1254 = vmul.f32 %v1238, %v1238
  %v1255 = vmul.f32 %v1239, %v1239
  %v1256 = vmul.f32 %v1240, %v1240
  %v1257 = vmul.f32 %v1241, %v1241
  %v1258 = vmul.f32 %v1242, %v1242
  %v1259 = vmul.f32 %v1243, %v1243
  %v1260 = vmul.f32 %v1244, %v1244
  %v1261 = vmul.f32 %v1245, %v1245
  %v1262 = vmul.f32 %v1246, %v1246
  %v1263 = vmul.f32 %v1247, %v1247
  %v1264 = vmul.f32 %v1248, %v1248
  %v1265 = vmul.f32 %v1249, %v1249
  %v1266 = vmul.f32 %v1250, %v1250
  %1267 = vadd.xlane.f32.xlu0 %v1251
  %v1268 = vpop.xlane.xlu0 %1267
  %1269 = vadd.xlane.f32.xlu0 %v1252
  %v1270 = vpop.xlane.xlu0 %1269
  %1271 = vadd.xlane.f32.xlu0 %v1253
  %v1272 = vpop.xlane.xlu0 %1271
  %1273 = vadd.xlane.f32.xlu0 %v1254
  %v1274 = vpop.xlane.xlu0 %1273
  %1275 = vadd.xlane.f32.xlu0 %v1255
  %v1276 = vpop.xlane.xlu0 %1275
  %1277 = vadd.xlane.f32.xlu0 %v1256
  %v1278 = vpop.xlane.xlu0 %1277
  %1279 = vadd.xlane.f32.xlu0 %v1257
  %v1280 = vpop.xlane.xlu0 %1279
  %1281 = vadd.xlane.f32.xlu0 %v1258
  %v1282 = vpop.xlane.xlu0 %1281
  %1283 = vadd.xlane.f32.xlu0 %v1259
  %v1284 = vpop.xlane.xlu0 %1283
  %1285 = vadd.xlane.f32.xlu0 %v1260
  %v1286 = vpop.xlane.xlu0 %1285
  %1287 = vadd.xlane.f32.xlu0 %v1261
  %v1288 = vpop.xlane.xlu0 %1287
  %1289 = vadd.xlane.f32.xlu0 %v1262
  %v1290 = vpop.xlane.xlu0 %1289
  %1291 = vadd.xlane.f32.xlu0 %v1263
  %v1292 = vpop.xlane.xlu0 %1291
  %1293 = vadd.xlane.f32.xlu0 %v1264
  %v1294 = vpop.xlane.xlu0 %1293
  %1295 = vadd.xlane.f32.xlu0 %v1265
  %v1296 = vpop.xlane.xlu0 %1295
  %1297 = vadd.xlane.f32.xlu0 %v1266
  %v1298 = vpop.xlane.xlu0 %1297
  %v1299 = vmul.f32 %v1268, %v1218
  %v1300 = vmul.f32 %v1270, %v1218
  %v1301 = vmul.f32 %v1272, %v1218
  %v1302 = vmul.f32 %v1274, %v1218
  %v1303 = vmul.f32 %v1276, %v1218
  %v1304 = vmul.f32 %v1278, %v1218
  %v1305 = vmul.f32 %v1280, %v1218
  %v1306 = vmul.f32 %v1282, %v1218
  %v1307 = vmul.f32 %v1284, %v1218
  %v1308 = vmul.f32 %v1286, %v1218
  %v1309 = vmul.f32 %v1288, %v1218
  %v1310 = vmul.f32 %v1290, %v1218
  %v1311 = vmul.f32 %v1292, %v1218
  %v1312 = vmul.f32 %v1294, %v1218
  %v1313 = vmul.f32 %v1296, %v1218
  %v1314 = vmul.f32 %v1298, %v1218
  %v1315 = vadd.f32 %v1299, 1e-06
  %v1316 = vadd.f32 %v1300, 1e-06
  %v1317 = vadd.f32 %v1301, 1e-06
  %v1318 = vadd.f32 %v1302, 1e-06
  %v1319 = vadd.f32 %v1303, 1e-06
  %v1320 = vadd.f32 %v1304, 1e-06
  %v1321 = vadd.f32 %v1305, 1e-06
  %v1322 = vadd.f32 %v1306, 1e-06
  %v1323 = vadd.f32 %v1307, 1e-06
  %v1324 = vadd.f32 %v1308, 1e-06
  %v1325 = vadd.f32 %v1309, 1e-06
  %v1326 = vadd.f32 %v1310, 1e-06
  %v1327 = vadd.f32 %v1311, 1e-06
  %v1328 = vadd.f32 %v1312, 1e-06
  %v1329 = vadd.f32 %v1313, 1e-06
  %v1330 = vadd.f32 %v1314, 1e-06
  %v1331 = vrsqrt.pop %v1315
  %v1332 = vmul.f32 %v1331, %v1315
  %v1333 = vmul.f32 %v1332, %v1331
  %v1334 = vmul.f32 0.5, %v1333
  %v1335 = vsub.f32 1.5, %v1334
  %v1336 = vmul.f32 %v1331, %v1335
  %vm1337 = vweird.f32 %v1315
  %vm1338 = vweird.f32 %v1331
  %vm1339 = vmor %vm1337, %vm1338
  %v1340 = vsel %vm1339, %v1331, %v1336
  %v1341 = vrsqrt.pop %v1316
  %v1342 = vmul.f32 %v1341, %v1316
  %v1343 = vmul.f32 %v1342, %v1341
  %v1344 = vmul.f32 0.5, %v1343
  %v1345 = vsub.f32 1.5, %v1344
  %v1346 = vmul.f32 %v1341, %v1345
  %vm1347 = vweird.f32 %v1316
  %vm1348 = vweird.f32 %v1341
  %vm1349 = vmor %vm1347, %vm1348
  %v1350 = vsel %vm1349, %v1341, %v1346
  %v1351 = vrsqrt.pop %v1317
  %v1352 = vmul.f32 %v1351, %v1317
  %v1353 = vmul.f32 %v1352, %v1351
  %v1354 = vmul.f32 0.5, %v1353
  %v1355 = vsub.f32 1.5, %v1354
  %v1356 = vmul.f32 %v1351, %v1355
  %vm1357 = vweird.f32 %v1317
  %vm1358 = vweird.f32 %v1351
  %vm1359 = vmor %vm1357, %vm1358
  %v1360 = vsel %vm1359, %v1351, %v1356
  %v1361 = vrsqrt.pop %v1318
  %v1362 = vmul.f32 %v1361, %v1318
  %v1363 = vmul.f32 %v1362, %v1361
  %v1364 = vmul.f32 0.5, %v1363
  %v1365 = vsub.f32 1.5, %v1364
  %v1366 = vmul.f32 %v1361, %v1365
  %vm1367 = vweird.f32 %v1318
  %vm1368 = vweird.f32 %v1361
  %vm1369 = vmor %vm1367, %vm1368
  %v1370 = vsel %vm1369, %v1361, %v1366
  %v1371 = vrsqrt.pop %v1319
  %v1372 = vmul.f32 %v1371, %v1319
  %v1373 = vmul.f32 %v1372, %v1371
  %v1374 = vmul.f32 0.5, %v1373
  %v1375 = vsub.f32 1.5, %v1374
  %v1376 = vmul.f32 %v1371, %v1375
  %vm1377 = vweird.f32 %v1319
  %vm1378 = vweird.f32 %v1371
  %vm1379 = vmor %vm1377, %vm1378
  %v1380 = vsel %vm1379, %v1371, %v1376
  %v1381 = vrsqrt.pop %v1320
  %v1382 = vmul.f32 %v1381, %v1320
  %v1383 = vmul.f32 %v1382, %v1381
  %v1384 = vmul.f32 0.5, %v1383
  %v1385 = vsub.f32 1.5, %v1384
  %v1386 = vmul.f32 %v1381, %v1385
  %vm1387 = vweird.f32 %v1320
  %vm1388 = vweird.f32 %v1381
  %vm1389 = vmor %vm1387, %vm1388
  %v1390 = vsel %vm1389, %v1381, %v1386
  %v1391 = vrsqrt.pop %v1321
  %v1392 = vmul.f32 %v1391, %v1321
  %v1393 = vmul.f32 %v1392, %v1391
  %v1394 = vmul.f32 0.5, %v1393
  %v1395 = vsub.f32 1.5, %v1394
  %v1396 = vmul.f32 %v1391, %v1395
  %vm1397 = vweird.f32 %v1321
  %vm1398 = vweird.f32 %v1391
  %vm1399 = vmor %vm1397, %vm1398
  %v1400 = vsel %vm1399, %v1391, %v1396
  %v1401 = vrsqrt.pop %v1322
  %v1402 = vmul.f32 %v1401, %v1322
  %v1403 = vmul.f32 %v1402, %v1401
  %v1404 = vmul.f32 0.5, %v1403
  %v1405 = vsub.f32 1.5, %v1404
  %v1406 = vmul.f32 %v1401, %v1405
  %vm1407 = vweird.f32 %v1322
  %vm1408 = vweird.f32 %v1401
  %vm1409 = vmor %vm1407, %vm1408
  %v1410 = vsel %vm1409, %v1401, %v1406
  %v1411 = vrsqrt.pop %v1323
  %v1412 = vmul.f32 %v1411, %v1323
  %v1413 = vmul.f32 %v1412, %v1411
  %v1414 = vmul.f32 0.5, %v1413
  %v1415 = vsub.f32 1.5, %v1414
  %v1416 = vmul.f32 %v1411, %v1415
  %vm1417 = vweird.f32 %v1323
  %vm1418 = vweird.f32 %v1411
  %vm1419 = vmor %vm1417, %vm1418
  %v1420 = vsel %vm1419, %v1411, %v1416
  %v1421 = vrsqrt.pop %v1324
  %v1422 = vmul.f32 %v1421, %v1324
  %v1423 = vmul.f32 %v1422, %v1421
  %v1424 = vmul.f32 0.5, %v1423
  %v1425 = vsub.f32 1.5, %v1424
  %v1426 = vmul.f32 %v1421, %v1425
  %vm1427 = vweird.f32 %v1324
  %vm1428 = vweird.f32 %v1421
  %vm1429 = vmor %vm1427, %vm1428
  %v1430 = vsel %vm1429, %v1421, %v1426
  %v1431 = vrsqrt.pop %v1325
  %v1432 = vmul.f32 %v1431, %v1325
  %v1433 = vmul.f32 %v1432, %v1431
  %v1434 = vmul.f32 0.5, %v1433
  %v1435 = vsub.f32 1.5, %v1434
  %v1436 = vmul.f32 %v1431, %v1435
  %vm1437 = vweird.f32 %v1325
  %vm1438 = vweird.f32 %v1431
  %vm1439 = vmor %vm1437, %vm1438
  %v1440 = vsel %vm1439, %v1431, %v1436
  %v1441 = vrsqrt.pop %v1326
  %v1442 = vmul.f32 %v1441, %v1326
  %v1443 = vmul.f32 %v1442, %v1441
  %v1444 = vmul.f32 0.5, %v1443
  %v1445 = vsub.f32 1.5, %v1444
  %v1446 = vmul.f32 %v1441, %v1445
  %vm1447 = vweird.f32 %v1326
  %vm1448 = vweird.f32 %v1441
  %vm1449 = vmor %vm1447, %vm1448
  %v1450 = vsel %vm1449, %v1441, %v1446
  %v1451 = vrsqrt.pop %v1327
  %v1452 = vmul.f32 %v1451, %v1327
  %v1453 = vmul.f32 %v1452, %v1451
  %v1454 = vmul.f32 0.5, %v1453
  %v1455 = vsub.f32 1.5, %v1454
  %v1456 = vmul.f32 %v1451, %v1455
  %vm1457 = vweird.f32 %v1327
  %vm1458 = vweird.f32 %v1451
  %vm1459 = vmor %vm1457, %vm1458
  %v1460 = vsel %vm1459, %v1451, %v1456
  %v1461 = vrsqrt.pop %v1328
  %v1462 = vmul.f32 %v1461, %v1328
  %v1463 = vmul.f32 %v1462, %v1461
  %v1464 = vmul.f32 0.5, %v1463
  %v1465 = vsub.f32 1.5, %v1464
  %v1466 = vmul.f32 %v1461, %v1465
  %vm1467 = vweird.f32 %v1328
  %vm1468 = vweird.f32 %v1461
  %vm1469 = vmor %vm1467, %vm1468
  %v1470 = vsel %vm1469, %v1461, %v1466
  %v1471 = vrsqrt.pop %v1329
  %v1472 = vmul.f32 %v1471, %v1329
  %v1473 = vmul.f32 %v1472, %v1471
  %v1474 = vmul.f32 0.5, %v1473
  %v1475 = vsub.f32 1.5, %v1474
  %v1476 = vmul.f32 %v1471, %v1475
  %vm1477 = vweird.f32 %v1329
  %vm1478 = vweird.f32 %v1471
  %vm1479 = vmor %vm1477, %vm1478
  %v1480 = vsel %vm1479, %v1471, %v1476
  %v1481 = vrsqrt.pop %v1330
  %v1482 = vmul.f32 %v1481, %v1330
  %v1483 = vmul.f32 %v1482, %v1481
  %v1484 = vmul.f32 0.5, %v1483
  %v1485 = vsub.f32 1.5, %v1484
  %v1486 = vmul.f32 %v1481, %v1485
  %vm1487 = vweird.f32 %v1330
  %vm1488 = vweird.f32 %v1481
  %vm1489 = vmor %vm1487, %vm1488
  %v1490 = vsel %vm1489, %v1481, %v1486
  %v1491 = vmul.f32 %v1235, %v1340
  %v1492 = vmul.f32 %v1236, %v1350
  %v1493 = vmul.f32 %v1237, %v1360
  %v1494 = vmul.f32 %v1238, %v1370
  %v1495 = vmul.f32 %v1239, %v1380
  %v1496 = vmul.f32 %v1240, %v1390
  %v1497 = vmul.f32 %v1241, %v1400
  %v1498 = vmul.f32 %v1242, %v1410
  %v1499 = vmul.f32 %v1243, %v1420
  %v1500 = vmul.f32 %v1244, %v1430
  %v1501 = vmul.f32 %v1245, %v1440
  %v1502 = vmul.f32 %v1246, %v1450
  %v1503 = vmul.f32 %v1247, %v1460
  %v1504 = vmul.f32 %v1248, %v1470
  %v1505 = vmul.f32 %v1249, %v1480
  %v1506 = vmul.f32 %v1250, %v1490
  %v1508 = vperm.slane %v1178, 0
  %v1510 = vmul.f32 %v1491, %v1508
  %v1511 = vmul.f32 %v1492, %v1508
  %v1512 = vmul.f32 %v1493, %v1508
  %v1513 = vmul.f32 %v1494, %v1508
  %v1514 = vmul.f32 %v1495, %v1508
  %v1515 = vmul.f32 %v1496, %v1508
  %v1516 = vmul.f32 %v1497, %v1508
  %v1517 = vmul.f32 %v1498, %v1508
  %v1518 = vmul.f32 %v1499, %v1508
  %v1519 = vmul.f32 %v1500, %v1508
  %v1520 = vmul.f32 %v1501, %v1508
  %v1521 = vmul.f32 %v1502, %v1508
  %v1522 = vmul.f32 %v1503, %v1508
  %v1523 = vmul.f32 %v1504, %v1508
  %v1524 = vmul.f32 %v1505, %v1508
  %v1525 = vmul.f32 %v1506, %v1508
  %v1527 = vperm.slane %v1179, 0
  %v1529 = vadd.f32 %v1510, %v1527
  %v1530 = vadd.f32 %v1511, %v1527
  %v1531 = vadd.f32 %v1512, %v1527
  %v1532 = vadd.f32 %v1513, %v1527
  %v1533 = vadd.f32 %v1514, %v1527
  %v1534 = vadd.f32 %v1515, %v1527
  %v1535 = vadd.f32 %v1516, %v1527
  %v1536 = vadd.f32 %v1517, %v1527
  %v1537 = vadd.f32 %v1518, %v1527
  %v1538 = vadd.f32 %v1519, %v1527
  %v1539 = vadd.f32 %v1520, %v1527
  %v1540 = vadd.f32 %v1521, %v1527
  %v1541 = vadd.f32 %v1522, %v1527
  %v1542 = vadd.f32 %v1523, %v1527
  %v1543 = vadd.f32 %v1524, %v1527
  %v1544 = vadd.f32 %v1525, %v1527
  %v1545 = vpack.c.bf16 %v1530, %v1529
  %v1546 = vpack.c.bf16 %v1532, %v1531
  %v1547 = vpack.c.bf16 %v1534, %v1533
  %v1548 = vpack.c.bf16 %v1536, %v1535
  %v1549 = vpack.c.bf16 %v1538, %v1537
  %v1550 = vpack.c.bf16 %v1540, %v1539
  %v1551 = vpack.c.bf16 %v1542, %v1541
  %v1552 = vpack.c.bf16 %v1544, %v1543
  %v1553 = vld [vmem:[%s7] sm:$0xff]
  %v1554 = vld [vmem:[%s7 + $0x8] sm:$0xf]
  %v1555 = vld [vmem:[%s7 + $0xc] sm:$0xff]
  %v1556 = vld [vmem:[%s7 + $0x14] sm:$0xf]
  %v1557 = vld [vmem:[%s7 + $0x18] sm:$0xff]
  %v1558 = vld [vmem:[%s7 + $0x20] sm:$0xf]
  %v1559 = vld [vmem:[%s7 + $0x24] sm:$0xff]
  %v1560 = vld [vmem:[%s7 + $0x2c] sm:$0xf]
  %v1561 = vld [vmem:[%s7 + $0x30] sm:$0xff]
  %v1562 = vld [vmem:[%s7 + $0x38] sm:$0xf]
  %v1563 = vld [vmem:[%s7 + $0x3c] sm:$0xff]
  %v1564 = vld [vmem:[%s7 + $0x44] sm:$0xf]
  %v1565 = vld [vmem:[%s7 + $0x48] sm:$0xff]
  %v1566 = vld [vmem:[%s7 + $0x50] sm:$0xf]
  %v1567 = vld [vmem:[%s7 + $0x54] sm:$0xff]
  %v1568 = vld [vmem:[%s7 + $0x5c] sm:$0xf]
  %v1569 = vld [vmem:[%s7 + $0x60] sm:$0xff]
  %v1570 = vld [vmem:[%s7 + $0x68] sm:$0xf]
  %v1571 = vld [vmem:[%s7 + $0x6c] sm:$0xff]
  %v1572 = vld [vmem:[%s7 + $0x74] sm:$0xf]
  %v1573 = vld [vmem:[%s7 + $0x78] sm:$0xff]
  %v1574 = vld [vmem:[%s7 + $0x80] sm:$0xf]
  %v1575 = vld [vmem:[%s7 + $0x84] sm:$0xff]
  %v1576 = vld [vmem:[%s7 + $0x8c] sm:$0xf]
  %v1577 = vld [vmem:[%s7 + $0x90] sm:$0xff]
  %v1578 = vld [vmem:[%s7 + $0x98] sm:$0xf]
  %v1579 = vld [vmem:[%s7 + $0x9c] sm:$0xff]
  %v1580 = vld [vmem:[%s7 + $0xa4] sm:$0xf]
  %v1581 = vld [vmem:[%s7 + $0xa8] sm:$0xff]
  %v1582 = vld [vmem:[%s7 + $0xb0] sm:$0xf]
  %v1583 = vld [vmem:[%s7 + $0xb4] sm:$0xff]
  %v1584 = vld [vmem:[%s7 + $0xbc] sm:$0xf]
  %v1585 = vld [vmem:[%s8] sm:$0x7]
  %v1587 = vperm.slane %v1585, 0
  %v1588 = vperm.slane %v1585, 1
  %v1589 = vperm.slane %v1585, 2
  %v1625 = vunpack.c.l.b16 %v1553
  %v1626 = vunpack.c.h.b16 %v1553
  %v1627 = vunpack.c.l.b16 %v1554
  %v1628 = vunpack.c.l.b16 %v1555
  %v1629 = vunpack.c.h.b16 %v1555
  %v1630 = vunpack.c.l.b16 %v1556
  %v1631 = vunpack.c.l.b16 %v1557
  %v1632 = vunpack.c.h.b16 %v1557
  %v1633 = vunpack.c.l.b16 %v1558
  %v1634 = vunpack.c.l.b16 %v1559
  %v1635 = vunpack.c.h.b16 %v1559
  %v1636 = vunpack.c.l.b16 %v1560
  %v1637 = vunpack.c.l.b16 %v1561
  %v1638 = vunpack.c.h.b16 %v1561
  %v1639 = vunpack.c.l.b16 %v1562
  %v1640 = vunpack.c.l.b16 %v1563
  %v1641 = vunpack.c.h.b16 %v1563
  %v1642 = vunpack.c.l.b16 %v1564
  %v1643 = vunpack.c.l.b16 %v1565
  %v1644 = vunpack.c.h.b16 %v1565
  %v1645 = vunpack.c.l.b16 %v1566
  %v1646 = vunpack.c.l.b16 %v1567
  %v1647 = vunpack.c.h.b16 %v1567
  %v1648 = vunpack.c.l.b16 %v1568
  %v1649 = vunpack.c.l.b16 %v1569
  %v1650 = vunpack.c.h.b16 %v1569
  %v1651 = vunpack.c.l.b16 %v1570
  %v1652 = vunpack.c.l.b16 %v1571
  %v1653 = vunpack.c.h.b16 %v1571
  %v1654 = vunpack.c.l.b16 %v1572
  %v1655 = vunpack.c.l.b16 %v1573
  %v1656 = vunpack.c.h.b16 %v1573
  %v1657 = vunpack.c.l.b16 %v1574
  %v1658 = vunpack.c.l.b16 %v1575
  %v1659 = vunpack.c.h.b16 %v1575
  %v1660 = vunpack.c.l.b16 %v1576
  %v1661 = vunpack.c.l.b16 %v1577
  %v1662 = vunpack.c.h.b16 %v1577
  %v1663 = vunpack.c.l.b16 %v1578
  %v1664 = vunpack.c.l.b16 %v1579
  %v1665 = vunpack.c.h.b16 %v1579
  %v1666 = vunpack.c.l.b16 %v1580
  %v1667 = vunpack.c.l.b16 %v1581
  %v1668 = vunpack.c.h.b16 %v1581
  %v1669 = vunpack.c.l.b16 %v1582
  %v1670 = vunpack.c.l.b16 %v1583
  %v1671 = vunpack.c.h.b16 %v1583
  %v1672 = vunpack.c.l.b16 %v1584
  %v1673 = vpack.c.b16 %v1628, %v1625
  %v1674 = vpack.c.b16 %v1629, %v1626
  %v1675 = vpack.c.b16 %v1630, %v1627
  %v1676 = vpack.c.b16 %v1634, %v1631
  %v1677 = vpack.c.b16 %v1635, %v1632
  %v1678 = vpack.c.b16 %v1636, %v1633
  %v1679 = vpack.c.b16 %v1640, %v1637
  %v1680 = vpack.c.b16 %v1641, %v1638
  %v1681 = vpack.c.b16 %v1642, %v1639
  %v1682 = vpack.c.b16 %v1646, %v1643
  %v1683 = vpack.c.b16 %v1647, %v1644
  %v1684 = vpack.c.b16 %v1648, %v1645
  %v1685 = vpack.c.b16 %v1652, %v1649
  %v1686 = vpack.c.b16 %v1653, %v1650
  %v1687 = vpack.c.b16 %v1654, %v1651
  %v1688 = vpack.c.b16 %v1658, %v1655
  %v1689 = vpack.c.b16 %v1659, %v1656
  %v1690 = vpack.c.b16 %v1660, %v1657
  %v1691 = vpack.c.b16 %v1664, %v1661
  %v1692 = vpack.c.b16 %v1665, %v1662
  %v1693 = vpack.c.b16 %v1666, %v1663
  %v1694 = vpack.c.b16 %v1670, %v1667
  %v1695 = vpack.c.b16 %v1671, %v1668
  %v1696 = vpack.c.b16 %v1672, %v1669
  %1721 = vmatpush.bf16.msra.mxu0 %v1694
  %1722 = vmatpush.bf16.msra.mxu0 %v1691
  %1723 = vmatpush.bf16.msra.mxu0 %v1688
  %1724 = vmatpush.bf16.msra.mxu0 %v1685
  %1725 = vmatpush.bf16.msra.mxu0 %v1682
  %1726 = vmatpush.bf16.msra.mxu0 %v1679
  %1727 = vmatpush.bf16.msra.mxu0 %v1676
  %1728 = vmatpush.bf16.msra.mxu0 %v1673
  %1729 = vmatmul.bf16.gmra.mxu0 %v1545
  %v1730 = vpop.f32.mrf.mxu0
  %v1731 = vadd.f32 %v1587, %v1730
  %v1732 = vpop.f32.mrf.mxu0
  %v1733 = vadd.f32 %v1587, %v1732
  %1734 = vmatmul.bf16.gmra.mxu0 %v1546
  %v1735 = vpop.f32.mrf.mxu0
  %v1736 = vadd.f32 %v1587, %v1735
  %v1737 = vpop.f32.mrf.mxu0
  %v1738 = vadd.f32 %v1587, %v1737
  %1739 = vmatmul.bf16.gmra.mxu0 %v1547
  %v1740 = vpop.f32.mrf.mxu0
  %v1741 = vadd.f32 %v1587, %v1740
  %v1742 = vpop.f32.mrf.mxu0
  %v1743 = vadd.f32 %v1587, %v1742
  %1744 = vmatmul.bf16.gmra.mxu0 %v1548
  %v1745 = vpop.f32.mrf.mxu0
  %v1746 = vadd.f32 %v1587, %v1745
  %v1747 = vpop.f32.mrf.mxu0
  %v1748 = vadd.f32 %v1587, %v1747
  %1749 = vmatmul.bf16.gmra.mxu0 %v1549
  %v1750 = vpop.f32.mrf.mxu0
  %v1751 = vadd.f32 %v1587, %v1750
  %v1752 = vpop.f32.mrf.mxu0
  %v1753 = vadd.f32 %v1587, %v1752
  %1754 = vmatmul.bf16.gmra.mxu0 %v1550
  %v1755 = vpop.f32.mrf.mxu0
  %v1756 = vadd.f32 %v1587, %v1755
  %v1757 = vpop.f32.mrf.mxu0
  %v1758 = vadd.f32 %v1587, %v1757
  %1759 = vmatmul.bf16.gmra.mxu0 %v1551
  %v1760 = vpop.f32.mrf.mxu0
  %v1761 = vadd.f32 %v1587, %v1760
  %v1762 = vpop.f32.mrf.mxu0
  %v1763 = vadd.f32 %v1587, %v1762
  %1764 = vmatmul.bf16.gmra.mxu0 %v1552
  %v1765 = vpop.f32.mrf.mxu0
  %v1766 = vadd.f32 %v1587, %v1765
  %v1767 = vpop.f32.mrf.mxu0
  %v1768 = vadd.f32 %v1587, %v1767
  %1769 = vdwg.mxu0
  %1770 = vmatpush.bf16.msra.mxu0 %v1695
  %1771 = vmatpush.bf16.msra.mxu0 %v1692
  %1772 = vmatpush.bf16.msra.mxu0 %v1689
  %1773 = vmatpush.bf16.msra.mxu0 %v1686
  %1774 = vmatpush.bf16.msra.mxu0 %v1683
  %1775 = vmatpush.bf16.msra.mxu0 %v1680
  %1776 = vmatpush.bf16.msra.mxu0 %v1677
  %1777 = vmatpush.bf16.msra.mxu0 %v1674
  %1778 = vmatmul.bf16.gmra.mxu0 %v1545
  %v1779 = vpop.f32.mrf.mxu0
  %v1780 = vadd.f32 %v1588, %v1779
  %v1781 = vpop.f32.mrf.mxu0
  %v1782 = vadd.f32 %v1588, %v1781
  %1783 = vmatmul.bf16.gmra.mxu0 %v1546
  %v1784 = vpop.f32.mrf.mxu0
  %v1785 = vadd.f32 %v1588, %v1784
  %v1786 = vpop.f32.mrf.mxu0
  %v1787 = vadd.f32 %v1588, %v1786
  %1788 = vmatmul.bf16.gmra.mxu0 %v1547
  %v1789 = vpop.f32.mrf.mxu0
  %v1790 = vadd.f32 %v1588, %v1789
  %v1791 = vpop.f32.mrf.mxu0
  %v1792 = vadd.f32 %v1588, %v1791
  %1793 = vmatmul.bf16.gmra.mxu0 %v1548
  %v1794 = vpop.f32.mrf.mxu0
  %v1795 = vadd.f32 %v1588, %v1794
  %v1796 = vpop.f32.mrf.mxu0
  %v1797 = vadd.f32 %v1588, %v1796
  %1798 = vmatmul.bf16.gmra.mxu0 %v1549
  %v1799 = vpop.f32.mrf.mxu0
  %v1800 = vadd.f32 %v1588, %v1799
  %v1801 = vpop.f32.mrf.mxu0
  %v1802 = vadd.f32 %v1588, %v1801
  %1803 = vmatmul.bf16.gmra.mxu0 %v1550
  %v1804 = vpop.f32.mrf.mxu0
  %v1805 = vadd.f32 %v1588, %v1804
  %v1806 = vpop.f32.mrf.mxu0
  %v1807 = vadd.f32 %v1588, %v1806
  %1808 = vmatmul.bf16.gmra.mxu0 %v1551
  %v1809 = vpop.f32.mrf.mxu0
  %v1810 = vadd.f32 %v1588, %v1809
  %v1811 = vpop.f32.mrf.mxu0
  %v1812 = vadd.f32 %v1588, %v1811
  %1813 = vmatmul.bf16.gmra.mxu0 %v1552
  %v1814 = vpop.f32.mrf.mxu0
  %v1815 = vadd.f32 %v1588, %v1814
  %v1816 = vpop.f32.mrf.mxu0
  %v1817 = vadd.f32 %v1588, %v1816
  %1818 = vdwg.mxu0
  %1819 = vmatpush.bf16.msra.mxu0 %v1696
  %1820 = vmatpush.bf16.msra.mxu0 %v1693
  %1821 = vmatpush.bf16.msra.mxu0 %v1690
  %1822 = vmatpush.bf16.msra.mxu0 %v1687
  %1823 = vmatpush.bf16.msra.mxu0 %v1684
  %1824 = vmatpush.bf16.msra.mxu0 %v1681
  %1825 = vmatpush.bf16.msra.mxu0 %v1678
  %1826 = vmatpush.bf16.msra.mxu0 %v1675
  %1827 = vmatmul.bf16.gmra.mxu0 %v1545
  %v1828 = vpop.f32.mrf.mxu0
  %v1829 = vadd.f32 %v1589, %v1828
  %v1830 = vpop.f32.mrf.mxu0
  %v1831 = vadd.f32 %v1589, %v1830
  %1832 = vmatmul.bf16.gmra.mxu0 %v1546
  %v1833 = vpop.f32.mrf.mxu0
  %v1834 = vadd.f32 %v1589, %v1833
  %v1835 = vpop.f32.mrf.mxu0
  %v1836 = vadd.f32 %v1589, %v1835
  %1837 = vmatmul.bf16.gmra.mxu0 %v1547
  %v1838 = vpop.f32.mrf.mxu0
  %v1839 = vadd.f32 %v1589, %v1838
  %v1840 = vpop.f32.mrf.mxu0
  %v1841 = vadd.f32 %v1589, %v1840
  %1842 = vmatmul.bf16.gmra.mxu0 %v1548
  %v1843 = vpop.f32.mrf.mxu0
  %v1844 = vadd.f32 %v1589, %v1843
  %v1845 = vpop.f32.mrf.mxu0
  %v1846 = vadd.f32 %v1589, %v1845
  %1847 = vmatmul.bf16.gmra.mxu0 %v1549
  %v1848 = vpop.f32.mrf.mxu0
  %v1849 = vadd.f32 %v1589, %v1848
  %v1850 = vpop.f32.mrf.mxu0
  %v1851 = vadd.f32 %v1589, %v1850
  %1852 = vmatmul.bf16.gmra.mxu0 %v1550
  %v1853 = vpop.f32.mrf.mxu0
  %v1854 = vadd.f32 %v1589, %v1853
  %v1855 = vpop.f32.mrf.mxu0
  %v1856 = vadd.f32 %v1589, %v1855
  %1857 = vmatmul.bf16.gmra.mxu0 %v1551
  %v1858 = vpop.f32.mrf.mxu0
  %v1859 = vadd.f32 %v1589, %v1858
  %v1860 = vpop.f32.mrf.mxu0
  %v1861 = vadd.f32 %v1589, %v1860
  %1862 = vmatmul.bf16.gmra.mxu0 %v1552
  %v1863 = vpop.f32.mrf.mxu0
  %v1864 = vadd.f32 %v1589, %v1863
  %v1865 = vpop.f32.mrf.mxu0
  %v1866 = vadd.f32 %v1589, %v1865
  %1867 = vdwg.mxu0
  %v1868 = vpack.c.bf16 %v1731, %v1731
  %v1869 = vpack.c.bf16 %v1733, %v1733
  %v1870 = vpack.c.bf16 %v1736, %v1736
  %v1871 = vpack.c.bf16 %v1738, %v1738
  %v1872 = vpack.c.bf16 %v1741, %v1741
  %v1873 = vpack.c.bf16 %v1743, %v1743
  %v1874 = vpack.c.bf16 %v1746, %v1746
  %v1875 = vpack.c.bf16 %v1748, %v1748
  %v1876 = vpack.c.bf16 %v1751, %v1751
  %v1877 = vpack.c.bf16 %v1753, %v1753
  %v1878 = vpack.c.bf16 %v1756, %v1756
  %v1879 = vpack.c.bf16 %v1758, %v1758
  %v1880 = vpack.c.bf16 %v1761, %v1761
  %v1881 = vpack.c.bf16 %v1763, %v1763
  %v1882 = vpack.c.bf16 %v1766, %v1766
  %v1883 = vpack.c.bf16 %v1768, %v1768
  %v1884 = vpack.c.bf16 %v1780, %v1780
  %v1885 = vpack.c.bf16 %v1782, %v1782
  %v1886 = vpack.c.bf16 %v1785, %v1785
  %v1887 = vpack.c.bf16 %v1787, %v1787
  %v1888 = vpack.c.bf16 %v1790, %v1790
  %v1889 = vpack.c.bf16 %v1792, %v1792
  %v1890 = vpack.c.bf16 %v1795, %v1795
  %v1891 = vpack.c.bf16 %v1797, %v1797
  %v1892 = vpack.c.bf16 %v1800, %v1800
  %v1893 = vpack.c.bf16 %v1802, %v1802
  %v1894 = vpack.c.bf16 %v1805, %v1805
  %v1895 = vpack.c.bf16 %v1807, %v1807
  %v1896 = vpack.c.bf16 %v1810, %v1810
  %v1897 = vpack.c.bf16 %v1812, %v1812
  %v1898 = vpack.c.bf16 %v1815, %v1815
  %v1899 = vpack.c.bf16 %v1817, %v1817
  %v1900 = vpack.c.bf16 %v1829, %v1829
  %v1901 = vpack.c.bf16 %v1831, %v1831
  %v1902 = vpack.c.bf16 %v1834, %v1834
  %v1903 = vpack.c.bf16 %v1836, %v1836
  %v1904 = vpack.c.bf16 %v1839, %v1839
  %v1905 = vpack.c.bf16 %v1841, %v1841
  %v1906 = vpack.c.bf16 %v1844, %v1844
  %v1907 = vpack.c.bf16 %v1846, %v1846
  %v1908 = vpack.c.bf16 %v1849, %v1849
  %v1909 = vpack.c.bf16 %v1851, %v1851
  %v1910 = vpack.c.bf16 %v1854, %v1854
  %v1911 = vpack.c.bf16 %v1856, %v1856
  %v1912 = vpack.c.bf16 %v1859, %v1859
  %v1913 = vpack.c.bf16 %v1861, %v1861
  %v1914 = vpack.c.bf16 %v1864, %v1864
  %v1915 = vpack.c.bf16 %v1866, %v1866
  %vm1916 = vcmask 523264
  %v1918 = vsel %vm1916, %v1868, 0
  %v1921 = vsel %vm1916, %v1884, 0
  %1923 = vmatpush.bf16.xpose.msra.mxu0 0
  %1924 = vmatpush.bf16.xpose.msra.mxu0 0
  %1925 = vmatpush.bf16.xpose.msra.mxu0 0
  %1926 = vmatpush.bf16.xpose.msra.mxu0 0
  %1927 = vmatpush.bf16.xpose.msra.mxu0 0
  %1928 = vmatpush.bf16.xpose.msra.mxu0 0
  %1929 = vmatpush.bf16.xpose.msra.mxu0 0
  %1930 = vmatpush.bf16.xpose.msra.mxu0 %v1921
  %1931 = vmatmul.bf16.gmra.mxu0 %v1918
  %v1932 = vpop.f32.mrf.mxu0
  %v1933 = vadd.f32 0.0, %v1932
  %v1934 = vpop.f32.mrf.mxu0
  %1935 = vdwg.mxu0
  %v1937 = vsel %vm1916, %v1869, 0
  %v1940 = vsel %vm1916, %v1885, 0
  %1942 = vmatpush.bf16.xpose.msra.mxu0 0
  %1943 = vmatpush.bf16.xpose.msra.mxu0 0
  %1944 = vmatpush.bf16.xpose.msra.mxu0 0
  %1945 = vmatpush.bf16.xpose.msra.mxu0 0
  %1946 = vmatpush.bf16.xpose.msra.mxu0 0
  %1947 = vmatpush.bf16.xpose.msra.mxu0 0
  %1948 = vmatpush.bf16.xpose.msra.mxu0 0
  %1949 = vmatpush.bf16.xpose.msra.mxu0 %v1940
  %1950 = vmatmul.bf16.gmra.mxu0 %v1937
  %v1951 = vpop.f32.mrf.mxu0
  %v1952 = vadd.f32 0.0, %v1951
  %v1953 = vpop.f32.mrf.mxu0
  %1954 = vdwg.mxu0
  %v1956 = vsel %vm1916, %v1870, 0
  %v1959 = vsel %vm1916, %v1886, 0
  %1961 = vmatpush.bf16.xpose.msra.mxu0 0
  %1962 = vmatpush.bf16.xpose.msra.mxu0 0
  %1963 = vmatpush.bf16.xpose.msra.mxu0 0
  %1964 = vmatpush.bf16.xpose.msra.mxu0 0
  %1965 = vmatpush.bf16.xpose.msra.mxu0 0
  %1966 = vmatpush.bf16.xpose.msra.mxu0 0
  %1967 = vmatpush.bf16.xpose.msra.mxu0 0
  %1968 = vmatpush.bf16.xpose.msra.mxu0 %v1959
  %1969 = vmatmul.bf16.gmra.mxu0 %v1956
  %v1970 = vpop.f32.mrf.mxu0
  %v1971 = vadd.f32 0.0, %v1970
  %v1972 = vpop.f32.mrf.mxu0
  %1973 = vdwg.mxu0
  %v1975 = vsel %vm1916, %v1871, 0
  %v1978 = vsel %vm1916, %v1887, 0
  %1980 = vmatpush.bf16.xpose.msra.mxu0 0
  %1981 = vmatpush.bf16.xpose.msra.mxu0 0
  %1982 = vmatpush.bf16.xpose.msra.mxu0 0
  %1983 = vmatpush.bf16.xpose.msra.mxu0 0
  %1984 = vmatpush.bf16.xpose.msra.mxu0 0
  %1985 = vmatpush.bf16.xpose.msra.mxu0 0
  %1986 = vmatpush.bf16.xpose.msra.mxu0 0
  %1987 = vmatpush.bf16.xpose.msra.mxu0 %v1978
  %1988 = vmatmul.bf16.gmra.mxu0 %v1975
  %v1989 = vpop.f32.mrf.mxu0
  %v1990 = vadd.f32 0.0, %v1989
  %v1991 = vpop.f32.mrf.mxu0
  %1992 = vdwg.mxu0
  %v1994 = vsel %vm1916, %v1872, 0
  %v1997 = vsel %vm1916, %v1888, 0
  %1999 = vmatpush.bf16.xpose.msra.mxu0 0
  %2000 = vmatpush.bf16.xpose.msra.mxu0 0
  %2001 = vmatpush.bf16.xpose.msra.mxu0 0
  %2002 = vmatpush.bf16.xpose.msra.mxu0 0
  %2003 = vmatpush.bf16.xpose.msra.mxu0 0
  %2004 = vmatpush.bf16.xpose.msra.mxu0 0
  %2005 = vmatpush.bf16.xpose.msra.mxu0 0
  %2006 = vmatpush.bf16.xpose.msra.mxu0 %v1997
  %2007 = vmatmul.bf16.gmra.mxu0 %v1994
  %v2008 = vpop.f32.mrf.mxu0
  %v2009 = vadd.f32 0.0, %v2008
  %v2010 = vpop.f32.mrf.mxu0
  %2011 = vdwg.mxu0
  %v2013 = vsel %vm1916, %v1873, 0
  %v2016 = vsel %vm1916, %v1889, 0
  %2018 = vmatpush.bf16.xpose.msra.mxu0 0
  %2019 = vmatpush.bf16.xpose.msra.mxu0 0
  %2020 = vmatpush.bf16.xpose.msra.mxu0 0
  %2021 = vmatpush.bf16.xpose.msra.mxu0 0
  %2022 = vmatpush.bf16.xpose.msra.mxu0 0
  %2023 = vmatpush.bf16.xpose.msra.mxu0 0
  %2024 = vmatpush.bf16.xpose.msra.mxu0 0
  %2025 = vmatpush.bf16.xpose.msra.mxu0 %v2016
  %2026 = vmatmul.bf16.gmra.mxu0 %v2013
  %v2027 = vpop.f32.mrf.mxu0
  %v2028 = vadd.f32 0.0, %v2027
  %v2029 = vpop.f32.mrf.mxu0
  %2030 = vdwg.mxu0
  %v2032 = vsel %vm1916, %v1874, 0
  %v2035 = vsel %vm1916, %v1890, 0
  %2037 = vmatpush.bf16.xpose.msra.mxu0 0
  %2038 = vmatpush.bf16.xpose.msra.mxu0 0
  %2039 = vmatpush.bf16.xpose.msra.mxu0 0
  %2040 = vmatpush.bf16.xpose.msra.mxu0 0
  %2041 = vmatpush.bf16.xpose.msra.mxu0 0
  %2042 = vmatpush.bf16.xpose.msra.mxu0 0
  %2043 = vmatpush.bf16.xpose.msra.mxu0 0
  %2044 = vmatpush.bf16.xpose.msra.mxu0 %v2035
  %2045 = vmatmul.bf16.gmra.mxu0 %v2032
  %v2046 = vpop.f32.mrf.mxu0
  %v2047 = vadd.f32 0.0, %v2046
  %v2048 = vpop.f32.mrf.mxu0
  %2049 = vdwg.mxu0
  %v2051 = vsel %vm1916, %v1875, 0
  %v2054 = vsel %vm1916, %v1891, 0
  %2056 = vmatpush.bf16.xpose.msra.mxu0 0
  %2057 = vmatpush.bf16.xpose.msra.mxu0 0
  %2058 = vmatpush.bf16.xpose.msra.mxu0 0
  %2059 = vmatpush.bf16.xpose.msra.mxu0 0
  %2060 = vmatpush.bf16.xpose.msra.mxu0 0
  %2061 = vmatpush.bf16.xpose.msra.mxu0 0
  %2062 = vmatpush.bf16.xpose.msra.mxu0 0
  %2063 = vmatpush.bf16.xpose.msra.mxu0 %v2054
  %2064 = vmatmul.bf16.gmra.mxu0 %v2051
  %v2065 = vpop.f32.mrf.mxu0
  %v2066 = vadd.f32 0.0, %v2065
  %v2067 = vpop.f32.mrf.mxu0
  %2068 = vdwg.mxu0
  %v2070 = vsel %vm1916, %v1876, 0
  %v2073 = vsel %vm1916, %v1892, 0
  %2075 = vmatpush.bf16.xpose.msra.mxu0 0
  %2076 = vmatpush.bf16.xpose.msra.mxu0 0
  %2077 = vmatpush.bf16.xpose.msra.mxu0 0
  %2078 = vmatpush.bf16.xpose.msra.mxu0 0
  %2079 = vmatpush.bf16.xpose.msra.mxu0 0
  %2080 = vmatpush.bf16.xpose.msra.mxu0 0
  %2081 = vmatpush.bf16.xpose.msra.mxu0 0
  %2082 = vmatpush.bf16.xpose.msra.mxu0 %v2073
  %2083 = vmatmul.bf16.gmra.mxu0 %v2070
  %v2084 = vpop.f32.mrf.mxu0
  %v2085 = vadd.f32 0.0, %v2084
  %v2086 = vpop.f32.mrf.mxu0
  %2087 = vdwg.mxu0
  %v2089 = vsel %vm1916, %v1877, 0
  %v2092 = vsel %vm1916, %v1893, 0
  %2094 = vmatpush.bf16.xpose.msra.mxu0 0
  %2095 = vmatpush.bf16.xpose.msra.mxu0 0
  %2096 = vmatpush.bf16.xpose.msra.mxu0 0
  %2097 = vmatpush.bf16.xpose.msra.mxu0 0
  %2098 = vmatpush.bf16.xpose.msra.mxu0 0
  %2099 = vmatpush.bf16.xpose.msra.mxu0 0
  %2100 = vmatpush.bf16.xpose.msra.mxu0 0
  %2101 = vmatpush.bf16.xpose.msra.mxu0 %v2092
  %2102 = vmatmul.bf16.gmra.mxu0 %v2089
  %v2103 = vpop.f32.mrf.mxu0
  %v2104 = vadd.f32 0.0, %v2103
  %v2105 = vpop.f32.mrf.mxu0
  %2106 = vdwg.mxu0
  %v2108 = vsel %vm1916, %v1878, 0
  %v2111 = vsel %vm1916, %v1894, 0
  %2113 = vmatpush.bf16.xpose.msra.mxu0 0
  %2114 = vmatpush.bf16.xpose.msra.mxu0 0
  %2115 = vmatpush.bf16.xpose.msra.mxu0 0
  %2116 = vmatpush.bf16.xpose.msra.mxu0 0
  %2117 = vmatpush.bf16.xpose.msra.mxu0 0
  %2118 = vmatpush.bf16.xpose.msra.mxu0 0
  %2119 = vmatpush.bf16.xpose.msra.mxu0 0
  %2120 = vmatpush.bf16.xpose.msra.mxu0 %v2111
  %2121 = vmatmul.bf16.gmra.mxu0 %v2108
  %v2122 = vpop.f32.mrf.mxu0
  %v2123 = vadd.f32 0.0, %v2122
  %v2124 = vpop.f32.mrf.mxu0
  %2125 = vdwg.mxu0
  %v2127 = vsel %vm1916, %v1879, 0
  %v2130 = vsel %vm1916, %v1895, 0
  %2132 = vmatpush.bf16.xpose.msra.mxu0 0
  %2133 = vmatpush.bf16.xpose.msra.mxu0 0
  %2134 = vmatpush.bf16.xpose.msra.mxu0 0
  %2135 = vmatpush.bf16.xpose.msra.mxu0 0
  %2136 = vmatpush.bf16.xpose.msra.mxu0 0
  %2137 = vmatpush.bf16.xpose.msra.mxu0 0
  %2138 = vmatpush.bf16.xpose.msra.mxu0 0
  %2139 = vmatpush.bf16.xpose.msra.mxu0 %v2130
  %2140 = vmatmul.bf16.gmra.mxu0 %v2127
  %v2141 = vpop.f32.mrf.mxu0
  %v2142 = vadd.f32 0.0, %v2141
  %v2143 = vpop.f32.mrf.mxu0
  %2144 = vdwg.mxu0
  %v2146 = vsel %vm1916, %v1880, 0
  %v2149 = vsel %vm1916, %v1896, 0
  %2151 = vmatpush.bf16.xpose.msra.mxu0 0
  %2152 = vmatpush.bf16.xpose.msra.mxu0 0
  %2153 = vmatpush.bf16.xpose.msra.mxu0 0
  %2154 = vmatpush.bf16.xpose.msra.mxu0 0
  %2155 = vmatpush.bf16.xpose.msra.mxu0 0
  %2156 = vmatpush.bf16.xpose.msra.mxu0 0
  %2157 = vmatpush.bf16.xpose.msra.mxu0 0
  %2158 = vmatpush.bf16.xpose.msra.mxu0 %v2149
  %2159 = vmatmul.bf16.gmra.mxu0 %v2146
  %v2160 = vpop.f32.mrf.mxu0
  %v2161 = vadd.f32 0.0, %v2160
  %v2162 = vpop.f32.mrf.mxu0
  %2163 = vdwg.mxu0
  %v2165 = vsel %vm1916, %v1881, 0
  %v2168 = vsel %vm1916, %v1897, 0
  %2170 = vmatpush.bf16.xpose.msra.mxu0 0
  %2171 = vmatpush.bf16.xpose.msra.mxu0 0
  %2172 = vmatpush.bf16.xpose.msra.mxu0 0
  %2173 = vmatpush.bf16.xpose.msra.mxu0 0
  %2174 = vmatpush.bf16.xpose.msra.mxu0 0
  %2175 = vmatpush.bf16.xpose.msra.mxu0 0
  %2176 = vmatpush.bf16.xpose.msra.mxu0 0
  %2177 = vmatpush.bf16.xpose.msra.mxu0 %v2168
  %2178 = vmatmul.bf16.gmra.mxu0 %v2165
  %v2179 = vpop.f32.mrf.mxu0
  %v2180 = vadd.f32 0.0, %v2179
  %v2181 = vpop.f32.mrf.mxu0
  %2182 = vdwg.mxu0
  %v2184 = vsel %vm1916, %v1882, 0
  %v2187 = vsel %vm1916, %v1898, 0
  %2189 = vmatpush.bf16.xpose.msra.mxu0 0
  %2190 = vmatpush.bf16.xpose.msra.mxu0 0
  %2191 = vmatpush.bf16.xpose.msra.mxu0 0
  %2192 = vmatpush.bf16.xpose.msra.mxu0 0
  %2193 = vmatpush.bf16.xpose.msra.mxu0 0
  %2194 = vmatpush.bf16.xpose.msra.mxu0 0
  %2195 = vmatpush.bf16.xpose.msra.mxu0 0
  %2196 = vmatpush.bf16.xpose.msra.mxu0 %v2187
  %2197 = vmatmul.bf16.gmra.mxu0 %v2184
  %v2198 = vpop.f32.mrf.mxu0
  %v2199 = vadd.f32 0.0, %v2198
  %v2200 = vpop.f32.mrf.mxu0
  %2201 = vdwg.mxu0
  %v2203 = vsel %vm1916, %v1883, 0
  %v2206 = vsel %vm1916, %v1899, 0
  %2208 = vmatpush.bf16.xpose.msra.mxu0 0
  %2209 = vmatpush.bf16.xpose.msra.mxu0 0
  %2210 = vmatpush.bf16.xpose.msra.mxu0 0
  %2211 = vmatpush.bf16.xpose.msra.mxu0 0
  %2212 = vmatpush.bf16.xpose.msra.mxu0 0
  %2213 = vmatpush.bf16.xpose.msra.mxu0 0
  %2214 = vmatpush.bf16.xpose.msra.mxu0 0
  %2215 = vmatpush.bf16.xpose.msra.mxu0 %v2206
  %2216 = vmatmul.bf16.gmra.mxu0 %v2203
  %v2217 = vpop.f32.mrf.mxu0
  %v2218 = vadd.f32 0.0, %v2217
  %v2219 = vpop.f32.mrf.mxu0
  %2220 = vdwg.mxu0
  %v2221 = vmul.f32 %v1933, 0.125
  %v2222 = vmul.f32 %v1952, 0.125
  %v2223 = vmul.f32 %v1971, 0.125
  %v2224 = vmul.f32 %v1990, 0.125
  %v2225 = vmul.f32 %v2009, 0.125
  %v2226 = vmul.f32 %v2028, 0.125
  %v2227 = vmul.f32 %v2047, 0.125
  %v2228 = vmul.f32 %v2066, 0.125
  %v2229 = vmul.f32 %v2085, 0.125
  %v2230 = vmul.f32 %v2104, 0.125
  %v2231 = vmul.f32 %v2123, 0.125
  %v2232 = vmul.f32 %v2142, 0.125
  %v2233 = vmul.f32 %v2161, 0.125
  %v2234 = vmul.f32 %v2180, 0.125
  %v2235 = vmul.f32 %v2199, 0.125
  %v2236 = vmul.f32 %v2218, 0.125
  %v2237 = vadd.f32 %v2221, %v1177
  %v2238 = vadd.f32 %v2222, %v1177
  %v2239 = vadd.f32 %v2223, %v1177
  %v2240 = vadd.f32 %v2224, %v1177
  %v2241 = vadd.f32 %v2225, %v1177
  %v2242 = vadd.f32 %v2226, %v1177
  %v2243 = vadd.f32 %v2227, %v1177
  %v2244 = vadd.f32 %v2228, %v1177
  %v2245 = vadd.f32 %v2229, %v1177
  %v2246 = vadd.f32 %v2230, %v1177
  %v2247 = vadd.f32 %v2231, %v1177
  %v2248 = vadd.f32 %v2232, %v1177
  %v2249 = vadd.f32 %v2233, %v1177
  %v2250 = vadd.f32 %v2234, %v1177
  %v2251 = vadd.f32 %v2235, %v1177
  %v2252 = vadd.f32 %v2236, %v1177
  %vm2253 = vcmask 64512
  %v2254 = vsel %vm2253, %v2237, -inf
  %2255 = vmax.xlane.f32.xlu0 %v2254
  %v2256 = vpop.xlane.xlu0 %2255
  %v2257 = vsel %vm2253, %v2238, -inf
  %2258 = vmax.xlane.f32.xlu0 %v2257
  %v2259 = vpop.xlane.xlu0 %2258
  %v2260 = vsel %vm2253, %v2239, -inf
  %2261 = vmax.xlane.f32.xlu0 %v2260
  %v2262 = vpop.xlane.xlu0 %2261
  %v2263 = vsel %vm2253, %v2240, -inf
  %2264 = vmax.xlane.f32.xlu0 %v2263
  %v2265 = vpop.xlane.xlu0 %2264
  %v2266 = vsel %vm2253, %v2241, -inf
  %2267 = vmax.xlane.f32.xlu0 %v2266
  %v2268 = vpop.xlane.xlu0 %2267
  %v2269 = vsel %vm2253, %v2242, -inf
  %2270 = vmax.xlane.f32.xlu0 %v2269
  %v2271 = vpop.xlane.xlu0 %2270
  %v2272 = vsel %vm2253, %v2243, -inf
  %2273 = vmax.xlane.f32.xlu0 %v2272
  %v2274 = vpop.xlane.xlu0 %2273
  %v2275 = vsel %vm2253, %v2244, -inf
  %2276 = vmax.xlane.f32.xlu0 %v2275
  %v2277 = vpop.xlane.xlu0 %2276
  %v2278 = vsel %vm2253, %v2245, -inf
  %2279 = vmax.xlane.f32.xlu0 %v2278
  %v2280 = vpop.xlane.xlu0 %2279
  %v2281 = vsel %vm2253, %v2246, -inf
  %2282 = vmax.xlane.f32.xlu0 %v2281
  %v2283 = vpop.xlane.xlu0 %2282
  %v2284 = vsel %vm2253, %v2247, -inf
  %2285 = vmax.xlane.f32.xlu0 %v2284
  %v2286 = vpop.xlane.xlu0 %2285
  %v2287 = vsel %vm2253, %v2248, -inf
  %2288 = vmax.xlane.f32.xlu0 %v2287
  %v2289 = vpop.xlane.xlu0 %2288
  %v2290 = vsel %vm2253, %v2249, -inf
  %2291 = vmax.xlane.f32.xlu0 %v2290
  %v2292 = vpop.xlane.xlu0 %2291
  %v2293 = vsel %vm2253, %v2250, -inf
  %2294 = vmax.xlane.f32.xlu0 %v2293
  %v2295 = vpop.xlane.xlu0 %2294
  %v2296 = vsel %vm2253, %v2251, -inf
  %2297 = vmax.xlane.f32.xlu0 %v2296
  %v2298 = vpop.xlane.xlu0 %2297
  %v2299 = vsel %vm2253, %v2252, -inf
  %2300 = vmax.xlane.f32.xlu0 %v2299
  %v2301 = vpop.xlane.xlu0 %2300
  %v2302 = vsub.f32 %v2237, %v2256
  %v2303 = vsub.f32 %v2238, %v2259
  %v2304 = vsub.f32 %v2239, %v2262
  %v2305 = vsub.f32 %v2240, %v2265
  %v2306 = vsub.f32 %v2241, %v2268
  %v2307 = vsub.f32 %v2242, %v2271
  %v2308 = vsub.f32 %v2243, %v2274
  %v2309 = vsub.f32 %v2244, %v2277
  %v2310 = vsub.f32 %v2245, %v2280
  %v2311 = vsub.f32 %v2246, %v2283
  %v2312 = vsub.f32 %v2247, %v2286
  %v2313 = vsub.f32 %v2248, %v2289
  %v2314 = vsub.f32 %v2249, %v2292
  %v2315 = vsub.f32 %v2250, %v2295
  %v2316 = vsub.f32 %v2251, %v2298
  %v2317 = vsub.f32 %v2252, %v2301
  %v2318 = vmul.f32 %v2302, 1.442695
  %v2319 = vpow.pop %v2318
  %v2320 = vmul.f32 %v2303, 1.442695
  %v2321 = vpow.pop %v2320
  %v2322 = vmul.f32 %v2304, 1.442695
  %v2323 = vpow.pop %v2322
  %v2324 = vmul.f32 %v2305, 1.442695
  %v2325 = vpow.pop %v2324
  %v2326 = vmul.f32 %v2306, 1.442695
  %v2327 = vpow.pop %v2326
  %v2328 = vmul.f32 %v2307, 1.442695
  %v2329 = vpow.pop %v2328
  %v2330 = vmul.f32 %v2308, 1.442695
  %v2331 = vpow.pop %v2330
  %v2332 = vmul.f32 %v2309, 1.442695
  %v2333 = vpow.pop %v2332
  %v2334 = vmul.f32 %v2310, 1.442695
  %v2335 = vpow.pop %v2334
  %v2336 = vmul.f32 %v2311, 1.442695
  %v2337 = vpow.pop %v2336
  %v2338 = vmul.f32 %v2312, 1.442695
  %v2339 = vpow.pop %v2338
  %v2340 = vmul.f32 %v2313, 1.442695
  %v2341 = vpow.pop %v2340
  %v2342 = vmul.f32 %v2314, 1.442695
  %v2343 = vpow.pop %v2342
  %v2344 = vmul.f32 %v2315, 1.442695
  %v2345 = vpow.pop %v2344
  %v2346 = vmul.f32 %v2316, 1.442695
  %v2347 = vpow.pop %v2346
  %v2348 = vmul.f32 %v2317, 1.442695
  %v2349 = vpow.pop %v2348
  %v2350 = vsel %vm2253, %v2319, 0.0
  %2351 = vadd.xlane.f32.xlu0 %v2350
  %v2352 = vpop.xlane.xlu0 %2351
  %v2353 = vsel %vm2253, %v2321, 0.0
  %2354 = vadd.xlane.f32.xlu0 %v2353
  %v2355 = vpop.xlane.xlu0 %2354
  %v2356 = vsel %vm2253, %v2323, 0.0
  %2357 = vadd.xlane.f32.xlu0 %v2356
  %v2358 = vpop.xlane.xlu0 %2357
  %v2359 = vsel %vm2253, %v2325, 0.0
  %2360 = vadd.xlane.f32.xlu0 %v2359
  %v2361 = vpop.xlane.xlu0 %2360
  %v2362 = vsel %vm2253, %v2327, 0.0
  %2363 = vadd.xlane.f32.xlu0 %v2362
  %v2364 = vpop.xlane.xlu0 %2363
  %v2365 = vsel %vm2253, %v2329, 0.0
  %2366 = vadd.xlane.f32.xlu0 %v2365
  %v2367 = vpop.xlane.xlu0 %2366
  %v2368 = vsel %vm2253, %v2331, 0.0
  %2369 = vadd.xlane.f32.xlu0 %v2368
  %v2370 = vpop.xlane.xlu0 %2369
  %v2371 = vsel %vm2253, %v2333, 0.0
  %2372 = vadd.xlane.f32.xlu0 %v2371
  %v2373 = vpop.xlane.xlu0 %2372
  %v2374 = vsel %vm2253, %v2335, 0.0
  %2375 = vadd.xlane.f32.xlu0 %v2374
  %v2376 = vpop.xlane.xlu0 %2375
  %v2377 = vsel %vm2253, %v2337, 0.0
  %2378 = vadd.xlane.f32.xlu0 %v2377
  %v2379 = vpop.xlane.xlu0 %2378
  %v2380 = vsel %vm2253, %v2339, 0.0
  %2381 = vadd.xlane.f32.xlu0 %v2380
  %v2382 = vpop.xlane.xlu0 %2381
  %v2383 = vsel %vm2253, %v2341, 0.0
  %2384 = vadd.xlane.f32.xlu0 %v2383
  %v2385 = vpop.xlane.xlu0 %2384
  %v2386 = vsel %vm2253, %v2343, 0.0
  %2387 = vadd.xlane.f32.xlu0 %v2386
  %v2388 = vpop.xlane.xlu0 %2387
  %v2389 = vsel %vm2253, %v2345, 0.0
  %2390 = vadd.xlane.f32.xlu0 %v2389
  %v2391 = vpop.xlane.xlu0 %2390
  %v2392 = vsel %vm2253, %v2347, 0.0
  %2393 = vadd.xlane.f32.xlu0 %v2392
  %v2394 = vpop.xlane.xlu0 %2393
  %v2395 = vsel %vm2253, %v2349, 0.0
  %2396 = vadd.xlane.f32.xlu0 %v2395
  %v2397 = vpop.xlane.xlu0 %2396
  %v2398 = vrcp.pop %v2352
  %v2399 = vmul.f32 %v2352, %v2398
  %v2400 = vsub.f32 1.0, %v2399
  %v2401 = vmul.f32 %v2398, %v2400
  %v2402 = vadd.f32 %v2398, %v2401
  %vm2403 = vweird.f32 %v2352
  %vm2404 = vweird.f32 %v2398
  %vm2405 = vmor %vm2403, %vm2404
  %v2406 = vsel %vm2405, %v2398, %v2402
  %v2407 = vand.u32 2147483647, %v2352
  %vm2408 = vcmp.eq.f32.partialorder %v2407, 8.507059e+37
  %v2409 = vand.u32 %v2352, 2147483648
  %v2410 = vor.u32 1.1754944e-38, %v2409
  %v2411 = vsel %vm2408, %v2410, %v2406
  %v2412 = vrcp.pop %v2355
  %v2413 = vmul.f32 %v2355, %v2412
  %v2414 = vsub.f32 1.0, %v2413
  %v2415 = vmul.f32 %v2412, %v2414
  %v2416 = vadd.f32 %v2412, %v2415
  %vm2417 = vweird.f32 %v2355
  %vm2418 = vweird.f32 %v2412
  %vm2419 = vmor %vm2417, %vm2418
  %v2420 = vsel %vm2419, %v2412, %v2416
  %v2421 = vand.u32 2147483647, %v2355
  %vm2422 = vcmp.eq.f32.partialorder %v2421, 8.507059e+37
  %v2423 = vand.u32 %v2355, 2147483648
  %v2424 = vor.u32 1.1754944e-38, %v2423
  %v2425 = vsel %vm2422, %v2424, %v2420
  %v2426 = vrcp.pop %v2358
  %v2427 = vmul.f32 %v2358, %v2426
  %v2428 = vsub.f32 1.0, %v2427
  %v2429 = vmul.f32 %v2426, %v2428
  %v2430 = vadd.f32 %v2426, %v2429
  %vm2431 = vweird.f32 %v2358
  %vm2432 = vweird.f32 %v2426
  %vm2433 = vmor %vm2431, %vm2432
  %v2434 = vsel %vm2433, %v2426, %v2430
  %v2435 = vand.u32 2147483647, %v2358
  %vm2436 = vcmp.eq.f32.partialorder %v2435, 8.507059e+37
  %v2437 = vand.u32 %v2358, 2147483648
  %v2438 = vor.u32 1.1754944e-38, %v2437
  %v2439 = vsel %vm2436, %v2438, %v2434
  %v2440 = vrcp.pop %v2361
  %v2441 = vmul.f32 %v2361, %v2440
  %v2442 = vsub.f32 1.0, %v2441
  %v2443 = vmul.f32 %v2440, %v2442
  %v2444 = vadd.f32 %v2440, %v2443
  %vm2445 = vweird.f32 %v2361
  %vm2446 = vweird.f32 %v2440
  %vm2447 = vmor %vm2445, %vm2446
  %v2448 = vsel %vm2447, %v2440, %v2444
  %v2449 = vand.u32 2147483647, %v2361
  %vm2450 = vcmp.eq.f32.partialorder %v2449, 8.507059e+37
  %v2451 = vand.u32 %v2361, 2147483648
  %v2452 = vor.u32 1.1754944e-38, %v2451
  %v2453 = vsel %vm2450, %v2452, %v2448
  %v2454 = vrcp.pop %v2364
  %v2455 = vmul.f32 %v2364, %v2454
  %v2456 = vsub.f32 1.0, %v2455
  %v2457 = vmul.f32 %v2454, %v2456
  %v2458 = vadd.f32 %v2454, %v2457
  %vm2459 = vweird.f32 %v2364
  %vm2460 = vweird.f32 %v2454
  %vm2461 = vmor %vm2459, %vm2460
  %v2462 = vsel %vm2461, %v2454, %v2458
  %v2463 = vand.u32 2147483647, %v2364
  %vm2464 = vcmp.eq.f32.partialorder %v2463, 8.507059e+37
  %v2465 = vand.u32 %v2364, 2147483648
  %v2466 = vor.u32 1.1754944e-38, %v2465
  %v2467 = vsel %vm2464, %v2466, %v2462
  %v2468 = vrcp.pop %v2367
  %v2469 = vmul.f32 %v2367, %v2468
  %v2470 = vsub.f32 1.0, %v2469
  %v2471 = vmul.f32 %v2468, %v2470
  %v2472 = vadd.f32 %v2468, %v2471
  %vm2473 = vweird.f32 %v2367
  %vm2474 = vweird.f32 %v2468
  %vm2475 = vmor %vm2473, %vm2474
  %v2476 = vsel %vm2475, %v2468, %v2472
  %v2477 = vand.u32 2147483647, %v2367
  %vm2478 = vcmp.eq.f32.partialorder %v2477, 8.507059e+37
  %v2479 = vand.u32 %v2367, 2147483648
  %v2480 = vor.u32 1.1754944e-38, %v2479
  %v2481 = vsel %vm2478, %v2480, %v2476
  %v2482 = vrcp.pop %v2370
  %v2483 = vmul.f32 %v2370, %v2482
  %v2484 = vsub.f32 1.0, %v2483
  %v2485 = vmul.f32 %v2482, %v2484
  %v2486 = vadd.f32 %v2482, %v2485
  %vm2487 = vweird.f32 %v2370
  %vm2488 = vweird.f32 %v2482
  %vm2489 = vmor %vm2487, %vm2488
  %v2490 = vsel %vm2489, %v2482, %v2486
  %v2491 = vand.u32 2147483647, %v2370
  %vm2492 = vcmp.eq.f32.partialorder %v2491, 8.507059e+37
  %v2493 = vand.u32 %v2370, 2147483648
  %v2494 = vor.u32 1.1754944e-38, %v2493
  %v2495 = vsel %vm2492, %v2494, %v2490
  %v2496 = vrcp.pop %v2373
  %v2497 = vmul.f32 %v2373, %v2496
  %v2498 = vsub.f32 1.0, %v2497
  %v2499 = vmul.f32 %v2496, %v2498
  %v2500 = vadd.f32 %v2496, %v2499
  %vm2501 = vweird.f32 %v2373
  %vm2502 = vweird.f32 %v2496
  %vm2503 = vmor %vm2501, %vm2502
  %v2504 = vsel %vm2503, %v2496, %v2500
  %v2505 = vand.u32 2147483647, %v2373
  %vm2506 = vcmp.eq.f32.partialorder %v2505, 8.507059e+37
  %v2507 = vand.u32 %v2373, 2147483648
  %v2508 = vor.u32 1.1754944e-38, %v2507
  %v2509 = vsel %vm2506, %v2508, %v2504
  %v2510 = vrcp.pop %v2376
  %v2511 = vmul.f32 %v2376, %v2510
  %v2512 = vsub.f32 1.0, %v2511
  %v2513 = vmul.f32 %v2510, %v2512
  %v2514 = vadd.f32 %v2510, %v2513
  %vm2515 = vweird.f32 %v2376
  %vm2516 = vweird.f32 %v2510
  %vm2517 = vmor %vm2515, %vm2516
  %v2518 = vsel %vm2517, %v2510, %v2514
  %v2519 = vand.u32 2147483647, %v2376
  %vm2520 = vcmp.eq.f32.partialorder %v2519, 8.507059e+37
  %v2521 = vand.u32 %v2376, 2147483648
  %v2522 = vor.u32 1.1754944e-38, %v2521
  %v2523 = vsel %vm2520, %v2522, %v2518
  %v2524 = vrcp.pop %v2379
  %v2525 = vmul.f32 %v2379, %v2524
  %v2526 = vsub.f32 1.0, %v2525
  %v2527 = vmul.f32 %v2524, %v2526
  %v2528 = vadd.f32 %v2524, %v2527
  %vm2529 = vweird.f32 %v2379
  %vm2530 = vweird.f32 %v2524
  %vm2531 = vmor %vm2529, %vm2530
  %v2532 = vsel %vm2531, %v2524, %v2528
  %v2533 = vand.u32 2147483647, %v2379
  %vm2534 = vcmp.eq.f32.partialorder %v2533, 8.507059e+37
  %v2535 = vand.u32 %v2379, 2147483648
  %v2536 = vor.u32 1.1754944e-38, %v2535
  %v2537 = vsel %vm2534, %v2536, %v2532
  %v2538 = vrcp.pop %v2382
  %v2539 = vmul.f32 %v2382, %v2538
  %v2540 = vsub.f32 1.0, %v2539
  %v2541 = vmul.f32 %v2538, %v2540
  %v2542 = vadd.f32 %v2538, %v2541
  %vm2543 = vweird.f32 %v2382
  %vm2544 = vweird.f32 %v2538
  %vm2545 = vmor %vm2543, %vm2544
  %v2546 = vsel %vm2545, %v2538, %v2542
  %v2547 = vand.u32 2147483647, %v2382
  %vm2548 = vcmp.eq.f32.partialorder %v2547, 8.507059e+37
  %v2549 = vand.u32 %v2382, 2147483648
  %v2550 = vor.u32 1.1754944e-38, %v2549
  %v2551 = vsel %vm2548, %v2550, %v2546
  %v2552 = vrcp.pop %v2385
  %v2553 = vmul.f32 %v2385, %v2552
  %v2554 = vsub.f32 1.0, %v2553
  %v2555 = vmul.f32 %v2552, %v2554
  %v2556 = vadd.f32 %v2552, %v2555
  %vm2557 = vweird.f32 %v2385
  %vm2558 = vweird.f32 %v2552
  %vm2559 = vmor %vm2557, %vm2558
  %v2560 = vsel %vm2559, %v2552, %v2556
  %v2561 = vand.u32 2147483647, %v2385
  %vm2562 = vcmp.eq.f32.partialorder %v2561, 8.507059e+37
  %v2563 = vand.u32 %v2385, 2147483648
  %v2564 = vor.u32 1.1754944e-38, %v2563
  %v2565 = vsel %vm2562, %v2564, %v2560
  %v2566 = vrcp.pop %v2388
  %v2567 = vmul.f32 %v2388, %v2566
  %v2568 = vsub.f32 1.0, %v2567
  %v2569 = vmul.f32 %v2566, %v2568
  %v2570 = vadd.f32 %v2566, %v2569
  %vm2571 = vweird.f32 %v2388
  %vm2572 = vweird.f32 %v2566
  %vm2573 = vmor %vm2571, %vm2572
  %v2574 = vsel %vm2573, %v2566, %v2570
  %v2575 = vand.u32 2147483647, %v2388
  %vm2576 = vcmp.eq.f32.partialorder %v2575, 8.507059e+37
  %v2577 = vand.u32 %v2388, 2147483648
  %v2578 = vor.u32 1.1754944e-38, %v2577
  %v2579 = vsel %vm2576, %v2578, %v2574
  %v2580 = vrcp.pop %v2391
  %v2581 = vmul.f32 %v2391, %v2580
  %v2582 = vsub.f32 1.0, %v2581
  %v2583 = vmul.f32 %v2580, %v2582
  %v2584 = vadd.f32 %v2580, %v2583
  %vm2585 = vweird.f32 %v2391
  %vm2586 = vweird.f32 %v2580
  %vm2587 = vmor %vm2585, %vm2586
  %v2588 = vsel %vm2587, %v2580, %v2584
  %v2589 = vand.u32 2147483647, %v2391
  %vm2590 = vcmp.eq.f32.partialorder %v2589, 8.507059e+37
  %v2591 = vand.u32 %v2391, 2147483648
  %v2592 = vor.u32 1.1754944e-38, %v2591
  %v2593 = vsel %vm2590, %v2592, %v2588
  %v2594 = vrcp.pop %v2394
  %v2595 = vmul.f32 %v2394, %v2594
  %v2596 = vsub.f32 1.0, %v2595
  %v2597 = vmul.f32 %v2594, %v2596
  %v2598 = vadd.f32 %v2594, %v2597
  %vm2599 = vweird.f32 %v2394
  %vm2600 = vweird.f32 %v2594
  %vm2601 = vmor %vm2599, %vm2600
  %v2602 = vsel %vm2601, %v2594, %v2598
  %v2603 = vand.u32 2147483647, %v2394
  %vm2604 = vcmp.eq.f32.partialorder %v2603, 8.507059e+37
  %v2605 = vand.u32 %v2394, 2147483648
  %v2606 = vor.u32 1.1754944e-38, %v2605
  %v2607 = vsel %vm2604, %v2606, %v2602
  %v2608 = vrcp.pop %v2397
  %v2609 = vmul.f32 %v2397, %v2608
  %v2610 = vsub.f32 1.0, %v2609
  %v2611 = vmul.f32 %v2608, %v2610
  %v2612 = vadd.f32 %v2608, %v2611
  %vm2613 = vweird.f32 %v2397
  %vm2614 = vweird.f32 %v2608
  %vm2615 = vmor %vm2613, %vm2614
  %v2616 = vsel %vm2615, %v2608, %v2612
  %v2617 = vand.u32 2147483647, %v2397
  %vm2618 = vcmp.eq.f32.partialorder %v2617, 8.507059e+37
  %v2619 = vand.u32 %v2397, 2147483648
  %v2620 = vor.u32 1.1754944e-38, %v2619
  %v2621 = vsel %vm2618, %v2620, %v2616
  %v2622 = vmul.f32 %v2319, %v2411
  %v2623 = vmul.f32 %v2321, %v2425
  %v2624 = vmul.f32 %v2323, %v2439
  %v2625 = vmul.f32 %v2325, %v2453
  %v2626 = vmul.f32 %v2327, %v2467
  %v2627 = vmul.f32 %v2329, %v2481
  %v2628 = vmul.f32 %v2331, %v2495
  %v2629 = vmul.f32 %v2333, %v2509
  %v2630 = vmul.f32 %v2335, %v2523
  %v2631 = vmul.f32 %v2337, %v2537
  %v2632 = vmul.f32 %v2339, %v2551
  %v2633 = vmul.f32 %v2341, %v2565
  %v2634 = vmul.f32 %v2343, %v2579
  %v2635 = vmul.f32 %v2345, %v2593
  %v2636 = vmul.f32 %v2347, %v2607
  %v2637 = vmul.f32 %v2349, %v2621
  %v2638 = vpack.c.bf16 %v2622, %v2622
  %v2639 = vpack.c.bf16 %v2623, %v2623
  %v2640 = vpack.c.bf16 %v2624, %v2624
  %v2641 = vpack.c.bf16 %v2625, %v2625
  %v2642 = vpack.c.bf16 %v2626, %v2626
  %v2643 = vpack.c.bf16 %v2627, %v2627
  %v2644 = vpack.c.bf16 %v2628, %v2628
  %v2645 = vpack.c.bf16 %v2629, %v2629
  %v2646 = vpack.c.bf16 %v2630, %v2630
  %v2647 = vpack.c.bf16 %v2631, %v2631
  %v2648 = vpack.c.bf16 %v2632, %v2632
  %v2649 = vpack.c.bf16 %v2633, %v2633
  %v2650 = vpack.c.bf16 %v2634, %v2634
  %v2651 = vpack.c.bf16 %v2635, %v2635
  %v2652 = vpack.c.bf16 %v2636, %v2636
  %v2653 = vpack.c.bf16 %v2637, %v2637
  %v2655 = vsel %vm2253, %v2638, 0
  %vm2657 = vcmask 1043456
  %v2659 = vsel %vm2657, %v1900, 0
  %2661 = vmatpush.bf16.msra.mxu0 0
  %2662 = vmatpush.bf16.msra.mxu0 0
  %2663 = vmatpush.bf16.msra.mxu0 0
  %2664 = vmatpush.bf16.msra.mxu0 0
  %2665 = vmatpush.bf16.msra.mxu0 0
  %2666 = vmatpush.bf16.msra.mxu0 0
  %2667 = vmatpush.bf16.msra.mxu0 0
  %2668 = vmatpush.bf16.msra.mxu0 %v2659
  %2669 = vmatmul.bf16.gmra.mxu0 %v2655
  %v2670 = vpop.f32.mrf.mxu0
  %v2671 = vadd.f32 0.0, %v2670
  %v2672 = vpop.f32.mrf.mxu0
  %2673 = vdwg.mxu0
  %v2675 = vsel %vm2253, %v2639, 0
  %v2678 = vsel %vm2657, %v1901, 0
  %2680 = vmatpush.bf16.msra.mxu0 0
  %2681 = vmatpush.bf16.msra.mxu0 0
  %2682 = vmatpush.bf16.msra.mxu0 0
  %2683 = vmatpush.bf16.msra.mxu0 0
  %2684 = vmatpush.bf16.msra.mxu0 0
  %2685 = vmatpush.bf16.msra.mxu0 0
  %2686 = vmatpush.bf16.msra.mxu0 0
  %2687 = vmatpush.bf16.msra.mxu0 %v2678
  %2688 = vmatmul.bf16.gmra.mxu0 %v2675
  %v2689 = vpop.f32.mrf.mxu0
  %v2690 = vadd.f32 0.0, %v2689
  %v2691 = vpop.f32.mrf.mxu0
  %2692 = vdwg.mxu0
  %v2694 = vsel %vm2253, %v2640, 0
  %v2697 = vsel %vm2657, %v1902, 0
  %2699 = vmatpush.bf16.msra.mxu0 0
  %2700 = vmatpush.bf16.msra.mxu0 0
  %2701 = vmatpush.bf16.msra.mxu0 0
  %2702 = vmatpush.bf16.msra.mxu0 0
  %2703 = vmatpush.bf16.msra.mxu0 0
  %2704 = vmatpush.bf16.msra.mxu0 0
  %2705 = vmatpush.bf16.msra.mxu0 0
  %2706 = vmatpush.bf16.msra.mxu0 %v2697
  %2707 = vmatmul.bf16.gmra.mxu0 %v2694
  %v2708 = vpop.f32.mrf.mxu0
  %v2709 = vadd.f32 0.0, %v2708
  %v2710 = vpop.f32.mrf.mxu0
  %2711 = vdwg.mxu0
  %v2713 = vsel %vm2253, %v2641, 0
  %v2716 = vsel %vm2657, %v1903, 0
  %2718 = vmatpush.bf16.msra.mxu0 0
  %2719 = vmatpush.bf16.msra.mxu0 0
  %2720 = vmatpush.bf16.msra.mxu0 0
  %2721 = vmatpush.bf16.msra.mxu0 0
  %2722 = vmatpush.bf16.msra.mxu0 0
  %2723 = vmatpush.bf16.msra.mxu0 0
  %2724 = vmatpush.bf16.msra.mxu0 0
  %2725 = vmatpush.bf16.msra.mxu0 %v2716
  %2726 = vmatmul.bf16.gmra.mxu0 %v2713
  %v2727 = vpop.f32.mrf.mxu0
  %v2728 = vadd.f32 0.0, %v2727
  %v2729 = vpop.f32.mrf.mxu0
  %2730 = vdwg.mxu0
  %v2732 = vsel %vm2253, %v2642, 0
  %v2735 = vsel %vm2657, %v1904, 0
  %2737 = vmatpush.bf16.msra.mxu0 0
  %2738 = vmatpush.bf16.msra.mxu0 0
  %2739 = vmatpush.bf16.msra.mxu0 0
  %2740 = vmatpush.bf16.msra.mxu0 0
  %2741 = vmatpush.bf16.msra.mxu0 0
  %2742 = vmatpush.bf16.msra.mxu0 0
  %2743 = vmatpush.bf16.msra.mxu0 0
  %2744 = vmatpush.bf16.msra.mxu0 %v2735
  %2745 = vmatmul.bf16.gmra.mxu0 %v2732
  %v2746 = vpop.f32.mrf.mxu0
  %v2747 = vadd.f32 0.0, %v2746
  %v2748 = vpop.f32.mrf.mxu0
  %2749 = vdwg.mxu0
  %v2751 = vsel %vm2253, %v2643, 0
  %v2754 = vsel %vm2657, %v1905, 0
  %2756 = vmatpush.bf16.msra.mxu0 0
  %2757 = vmatpush.bf16.msra.mxu0 0
  %2758 = vmatpush.bf16.msra.mxu0 0
  %2759 = vmatpush.bf16.msra.mxu0 0
  %2760 = vmatpush.bf16.msra.mxu0 0
  %2761 = vmatpush.bf16.msra.mxu0 0
  %2762 = vmatpush.bf16.msra.mxu0 0
  %2763 = vmatpush.bf16.msra.mxu0 %v2754
  %2764 = vmatmul.bf16.gmra.mxu0 %v2751
  %v2765 = vpop.f32.mrf.mxu0
  %v2766 = vadd.f32 0.0, %v2765
  %v2767 = vpop.f32.mrf.mxu0
  %2768 = vdwg.mxu0
  %v2770 = vsel %vm2253, %v2644, 0
  %v2773 = vsel %vm2657, %v1906, 0
  %2775 = vmatpush.bf16.msra.mxu0 0
  %2776 = vmatpush.bf16.msra.mxu0 0
  %2777 = vmatpush.bf16.msra.mxu0 0
  %2778 = vmatpush.bf16.msra.mxu0 0
  %2779 = vmatpush.bf16.msra.mxu0 0
  %2780 = vmatpush.bf16.msra.mxu0 0
  %2781 = vmatpush.bf16.msra.mxu0 0
  %2782 = vmatpush.bf16.msra.mxu0 %v2773
  %2783 = vmatmul.bf16.gmra.mxu0 %v2770
  %v2784 = vpop.f32.mrf.mxu0
  %v2785 = vadd.f32 0.0, %v2784
  %v2786 = vpop.f32.mrf.mxu0
  %2787 = vdwg.mxu0
  %v2789 = vsel %vm2253, %v2645, 0
  %v2792 = vsel %vm2657, %v1907, 0
  %2794 = vmatpush.bf16.msra.mxu0 0
  %2795 = vmatpush.bf16.msra.mxu0 0
  %2796 = vmatpush.bf16.msra.mxu0 0
  %2797 = vmatpush.bf16.msra.mxu0 0
  %2798 = vmatpush.bf16.msra.mxu0 0
  %2799 = vmatpush.bf16.msra.mxu0 0
  %2800 = vmatpush.bf16.msra.mxu0 0
  %2801 = vmatpush.bf16.msra.mxu0 %v2792
  %2802 = vmatmul.bf16.gmra.mxu0 %v2789
  %v2803 = vpop.f32.mrf.mxu0
  %v2804 = vadd.f32 0.0, %v2803
  %v2805 = vpop.f32.mrf.mxu0
  %2806 = vdwg.mxu0
  %v2808 = vsel %vm2253, %v2646, 0
  %v2811 = vsel %vm2657, %v1908, 0
  %2813 = vmatpush.bf16.msra.mxu0 0
  %2814 = vmatpush.bf16.msra.mxu0 0
  %2815 = vmatpush.bf16.msra.mxu0 0
  %2816 = vmatpush.bf16.msra.mxu0 0
  %2817 = vmatpush.bf16.msra.mxu0 0
  %2818 = vmatpush.bf16.msra.mxu0 0
  %2819 = vmatpush.bf16.msra.mxu0 0
  %2820 = vmatpush.bf16.msra.mxu0 %v2811
  %2821 = vmatmul.bf16.gmra.mxu0 %v2808
  %v2822 = vpop.f32.mrf.mxu0
  %v2823 = vadd.f32 0.0, %v2822
  %v2824 = vpop.f32.mrf.mxu0
  %2825 = vdwg.mxu0
  %v2827 = vsel %vm2253, %v2647, 0
  %v2830 = vsel %vm2657, %v1909, 0
  %2832 = vmatpush.bf16.msra.mxu0 0
  %2833 = vmatpush.bf16.msra.mxu0 0
  %2834 = vmatpush.bf16.msra.mxu0 0
  %2835 = vmatpush.bf16.msra.mxu0 0
  %2836 = vmatpush.bf16.msra.mxu0 0
  %2837 = vmatpush.bf16.msra.mxu0 0
  %2838 = vmatpush.bf16.msra.mxu0 0
  %2839 = vmatpush.bf16.msra.mxu0 %v2830
  %2840 = vmatmul.bf16.gmra.mxu0 %v2827
  %v2841 = vpop.f32.mrf.mxu0
  %v2842 = vadd.f32 0.0, %v2841
  %v2843 = vpop.f32.mrf.mxu0
  %2844 = vdwg.mxu0
  %v2846 = vsel %vm2253, %v2648, 0
  %v2849 = vsel %vm2657, %v1910, 0
  %2851 = vmatpush.bf16.msra.mxu0 0
  %2852 = vmatpush.bf16.msra.mxu0 0
  %2853 = vmatpush.bf16.msra.mxu0 0
  %2854 = vmatpush.bf16.msra.mxu0 0
  %2855 = vmatpush.bf16.msra.mxu0 0
  %2856 = vmatpush.bf16.msra.mxu0 0
  %2857 = vmatpush.bf16.msra.mxu0 0
  %2858 = vmatpush.bf16.msra.mxu0 %v2849
  %2859 = vmatmul.bf16.gmra.mxu0 %v2846
  %v2860 = vpop.f32.mrf.mxu0
  %v2861 = vadd.f32 0.0, %v2860
  %v2862 = vpop.f32.mrf.mxu0
  %2863 = vdwg.mxu0
  %v2865 = vsel %vm2253, %v2649, 0
  %v2868 = vsel %vm2657, %v1911, 0
  %2870 = vmatpush.bf16.msra.mxu0 0
  %2871 = vmatpush.bf16.msra.mxu0 0
  %2872 = vmatpush.bf16.msra.mxu0 0
  %2873 = vmatpush.bf16.msra.mxu0 0
  %2874 = vmatpush.bf16.msra.mxu0 0
  %2875 = vmatpush.bf16.msra.mxu0 0
  %2876 = vmatpush.bf16.msra.mxu0 0
  %2877 = vmatpush.bf16.msra.mxu0 %v2868
  %2878 = vmatmul.bf16.gmra.mxu0 %v2865
  %v2879 = vpop.f32.mrf.mxu0
  %v2880 = vadd.f32 0.0, %v2879
  %v2881 = vpop.f32.mrf.mxu0
  %2882 = vdwg.mxu0
  %v2884 = vsel %vm2253, %v2650, 0
  %v2887 = vsel %vm2657, %v1912, 0
  %2889 = vmatpush.bf16.msra.mxu0 0
  %2890 = vmatpush.bf16.msra.mxu0 0
  %2891 = vmatpush.bf16.msra.mxu0 0
  %2892 = vmatpush.bf16.msra.mxu0 0
  %2893 = vmatpush.bf16.msra.mxu0 0
  %2894 = vmatpush.bf16.msra.mxu0 0
  %2895 = vmatpush.bf16.msra.mxu0 0
  %2896 = vmatpush.bf16.msra.mxu0 %v2887
  %2897 = vmatmul.bf16.gmra.mxu0 %v2884
  %v2898 = vpop.f32.mrf.mxu0
  %v2899 = vadd.f32 0.0, %v2898
  %v2900 = vpop.f32.mrf.mxu0
  %2901 = vdwg.mxu0
  %v2903 = vsel %vm2253, %v2651, 0
  %v2906 = vsel %vm2657, %v1913, 0
  %2908 = vmatpush.bf16.msra.mxu0 0
  %2909 = vmatpush.bf16.msra.mxu0 0
  %2910 = vmatpush.bf16.msra.mxu0 0
  %2911 = vmatpush.bf16.msra.mxu0 0
  %2912 = vmatpush.bf16.msra.mxu0 0
  %2913 = vmatpush.bf16.msra.mxu0 0
  %2914 = vmatpush.bf16.msra.mxu0 0
  %2915 = vmatpush.bf16.msra.mxu0 %v2906
  %2916 = vmatmul.bf16.gmra.mxu0 %v2903
  %v2917 = vpop.f32.mrf.mxu0
  %v2918 = vadd.f32 0.0, %v2917
  %v2919 = vpop.f32.mrf.mxu0
  %2920 = vdwg.mxu0
  %v2922 = vsel %vm2253, %v2652, 0
  %v2925 = vsel %vm2657, %v1914, 0
  %2927 = vmatpush.bf16.msra.mxu0 0
  %2928 = vmatpush.bf16.msra.mxu0 0
  %2929 = vmatpush.bf16.msra.mxu0 0
  %2930 = vmatpush.bf16.msra.mxu0 0
  %2931 = vmatpush.bf16.msra.mxu0 0
  %2932 = vmatpush.bf16.msra.mxu0 0
  %2933 = vmatpush.bf16.msra.mxu0 0
  %2934 = vmatpush.bf16.msra.mxu0 %v2925
  %2935 = vmatmul.bf16.gmra.mxu0 %v2922
  %v2936 = vpop.f32.mrf.mxu0
  %v2937 = vadd.f32 0.0, %v2936
  %v2938 = vpop.f32.mrf.mxu0
  %2939 = vdwg.mxu0
  %v2941 = vsel %vm2253, %v2653, 0
  %v2944 = vsel %vm2657, %v1915, 0
  %2946 = vmatpush.bf16.msra.mxu0 0
  %2947 = vmatpush.bf16.msra.mxu0 0
  %2948 = vmatpush.bf16.msra.mxu0 0
  %2949 = vmatpush.bf16.msra.mxu0 0
  %2950 = vmatpush.bf16.msra.mxu0 0
  %2951 = vmatpush.bf16.msra.mxu0 0
  %2952 = vmatpush.bf16.msra.mxu0 0
  %2953 = vmatpush.bf16.msra.mxu0 %v2944
  %2954 = vmatmul.bf16.gmra.mxu0 %v2941
  %v2955 = vpop.f32.mrf.mxu0
  %v2956 = vadd.f32 0.0, %v2955
  %v2957 = vpop.f32.mrf.mxu0
  %2958 = vdwg.mxu0
  %v2960 = vunpack.c.l.b16 %v1868
  %v2961 = vpack.c.b16 %v2960, %v2960
  %2962 = vrot.lane.b32.xlu0 %v2961, 64
  %v2963 = vpop.permute.xlu0 %2962
  %v2965 = vunpack.c.l.b16 %v1884
  %v2966 = vpack.c.b16 %v2965, %v2965
  %2967 = vrot.lane.b32.xlu0 %v2966, 64
  %v2968 = vpop.permute.xlu0 %2967
  %v2970 = vsel %vm1916, %v2963, 0
  %v2973 = vsel %vm1916, %v2968, 0
  %2975 = vmatpush.bf16.xpose.msra.mxu0 0
  %2976 = vmatpush.bf16.xpose.msra.mxu0 0
  %2977 = vmatpush.bf16.xpose.msra.mxu0 0
  %2978 = vmatpush.bf16.xpose.msra.mxu0 0
  %2979 = vmatpush.bf16.xpose.msra.mxu0 0
  %2980 = vmatpush.bf16.xpose.msra.mxu0 0
  %2981 = vmatpush.bf16.xpose.msra.mxu0 0
  %2982 = vmatpush.bf16.xpose.msra.mxu0 %v2973
  %2983 = vmatmul.bf16.gmra.mxu0 %v2970
  %v2984 = vpop.f32.mrf.mxu0
  %v2985 = vadd.f32 0.0, %v2984
  %v2986 = vpop.f32.mrf.mxu0
  %2987 = vdwg.mxu0
  %v2989 = vunpack.c.l.b16 %v1869
  %v2990 = vpack.c.b16 %v2989, %v2989
  %2991 = vrot.lane.b32.xlu0 %v2990, 64
  %v2992 = vpop.permute.xlu0 %2991
  %v2994 = vunpack.c.l.b16 %v1885
  %v2995 = vpack.c.b16 %v2994, %v2994
  %2996 = vrot.lane.b32.xlu0 %v2995, 64
  %v2997 = vpop.permute.xlu0 %2996
  %v2999 = vsel %vm1916, %v2992, 0
  %v3002 = vsel %vm1916, %v2997, 0
  %3004 = vmatpush.bf16.xpose.msra.mxu0 0
  %3005 = vmatpush.bf16.xpose.msra.mxu0 0
  %3006 = vmatpush.bf16.xpose.msra.mxu0 0
  %3007 = vmatpush.bf16.xpose.msra.mxu0 0
  %3008 = vmatpush.bf16.xpose.msra.mxu0 0
  %3009 = vmatpush.bf16.xpose.msra.mxu0 0
  %3010 = vmatpush.bf16.xpose.msra.mxu0 0
  %3011 = vmatpush.bf16.xpose.msra.mxu0 %v3002
  %3012 = vmatmul.bf16.gmra.mxu0 %v2999
  %v3013 = vpop.f32.mrf.mxu0
  %v3014 = vadd.f32 0.0, %v3013
  %v3015 = vpop.f32.mrf.mxu0
  %3016 = vdwg.mxu0
  %v3018 = vunpack.c.l.b16 %v1870
  %v3019 = vpack.c.b16 %v3018, %v3018
  %3020 = vrot.lane.b32.xlu0 %v3019, 64
  %v3021 = vpop.permute.xlu0 %3020
  %v3023 = vunpack.c.l.b16 %v1886
  %v3024 = vpack.c.b16 %v3023, %v3023
  %3025 = vrot.lane.b32.xlu0 %v3024, 64
  %v3026 = vpop.permute.xlu0 %3025
  %v3028 = vsel %vm1916, %v3021, 0
  %v3031 = vsel %vm1916, %v3026, 0
  %3033 = vmatpush.bf16.xpose.msra.mxu0 0
  %3034 = vmatpush.bf16.xpose.msra.mxu0 0
  %3035 = vmatpush.bf16.xpose.msra.mxu0 0
  %3036 = vmatpush.bf16.xpose.msra.mxu0 0
  %3037 = vmatpush.bf16.xpose.msra.mxu0 0
  %3038 = vmatpush.bf16.xpose.msra.mxu0 0
  %3039 = vmatpush.bf16.xpose.msra.mxu0 0
  %3040 = vmatpush.bf16.xpose.msra.mxu0 %v3031
  %3041 = vmatmul.bf16.gmra.mxu0 %v3028
  %v3042 = vpop.f32.mrf.mxu0
  %v3043 = vadd.f32 0.0, %v3042
  %v3044 = vpop.f32.mrf.mxu0
  %3045 = vdwg.mxu0
  %v3047 = vunpack.c.l.b16 %v1871
  %v3048 = vpack.c.b16 %v3047, %v3047
  %3049 = vrot.lane.b32.xlu0 %v3048, 64
  %v3050 = vpop.permute.xlu0 %3049
  %v3052 = vunpack.c.l.b16 %v1887
  %v3053 = vpack.c.b16 %v3052, %v3052
  %3054 = vrot.lane.b32.xlu0 %v3053, 64
  %v3055 = vpop.permute.xlu0 %3054
  %v3057 = vsel %vm1916, %v3050, 0
  %v3060 = vsel %vm1916, %v3055, 0
  %3062 = vmatpush.bf16.xpose.msra.mxu0 0
  %3063 = vmatpush.bf16.xpose.msra.mxu0 0
  %3064 = vmatpush.bf16.xpose.msra.mxu0 0
  %3065 = vmatpush.bf16.xpose.msra.mxu0 0
  %3066 = vmatpush.bf16.xpose.msra.mxu0 0
  %3067 = vmatpush.bf16.xpose.msra.mxu0 0
  %3068 = vmatpush.bf16.xpose.msra.mxu0 0
  %3069 = vmatpush.bf16.xpose.msra.mxu0 %v3060
  %3070 = vmatmul.bf16.gmra.mxu0 %v3057
  %v3071 = vpop.f32.mrf.mxu0
  %v3072 = vadd.f32 0.0, %v3071
  %v3073 = vpop.f32.mrf.mxu0
  %3074 = vdwg.mxu0
  %v3076 = vunpack.c.l.b16 %v1872
  %v3077 = vpack.c.b16 %v3076, %v3076
  %3078 = vrot.lane.b32.xlu0 %v3077, 64
  %v3079 = vpop.permute.xlu0 %3078
  %v3081 = vunpack.c.l.b16 %v1888
  %v3082 = vpack.c.b16 %v3081, %v3081
  %3083 = vrot.lane.b32.xlu0 %v3082, 64
  %v3084 = vpop.permute.xlu0 %3083
  %v3086 = vsel %vm1916, %v3079, 0
  %v3089 = vsel %vm1916, %v3084, 0
  %3091 = vmatpush.bf16.xpose.msra.mxu0 0
  %3092 = vmatpush.bf16.xpose.msra.mxu0 0
  %3093 = vmatpush.bf16.xpose.msra.mxu0 0
  %3094 = vmatpush.bf16.xpose.msra.mxu0 0
  %3095 = vmatpush.bf16.xpose.msra.mxu0 0
  %3096 = vmatpush.bf16.xpose.msra.mxu0 0
  %3097 = vmatpush.bf16.xpose.msra.mxu0 0
  %3098 = vmatpush.bf16.xpose.msra.mxu0 %v3089
  %3099 = vmatmul.bf16.gmra.mxu0 %v3086
  %v3100 = vpop.f32.mrf.mxu0
  %v3101 = vadd.f32 0.0, %v3100
  %v3102 = vpop.f32.mrf.mxu0
  %3103 = vdwg.mxu0
  %v3105 = vunpack.c.l.b16 %v1873
  %v3106 = vpack.c.b16 %v3105, %v3105
  %3107 = vrot.lane.b32.xlu0 %v3106, 64
  %v3108 = vpop.permute.xlu0 %3107
  %v3110 = vunpack.c.l.b16 %v1889
  %v3111 = vpack.c.b16 %v3110, %v3110
  %3112 = vrot.lane.b32.xlu0 %v3111, 64
  %v3113 = vpop.permute.xlu0 %3112
  %v3115 = vsel %vm1916, %v3108, 0
  %v3118 = vsel %vm1916, %v3113, 0
  %3120 = vmatpush.bf16.xpose.msra.mxu0 0
  %3121 = vmatpush.bf16.xpose.msra.mxu0 0
  %3122 = vmatpush.bf16.xpose.msra.mxu0 0
  %3123 = vmatpush.bf16.xpose.msra.mxu0 0
  %3124 = vmatpush.bf16.xpose.msra.mxu0 0
  %3125 = vmatpush.bf16.xpose.msra.mxu0 0
  %3126 = vmatpush.bf16.xpose.msra.mxu0 0
  %3127 = vmatpush.bf16.xpose.msra.mxu0 %v3118
  %3128 = vmatmul.bf16.gmra.mxu0 %v3115
  %v3129 = vpop.f32.mrf.mxu0
  %v3130 = vadd.f32 0.0, %v3129
  %v3131 = vpop.f32.mrf.mxu0
  %3132 = vdwg.mxu0
  %v3134 = vunpack.c.l.b16 %v1874
  %v3135 = vpack.c.b16 %v3134, %v3134
  %3136 = vrot.lane.b32.xlu0 %v3135, 64
  %v3137 = vpop.permute.xlu0 %3136
  %v3139 = vunpack.c.l.b16 %v1890
  %v3140 = vpack.c.b16 %v3139, %v3139
  %3141 = vrot.lane.b32.xlu0 %v3140, 64
  %v3142 = vpop.permute.xlu0 %3141
  %v3144 = vsel %vm1916, %v3137, 0
  %v3147 = vsel %vm1916, %v3142, 0
  %3149 = vmatpush.bf16.xpose.msra.mxu0 0
  %3150 = vmatpush.bf16.xpose.msra.mxu0 0
  %3151 = vmatpush.bf16.xpose.msra.mxu0 0
  %3152 = vmatpush.bf16.xpose.msra.mxu0 0
  %3153 = vmatpush.bf16.xpose.msra.mxu0 0
  %3154 = vmatpush.bf16.xpose.msra.mxu0 0
  %3155 = vmatpush.bf16.xpose.msra.mxu0 0
  %3156 = vmatpush.bf16.xpose.msra.mxu0 %v3147
  %3157 = vmatmul.bf16.gmra.mxu0 %v3144
  %v3158 = vpop.f32.mrf.mxu0
  %v3159 = vadd.f32 0.0, %v3158
  %v3160 = vpop.f32.mrf.mxu0
  %3161 = vdwg.mxu0
  %v3163 = vunpack.c.l.b16 %v1875
  %v3164 = vpack.c.b16 %v3163, %v3163
  %3165 = vrot.lane.b32.xlu0 %v3164, 64
  %v3166 = vpop.permute.xlu0 %3165
  %v3168 = vunpack.c.l.b16 %v1891
  %v3169 = vpack.c.b16 %v3168, %v3168
  %3170 = vrot.lane.b32.xlu0 %v3169, 64
  %v3171 = vpop.permute.xlu0 %3170
  %v3173 = vsel %vm1916, %v3166, 0
  %v3176 = vsel %vm1916, %v3171, 0
  %3178 = vmatpush.bf16.xpose.msra.mxu0 0
  %3179 = vmatpush.bf16.xpose.msra.mxu0 0
  %3180 = vmatpush.bf16.xpose.msra.mxu0 0
  %3181 = vmatpush.bf16.xpose.msra.mxu0 0
  %3182 = vmatpush.bf16.xpose.msra.mxu0 0
  %3183 = vmatpush.bf16.xpose.msra.mxu0 0
  %3184 = vmatpush.bf16.xpose.msra.mxu0 0
  %3185 = vmatpush.bf16.xpose.msra.mxu0 %v3176
  %3186 = vmatmul.bf16.gmra.mxu0 %v3173
  %v3187 = vpop.f32.mrf.mxu0
  %v3188 = vadd.f32 0.0, %v3187
  %v3189 = vpop.f32.mrf.mxu0
  %3190 = vdwg.mxu0
  %v3192 = vunpack.c.l.b16 %v1876
  %v3193 = vpack.c.b16 %v3192, %v3192
  %3194 = vrot.lane.b32.xlu0 %v3193, 64
  %v3195 = vpop.permute.xlu0 %3194
  %v3197 = vunpack.c.l.b16 %v1892
  %v3198 = vpack.c.b16 %v3197, %v3197
  %3199 = vrot.lane.b32.xlu0 %v3198, 64
  %v3200 = vpop.permute.xlu0 %3199
  %v3202 = vsel %vm1916, %v3195, 0
  %v3205 = vsel %vm1916, %v3200, 0
  %3207 = vmatpush.bf16.xpose.msra.mxu0 0
  %3208 = vmatpush.bf16.xpose.msra.mxu0 0
  %3209 = vmatpush.bf16.xpose.msra.mxu0 0
  %3210 = vmatpush.bf16.xpose.msra.mxu0 0
  %3211 = vmatpush.bf16.xpose.msra.mxu0 0
  %3212 = vmatpush.bf16.xpose.msra.mxu0 0
  %3213 = vmatpush.bf16.xpose.msra.mxu0 0
  %3214 = vmatpush.bf16.xpose.msra.mxu0 %v3205
  %3215 = vmatmul.bf16.gmra.mxu0 %v3202
  %v3216 = vpop.f32.mrf.mxu0
  %v3217 = vadd.f32 0.0, %v3216
  %v3218 = vpop.f32.mrf.mxu0
  %3219 = vdwg.mxu0
  %v3221 = vunpack.c.l.b16 %v1877
  %v3222 = vpack.c.b16 %v3221, %v3221
  %3223 = vrot.lane.b32.xlu0 %v3222, 64
  %v3224 = vpop.permute.xlu0 %3223
  %v3226 = vunpack.c.l.b16 %v1893
  %v3227 = vpack.c.b16 %v3226, %v3226
  %3228 = vrot.lane.b32.xlu0 %v3227, 64
  %v3229 = vpop.permute.xlu0 %3228
  %v3231 = vsel %vm1916, %v3224, 0
  %v3234 = vsel %vm1916, %v3229, 0
  %3236 = vmatpush.bf16.xpose.msra.mxu0 0
  %3237 = vmatpush.bf16.xpose.msra.mxu0 0
  %3238 = vmatpush.bf16.xpose.msra.mxu0 0
  %3239 = vmatpush.bf16.xpose.msra.mxu0 0
  %3240 = vmatpush.bf16.xpose.msra.mxu0 0
  %3241 = vmatpush.bf16.xpose.msra.mxu0 0
  %3242 = vmatpush.bf16.xpose.msra.mxu0 0
  %3243 = vmatpush.bf16.xpose.msra.mxu0 %v3234
  %3244 = vmatmul.bf16.gmra.mxu0 %v3231
  %v3245 = vpop.f32.mrf.mxu0
  %v3246 = vadd.f32 0.0, %v3245
  %v3247 = vpop.f32.mrf.mxu0
  %3248 = vdwg.mxu0
  %v3250 = vunpack.c.l.b16 %v1878
  %v3251 = vpack.c.b16 %v3250, %v3250
  %3252 = vrot.lane.b32.xlu0 %v3251, 64
  %v3253 = vpop.permute.xlu0 %3252
  %v3255 = vunpack.c.l.b16 %v1894
  %v3256 = vpack.c.b16 %v3255, %v3255
  %3257 = vrot.lane.b32.xlu0 %v3256, 64
  %v3258 = vpop.permute.xlu0 %3257
  %v3260 = vsel %vm1916, %v3253, 0
  %v3263 = vsel %vm1916, %v3258, 0
  %3265 = vmatpush.bf16.xpose.msra.mxu0 0
  %3266 = vmatpush.bf16.xpose.msra.mxu0 0
  %3267 = vmatpush.bf16.xpose.msra.mxu0 0
  %3268 = vmatpush.bf16.xpose.msra.mxu0 0
  %3269 = vmatpush.bf16.xpose.msra.mxu0 0
  %3270 = vmatpush.bf16.xpose.msra.mxu0 0
  %3271 = vmatpush.bf16.xpose.msra.mxu0 0
  %3272 = vmatpush.bf16.xpose.msra.mxu0 %v3263
  %3273 = vmatmul.bf16.gmra.mxu0 %v3260
  %v3274 = vpop.f32.mrf.mxu0
  %v3275 = vadd.f32 0.0, %v3274
  %v3276 = vpop.f32.mrf.mxu0
  %3277 = vdwg.mxu0
  %v3279 = vunpack.c.l.b16 %v1879
  %v3280 = vpack.c.b16 %v3279, %v3279
  %3281 = vrot.lane.b32.xlu0 %v3280, 64
  %v3282 = vpop.permute.xlu0 %3281
  %v3284 = vunpack.c.l.b16 %v1895
  %v3285 = vpack.c.b16 %v3284, %v3284
  %3286 = vrot.lane.b32.xlu0 %v3285, 64
  %v3287 = vpop.permute.xlu0 %3286
  %v3289 = vsel %vm1916, %v3282, 0
  %v3292 = vsel %vm1916, %v3287, 0
  %3294 = vmatpush.bf16.xpose.msra.mxu0 0
  %3295 = vmatpush.bf16.xpose.msra.mxu0 0
  %3296 = vmatpush.bf16.xpose.msra.mxu0 0
  %3297 = vmatpush.bf16.xpose.msra.mxu0 0
  %3298 = vmatpush.bf16.xpose.msra.mxu0 0
  %3299 = vmatpush.bf16.xpose.msra.mxu0 0
  %3300 = vmatpush.bf16.xpose.msra.mxu0 0
  %3301 = vmatpush.bf16.xpose.msra.mxu0 %v3292
  %3302 = vmatmul.bf16.gmra.mxu0 %v3289
  %v3303 = vpop.f32.mrf.mxu0
  %v3304 = vadd.f32 0.0, %v3303
  %v3305 = vpop.f32.mrf.mxu0
  %3306 = vdwg.mxu0
  %v3308 = vunpack.c.l.b16 %v1880
  %v3309 = vpack.c.b16 %v3308, %v3308
  %3310 = vrot.lane.b32.xlu0 %v3309, 64
  %v3311 = vpop.permute.xlu0 %3310
  %v3313 = vunpack.c.l.b16 %v1896
  %v3314 = vpack.c.b16 %v3313, %v3313
  %3315 = vrot.lane.b32.xlu0 %v3314, 64
  %v3316 = vpop.permute.xlu0 %3315
  %v3318 = vsel %vm1916, %v3311, 0
  %v3321 = vsel %vm1916, %v3316, 0
  %3323 = vmatpush.bf16.xpose.msra.mxu0 0
  %3324 = vmatpush.bf16.xpose.msra.mxu0 0
  %3325 = vmatpush.bf16.xpose.msra.mxu0 0
  %3326 = vmatpush.bf16.xpose.msra.mxu0 0
  %3327 = vmatpush.bf16.xpose.msra.mxu0 0
  %3328 = vmatpush.bf16.xpose.msra.mxu0 0
  %3329 = vmatpush.bf16.xpose.msra.mxu0 0
  %3330 = vmatpush.bf16.xpose.msra.mxu0 %v3321
  %3331 = vmatmul.bf16.gmra.mxu0 %v3318
  %v3332 = vpop.f32.mrf.mxu0
  %v3333 = vadd.f32 0.0, %v3332
  %v3334 = vpop.f32.mrf.mxu0
  %3335 = vdwg.mxu0
  %v3337 = vunpack.c.l.b16 %v1881
  %v3338 = vpack.c.b16 %v3337, %v3337
  %3339 = vrot.lane.b32.xlu0 %v3338, 64
  %v3340 = vpop.permute.xlu0 %3339
  %v3342 = vunpack.c.l.b16 %v1897
  %v3343 = vpack.c.b16 %v3342, %v3342
  %3344 = vrot.lane.b32.xlu0 %v3343, 64
  %v3345 = vpop.permute.xlu0 %3344
  %v3347 = vsel %vm1916, %v3340, 0
  %v3350 = vsel %vm1916, %v3345, 0
  %3352 = vmatpush.bf16.xpose.msra.mxu0 0
  %3353 = vmatpush.bf16.xpose.msra.mxu0 0
  %3354 = vmatpush.bf16.xpose.msra.mxu0 0
  %3355 = vmatpush.bf16.xpose.msra.mxu0 0
  %3356 = vmatpush.bf16.xpose.msra.mxu0 0
  %3357 = vmatpush.bf16.xpose.msra.mxu0 0
  %3358 = vmatpush.bf16.xpose.msra.mxu0 0
  %3359 = vmatpush.bf16.xpose.msra.mxu0 %v3350
  %3360 = vmatmul.bf16.gmra.mxu0 %v3347
  %v3361 = vpop.f32.mrf.mxu0
  %v3362 = vadd.f32 0.0, %v3361
  %v3363 = vpop.f32.mrf.mxu0
  %3364 = vdwg.mxu0
  %v3366 = vunpack.c.l.b16 %v1882
  %v3367 = vpack.c.b16 %v3366, %v3366
  %3368 = vrot.lane.b32.xlu0 %v3367, 64
  %v3369 = vpop.permute.xlu0 %3368
  %v3371 = vunpack.c.l.b16 %v1898
  %v3372 = vpack.c.b16 %v3371, %v3371
  %3373 = vrot.lane.b32.xlu0 %v3372, 64
  %v3374 = vpop.permute.xlu0 %3373
  %v3376 = vsel %vm1916, %v3369, 0
  %v3379 = vsel %vm1916, %v3374, 0
  %3381 = vmatpush.bf16.xpose.msra.mxu0 0
  %3382 = vmatpush.bf16.xpose.msra.mxu0 0
  %3383 = vmatpush.bf16.xpose.msra.mxu0 0
  %3384 = vmatpush.bf16.xpose.msra.mxu0 0
  %3385 = vmatpush.bf16.xpose.msra.mxu0 0
  %3386 = vmatpush.bf16.xpose.msra.mxu0 0
  %3387 = vmatpush.bf16.xpose.msra.mxu0 0
  %3388 = vmatpush.bf16.xpose.msra.mxu0 %v3379
  %3389 = vmatmul.bf16.gmra.mxu0 %v3376
  %v3390 = vpop.f32.mrf.mxu0
  %v3391 = vadd.f32 0.0, %v3390
  %v3392 = vpop.f32.mrf.mxu0
  %3393 = vdwg.mxu0
  %v3395 = vunpack.c.l.b16 %v1883
  %v3396 = vpack.c.b16 %v3395, %v3395
  %3397 = vrot.lane.b32.xlu0 %v3396, 64
  %v3398 = vpop.permute.xlu0 %3397
  %v3400 = vunpack.c.l.b16 %v1899
  %v3401 = vpack.c.b16 %v3400, %v3400
  %3402 = vrot.lane.b32.xlu0 %v3401, 64
  %v3403 = vpop.permute.xlu0 %3402
  %v3405 = vsel %vm1916, %v3398, 0
  %v3408 = vsel %vm1916, %v3403, 0
  %3410 = vmatpush.bf16.xpose.msra.mxu0 0
  %3411 = vmatpush.bf16.xpose.msra.mxu0 0
  %3412 = vmatpush.bf16.xpose.msra.mxu0 0
  %3413 = vmatpush.bf16.xpose.msra.mxu0 0
  %3414 = vmatpush.bf16.xpose.msra.mxu0 0
  %3415 = vmatpush.bf16.xpose.msra.mxu0 0
  %3416 = vmatpush.bf16.xpose.msra.mxu0 0
  %3417 = vmatpush.bf16.xpose.msra.mxu0 %v3408
  %3418 = vmatmul.bf16.gmra.mxu0 %v3405
  %v3419 = vpop.f32.mrf.mxu0
  %v3420 = vadd.f32 0.0, %v3419
  %v3421 = vpop.f32.mrf.mxu0
  %3422 = vdwg.mxu0
  %v3423 = vmul.f32 %v2985, 0.125
  %v3424 = vmul.f32 %v3014, 0.125
  %v3425 = vmul.f32 %v3043, 0.125
  %v3426 = vmul.f32 %v3072, 0.125
  %v3427 = vmul.f32 %v3101, 0.125
  %v3428 = vmul.f32 %v3130, 0.125
  %v3429 = vmul.f32 %v3159, 0.125
  %v3430 = vmul.f32 %v3188, 0.125
  %v3431 = vmul.f32 %v3217, 0.125
  %v3432 = vmul.f32 %v3246, 0.125
  %v3433 = vmul.f32 %v3275, 0.125
  %v3434 = vmul.f32 %v3304, 0.125
  %v3435 = vmul.f32 %v3333, 0.125
  %v3436 = vmul.f32 %v3362, 0.125
  %v3437 = vmul.f32 %v3391, 0.125
  %v3438 = vmul.f32 %v3420, 0.125
  %v3439 = vadd.f32 %v3423, %v1177
  %v3440 = vadd.f32 %v3424, %v1177
  %v3441 = vadd.f32 %v3425, %v1177
  %v3442 = vadd.f32 %v3426, %v1177
  %v3443 = vadd.f32 %v3427, %v1177
  %v3444 = vadd.f32 %v3428, %v1177
  %v3445 = vadd.f32 %v3429, %v1177
  %v3446 = vadd.f32 %v3430, %v1177
  %v3447 = vadd.f32 %v3431, %v1177
  %v3448 = vadd.f32 %v3432, %v1177
  %v3449 = vadd.f32 %v3433, %v1177
  %v3450 = vadd.f32 %v3434, %v1177
  %v3451 = vadd.f32 %v3435, %v1177
  %v3452 = vadd.f32 %v3436, %v1177
  %v3453 = vadd.f32 %v3437, %v1177
  %v3454 = vadd.f32 %v3438, %v1177
  %v3455 = vsel %vm2253, %v3439, -inf
  %3456 = vmax.xlane.f32.xlu0 %v3455
  %v3457 = vpop.xlane.xlu0 %3456
  %v3458 = vsel %vm2253, %v3440, -inf
  %3459 = vmax.xlane.f32.xlu0 %v3458
  %v3460 = vpop.xlane.xlu0 %3459
  %v3461 = vsel %vm2253, %v3441, -inf
  %3462 = vmax.xlane.f32.xlu0 %v3461
  %v3463 = vpop.xlane.xlu0 %3462
  %v3464 = vsel %vm2253, %v3442, -inf
  %3465 = vmax.xlane.f32.xlu0 %v3464
  %v3466 = vpop.xlane.xlu0 %3465
  %v3467 = vsel %vm2253, %v3443, -inf
  %3468 = vmax.xlane.f32.xlu0 %v3467
  %v3469 = vpop.xlane.xlu0 %3468
  %v3470 = vsel %vm2253, %v3444, -inf
  %3471 = vmax.xlane.f32.xlu0 %v3470
  %v3472 = vpop.xlane.xlu0 %3471
  %v3473 = vsel %vm2253, %v3445, -inf
  %3474 = vmax.xlane.f32.xlu0 %v3473
  %v3475 = vpop.xlane.xlu0 %3474
  %v3476 = vsel %vm2253, %v3446, -inf
  %3477 = vmax.xlane.f32.xlu0 %v3476
  %v3478 = vpop.xlane.xlu0 %3477
  %v3479 = vsel %vm2253, %v3447, -inf
  %3480 = vmax.xlane.f32.xlu0 %v3479
  %v3481 = vpop.xlane.xlu0 %3480
  %v3482 = vsel %vm2253, %v3448, -inf
  %3483 = vmax.xlane.f32.xlu0 %v3482
  %v3484 = vpop.xlane.xlu0 %3483
  %v3485 = vsel %vm2253, %v3449, -inf
  %3486 = vmax.xlane.f32.xlu0 %v3485
  %v3487 = vpop.xlane.xlu0 %3486
  %v3488 = vsel %vm2253, %v3450, -inf
  %3489 = vmax.xlane.f32.xlu0 %v3488
  %v3490 = vpop.xlane.xlu0 %3489
  %v3491 = vsel %vm2253, %v3451, -inf
  %3492 = vmax.xlane.f32.xlu0 %v3491
  %v3493 = vpop.xlane.xlu0 %3492
  %v3494 = vsel %vm2253, %v3452, -inf
  %3495 = vmax.xlane.f32.xlu0 %v3494
  %v3496 = vpop.xlane.xlu0 %3495
  %v3497 = vsel %vm2253, %v3453, -inf
  %3498 = vmax.xlane.f32.xlu0 %v3497
  %v3499 = vpop.xlane.xlu0 %3498
  %v3500 = vsel %vm2253, %v3454, -inf
  %3501 = vmax.xlane.f32.xlu0 %v3500
  %v3502 = vpop.xlane.xlu0 %3501
  %v3503 = vsub.f32 %v3439, %v3457
  %v3504 = vsub.f32 %v3440, %v3460
  %v3505 = vsub.f32 %v3441, %v3463
  %v3506 = vsub.f32 %v3442, %v3466
  %v3507 = vsub.f32 %v3443, %v3469
  %v3508 = vsub.f32 %v3444, %v3472
  %v3509 = vsub.f32 %v3445, %v3475
  %v3510 = vsub.f32 %v3446, %v3478
  %v3511 = vsub.f32 %v3447, %v3481
  %v3512 = vsub.f32 %v3448, %v3484
  %v3513 = vsub.f32 %v3449, %v3487
  %v3514 = vsub.f32 %v3450, %v3490
  %v3515 = vsub.f32 %v3451, %v3493
  %v3516 = vsub.f32 %v3452, %v3496
  %v3517 = vsub.f32 %v3453, %v3499
  %v3518 = vsub.f32 %v3454, %v3502
  %v3519 = vmul.f32 %v3503, 1.442695
  %v3520 = vpow.pop %v3519
  %v3521 = vmul.f32 %v3504, 1.442695
  %v3522 = vpow.pop %v3521
  %v3523 = vmul.f32 %v3505, 1.442695
  %v3524 = vpow.pop %v3523
  %v3525 = vmul.f32 %v3506, 1.442695
  %v3526 = vpow.pop %v3525
  %v3527 = vmul.f32 %v3507, 1.442695
  %v3528 = vpow.pop %v3527
  %v3529 = vmul.f32 %v3508, 1.442695
  %v3530 = vpow.pop %v3529
  %v3531 = vmul.f32 %v3509, 1.442695
  %v3532 = vpow.pop %v3531
  %v3533 = vmul.f32 %v3510, 1.442695
  %v3534 = vpow.pop %v3533
  %v3535 = vmul.f32 %v3511, 1.442695
  %v3536 = vpow.pop %v3535
  %v3537 = vmul.f32 %v3512, 1.442695
  %v3538 = vpow.pop %v3537
  %v3539 = vmul.f32 %v3513, 1.442695
  %v3540 = vpow.pop %v3539
  %v3541 = vmul.f32 %v3514, 1.442695
  %v3542 = vpow.pop %v3541
  %v3543 = vmul.f32 %v3515, 1.442695
  %v3544 = vpow.pop %v3543
  %v3545 = vmul.f32 %v3516, 1.442695
  %v3546 = vpow.pop %v3545
  %v3547 = vmul.f32 %v3517, 1.442695
  %v3548 = vpow.pop %v3547
  %v3549 = vmul.f32 %v3518, 1.442695
  %v3550 = vpow.pop %v3549
  %v3551 = vsel %vm2253, %v3520, 0.0
  %3552 = vadd.xlane.f32.xlu0 %v3551
  %v3553 = vpop.xlane.xlu0 %3552
  %v3554 = vsel %vm2253, %v3522, 0.0
  %3555 = vadd.xlane.f32.xlu0 %v3554
  %v3556 = vpop.xlane.xlu0 %3555
  %v3557 = vsel %vm2253, %v3524, 0.0
  %3558 = vadd.xlane.f32.xlu0 %v3557
  %v3559 = vpop.xlane.xlu0 %3558
  %v3560 = vsel %vm2253, %v3526, 0.0
  %3561 = vadd.xlane.f32.xlu0 %v3560
  %v3562 = vpop.xlane.xlu0 %3561
  %v3563 = vsel %vm2253, %v3528, 0.0
  %3564 = vadd.xlane.f32.xlu0 %v3563
  %v3565 = vpop.xlane.xlu0 %3564
  %v3566 = vsel %vm2253, %v3530, 0.0
  %3567 = vadd.xlane.f32.xlu0 %v3566
  %v3568 = vpop.xlane.xlu0 %3567
  %v3569 = vsel %vm2253, %v3532, 0.0
  %3570 = vadd.xlane.f32.xlu0 %v3569
  %v3571 = vpop.xlane.xlu0 %3570
  %v3572 = vsel %vm2253, %v3534, 0.0
  %3573 = vadd.xlane.f32.xlu0 %v3572
  %v3574 = vpop.xlane.xlu0 %3573
  %v3575 = vsel %vm2253, %v3536, 0.0
  %3576 = vadd.xlane.f32.xlu0 %v3575
  %v3577 = vpop.xlane.xlu0 %3576
  %v3578 = vsel %vm2253, %v3538, 0.0
  %3579 = vadd.xlane.f32.xlu0 %v3578
  %v3580 = vpop.xlane.xlu0 %3579
  %v3581 = vsel %vm2253, %v3540, 0.0
  %3582 = vadd.xlane.f32.xlu0 %v3581
  %v3583 = vpop.xlane.xlu0 %3582
  %v3584 = vsel %vm2253, %v3542, 0.0
  %3585 = vadd.xlane.f32.xlu0 %v3584
  %v3586 = vpop.xlane.xlu0 %3585
  %v3587 = vsel %vm2253, %v3544, 0.0
  %3588 = vadd.xlane.f32.xlu0 %v3587
  %v3589 = vpop.xlane.xlu0 %3588
  %v3590 = vsel %vm2253, %v3546, 0.0
  %3591 = vadd.xlane.f32.xlu0 %v3590
  %v3592 = vpop.xlane.xlu0 %3591
  %v3593 = vsel %vm2253, %v3548, 0.0
  %3594 = vadd.xlane.f32.xlu0 %v3593
  %v3595 = vpop.xlane.xlu0 %3594
  %v3596 = vsel %vm2253, %v3550, 0.0
  %3597 = vadd.xlane.f32.xlu0 %v3596
  %v3598 = vpop.xlane.xlu0 %3597
  %v3599 = vrcp.pop %v3553
  %v3600 = vmul.f32 %v3553, %v3599
  %v3601 = vsub.f32 1.0, %v3600
  %v3602 = vmul.f32 %v3599, %v3601
  %v3603 = vadd.f32 %v3599, %v3602
  %vm3604 = vweird.f32 %v3553
  %vm3605 = vweird.f32 %v3599
  %vm3606 = vmor %vm3604, %vm3605
  %v3607 = vsel %vm3606, %v3599, %v3603
  %v3608 = vand.u32 2147483647, %v3553
  %vm3609 = vcmp.eq.f32.partialorder %v3608, 8.507059e+37
  %v3610 = vand.u32 %v3553, 2147483648
  %v3611 = vor.u32 1.1754944e-38, %v3610
  %v3612 = vsel %vm3609, %v3611, %v3607
  %v3613 = vrcp.pop %v3556
  %v3614 = vmul.f32 %v3556, %v3613
  %v3615 = vsub.f32 1.0, %v3614
  %v3616 = vmul.f32 %v3613, %v3615
  %v3617 = vadd.f32 %v3613, %v3616
  %vm3618 = vweird.f32 %v3556
  %vm3619 = vweird.f32 %v3613
  %vm3620 = vmor %vm3618, %vm3619
  %v3621 = vsel %vm3620, %v3613, %v3617
  %v3622 = vand.u32 2147483647, %v3556
  %vm3623 = vcmp.eq.f32.partialorder %v3622, 8.507059e+37
  %v3624 = vand.u32 %v3556, 2147483648
  %v3625 = vor.u32 1.1754944e-38, %v3624
  %v3626 = vsel %vm3623, %v3625, %v3621
  %v3627 = vrcp.pop %v3559
  %v3628 = vmul.f32 %v3559, %v3627
  %v3629 = vsub.f32 1.0, %v3628
  %v3630 = vmul.f32 %v3627, %v3629
  %v3631 = vadd.f32 %v3627, %v3630
  %vm3632 = vweird.f32 %v3559
  %vm3633 = vweird.f32 %v3627
  %vm3634 = vmor %vm3632, %vm3633
  %v3635 = vsel %vm3634, %v3627, %v3631
  %v3636 = vand.u32 2147483647, %v3559
  %vm3637 = vcmp.eq.f32.partialorder %v3636, 8.507059e+37
  %v3638 = vand.u32 %v3559, 2147483648
  %v3639 = vor.u32 1.1754944e-38, %v3638
  %v3640 = vsel %vm3637, %v3639, %v3635
  %v3641 = vrcp.pop %v3562
  %v3642 = vmul.f32 %v3562, %v3641
  %v3643 = vsub.f32 1.0, %v3642
  %v3644 = vmul.f32 %v3641, %v3643
  %v3645 = vadd.f32 %v3641, %v3644
  %vm3646 = vweird.f32 %v3562
  %vm3647 = vweird.f32 %v3641
  %vm3648 = vmor %vm3646, %vm3647
  %v3649 = vsel %vm3648, %v3641, %v3645
  %v3650 = vand.u32 2147483647, %v3562
  %vm3651 = vcmp.eq.f32.partialorder %v3650, 8.507059e+37
  %v3652 = vand.u32 %v3562, 2147483648
  %v3653 = vor.u32 1.1754944e-38, %v3652
  %v3654 = vsel %vm3651, %v3653, %v3649
  %v3655 = vrcp.pop %v3565
  %v3656 = vmul.f32 %v3565, %v3655
  %v3657 = vsub.f32 1.0, %v3656
  %v3658 = vmul.f32 %v3655, %v3657
  %v3659 = vadd.f32 %v3655, %v3658
  %vm3660 = vweird.f32 %v3565
  %vm3661 = vweird.f32 %v3655
  %vm3662 = vmor %vm3660, %vm3661
  %v3663 = vsel %vm3662, %v3655, %v3659
  %v3664 = vand.u32 2147483647, %v3565
  %vm3665 = vcmp.eq.f32.partialorder %v3664, 8.507059e+37
  %v3666 = vand.u32 %v3565, 2147483648
  %v3667 = vor.u32 1.1754944e-38, %v3666
  %v3668 = vsel %vm3665, %v3667, %v3663
  %v3669 = vrcp.pop %v3568
  %v3670 = vmul.f32 %v3568, %v3669
  %v3671 = vsub.f32 1.0, %v3670
  %v3672 = vmul.f32 %v3669, %v3671
  %v3673 = vadd.f32 %v3669, %v3672
  %vm3674 = vweird.f32 %v3568
  %vm3675 = vweird.f32 %v3669
  %vm3676 = vmor %vm3674, %vm3675
  %v3677 = vsel %vm3676, %v3669, %v3673
  %v3678 = vand.u32 2147483647, %v3568
  %vm3679 = vcmp.eq.f32.partialorder %v3678, 8.507059e+37
  %v3680 = vand.u32 %v3568, 2147483648
  %v3681 = vor.u32 1.1754944e-38, %v3680
  %v3682 = vsel %vm3679, %v3681, %v3677
  %v3683 = vrcp.pop %v3571
  %v3684 = vmul.f32 %v3571, %v3683
  %v3685 = vsub.f32 1.0, %v3684
  %v3686 = vmul.f32 %v3683, %v3685
  %v3687 = vadd.f32 %v3683, %v3686
  %vm3688 = vweird.f32 %v3571
  %vm3689 = vweird.f32 %v3683
  %vm3690 = vmor %vm3688, %vm3689
  %v3691 = vsel %vm3690, %v3683, %v3687
  %v3692 = vand.u32 2147483647, %v3571
  %vm3693 = vcmp.eq.f32.partialorder %v3692, 8.507059e+37
  %v3694 = vand.u32 %v3571, 2147483648
  %v3695 = vor.u32 1.1754944e-38, %v3694
  %v3696 = vsel %vm3693, %v3695, %v3691
  %v3697 = vrcp.pop %v3574
  %v3698 = vmul.f32 %v3574, %v3697
  %v3699 = vsub.f32 1.0, %v3698
  %v3700 = vmul.f32 %v3697, %v3699
  %v3701 = vadd.f32 %v3697, %v3700
  %vm3702 = vweird.f32 %v3574
  %vm3703 = vweird.f32 %v3697
  %vm3704 = vmor %vm3702, %vm3703
  %v3705 = vsel %vm3704, %v3697, %v3701
  %v3706 = vand.u32 2147483647, %v3574
  %vm3707 = vcmp.eq.f32.partialorder %v3706, 8.507059e+37
  %v3708 = vand.u32 %v3574, 2147483648
  %v3709 = vor.u32 1.1754944e-38, %v3708
  %v3710 = vsel %vm3707, %v3709, %v3705
  %v3711 = vrcp.pop %v3577
  %v3712 = vmul.f32 %v3577, %v3711
  %v3713 = vsub.f32 1.0, %v3712
  %v3714 = vmul.f32 %v3711, %v3713
  %v3715 = vadd.f32 %v3711, %v3714
  %vm3716 = vweird.f32 %v3577
  %vm3717 = vweird.f32 %v3711
  %vm3718 = vmor %vm3716, %vm3717
  %v3719 = vsel %vm3718, %v3711, %v3715
  %v3720 = vand.u32 2147483647, %v3577
  %vm3721 = vcmp.eq.f32.partialorder %v3720, 8.507059e+37
  %v3722 = vand.u32 %v3577, 2147483648
  %v3723 = vor.u32 1.1754944e-38, %v3722
  %v3724 = vsel %vm3721, %v3723, %v3719
  %v3725 = vrcp.pop %v3580
  %v3726 = vmul.f32 %v3580, %v3725
  %v3727 = vsub.f32 1.0, %v3726
  %v3728 = vmul.f32 %v3725, %v3727
  %v3729 = vadd.f32 %v3725, %v3728
  %vm3730 = vweird.f32 %v3580
  %vm3731 = vweird.f32 %v3725
  %vm3732 = vmor %vm3730, %vm3731
  %v3733 = vsel %vm3732, %v3725, %v3729
  %v3734 = vand.u32 2147483647, %v3580
  %vm3735 = vcmp.eq.f32.partialorder %v3734, 8.507059e+37
  %v3736 = vand.u32 %v3580, 2147483648
  %v3737 = vor.u32 1.1754944e-38, %v3736
  %v3738 = vsel %vm3735, %v3737, %v3733
  %v3739 = vrcp.pop %v3583
  %v3740 = vmul.f32 %v3583, %v3739
  %v3741 = vsub.f32 1.0, %v3740
  %v3742 = vmul.f32 %v3739, %v3741
  %v3743 = vadd.f32 %v3739, %v3742
  %vm3744 = vweird.f32 %v3583
  %vm3745 = vweird.f32 %v3739
  %vm3746 = vmor %vm3744, %vm3745
  %v3747 = vsel %vm3746, %v3739, %v3743
  %v3748 = vand.u32 2147483647, %v3583
  %vm3749 = vcmp.eq.f32.partialorder %v3748, 8.507059e+37
  %v3750 = vand.u32 %v3583, 2147483648
  %v3751 = vor.u32 1.1754944e-38, %v3750
  %v3752 = vsel %vm3749, %v3751, %v3747
  %v3753 = vrcp.pop %v3586
  %v3754 = vmul.f32 %v3586, %v3753
  %v3755 = vsub.f32 1.0, %v3754
  %v3756 = vmul.f32 %v3753, %v3755
  %v3757 = vadd.f32 %v3753, %v3756
  %vm3758 = vweird.f32 %v3586
  %vm3759 = vweird.f32 %v3753
  %vm3760 = vmor %vm3758, %vm3759
  %v3761 = vsel %vm3760, %v3753, %v3757
  %v3762 = vand.u32 2147483647, %v3586
  %vm3763 = vcmp.eq.f32.partialorder %v3762, 8.507059e+37
  %v3764 = vand.u32 %v3586, 2147483648
  %v3765 = vor.u32 1.1754944e-38, %v3764
  %v3766 = vsel %vm3763, %v3765, %v3761
  %v3767 = vrcp.pop %v3589
  %v3768 = vmul.f32 %v3589, %v3767
  %v3769 = vsub.f32 1.0, %v3768
  %v3770 = vmul.f32 %v3767, %v3769
  %v3771 = vadd.f32 %v3767, %v3770
  %vm3772 = vweird.f32 %v3589
  %vm3773 = vweird.f32 %v3767
  %vm3774 = vmor %vm3772, %vm3773
  %v3775 = vsel %vm3774, %v3767, %v3771
  %v3776 = vand.u32 2147483647, %v3589
  %vm3777 = vcmp.eq.f32.partialorder %v3776, 8.507059e+37
  %v3778 = vand.u32 %v3589, 2147483648
  %v3779 = vor.u32 1.1754944e-38, %v3778
  %v3780 = vsel %vm3777, %v3779, %v3775
  %v3781 = vrcp.pop %v3592
  %v3782 = vmul.f32 %v3592, %v3781
  %v3783 = vsub.f32 1.0, %v3782
  %v3784 = vmul.f32 %v3781, %v3783
  %v3785 = vadd.f32 %v3781, %v3784
  %vm3786 = vweird.f32 %v3592
  %vm3787 = vweird.f32 %v3781
  %vm3788 = vmor %vm3786, %vm3787
  %v3789 = vsel %vm3788, %v3781, %v3785
  %v3790 = vand.u32 2147483647, %v3592
  %vm3791 = vcmp.eq.f32.partialorder %v3790, 8.507059e+37
  %v3792 = vand.u32 %v3592, 2147483648
  %v3793 = vor.u32 1.1754944e-38, %v3792
  %v3794 = vsel %vm3791, %v3793, %v3789
  %v3795 = vrcp.pop %v3595
  %v3796 = vmul.f32 %v3595, %v3795
  %v3797 = vsub.f32 1.0, %v3796
  %v3798 = vmul.f32 %v3795, %v3797
  %v3799 = vadd.f32 %v3795, %v3798
  %vm3800 = vweird.f32 %v3595
  %vm3801 = vweird.f32 %v3795
  %vm3802 = vmor %vm3800, %vm3801
  %v3803 = vsel %vm3802, %v3795, %v3799
  %v3804 = vand.u32 2147483647, %v3595
  %vm3805 = vcmp.eq.f32.partialorder %v3804, 8.507059e+37
  %v3806 = vand.u32 %v3595, 2147483648
  %v3807 = vor.u32 1.1754944e-38, %v3806
  %v3808 = vsel %vm3805, %v3807, %v3803
  %v3809 = vrcp.pop %v3598
  %v3810 = vmul.f32 %v3598, %v3809
  %v3811 = vsub.f32 1.0, %v3810
  %v3812 = vmul.f32 %v3809, %v3811
  %v3813 = vadd.f32 %v3809, %v3812
  %vm3814 = vweird.f32 %v3598
  %vm3815 = vweird.f32 %v3809
  %vm3816 = vmor %vm3814, %vm3815
  %v3817 = vsel %vm3816, %v3809, %v3813
  %v3818 = vand.u32 2147483647, %v3598
  %vm3819 = vcmp.eq.f32.partialorder %v3818, 8.507059e+37
  %v3820 = vand.u32 %v3598, 2147483648
  %v3821 = vor.u32 1.1754944e-38, %v3820
  %v3822 = vsel %vm3819, %v3821, %v3817
  %v3823 = vmul.f32 %v3520, %v3612
  %v3824 = vmul.f32 %v3522, %v3626
  %v3825 = vmul.f32 %v3524, %v3640
  %v3826 = vmul.f32 %v3526, %v3654
  %v3827 = vmul.f32 %v3528, %v3668
  %v3828 = vmul.f32 %v3530, %v3682
  %v3829 = vmul.f32 %v3532, %v3696
  %v3830 = vmul.f32 %v3534, %v3710
  %v3831 = vmul.f32 %v3536, %v3724
  %v3832 = vmul.f32 %v3538, %v3738
  %v3833 = vmul.f32 %v3540, %v3752
  %v3834 = vmul.f32 %v3542, %v3766
  %v3835 = vmul.f32 %v3544, %v3780
  %v3836 = vmul.f32 %v3546, %v3794
  %v3837 = vmul.f32 %v3548, %v3808
  %v3838 = vmul.f32 %v3550, %v3822
  %v3839 = vpack.c.bf16 %v3823, %v3823
  %v3840 = vpack.c.bf16 %v3824, %v3824
  %v3841 = vpack.c.bf16 %v3825, %v3825
  %v3842 = vpack.c.bf16 %v3826, %v3826
  %v3843 = vpack.c.bf16 %v3827, %v3827
  %v3844 = vpack.c.bf16 %v3828, %v3828
  %v3845 = vpack.c.bf16 %v3829, %v3829
  %v3846 = vpack.c.bf16 %v3830, %v3830
  %v3847 = vpack.c.bf16 %v3831, %v3831
  %v3848 = vpack.c.bf16 %v3832, %v3832
  %v3849 = vpack.c.bf16 %v3833, %v3833
  %v3850 = vpack.c.bf16 %v3834, %v3834
  %v3851 = vpack.c.bf16 %v3835, %v3835
  %v3852 = vpack.c.bf16 %v3836, %v3836
  %v3853 = vpack.c.bf16 %v3837, %v3837
  %v3854 = vpack.c.bf16 %v3838, %v3838
  %v3856 = vunpack.c.l.b16 %v1900
  %v3857 = vpack.c.b16 %v3856, %v3856
  %3858 = vrot.lane.b32.xlu0 %v3857, 64
  %v3859 = vpop.permute.xlu0 %3858
  %v3861 = vsel %vm2253, %v3839, 0
  %v3864 = vsel %vm2657, %v3859, 0
  %3866 = vmatpush.bf16.msra.mxu0 0
  %3867 = vmatpush.bf16.msra.mxu0 0
  %3868 = vmatpush.bf16.msra.mxu0 0
  %3869 = vmatpush.bf16.msra.mxu0 0
  %3870 = vmatpush.bf16.msra.mxu0 0
  %3871 = vmatpush.bf16.msra.mxu0 0
  %3872 = vmatpush.bf16.msra.mxu0 0
  %3873 = vmatpush.bf16.msra.mxu0 %v3864
  %3874 = vmatmul.bf16.gmra.mxu0 %v3861
  %v3875 = vpop.f32.mrf.mxu0
  %v3876 = vadd.f32 0.0, %v3875
  %v3877 = vpop.f32.mrf.mxu0
  %3878 = vdwg.mxu0
  %v3880 = vunpack.c.l.b16 %v1901
  %v3881 = vpack.c.b16 %v3880, %v3880
  %3882 = vrot.lane.b32.xlu0 %v3881, 64
  %v3883 = vpop.permute.xlu0 %3882
  %v3885 = vsel %vm2253, %v3840, 0
  %v3888 = vsel %vm2657, %v3883, 0
  %3890 = vmatpush.bf16.msra.mxu0 0
  %3891 = vmatpush.bf16.msra.mxu0 0
  %3892 = vmatpush.bf16.msra.mxu0 0
  %3893 = vmatpush.bf16.msra.mxu0 0
  %3894 = vmatpush.bf16.msra.mxu0 0
  %3895 = vmatpush.bf16.msra.mxu0 0
  %3896 = vmatpush.bf16.msra.mxu0 0
  %3897 = vmatpush.bf16.msra.mxu0 %v3888
  %3898 = vmatmul.bf16.gmra.mxu0 %v3885
  %v3899 = vpop.f32.mrf.mxu0
  %v3900 = vadd.f32 0.0, %v3899
  %v3901 = vpop.f32.mrf.mxu0
  %3902 = vdwg.mxu0
  %v3904 = vunpack.c.l.b16 %v1902
  %v3905 = vpack.c.b16 %v3904, %v3904
  %3906 = vrot.lane.b32.xlu0 %v3905, 64
  %v3907 = vpop.permute.xlu0 %3906
  %v3909 = vsel %vm2253, %v3841, 0
  %v3912 = vsel %vm2657, %v3907, 0
  %3914 = vmatpush.bf16.msra.mxu0 0
  %3915 = vmatpush.bf16.msra.mxu0 0
  %3916 = vmatpush.bf16.msra.mxu0 0
  %3917 = vmatpush.bf16.msra.mxu0 0
  %3918 = vmatpush.bf16.msra.mxu0 0
  %3919 = vmatpush.bf16.msra.mxu0 0
  %3920 = vmatpush.bf16.msra.mxu0 0
  %3921 = vmatpush.bf16.msra.mxu0 %v3912
  %3922 = vmatmul.bf16.gmra.mxu0 %v3909
  %v3923 = vpop.f32.mrf.mxu0
  %v3924 = vadd.f32 0.0, %v3923
  %v3925 = vpop.f32.mrf.mxu0
  %3926 = vdwg.mxu0
  %v3928 = vunpack.c.l.b16 %v1903
  %v3929 = vpack.c.b16 %v3928, %v3928
  %3930 = vrot.lane.b32.xlu0 %v3929, 64
  %v3931 = vpop.permute.xlu0 %3930
  %v3933 = vsel %vm2253, %v3842, 0
  %v3936 = vsel %vm2657, %v3931, 0
  %3938 = vmatpush.bf16.msra.mxu0 0
  %3939 = vmatpush.bf16.msra.mxu0 0
  %3940 = vmatpush.bf16.msra.mxu0 0
  %3941 = vmatpush.bf16.msra.mxu0 0
  %3942 = vmatpush.bf16.msra.mxu0 0
  %3943 = vmatpush.bf16.msra.mxu0 0
  %3944 = vmatpush.bf16.msra.mxu0 0
  %3945 = vmatpush.bf16.msra.mxu0 %v3936
  %3946 = vmatmul.bf16.gmra.mxu0 %v3933
  %v3947 = vpop.f32.mrf.mxu0
  %v3948 = vadd.f32 0.0, %v3947
  %v3949 = vpop.f32.mrf.mxu0
  %3950 = vdwg.mxu0
  %v3952 = vunpack.c.l.b16 %v1904
  %v3953 = vpack.c.b16 %v3952, %v3952
  %3954 = vrot.lane.b32.xlu0 %v3953, 64
  %v3955 = vpop.permute.xlu0 %3954
  %v3957 = vsel %vm2253, %v3843, 0
  %v3960 = vsel %vm2657, %v3955, 0
  %3962 = vmatpush.bf16.msra.mxu0 0
  %3963 = vmatpush.bf16.msra.mxu0 0
  %3964 = vmatpush.bf16.msra.mxu0 0
  %3965 = vmatpush.bf16.msra.mxu0 0
  %3966 = vmatpush.bf16.msra.mxu0 0
  %3967 = vmatpush.bf16.msra.mxu0 0
  %3968 = vmatpush.bf16.msra.mxu0 0
  %3969 = vmatpush.bf16.msra.mxu0 %v3960
  %3970 = vmatmul.bf16.gmra.mxu0 %v3957
  %v3971 = vpop.f32.mrf.mxu0
  %v3972 = vadd.f32 0.0, %v3971
  %v3973 = vpop.f32.mrf.mxu0
  %3974 = vdwg.mxu0
  %v3976 = vunpack.c.l.b16 %v1905
  %v3977 = vpack.c.b16 %v3976, %v3976
  %3978 = vrot.lane.b32.xlu0 %v3977, 64
  %v3979 = vpop.permute.xlu0 %3978
  %v3981 = vsel %vm2253, %v3844, 0
  %v3984 = vsel %vm2657, %v3979, 0
  %3986 = vmatpush.bf16.msra.mxu0 0
  %3987 = vmatpush.bf16.msra.mxu0 0
  %3988 = vmatpush.bf16.msra.mxu0 0
  %3989 = vmatpush.bf16.msra.mxu0 0
  %3990 = vmatpush.bf16.msra.mxu0 0
  %3991 = vmatpush.bf16.msra.mxu0 0
  %3992 = vmatpush.bf16.msra.mxu0 0
  %3993 = vmatpush.bf16.msra.mxu0 %v3984
  %3994 = vmatmul.bf16.gmra.mxu0 %v3981
  %v3995 = vpop.f32.mrf.mxu0
  %v3996 = vadd.f32 0.0, %v3995
  %v3997 = vpop.f32.mrf.mxu0
  %3998 = vdwg.mxu0
  %v4000 = vunpack.c.l.b16 %v1906
  %v4001 = vpack.c.b16 %v4000, %v4000
  %4002 = vrot.lane.b32.xlu0 %v4001, 64
  %v4003 = vpop.permute.xlu0 %4002
  %v4005 = vsel %vm2253, %v3845, 0
  %v4008 = vsel %vm2657, %v4003, 0
  %4010 = vmatpush.bf16.msra.mxu0 0
  %4011 = vmatpush.bf16.msra.mxu0 0
  %4012 = vmatpush.bf16.msra.mxu0 0
  %4013 = vmatpush.bf16.msra.mxu0 0
  %4014 = vmatpush.bf16.msra.mxu0 0
  %4015 = vmatpush.bf16.msra.mxu0 0
  %4016 = vmatpush.bf16.msra.mxu0 0
  %4017 = vmatpush.bf16.msra.mxu0 %v4008
  %4018 = vmatmul.bf16.gmra.mxu0 %v4005
  %v4019 = vpop.f32.mrf.mxu0
  %v4020 = vadd.f32 0.0, %v4019
  %v4021 = vpop.f32.mrf.mxu0
  %4022 = vdwg.mxu0
  %v4024 = vunpack.c.l.b16 %v1907
  %v4025 = vpack.c.b16 %v4024, %v4024
  %4026 = vrot.lane.b32.xlu0 %v4025, 64
  %v4027 = vpop.permute.xlu0 %4026
  %v4029 = vsel %vm2253, %v3846, 0
  %v4032 = vsel %vm2657, %v4027, 0
  %4034 = vmatpush.bf16.msra.mxu0 0
  %4035 = vmatpush.bf16.msra.mxu0 0
  %4036 = vmatpush.bf16.msra.mxu0 0
  %4037 = vmatpush.bf16.msra.mxu0 0
  %4038 = vmatpush.bf16.msra.mxu0 0
  %4039 = vmatpush.bf16.msra.mxu0 0
  %4040 = vmatpush.bf16.msra.mxu0 0
  %4041 = vmatpush.bf16.msra.mxu0 %v4032
  %4042 = vmatmul.bf16.gmra.mxu0 %v4029
  %v4043 = vpop.f32.mrf.mxu0
  %v4044 = vadd.f32 0.0, %v4043
  %v4045 = vpop.f32.mrf.mxu0
  %4046 = vdwg.mxu0
  %v4048 = vunpack.c.l.b16 %v1908
  %v4049 = vpack.c.b16 %v4048, %v4048
  %4050 = vrot.lane.b32.xlu0 %v4049, 64
  %v4051 = vpop.permute.xlu0 %4050
  %v4053 = vsel %vm2253, %v3847, 0
  %v4056 = vsel %vm2657, %v4051, 0
  %4058 = vmatpush.bf16.msra.mxu0 0
  %4059 = vmatpush.bf16.msra.mxu0 0
  %4060 = vmatpush.bf16.msra.mxu0 0
  %4061 = vmatpush.bf16.msra.mxu0 0
  %4062 = vmatpush.bf16.msra.mxu0 0
  %4063 = vmatpush.bf16.msra.mxu0 0
  %4064 = vmatpush.bf16.msra.mxu0 0
  %4065 = vmatpush.bf16.msra.mxu0 %v4056
  %4066 = vmatmul.bf16.gmra.mxu0 %v4053
  %v4067 = vpop.f32.mrf.mxu0
  %v4068 = vadd.f32 0.0, %v4067
  %v4069 = vpop.f32.mrf.mxu0
  %4070 = vdwg.mxu0
  %v4072 = vunpack.c.l.b16 %v1909
  %v4073 = vpack.c.b16 %v4072, %v4072
  %4074 = vrot.lane.b32.xlu0 %v4073, 64
  %v4075 = vpop.permute.xlu0 %4074
  %v4077 = vsel %vm2253, %v3848, 0
  %v4080 = vsel %vm2657, %v4075, 0
  %4082 = vmatpush.bf16.msra.mxu0 0
  %4083 = vmatpush.bf16.msra.mxu0 0
  %4084 = vmatpush.bf16.msra.mxu0 0
  %4085 = vmatpush.bf16.msra.mxu0 0
  %4086 = vmatpush.bf16.msra.mxu0 0
  %4087 = vmatpush.bf16.msra.mxu0 0
  %4088 = vmatpush.bf16.msra.mxu0 0
  %4089 = vmatpush.bf16.msra.mxu0 %v4080
  %4090 = vmatmul.bf16.gmra.mxu0 %v4077
  %v4091 = vpop.f32.mrf.mxu0
  %v4092 = vadd.f32 0.0, %v4091
  %v4093 = vpop.f32.mrf.mxu0
  %4094 = vdwg.mxu0
  %v4096 = vunpack.c.l.b16 %v1910
  %v4097 = vpack.c.b16 %v4096, %v4096
  %4098 = vrot.lane.b32.xlu0 %v4097, 64
  %v4099 = vpop.permute.xlu0 %4098
  %v4101 = vsel %vm2253, %v3849, 0
  %v4104 = vsel %vm2657, %v4099, 0
  %4106 = vmatpush.bf16.msra.mxu0 0
  %4107 = vmatpush.bf16.msra.mxu0 0
  %4108 = vmatpush.bf16.msra.mxu0 0
  %4109 = vmatpush.bf16.msra.mxu0 0
  %4110 = vmatpush.bf16.msra.mxu0 0
  %4111 = vmatpush.bf16.msra.mxu0 0
  %4112 = vmatpush.bf16.msra.mxu0 0
  %4113 = vmatpush.bf16.msra.mxu0 %v4104
  %4114 = vmatmul.bf16.gmra.mxu0 %v4101
  %v4115 = vpop.f32.mrf.mxu0
  %v4116 = vadd.f32 0.0, %v4115
  %v4117 = vpop.f32.mrf.mxu0
  %4118 = vdwg.mxu0
  %v4120 = vunpack.c.l.b16 %v1911
  %v4121 = vpack.c.b16 %v4120, %v4120
  %4122 = vrot.lane.b32.xlu0 %v4121, 64
  %v4123 = vpop.permute.xlu0 %4122
  %v4125 = vsel %vm2253, %v3850, 0
  %v4128 = vsel %vm2657, %v4123, 0
  %4130 = vmatpush.bf16.msra.mxu0 0
  %4131 = vmatpush.bf16.msra.mxu0 0
  %4132 = vmatpush.bf16.msra.mxu0 0
  %4133 = vmatpush.bf16.msra.mxu0 0
  %4134 = vmatpush.bf16.msra.mxu0 0
  %4135 = vmatpush.bf16.msra.mxu0 0
  %4136 = vmatpush.bf16.msra.mxu0 0
  %4137 = vmatpush.bf16.msra.mxu0 %v4128
  %4138 = vmatmul.bf16.gmra.mxu0 %v4125
  %v4139 = vpop.f32.mrf.mxu0
  %v4140 = vadd.f32 0.0, %v4139
  %v4141 = vpop.f32.mrf.mxu0
  %4142 = vdwg.mxu0
  %v4144 = vunpack.c.l.b16 %v1912
  %v4145 = vpack.c.b16 %v4144, %v4144
  %4146 = vrot.lane.b32.xlu0 %v4145, 64
  %v4147 = vpop.permute.xlu0 %4146
  %v4149 = vsel %vm2253, %v3851, 0
  %v4152 = vsel %vm2657, %v4147, 0
  %4154 = vmatpush.bf16.msra.mxu0 0
  %4155 = vmatpush.bf16.msra.mxu0 0
  %4156 = vmatpush.bf16.msra.mxu0 0
  %4157 = vmatpush.bf16.msra.mxu0 0
  %4158 = vmatpush.bf16.msra.mxu0 0
  %4159 = vmatpush.bf16.msra.mxu0 0
  %4160 = vmatpush.bf16.msra.mxu0 0
  %4161 = vmatpush.bf16.msra.mxu0 %v4152
  %4162 = vmatmul.bf16.gmra.mxu0 %v4149
  %v4163 = vpop.f32.mrf.mxu0
  %v4164 = vadd.f32 0.0, %v4163
  %v4165 = vpop.f32.mrf.mxu0
  %4166 = vdwg.mxu0
  %v4168 = vunpack.c.l.b16 %v1913
  %v4169 = vpack.c.b16 %v4168, %v4168
  %4170 = vrot.lane.b32.xlu0 %v4169, 64
  %v4171 = vpop.permute.xlu0 %4170
  %v4173 = vsel %vm2253, %v3852, 0
  %v4176 = vsel %vm2657, %v4171, 0
  %4178 = vmatpush.bf16.msra.mxu0 0
  %4179 = vmatpush.bf16.msra.mxu0 0
  %4180 = vmatpush.bf16.msra.mxu0 0
  %4181 = vmatpush.bf16.msra.mxu0 0
  %4182 = vmatpush.bf16.msra.mxu0 0
  %4183 = vmatpush.bf16.msra.mxu0 0
  %4184 = vmatpush.bf16.msra.mxu0 0
  %4185 = vmatpush.bf16.msra.mxu0 %v4176
  %4186 = vmatmul.bf16.gmra.mxu0 %v4173
  %v4187 = vpop.f32.mrf.mxu0
  %v4188 = vadd.f32 0.0, %v4187
  %v4189 = vpop.f32.mrf.mxu0
  %4190 = vdwg.mxu0
  %v4192 = vunpack.c.l.b16 %v1914
  %v4193 = vpack.c.b16 %v4192, %v4192
  %4194 = vrot.lane.b32.xlu0 %v4193, 64
  %v4195 = vpop.permute.xlu0 %4194
  %v4197 = vsel %vm2253, %v3853, 0
  %v4200 = vsel %vm2657, %v4195, 0
  %4202 = vmatpush.bf16.msra.mxu0 0
  %4203 = vmatpush.bf16.msra.mxu0 0
  %4204 = vmatpush.bf16.msra.mxu0 0
  %4205 = vmatpush.bf16.msra.mxu0 0
  %4206 = vmatpush.bf16.msra.mxu0 0
  %4207 = vmatpush.bf16.msra.mxu0 0
  %4208 = vmatpush.bf16.msra.mxu0 0
  %4209 = vmatpush.bf16.msra.mxu0 %v4200
  %4210 = vmatmul.bf16.gmra.mxu0 %v4197
  %v4211 = vpop.f32.mrf.mxu0
  %v4212 = vadd.f32 0.0, %v4211
  %v4213 = vpop.f32.mrf.mxu0
  %4214 = vdwg.mxu0
  %v4216 = vunpack.c.l.b16 %v1915
  %v4217 = vpack.c.b16 %v4216, %v4216
  %4218 = vrot.lane.b32.xlu0 %v4217, 64
  %v4219 = vpop.permute.xlu0 %4218
  %v4221 = vsel %vm2253, %v3854, 0
  %v4224 = vsel %vm2657, %v4219, 0
  %4226 = vmatpush.bf16.msra.mxu0 0
  %4227 = vmatpush.bf16.msra.mxu0 0
  %4228 = vmatpush.bf16.msra.mxu0 0
  %4229 = vmatpush.bf16.msra.mxu0 0
  %4230 = vmatpush.bf16.msra.mxu0 0
  %4231 = vmatpush.bf16.msra.mxu0 0
  %4232 = vmatpush.bf16.msra.mxu0 0
  %4233 = vmatpush.bf16.msra.mxu0 %v4224
  %4234 = vmatmul.bf16.gmra.mxu0 %v4221
  %v4235 = vpop.f32.mrf.mxu0
  %v4236 = vadd.f32 0.0, %v4235
  %v4237 = vpop.f32.mrf.mxu0
  %4238 = vdwg.mxu0
  %4255 = vrot.lane.b32.xlu0 %v3876, 64
  %v4256 = vpop.permute.xlu0 %4255
  %4257 = vrot.lane.b32.xlu0 %v3900, 64
  %v4258 = vpop.permute.xlu0 %4257
  %4259 = vrot.lane.b32.xlu0 %v3924, 64
  %v4260 = vpop.permute.xlu0 %4259
  %4261 = vrot.lane.b32.xlu0 %v3948, 64
  %v4262 = vpop.permute.xlu0 %4261
  %4263 = vrot.lane.b32.xlu0 %v3972, 64
  %v4264 = vpop.permute.xlu0 %4263
  %4265 = vrot.lane.b32.xlu0 %v3996, 64
  %v4266 = vpop.permute.xlu0 %4265
  %4267 = vrot.lane.b32.xlu0 %v4020, 64
  %v4268 = vpop.permute.xlu0 %4267
  %4269 = vrot.lane.b32.xlu0 %v4044, 64
  %v4270 = vpop.permute.xlu0 %4269
  %4271 = vrot.lane.b32.xlu0 %v4068, 64
  %v4272 = vpop.permute.xlu0 %4271
  %4273 = vrot.lane.b32.xlu0 %v4092, 64
  %v4274 = vpop.permute.xlu0 %4273
  %4275 = vrot.lane.b32.xlu0 %v4116, 64
  %v4276 = vpop.permute.xlu0 %4275
  %4277 = vrot.lane.b32.xlu0 %v4140, 64
  %v4278 = vpop.permute.xlu0 %4277
  %4279 = vrot.lane.b32.xlu0 %v4164, 64
  %v4280 = vpop.permute.xlu0 %4279
  %4281 = vrot.lane.b32.xlu0 %v4188, 64
  %v4282 = vpop.permute.xlu0 %4281
  %4283 = vrot.lane.b32.xlu0 %v4212, 64
  %v4284 = vpop.permute.xlu0 %4283
  %4285 = vrot.lane.b32.xlu0 %v4236, 64
  %v4286 = vpop.permute.xlu0 %4285
  %v4303 = vsel %vm1916, %v2671, %v4256
  %v4304 = vsel %vm1916, %v2690, %v4258
  %v4305 = vsel %vm1916, %v2709, %v4260
  %v4306 = vsel %vm1916, %v2728, %v4262
  %v4307 = vsel %vm1916, %v2747, %v4264
  %v4308 = vsel %vm1916, %v2766, %v4266
  %v4309 = vsel %vm1916, %v2785, %v4268
  %v4310 = vsel %vm1916, %v2804, %v4270
  %v4311 = vsel %vm1916, %v2823, %v4272
  %v4312 = vsel %vm1916, %v2842, %v4274
  %v4313 = vsel %vm1916, %v2861, %v4276
  %v4314 = vsel %vm1916, %v2880, %v4278
  %v4315 = vsel %vm1916, %v2899, %v4280
  %v4316 = vsel %vm1916, %v2918, %v4282
  %v4317 = vsel %vm1916, %v2937, %v4284
  %v4318 = vsel %vm1916, %v2956, %v4286
  %v4319 = vpack.c.bf16 %v4304, %v4303
  %v4320 = vpack.c.bf16 %v4306, %v4305
  %v4321 = vpack.c.bf16 %v4308, %v4307
  %v4322 = vpack.c.bf16 %v4310, %v4309
  %v4323 = vpack.c.bf16 %v4312, %v4311
  %v4324 = vpack.c.bf16 %v4314, %v4313
  %v4325 = vpack.c.bf16 %v4316, %v4315
  %v4326 = vpack.c.bf16 %v4318, %v4317
  %v4327 = vld [vmem:[%s9] sm:$0xf]
  %v4328 = vld [vmem:[%s9 + $0x4] sm:$0xf]
  %v4329 = vld [vmem:[%s9 + $0x8] sm:$0xf]
  %v4330 = vld [vmem:[%s9 + $0xc] sm:$0xf]
  %v4331 = vld [vmem:[%s9 + $0x10] sm:$0xf]
  %v4332 = vld [vmem:[%s9 + $0x14] sm:$0xf]
  %v4333 = vld [vmem:[%s9 + $0x18] sm:$0xf]
  %v4334 = vld [vmem:[%s9 + $0x1c] sm:$0xf]
  %v4335 = vld [vmem:[%s9 + $0x20] sm:$0xf]
  %v4336 = vld [vmem:[%s9 + $0x24] sm:$0xf]
  %v4337 = vld [vmem:[%s9 + $0x28] sm:$0xf]
  %v4338 = vld [vmem:[%s9 + $0x2c] sm:$0xf]
  %v4339 = vld [vmem:[%s9 + $0x30] sm:$0xf]
  %v4340 = vld [vmem:[%s9 + $0x34] sm:$0xf]
  %v4341 = vld [vmem:[%s9 + $0x38] sm:$0xf]
  %v4342 = vld [vmem:[%s9 + $0x3c] sm:$0xf]
  %v4359 = vunpack.c.l.b16 %v4327
  %v4360 = vunpack.c.l.b16 %v4328
  %v4361 = vunpack.c.l.b16 %v4329
  %v4362 = vunpack.c.l.b16 %v4330
  %v4363 = vunpack.c.l.b16 %v4331
  %v4364 = vunpack.c.l.b16 %v4332
  %v4365 = vunpack.c.l.b16 %v4333
  %v4366 = vunpack.c.l.b16 %v4334
  %v4367 = vunpack.c.l.b16 %v4335
  %v4368 = vunpack.c.l.b16 %v4336
  %v4369 = vunpack.c.l.b16 %v4337
  %v4370 = vunpack.c.l.b16 %v4338
  %v4371 = vunpack.c.l.b16 %v4339
  %v4372 = vunpack.c.l.b16 %v4340
  %v4373 = vunpack.c.l.b16 %v4341
  %v4374 = vunpack.c.l.b16 %v4342
  %v4375 = vpack.c.b16 %v4360, %v4359
  %v4376 = vpack.c.b16 %v4362, %v4361
  %v4377 = vpack.c.b16 %v4364, %v4363
  %v4378 = vpack.c.b16 %v4366, %v4365
  %v4379 = vpack.c.b16 %v4368, %v4367
  %v4380 = vpack.c.b16 %v4370, %v4369
  %v4381 = vpack.c.b16 %v4372, %v4371
  %v4382 = vpack.c.b16 %v4374, %v4373
  %4391 = vmatpush.bf16.msra.mxu0 %v4382
  %4392 = vmatpush.bf16.msra.mxu0 %v4381
  %4393 = vmatpush.bf16.msra.mxu0 %v4380
  %4394 = vmatpush.bf16.msra.mxu0 %v4379
  %4395 = vmatpush.bf16.msra.mxu0 %v4378
  %4396 = vmatpush.bf16.msra.mxu0 %v4377
  %4397 = vmatpush.bf16.msra.mxu0 %v4376
  %4398 = vmatpush.bf16.msra.mxu0 %v4375
  %4399 = vmatmul.bf16.gmra.mxu0 %v4319
  %v4400 = vpop.f32.mrf.mxu0
  %v4401 = vadd.f32 0.0, %v4400
  %v4402 = vpop.f32.mrf.mxu0
  %v4403 = vadd.f32 0.0, %v4402
  %4404 = vmatmul.bf16.gmra.mxu0 %v4320
  %v4405 = vpop.f32.mrf.mxu0
  %v4406 = vadd.f32 0.0, %v4405
  %v4407 = vpop.f32.mrf.mxu0
  %v4408 = vadd.f32 0.0, %v4407
  %4409 = vmatmul.bf16.gmra.mxu0 %v4321
  %v4410 = vpop.f32.mrf.mxu0
  %v4411 = vadd.f32 0.0, %v4410
  %v4412 = vpop.f32.mrf.mxu0
  %v4413 = vadd.f32 0.0, %v4412
  %4414 = vmatmul.bf16.gmra.mxu0 %v4322
  %v4415 = vpop.f32.mrf.mxu0
  %v4416 = vadd.f32 0.0, %v4415
  %v4417 = vpop.f32.mrf.mxu0
  %v4418 = vadd.f32 0.0, %v4417
  %4419 = vmatmul.bf16.gmra.mxu0 %v4323
  %v4420 = vpop.f32.mrf.mxu0
  %v4421 = vadd.f32 0.0, %v4420
  %v4422 = vpop.f32.mrf.mxu0
  %v4423 = vadd.f32 0.0, %v4422
  %4424 = vmatmul.bf16.gmra.mxu0 %v4324
  %v4425 = vpop.f32.mrf.mxu0
  %v4426 = vadd.f32 0.0, %v4425
  %v4427 = vpop.f32.mrf.mxu0
  %v4428 = vadd.f32 0.0, %v4427
  %4429 = vmatmul.bf16.gmra.mxu0 %v4325
  %v4430 = vpop.f32.mrf.mxu0
  %v4431 = vadd.f32 0.0, %v4430
  %v4432 = vpop.f32.mrf.mxu0
  %v4433 = vadd.f32 0.0, %v4432
  %4434 = vmatmul.bf16.gmra.mxu0 %v4326
  %v4435 = vpop.f32.mrf.mxu0
  %v4436 = vadd.f32 0.0, %v4435
  %v4437 = vpop.f32.mrf.mxu0
  %v4438 = vadd.f32 0.0, %v4437
  %4439 = vdwg.mxu0
  %v4440 = vadd.f32 %v1135, %v4401
  %v4441 = vadd.f32 %v1137, %v4403
  %v4442 = vadd.f32 %v1140, %v4406
  %v4443 = vadd.f32 %v1142, %v4408
  %v4444 = vadd.f32 %v1145, %v4411
  %v4445 = vadd.f32 %v1147, %v4413
  %v4446 = vadd.f32 %v1150, %v4416
  %v4447 = vadd.f32 %v1152, %v4418
  %v4448 = vadd.f32 %v1155, %v4421
  %v4449 = vadd.f32 %v1157, %v4423
  %v4450 = vadd.f32 %v1160, %v4426
  %v4451 = vadd.f32 %v1162, %v4428
  %v4452 = vadd.f32 %v1165, %v4431
  %v4453 = vadd.f32 %v1167, %v4433
  %v4454 = vadd.f32 %v1170, %v4436
  %v4455 = vadd.f32 %v1172, %v4438
  %v4456 = vld [vmem:[%s10] sm:$0x1]
  %v4458 = vperm.slane %v4456, 0
  %v4460 = vadd.f32 %v4440, %v4458
  %v4461 = vadd.f32 %v4441, %v4458
  %v4462 = vadd.f32 %v4442, %v4458
  %v4463 = vadd.f32 %v4443, %v4458
  %v4464 = vadd.f32 %v4444, %v4458
  %v4465 = vadd.f32 %v4445, %v4458
  %v4466 = vadd.f32 %v4446, %v4458
  %v4467 = vadd.f32 %v4447, %v4458
  %v4468 = vadd.f32 %v4448, %v4458
  %v4469 = vadd.f32 %v4449, %v4458
  %v4470 = vadd.f32 %v4450, %v4458
  %v4471 = vadd.f32 %v4451, %v4458
  %v4472 = vadd.f32 %v4452, %v4458
  %v4473 = vadd.f32 %v4453, %v4458
  %v4474 = vadd.f32 %v4454, %v4458
  %v4475 = vadd.f32 %v4455, %v4458
  %v4476 = vld [vmem:[%s11] sm:$0x1]
  %v4477 = vld [vmem:[%s12] sm:$0x1]
  %4478 = vadd.xlane.f32.xlu0 %v4460
  %v4479 = vpop.xlane.xlu0 %4478
  %4480 = vadd.xlane.f32.xlu0 %v4461
  %v4481 = vpop.xlane.xlu0 %4480
  %4482 = vadd.xlane.f32.xlu0 %v4462
  %v4483 = vpop.xlane.xlu0 %4482
  %4484 = vadd.xlane.f32.xlu0 %v4463
  %v4485 = vpop.xlane.xlu0 %4484
  %4486 = vadd.xlane.f32.xlu0 %v4464
  %v4487 = vpop.xlane.xlu0 %4486
  %4488 = vadd.xlane.f32.xlu0 %v4465
  %v4489 = vpop.xlane.xlu0 %4488
  %4490 = vadd.xlane.f32.xlu0 %v4466
  %v4491 = vpop.xlane.xlu0 %4490
  %4492 = vadd.xlane.f32.xlu0 %v4467
  %v4493 = vpop.xlane.xlu0 %4492
  %4494 = vadd.xlane.f32.xlu0 %v4468
  %v4495 = vpop.xlane.xlu0 %4494
  %4496 = vadd.xlane.f32.xlu0 %v4469
  %v4497 = vpop.xlane.xlu0 %4496
  %4498 = vadd.xlane.f32.xlu0 %v4470
  %v4499 = vpop.xlane.xlu0 %4498
  %4500 = vadd.xlane.f32.xlu0 %v4471
  %v4501 = vpop.xlane.xlu0 %4500
  %4502 = vadd.xlane.f32.xlu0 %v4472
  %v4503 = vpop.xlane.xlu0 %4502
  %4504 = vadd.xlane.f32.xlu0 %v4473
  %v4505 = vpop.xlane.xlu0 %4504
  %4506 = vadd.xlane.f32.xlu0 %v4474
  %v4507 = vpop.xlane.xlu0 %4506
  %4508 = vadd.xlane.f32.xlu0 %v4475
  %v4509 = vpop.xlane.xlu0 %4508
  %v4510 = vmul.f32 %v4479, %v1218
  %v4511 = vmul.f32 %v4481, %v1218
  %v4512 = vmul.f32 %v4483, %v1218
  %v4513 = vmul.f32 %v4485, %v1218
  %v4514 = vmul.f32 %v4487, %v1218
  %v4515 = vmul.f32 %v4489, %v1218
  %v4516 = vmul.f32 %v4491, %v1218
  %v4517 = vmul.f32 %v4493, %v1218
  %v4518 = vmul.f32 %v4495, %v1218
  %v4519 = vmul.f32 %v4497, %v1218
  %v4520 = vmul.f32 %v4499, %v1218
  %v4521 = vmul.f32 %v4501, %v1218
  %v4522 = vmul.f32 %v4503, %v1218
  %v4523 = vmul.f32 %v4505, %v1218
  %v4524 = vmul.f32 %v4507, %v1218
  %v4525 = vmul.f32 %v4509, %v1218
  %v4526 = vsub.f32 %v4460, %v4510
  %v4527 = vsub.f32 %v4461, %v4511
  %v4528 = vsub.f32 %v4462, %v4512
  %v4529 = vsub.f32 %v4463, %v4513
  %v4530 = vsub.f32 %v4464, %v4514
  %v4531 = vsub.f32 %v4465, %v4515
  %v4532 = vsub.f32 %v4466, %v4516
  %v4533 = vsub.f32 %v4467, %v4517
  %v4534 = vsub.f32 %v4468, %v4518
  %v4535 = vsub.f32 %v4469, %v4519
  %v4536 = vsub.f32 %v4470, %v4520
  %v4537 = vsub.f32 %v4471, %v4521
  %v4538 = vsub.f32 %v4472, %v4522
  %v4539 = vsub.f32 %v4473, %v4523
  %v4540 = vsub.f32 %v4474, %v4524
  %v4541 = vsub.f32 %v4475, %v4525
  %v4542 = vmul.f32 %v4526, %v4526
  %v4543 = vmul.f32 %v4527, %v4527
  %v4544 = vmul.f32 %v4528, %v4528
  %v4545 = vmul.f32 %v4529, %v4529
  %v4546 = vmul.f32 %v4530, %v4530
  %v4547 = vmul.f32 %v4531, %v4531
  %v4548 = vmul.f32 %v4532, %v4532
  %v4549 = vmul.f32 %v4533, %v4533
  %v4550 = vmul.f32 %v4534, %v4534
  %v4551 = vmul.f32 %v4535, %v4535
  %v4552 = vmul.f32 %v4536, %v4536
  %v4553 = vmul.f32 %v4537, %v4537
  %v4554 = vmul.f32 %v4538, %v4538
  %v4555 = vmul.f32 %v4539, %v4539
  %v4556 = vmul.f32 %v4540, %v4540
  %v4557 = vmul.f32 %v4541, %v4541
  %4558 = vadd.xlane.f32.xlu0 %v4542
  %v4559 = vpop.xlane.xlu0 %4558
  %4560 = vadd.xlane.f32.xlu0 %v4543
  %v4561 = vpop.xlane.xlu0 %4560
  %4562 = vadd.xlane.f32.xlu0 %v4544
  %v4563 = vpop.xlane.xlu0 %4562
  %4564 = vadd.xlane.f32.xlu0 %v4545
  %v4565 = vpop.xlane.xlu0 %4564
  %4566 = vadd.xlane.f32.xlu0 %v4546
  %v4567 = vpop.xlane.xlu0 %4566
  %4568 = vadd.xlane.f32.xlu0 %v4547
  %v4569 = vpop.xlane.xlu0 %4568
  %4570 = vadd.xlane.f32.xlu0 %v4548
  %v4571 = vpop.xlane.xlu0 %4570
  %4572 = vadd.xlane.f32.xlu0 %v4549
  %v4573 = vpop.xlane.xlu0 %4572
  %4574 = vadd.xlane.f32.xlu0 %v4550
  %v4575 = vpop.xlane.xlu0 %4574
  %4576 = vadd.xlane.f32.xlu0 %v4551
  %v4577 = vpop.xlane.xlu0 %4576
  %4578 = vadd.xlane.f32.xlu0 %v4552
  %v4579 = vpop.xlane.xlu0 %4578
  %4580 = vadd.xlane.f32.xlu0 %v4553
  %v4581 = vpop.xlane.xlu0 %4580
  %4582 = vadd.xlane.f32.xlu0 %v4554
  %v4583 = vpop.xlane.xlu0 %4582
  %4584 = vadd.xlane.f32.xlu0 %v4555
  %v4585 = vpop.xlane.xlu0 %4584
  %4586 = vadd.xlane.f32.xlu0 %v4556
  %v4587 = vpop.xlane.xlu0 %4586
  %4588 = vadd.xlane.f32.xlu0 %v4557
  %v4589 = vpop.xlane.xlu0 %4588
  %v4590 = vmul.f32 %v4559, %v1218
  %v4591 = vmul.f32 %v4561, %v1218
  %v4592 = vmul.f32 %v4563, %v1218
  %v4593 = vmul.f32 %v4565, %v1218
  %v4594 = vmul.f32 %v4567, %v1218
  %v4595 = vmul.f32 %v4569, %v1218
  %v4596 = vmul.f32 %v4571, %v1218
  %v4597 = vmul.f32 %v4573, %v1218
  %v4598 = vmul.f32 %v4575, %v1218
  %v4599 = vmul.f32 %v4577, %v1218
  %v4600 = vmul.f32 %v4579, %v1218
  %v4601 = vmul.f32 %v4581, %v1218
  %v4602 = vmul.f32 %v4583, %v1218
  %v4603 = vmul.f32 %v4585, %v1218
  %v4604 = vmul.f32 %v4587, %v1218
  %v4605 = vmul.f32 %v4589, %v1218
  %v4606 = vadd.f32 %v4590, 1e-06
  %v4607 = vadd.f32 %v4591, 1e-06
  %v4608 = vadd.f32 %v4592, 1e-06
  %v4609 = vadd.f32 %v4593, 1e-06
  %v4610 = vadd.f32 %v4594, 1e-06
  %v4611 = vadd.f32 %v4595, 1e-06
  %v4612 = vadd.f32 %v4596, 1e-06
  %v4613 = vadd.f32 %v4597, 1e-06
  %v4614 = vadd.f32 %v4598, 1e-06
  %v4615 = vadd.f32 %v4599, 1e-06
  %v4616 = vadd.f32 %v4600, 1e-06
  %v4617 = vadd.f32 %v4601, 1e-06
  %v4618 = vadd.f32 %v4602, 1e-06
  %v4619 = vadd.f32 %v4603, 1e-06
  %v4620 = vadd.f32 %v4604, 1e-06
  %v4621 = vadd.f32 %v4605, 1e-06
  %v4622 = vrsqrt.pop %v4606
  %v4623 = vmul.f32 %v4622, %v4606
  %v4624 = vmul.f32 %v4623, %v4622
  %v4625 = vmul.f32 0.5, %v4624
  %v4626 = vsub.f32 1.5, %v4625
  %v4627 = vmul.f32 %v4622, %v4626
  %vm4628 = vweird.f32 %v4606
  %vm4629 = vweird.f32 %v4622
  %vm4630 = vmor %vm4628, %vm4629
  %v4631 = vsel %vm4630, %v4622, %v4627
  %v4632 = vrsqrt.pop %v4607
  %v4633 = vmul.f32 %v4632, %v4607
  %v4634 = vmul.f32 %v4633, %v4632
  %v4635 = vmul.f32 0.5, %v4634
  %v4636 = vsub.f32 1.5, %v4635
  %v4637 = vmul.f32 %v4632, %v4636
  %vm4638 = vweird.f32 %v4607
  %vm4639 = vweird.f32 %v4632
  %vm4640 = vmor %vm4638, %vm4639
  %v4641 = vsel %vm4640, %v4632, %v4637
  %v4642 = vrsqrt.pop %v4608
  %v4643 = vmul.f32 %v4642, %v4608
  %v4644 = vmul.f32 %v4643, %v4642
  %v4645 = vmul.f32 0.5, %v4644
  %v4646 = vsub.f32 1.5, %v4645
  %v4647 = vmul.f32 %v4642, %v4646
  %vm4648 = vweird.f32 %v4608
  %vm4649 = vweird.f32 %v4642
  %vm4650 = vmor %vm4648, %vm4649
  %v4651 = vsel %vm4650, %v4642, %v4647
  %v4652 = vrsqrt.pop %v4609
  %v4653 = vmul.f32 %v4652, %v4609
  %v4654 = vmul.f32 %v4653, %v4652
  %v4655 = vmul.f32 0.5, %v4654
  %v4656 = vsub.f32 1.5, %v4655
  %v4657 = vmul.f32 %v4652, %v4656
  %vm4658 = vweird.f32 %v4609
  %vm4659 = vweird.f32 %v4652
  %vm4660 = vmor %vm4658, %vm4659
  %v4661 = vsel %vm4660, %v4652, %v4657
  %v4662 = vrsqrt.pop %v4610
  %v4663 = vmul.f32 %v4662, %v4610
  %v4664 = vmul.f32 %v4663, %v4662
  %v4665 = vmul.f32 0.5, %v4664
  %v4666 = vsub.f32 1.5, %v4665
  %v4667 = vmul.f32 %v4662, %v4666
  %vm4668 = vweird.f32 %v4610
  %vm4669 = vweird.f32 %v4662
  %vm4670 = vmor %vm4668, %vm4669
  %v4671 = vsel %vm4670, %v4662, %v4667
  %v4672 = vrsqrt.pop %v4611
  %v4673 = vmul.f32 %v4672, %v4611
  %v4674 = vmul.f32 %v4673, %v4672
  %v4675 = vmul.f32 0.5, %v4674
  %v4676 = vsub.f32 1.5, %v4675
  %v4677 = vmul.f32 %v4672, %v4676
  %vm4678 = vweird.f32 %v4611
  %vm4679 = vweird.f32 %v4672
  %vm4680 = vmor %vm4678, %vm4679
  %v4681 = vsel %vm4680, %v4672, %v4677
  %v4682 = vrsqrt.pop %v4612
  %v4683 = vmul.f32 %v4682, %v4612
  %v4684 = vmul.f32 %v4683, %v4682
  %v4685 = vmul.f32 0.5, %v4684
  %v4686 = vsub.f32 1.5, %v4685
  %v4687 = vmul.f32 %v4682, %v4686
  %vm4688 = vweird.f32 %v4612
  %vm4689 = vweird.f32 %v4682
  %vm4690 = vmor %vm4688, %vm4689
  %v4691 = vsel %vm4690, %v4682, %v4687
  %v4692 = vrsqrt.pop %v4613
  %v4693 = vmul.f32 %v4692, %v4613
  %v4694 = vmul.f32 %v4693, %v4692
  %v4695 = vmul.f32 0.5, %v4694
  %v4696 = vsub.f32 1.5, %v4695
  %v4697 = vmul.f32 %v4692, %v4696
  %vm4698 = vweird.f32 %v4613
  %vm4699 = vweird.f32 %v4692
  %vm4700 = vmor %vm4698, %vm4699
  %v4701 = vsel %vm4700, %v4692, %v4697
  %v4702 = vrsqrt.pop %v4614
  %v4703 = vmul.f32 %v4702, %v4614
  %v4704 = vmul.f32 %v4703, %v4702
  %v4705 = vmul.f32 0.5, %v4704
  %v4706 = vsub.f32 1.5, %v4705
  %v4707 = vmul.f32 %v4702, %v4706
  %vm4708 = vweird.f32 %v4614
  %vm4709 = vweird.f32 %v4702
  %vm4710 = vmor %vm4708, %vm4709
  %v4711 = vsel %vm4710, %v4702, %v4707
  %v4712 = vrsqrt.pop %v4615
  %v4713 = vmul.f32 %v4712, %v4615
  %v4714 = vmul.f32 %v4713, %v4712
  %v4715 = vmul.f32 0.5, %v4714
  %v4716 = vsub.f32 1.5, %v4715
  %v4717 = vmul.f32 %v4712, %v4716
  %vm4718 = vweird.f32 %v4615
  %vm4719 = vweird.f32 %v4712
  %vm4720 = vmor %vm4718, %vm4719
  %v4721 = vsel %vm4720, %v4712, %v4717
  %v4722 = vrsqrt.pop %v4616
  %v4723 = vmul.f32 %v4722, %v4616
  %v4724 = vmul.f32 %v4723, %v4722
  %v4725 = vmul.f32 0.5, %v4724
  %v4726 = vsub.f32 1.5, %v4725
  %v4727 = vmul.f32 %v4722, %v4726
  %vm4728 = vweird.f32 %v4616
  %vm4729 = vweird.f32 %v4722
  %vm4730 = vmor %vm4728, %vm4729
  %v4731 = vsel %vm4730, %v4722, %v4727
  %v4732 = vrsqrt.pop %v4617
  %v4733 = vmul.f32 %v4732, %v4617
  %v4734 = vmul.f32 %v4733, %v4732
  %v4735 = vmul.f32 0.5, %v4734
  %v4736 = vsub.f32 1.5, %v4735
  %v4737 = vmul.f32 %v4732, %v4736
  %vm4738 = vweird.f32 %v4617
  %vm4739 = vweird.f32 %v4732
  %vm4740 = vmor %vm4738, %vm4739
  %v4741 = vsel %vm4740, %v4732, %v4737
  %v4742 = vrsqrt.pop %v4618
  %v4743 = vmul.f32 %v4742, %v4618
  %v4744 = vmul.f32 %v4743, %v4742
  %v4745 = vmul.f32 0.5, %v4744
  %v4746 = vsub.f32 1.5, %v4745
  %v4747 = vmul.f32 %v4742, %v4746
  %vm4748 = vweird.f32 %v4618
  %vm4749 = vweird.f32 %v4742
  %vm4750 = vmor %vm4748, %vm4749
  %v4751 = vsel %vm4750, %v4742, %v4747
  %v4752 = vrsqrt.pop %v4619
  %v4753 = vmul.f32 %v4752, %v4619
  %v4754 = vmul.f32 %v4753, %v4752
  %v4755 = vmul.f32 0.5, %v4754
  %v4756 = vsub.f32 1.5, %v4755
  %v4757 = vmul.f32 %v4752, %v4756
  %vm4758 = vweird.f32 %v4619
  %vm4759 = vweird.f32 %v4752
  %vm4760 = vmor %vm4758, %vm4759
  %v4761 = vsel %vm4760, %v4752, %v4757
  %v4762 = vrsqrt.pop %v4620
  %v4763 = vmul.f32 %v4762, %v4620
  %v4764 = vmul.f32 %v4763, %v4762
  %v4765 = vmul.f32 0.5, %v4764
  %v4766 = vsub.f32 1.5, %v4765
  %v4767 = vmul.f32 %v4762, %v4766
  %vm4768 = vweird.f32 %v4620
  %vm4769 = vweird.f32 %v4762
  %vm4770 = vmor %vm4768, %vm4769
  %v4771 = vsel %vm4770, %v4762, %v4767
  %v4772 = vrsqrt.pop %v4621
  %v4773 = vmul.f32 %v4772, %v4621
  %v4774 = vmul.f32 %v4773, %v4772
  %v4775 = vmul.f32 0.5, %v4774
  %v4776 = vsub.f32 1.5, %v4775
  %v4777 = vmul.f32 %v4772, %v4776
  %vm4778 = vweird.f32 %v4621
  %vm4779 = vweird.f32 %v4772
  %vm4780 = vmor %vm4778, %vm4779
  %v4781 = vsel %vm4780, %v4772, %v4777
  %v4782 = vmul.f32 %v4526, %v4631
  %v4783 = vmul.f32 %v4527, %v4641
  %v4784 = vmul.f32 %v4528, %v4651
  %v4785 = vmul.f32 %v4529, %v4661
  %v4786 = vmul.f32 %v4530, %v4671
  %v4787 = vmul.f32 %v4531, %v4681
  %v4788 = vmul.f32 %v4532, %v4691
  %v4789 = vmul.f32 %v4533, %v4701
  %v4790 = vmul.f32 %v4534, %v4711
  %v4791 = vmul.f32 %v4535, %v4721
  %v4792 = vmul.f32 %v4536, %v4731
  %v4793 = vmul.f32 %v4537, %v4741
  %v4794 = vmul.f32 %v4538, %v4751
  %v4795 = vmul.f32 %v4539, %v4761
  %v4796 = vmul.f32 %v4540, %v4771
  %v4797 = vmul.f32 %v4541, %v4781
  %v4799 = vperm.slane %v4476, 0
  %v4801 = vmul.f32 %v4782, %v4799
  %v4802 = vmul.f32 %v4783, %v4799
  %v4803 = vmul.f32 %v4784, %v4799
  %v4804 = vmul.f32 %v4785, %v4799
  %v4805 = vmul.f32 %v4786, %v4799
  %v4806 = vmul.f32 %v4787, %v4799
  %v4807 = vmul.f32 %v4788, %v4799
  %v4808 = vmul.f32 %v4789, %v4799
  %v4809 = vmul.f32 %v4790, %v4799
  %v4810 = vmul.f32 %v4791, %v4799
  %v4811 = vmul.f32 %v4792, %v4799
  %v4812 = vmul.f32 %v4793, %v4799
  %v4813 = vmul.f32 %v4794, %v4799
  %v4814 = vmul.f32 %v4795, %v4799
  %v4815 = vmul.f32 %v4796, %v4799
  %v4816 = vmul.f32 %v4797, %v4799
  %v4818 = vperm.slane %v4477, 0
  %v4820 = vadd.f32 %v4801, %v4818
  %v4821 = vadd.f32 %v4802, %v4818
  %v4822 = vadd.f32 %v4803, %v4818
  %v4823 = vadd.f32 %v4804, %v4818
  %v4824 = vadd.f32 %v4805, %v4818
  %v4825 = vadd.f32 %v4806, %v4818
  %v4826 = vadd.f32 %v4807, %v4818
  %v4827 = vadd.f32 %v4808, %v4818
  %v4828 = vadd.f32 %v4809, %v4818
  %v4829 = vadd.f32 %v4810, %v4818
  %v4830 = vadd.f32 %v4811, %v4818
  %v4831 = vadd.f32 %v4812, %v4818
  %v4832 = vadd.f32 %v4813, %v4818
  %v4833 = vadd.f32 %v4814, %v4818
  %v4834 = vadd.f32 %v4815, %v4818
  %v4835 = vadd.f32 %v4816, %v4818
  %v4836 = vpack.c.bf16 %v4821, %v4820
  %v4837 = vpack.c.bf16 %v4823, %v4822
  %v4838 = vpack.c.bf16 %v4825, %v4824
  %v4839 = vpack.c.bf16 %v4827, %v4826
  %v4840 = vpack.c.bf16 %v4829, %v4828
  %v4841 = vpack.c.bf16 %v4831, %v4830
  %v4842 = vpack.c.bf16 %v4833, %v4832
  %v4843 = vpack.c.bf16 %v4835, %v4834
  %v4844 = vld [vmem:[%s13] sm:$0xff]
  %v4845 = vld [vmem:[%s13 + $0x8] sm:$0xff]
  %v4846 = vld [vmem:[%s13 + $0x10] sm:$0xff]
  %v4847 = vld [vmem:[%s13 + $0x18] sm:$0xff]
  %v4848 = vld [vmem:[%s13 + $0x20] sm:$0xff]
  %v4849 = vld [vmem:[%s13 + $0x28] sm:$0xff]
  %v4850 = vld [vmem:[%s13 + $0x30] sm:$0xff]
  %v4851 = vld [vmem:[%s13 + $0x38] sm:$0xff]
  %v4852 = vld [vmem:[%s13 + $0x40] sm:$0xff]
  %v4853 = vld [vmem:[%s13 + $0x48] sm:$0xff]
  %v4854 = vld [vmem:[%s13 + $0x50] sm:$0xff]
  %v4855 = vld [vmem:[%s13 + $0x58] sm:$0xff]
  %v4856 = vld [vmem:[%s13 + $0x60] sm:$0xff]
  %v4857 = vld [vmem:[%s13 + $0x68] sm:$0xff]
  %v4858 = vld [vmem:[%s13 + $0x70] sm:$0xff]
  %v4859 = vld [vmem:[%s13 + $0x78] sm:$0xff]
  %v4860 = vld [vmem:[%s13 + $0x80] sm:$0xff]
  %v4861 = vld [vmem:[%s13 + $0x88] sm:$0xff]
  %v4862 = vld [vmem:[%s13 + $0x90] sm:$0xff]
  %v4863 = vld [vmem:[%s13 + $0x98] sm:$0xff]
  %v4864 = vld [vmem:[%s13 + $0xa0] sm:$0xff]
  %v4865 = vld [vmem:[%s13 + $0xa8] sm:$0xff]
  %v4866 = vld [vmem:[%s13 + $0xb0] sm:$0xff]
  %v4867 = vld [vmem:[%s13 + $0xb8] sm:$0xff]
  %v4868 = vld [vmem:[%s13 + $0xc0] sm:$0xff]
  %v4869 = vld [vmem:[%s13 + $0xc8] sm:$0xff]
  %v4870 = vld [vmem:[%s13 + $0xd0] sm:$0xff]
  %v4871 = vld [vmem:[%s13 + $0xd8] sm:$0xff]
  %v4872 = vld [vmem:[%s13 + $0xe0] sm:$0xff]
  %v4873 = vld [vmem:[%s13 + $0xe8] sm:$0xff]
  %v4874 = vld [vmem:[%s13 + $0xf0] sm:$0xff]
  %v4875 = vld [vmem:[%s13 + $0xf8] sm:$0xff]
  %v4876 = vld [vmem:[%s14] sm:$0xf]
  %v4878 = vperm.slane %v4876, 0
  %v4879 = vperm.slane %v4876, 1
  %v4880 = vperm.slane %v4876, 2
  %v4881 = vperm.slane %v4876, 3
  %v4918 = vunpack.c.l.b16 %v4844
  %v4919 = vunpack.c.h.b16 %v4844
  %v4920 = vunpack.c.l.b16 %v4845
  %v4921 = vunpack.c.h.b16 %v4845
  %v4922 = vunpack.c.l.b16 %v4846
  %v4923 = vunpack.c.h.b16 %v4846
  %v4924 = vunpack.c.l.b16 %v4847
  %v4925 = vunpack.c.h.b16 %v4847
  %v4926 = vunpack.c.l.b16 %v4848
  %v4927 = vunpack.c.h.b16 %v4848
  %v4928 = vunpack.c.l.b16 %v4849
  %v4929 = vunpack.c.h.b16 %v4849
  %v4930 = vunpack.c.l.b16 %v4850
  %v4931 = vunpack.c.h.b16 %v4850
  %v4932 = vunpack.c.l.b16 %v4851
  %v4933 = vunpack.c.h.b16 %v4851
  %v4934 = vunpack.c.l.b16 %v4852
  %v4935 = vunpack.c.h.b16 %v4852
  %v4936 = vunpack.c.l.b16 %v4853
  %v4937 = vunpack.c.h.b16 %v4853
  %v4938 = vunpack.c.l.b16 %v4854
  %v4939 = vunpack.c.h.b16 %v4854
  %v4940 = vunpack.c.l.b16 %v4855
  %v4941 = vunpack.c.h.b16 %v4855
  %v4942 = vunpack.c.l.b16 %v4856
  %v4943 = vunpack.c.h.b16 %v4856
  %v4944 = vunpack.c.l.b16 %v4857
  %v4945 = vunpack.c.h.b16 %v4857
  %v4946 = vunpack.c.l.b16 %v4858
  %v4947 = vunpack.c.h.b16 %v4858
  %v4948 = vunpack.c.l.b16 %v4859
  %v4949 = vunpack.c.h.b16 %v4859
  %v4950 = vunpack.c.l.b16 %v4860
  %v4951 = vunpack.c.h.b16 %v4860
  %v4952 = vunpack.c.l.b16 %v4861
  %v4953 = vunpack.c.h.b16 %v4861
  %v4954 = vunpack.c.l.b16 %v4862
  %v4955 = vunpack.c.h.b16 %v4862
  %v4956 = vunpack.c.l.b16 %v4863
  %v4957 = vunpack.c.h.b16 %v4863
  %v4958 = vunpack.c.l.b16 %v4864
  %v4959 = vunpack.c.h.b16 %v4864
  %v4960 = vunpack.c.l.b16 %v4865
  %v4961 = vunpack.c.h.b16 %v4865
  %v4962 = vunpack.c.l.b16 %v4866
  %v4963 = vunpack.c.h.b16 %v4866
  %v4964 = vunpack.c.l.b16 %v4867
  %v4965 = vunpack.c.h.b16 %v4867
  %v4966 = vunpack.c.l.b16 %v4868
  %v4967 = vunpack.c.h.b16 %v4868
  %v4968 = vunpack.c.l.b16 %v4869
  %v4969 = vunpack.c.h.b16 %v4869
  %v4970 = vunpack.c.l.b16 %v4870
  %v4971 = vunpack.c.h.b16 %v4870
  %v4972 = vunpack.c.l.b16 %v4871
  %v4973 = vunpack.c.h.b16 %v4871
  %v4974 = vunpack.c.l.b16 %v4872
  %v4975 = vunpack.c.h.b16 %v4872
  %v4976 = vunpack.c.l.b16 %v4873
  %v4977 = vunpack.c.h.b16 %v4873
  %v4978 = vunpack.c.l.b16 %v4874
  %v4979 = vunpack.c.h.b16 %v4874
  %v4980 = vunpack.c.l.b16 %v4875
  %v4981 = vunpack.c.h.b16 %v4875
  %v4982 = vpack.c.b16 %v4922, %v4918
  %v4983 = vpack.c.b16 %v4923, %v4919
  %v4984 = vpack.c.b16 %v4924, %v4920
  %v4985 = vpack.c.b16 %v4925, %v4921
  %v4986 = vpack.c.b16 %v4930, %v4926
  %v4987 = vpack.c.b16 %v4931, %v4927
  %v4988 = vpack.c.b16 %v4932, %v4928
  %v4989 = vpack.c.b16 %v4933, %v4929
  %v4990 = vpack.c.b16 %v4938, %v4934
  %v4991 = vpack.c.b16 %v4939, %v4935
  %v4992 = vpack.c.b16 %v4940, %v4936
  %v4993 = vpack.c.b16 %v4941, %v4937
  %v4994 = vpack.c.b16 %v4946, %v4942
  %v4995 = vpack.c.b16 %v4947, %v4943
  %v4996 = vpack.c.b16 %v4948, %v4944
  %v4997 = vpack.c.b16 %v4949, %v4945
  %v4998 = vpack.c.b16 %v4954, %v4950
  %v4999 = vpack.c.b16 %v4955, %v4951
  %v5000 = vpack.c.b16 %v4956, %v4952
  %v5001 = vpack.c.b16 %v4957, %v4953
  %v5002 = vpack.c.b16 %v4962, %v4958
  %v5003 = vpack.c.b16 %v4963, %v4959
  %v5004 = vpack.c.b16 %v4964, %v4960
  %v5005 = vpack.c.b16 %v4965, %v4961
  %v5006 = vpack.c.b16 %v4970, %v4966
  %v5007 = vpack.c.b16 %v4971, %v4967
  %v5008 = vpack.c.b16 %v4972, %v4968
  %v5009 = vpack.c.b16 %v4973, %v4969
  %v5010 = vpack.c.b16 %v4978, %v4974
  %v5011 = vpack.c.b16 %v4979, %v4975
  %v5012 = vpack.c.b16 %v4980, %v4976
  %v5013 = vpack.c.b16 %v4981, %v4977
  %5046 = vmatpush.bf16.msra.mxu0 %v5010
  %5047 = vmatpush.bf16.msra.mxu0 %v5006
  %5048 = vmatpush.bf16.msra.mxu0 %v5002
  %5049 = vmatpush.bf16.msra.mxu0 %v4998
  %5050 = vmatpush.bf16.msra.mxu0 %v4994
  %5051 = vmatpush.bf16.msra.mxu0 %v4990
  %5052 = vmatpush.bf16.msra.mxu0 %v4986
  %5053 = vmatpush.bf16.msra.mxu0 %v4982
  %5054 = vmatmul.bf16.gmra.mxu0 %v4836
  %v5055 = vpop.f32.mrf.mxu0
  %v5056 = vadd.f32 %v4878, %v5055
  %v5057 = vpop.f32.mrf.mxu0
  %v5058 = vadd.f32 %v4878, %v5057
  %5059 = vmatmul.bf16.gmra.mxu0 %v4837
  %v5060 = vpop.f32.mrf.mxu0
  %v5061 = vadd.f32 %v4878, %v5060
  %v5062 = vpop.f32.mrf.mxu0
  %v5063 = vadd.f32 %v4878, %v5062
  %5064 = vmatmul.bf16.gmra.mxu0 %v4838
  %v5065 = vpop.f32.mrf.mxu0
  %v5066 = vadd.f32 %v4878, %v5065
  %v5067 = vpop.f32.mrf.mxu0
  %v5068 = vadd.f32 %v4878, %v5067
  %5069 = vmatmul.bf16.gmra.mxu0 %v4839
  %v5070 = vpop.f32.mrf.mxu0
  %v5071 = vadd.f32 %v4878, %v5070
  %v5072 = vpop.f32.mrf.mxu0
  %v5073 = vadd.f32 %v4878, %v5072
  %5074 = vmatmul.bf16.gmra.mxu0 %v4840
  %v5075 = vpop.f32.mrf.mxu0
  %v5076 = vadd.f32 %v4878, %v5075
  %v5077 = vpop.f32.mrf.mxu0
  %v5078 = vadd.f32 %v4878, %v5077
  %5079 = vmatmul.bf16.gmra.mxu0 %v4841
  %v5080 = vpop.f32.mrf.mxu0
  %v5081 = vadd.f32 %v4878, %v5080
  %v5082 = vpop.f32.mrf.mxu0
  %v5083 = vadd.f32 %v4878, %v5082
  %5084 = vmatmul.bf16.gmra.mxu0 %v4842
  %v5085 = vpop.f32.mrf.mxu0
  %v5086 = vadd.f32 %v4878, %v5085
  %v5087 = vpop.f32.mrf.mxu0
  %v5088 = vadd.f32 %v4878, %v5087
  %5089 = vmatmul.bf16.gmra.mxu0 %v4843
  %v5090 = vpop.f32.mrf.mxu0
  %v5091 = vadd.f32 %v4878, %v5090
  %v5092 = vpop.f32.mrf.mxu0
  %v5093 = vadd.f32 %v4878, %v5092
  %5094 = vdwg.mxu0
  %5095 = vmatpush.bf16.msra.mxu0 %v5011
  %5096 = vmatpush.bf16.msra.mxu0 %v5007
  %5097 = vmatpush.bf16.msra.mxu0 %v5003
  %5098 = vmatpush.bf16.msra.mxu0 %v4999
  %5099 = vmatpush.bf16.msra.mxu0 %v4995
  %5100 = vmatpush.bf16.msra.mxu0 %v4991
  %5101 = vmatpush.bf16.msra.mxu0 %v4987
  %5102 = vmatpush.bf16.msra.mxu0 %v4983
  %5103 = vmatmul.bf16.gmra.mxu0 %v4836
  %v5104 = vpop.f32.mrf.mxu0
  %v5105 = vadd.f32 %v4879, %v5104
  %v5106 = vpop.f32.mrf.mxu0
  %v5107 = vadd.f32 %v4879, %v5106
  %5108 = vmatmul.bf16.gmra.mxu0 %v4837
  %v5109 = vpop.f32.mrf.mxu0
  %v5110 = vadd.f32 %v4879, %v5109
  %v5111 = vpop.f32.mrf.mxu0
  %v5112 = vadd.f32 %v4879, %v5111
  %5113 = vmatmul.bf16.gmra.mxu0 %v4838
  %v5114 = vpop.f32.mrf.mxu0
  %v5115 = vadd.f32 %v4879, %v5114
  %v5116 = vpop.f32.mrf.mxu0
  %v5117 = vadd.f32 %v4879, %v5116
  %5118 = vmatmul.bf16.gmra.mxu0 %v4839
  %v5119 = vpop.f32.mrf.mxu0
  %v5120 = vadd.f32 %v4879, %v5119
  %v5121 = vpop.f32.mrf.mxu0
  %v5122 = vadd.f32 %v4879, %v5121
  %5123 = vmatmul.bf16.gmra.mxu0 %v4840
  %v5124 = vpop.f32.mrf.mxu0
  %v5125 = vadd.f32 %v4879, %v5124
  %v5126 = vpop.f32.mrf.mxu0
  %v5127 = vadd.f32 %v4879, %v5126
  %5128 = vmatmul.bf16.gmra.mxu0 %v4841
  %v5129 = vpop.f32.mrf.mxu0
  %v5130 = vadd.f32 %v4879, %v5129
  %v5131 = vpop.f32.mrf.mxu0
  %v5132 = vadd.f32 %v4879, %v5131
  %5133 = vmatmul.bf16.gmra.mxu0 %v4842
  %v5134 = vpop.f32.mrf.mxu0
  %v5135 = vadd.f32 %v4879, %v5134
  %v5136 = vpop.f32.mrf.mxu0
  %v5137 = vadd.f32 %v4879, %v5136
  %5138 = vmatmul.bf16.gmra.mxu0 %v4843
  %v5139 = vpop.f32.mrf.mxu0
  %v5140 = vadd.f32 %v4879, %v5139
  %v5141 = vpop.f32.mrf.mxu0
  %v5142 = vadd.f32 %v4879, %v5141
  %5143 = vdwg.mxu0
  %5144 = vmatpush.bf16.msra.mxu0 %v5012
  %5145 = vmatpush.bf16.msra.mxu0 %v5008
  %5146 = vmatpush.bf16.msra.mxu0 %v5004
  %5147 = vmatpush.bf16.msra.mxu0 %v5000
  %5148 = vmatpush.bf16.msra.mxu0 %v4996
  %5149 = vmatpush.bf16.msra.mxu0 %v4992
  %5150 = vmatpush.bf16.msra.mxu0 %v4988
  %5151 = vmatpush.bf16.msra.mxu0 %v4984
  %5152 = vmatmul.bf16.gmra.mxu0 %v4836
  %v5153 = vpop.f32.mrf.mxu0
  %v5154 = vadd.f32 %v4880, %v5153
  %v5155 = vpop.f32.mrf.mxu0
  %v5156 = vadd.f32 %v4880, %v5155
  %5157 = vmatmul.bf16.gmra.mxu0 %v4837
  %v5158 = vpop.f32.mrf.mxu0
  %v5159 = vadd.f32 %v4880, %v5158
  %v5160 = vpop.f32.mrf.mxu0
  %v5161 = vadd.f32 %v4880, %v5160
  %5162 = vmatmul.bf16.gmra.mxu0 %v4838
  %v5163 = vpop.f32.mrf.mxu0
  %v5164 = vadd.f32 %v4880, %v5163
  %v5165 = vpop.f32.mrf.mxu0
  %v5166 = vadd.f32 %v4880, %v5165
  %5167 = vmatmul.bf16.gmra.mxu0 %v4839
  %v5168 = vpop.f32.mrf.mxu0
  %v5169 = vadd.f32 %v4880, %v5168
  %v5170 = vpop.f32.mrf.mxu0
  %v5171 = vadd.f32 %v4880, %v5170
  %5172 = vmatmul.bf16.gmra.mxu0 %v4840
  %v5173 = vpop.f32.mrf.mxu0
  %v5174 = vadd.f32 %v4880, %v5173
  %v5175 = vpop.f32.mrf.mxu0
  %v5176 = vadd.f32 %v4880, %v5175
  %5177 = vmatmul.bf16.gmra.mxu0 %v4841
  %v5178 = vpop.f32.mrf.mxu0
  %v5179 = vadd.f32 %v4880, %v5178
  %v5180 = vpop.f32.mrf.mxu0
  %v5181 = vadd.f32 %v4880, %v5180
  %5182 = vmatmul.bf16.gmra.mxu0 %v4842
  %v5183 = vpop.f32.mrf.mxu0
  %v5184 = vadd.f32 %v4880, %v5183
  %v5185 = vpop.f32.mrf.mxu0
  %v5186 = vadd.f32 %v4880, %v5185
  %5187 = vmatmul.bf16.gmra.mxu0 %v4843
  %v5188 = vpop.f32.mrf.mxu0
  %v5189 = vadd.f32 %v4880, %v5188
  %v5190 = vpop.f32.mrf.mxu0
  %v5191 = vadd.f32 %v4880, %v5190
  %5192 = vdwg.mxu0
  %5193 = vmatpush.bf16.msra.mxu0 %v5013
  %5194 = vmatpush.bf16.msra.mxu0 %v5009
  %5195 = vmatpush.bf16.msra.mxu0 %v5005
  %5196 = vmatpush.bf16.msra.mxu0 %v5001
  %5197 = vmatpush.bf16.msra.mxu0 %v4997
  %5198 = vmatpush.bf16.msra.mxu0 %v4993
  %5199 = vmatpush.bf16.msra.mxu0 %v4989
  %5200 = vmatpush.bf16.msra.mxu0 %v4985
  %5201 = vmatmul.bf16.gmra.mxu0 %v4836
  %v5202 = vpop.f32.mrf.mxu0
  %v5203 = vadd.f32 %v4881, %v5202
  %v5204 = vpop.f32.mrf.mxu0
  %v5205 = vadd.f32 %v4881, %v5204
  %5206 = vmatmul.bf16.gmra.mxu0 %v4837
  %v5207 = vpop.f32.mrf.mxu0
  %v5208 = vadd.f32 %v4881, %v5207
  %v5209 = vpop.f32.mrf.mxu0
  %v5210 = vadd.f32 %v4881, %v5209
  %5211 = vmatmul.bf16.gmra.mxu0 %v4838
  %v5212 = vpop.f32.mrf.mxu0
  %v5213 = vadd.f32 %v4881, %v5212
  %v5214 = vpop.f32.mrf.mxu0
  %v5215 = vadd.f32 %v4881, %v5214
  %5216 = vmatmul.bf16.gmra.mxu0 %v4839
  %v5217 = vpop.f32.mrf.mxu0
  %v5218 = vadd.f32 %v4881, %v5217
  %v5219 = vpop.f32.mrf.mxu0
  %v5220 = vadd.f32 %v4881, %v5219
  %5221 = vmatmul.bf16.gmra.mxu0 %v4840
  %v5222 = vpop.f32.mrf.mxu0
  %v5223 = vadd.f32 %v4881, %v5222
  %v5224 = vpop.f32.mrf.mxu0
  %v5225 = vadd.f32 %v4881, %v5224
  %5226 = vmatmul.bf16.gmra.mxu0 %v4841
  %v5227 = vpop.f32.mrf.mxu0
  %v5228 = vadd.f32 %v4881, %v5227
  %v5229 = vpop.f32.mrf.mxu0
  %v5230 = vadd.f32 %v4881, %v5229
  %5231 = vmatmul.bf16.gmra.mxu0 %v4842
  %v5232 = vpop.f32.mrf.mxu0
  %v5233 = vadd.f32 %v4881, %v5232
  %v5234 = vpop.f32.mrf.mxu0
  %v5235 = vadd.f32 %v4881, %v5234
  %5236 = vmatmul.bf16.gmra.mxu0 %v4843
  %v5237 = vpop.f32.mrf.mxu0
  %v5238 = vadd.f32 %v4881, %v5237
  %v5239 = vpop.f32.mrf.mxu0
  %v5240 = vadd.f32 %v4881, %v5239
  %5241 = vdwg.mxu0
  %v5242 = vmul.f32 %v5056, %v5056
  %v5243 = vmul.f32 %v5105, %v5105
  %v5244 = vmul.f32 %v5154, %v5154
  %v5245 = vmul.f32 %v5203, %v5203
  %v5246 = vmul.f32 %v5058, %v5058
  %v5247 = vmul.f32 %v5107, %v5107
  %v5248 = vmul.f32 %v5156, %v5156
  %v5249 = vmul.f32 %v5205, %v5205
  %v5250 = vmul.f32 %v5061, %v5061
  %v5251 = vmul.f32 %v5110, %v5110
  %v5252 = vmul.f32 %v5159, %v5159
  %v5253 = vmul.f32 %v5208, %v5208
  %v5254 = vmul.f32 %v5063, %v5063
  %v5255 = vmul.f32 %v5112, %v5112
  %v5256 = vmul.f32 %v5161, %v5161
  %v5257 = vmul.f32 %v5210, %v5210
  %v5258 = vmul.f32 %v5066, %v5066
  %v5259 = vmul.f32 %v5115, %v5115
  %v5260 = vmul.f32 %v5164, %v5164
  %v5261 = vmul.f32 %v5213, %v5213
  %v5262 = vmul.f32 %v5068, %v5068
  %v5263 = vmul.f32 %v5117, %v5117
  %v5264 = vmul.f32 %v5166, %v5166
  %v5265 = vmul.f32 %v5215, %v5215
  %v5266 = vmul.f32 %v5071, %v5071
  %v5267 = vmul.f32 %v5120, %v5120
  %v5268 = vmul.f32 %v5169, %v5169
  %v5269 = vmul.f32 %v5218, %v5218
  %v5270 = vmul.f32 %v5073, %v5073
  %v5271 = vmul.f32 %v5122, %v5122
  %v5272 = vmul.f32 %v5171, %v5171
  %v5273 = vmul.f32 %v5220, %v5220
  %v5274 = vmul.f32 %v5076, %v5076
  %v5275 = vmul.f32 %v5125, %v5125
  %v5276 = vmul.f32 %v5174, %v5174
  %v5277 = vmul.f32 %v5223, %v5223
  %v5278 = vmul.f32 %v5078, %v5078
  %v5279 = vmul.f32 %v5127, %v5127
  %v5280 = vmul.f32 %v5176, %v5176
  %v5281 = vmul.f32 %v5225, %v5225
  %v5282 = vmul.f32 %v5081, %v5081
  %v5283 = vmul.f32 %v5130, %v5130
  %v5284 = vmul.f32 %v5179, %v5179
  %v5285 = vmul.f32 %v5228, %v5228
  %v5286 = vmul.f32 %v5083, %v5083
  %v5287 = vmul.f32 %v5132, %v5132
  %v5288 = vmul.f32 %v5181, %v5181
  %v5289 = vmul.f32 %v5230, %v5230
  %v5290 = vmul.f32 %v5086, %v5086
  %v5291 = vmul.f32 %v5135, %v5135
  %v5292 = vmul.f32 %v5184, %v5184
  %v5293 = vmul.f32 %v5233, %v5233
  %v5294 = vmul.f32 %v5088, %v5088
  %v5295 = vmul.f32 %v5137, %v5137
  %v5296 = vmul.f32 %v5186, %v5186
  %v5297 = vmul.f32 %v5235, %v5235
  %v5298 = vmul.f32 %v5091, %v5091
  %v5299 = vmul.f32 %v5140, %v5140
  %v5300 = vmul.f32 %v5189, %v5189
  %v5301 = vmul.f32 %v5238, %v5238
  %v5302 = vmul.f32 %v5093, %v5093
  %v5303 = vmul.f32 %v5142, %v5142
  %v5304 = vmul.f32 %v5191, %v5191
  %v5305 = vmul.f32 %v5240, %v5240
  %v5306 = vmul.f32 %v5056, %v5242
  %v5307 = vmul.f32 %v5105, %v5243
  %v5308 = vmul.f32 %v5154, %v5244
  %v5309 = vmul.f32 %v5203, %v5245
  %v5310 = vmul.f32 %v5058, %v5246
  %v5311 = vmul.f32 %v5107, %v5247
  %v5312 = vmul.f32 %v5156, %v5248
  %v5313 = vmul.f32 %v5205, %v5249
  %v5314 = vmul.f32 %v5061, %v5250
  %v5315 = vmul.f32 %v5110, %v5251
  %v5316 = vmul.f32 %v5159, %v5252
  %v5317 = vmul.f32 %v5208, %v5253
  %v5318 = vmul.f32 %v5063, %v5254
  %v5319 = vmul.f32 %v5112, %v5255
  %v5320 = vmul.f32 %v5161, %v5256
  %v5321 = vmul.f32 %v5210, %v5257
  %v5322 = vmul.f32 %v5066, %v5258
  %v5323 = vmul.f32 %v5115, %v5259
  %v5324 = vmul.f32 %v5164, %v5260
  %v5325 = vmul.f32 %v5213, %v5261
  %v5326 = vmul.f32 %v5068, %v5262
  %v5327 = vmul.f32 %v5117, %v5263
  %v5328 = vmul.f32 %v5166, %v5264
  %v5329 = vmul.f32 %v5215, %v5265
  %v5330 = vmul.f32 %v5071, %v5266
  %v5331 = vmul.f32 %v5120, %v5267
  %v5332 = vmul.f32 %v5169, %v5268
  %v5333 = vmul.f32 %v5218, %v5269
  %v5334 = vmul.f32 %v5073, %v5270
  %v5335 = vmul.f32 %v5122, %v5271
  %v5336 = vmul.f32 %v5171, %v5272
  %v5337 = vmul.f32 %v5220, %v5273
  %v5338 = vmul.f32 %v5076, %v5274
  %v5339 = vmul.f32 %v5125, %v5275
  %v5340 = vmul.f32 %v5174, %v5276
  %v5341 = vmul.f32 %v5223, %v5277
  %v5342 = vmul.f32 %v5078, %v5278
  %v5343 = vmul.f32 %v5127, %v5279
  %v5344 = vmul.f32 %v5176, %v5280
  %v5345 = vmul.f32 %v5225, %v5281
  %v5346 = vmul.f32 %v5081, %v5282
  %v5347 = vmul.f32 %v5130, %v5283
  %v5348 = vmul.f32 %v5179, %v5284
  %v5349 = vmul.f32 %v5228, %v5285
  %v5350 = vmul.f32 %v5083, %v5286
  %v5351 = vmul.f32 %v5132, %v5287
  %v5352 = vmul.f32 %v5181, %v5288
  %v5353 = vmul.f32 %v5230, %v5289
  %v5354 = vmul.f32 %v5086, %v5290
  %v5355 = vmul.f32 %v5135, %v5291
  %v5356 = vmul.f32 %v5184, %v5292
  %v5357 = vmul.f32 %v5233, %v5293
  %v5358 = vmul.f32 %v5088, %v5294
  %v5359 = vmul.f32 %v5137, %v5295
  %v5360 = vmul.f32 %v5186, %v5296
  %v5361 = vmul.f32 %v5235, %v5297
  %v5362 = vmul.f32 %v5091, %v5298
  %v5363 = vmul.f32 %v5140, %v5299
  %v5364 = vmul.f32 %v5189, %v5300
  %v5365 = vmul.f32 %v5238, %v5301
  %v5366 = vmul.f32 %v5093, %v5302
  %v5367 = vmul.f32 %v5142, %v5303
  %v5368 = vmul.f32 %v5191, %v5304
  %v5369 = vmul.f32 %v5240, %v5305
  %v5370 = vmul.f32 %v5306, 0.044715
  %v5371 = vmul.f32 %v5307, 0.044715
  %v5372 = vmul.f32 %v5308, 0.044715
  %v5373 = vmul.f32 %v5309, 0.044715
  %v5374 = vmul.f32 %v5310, 0.044715
  %v5375 = vmul.f32 %v5311, 0.044715
  %v5376 = vmul.f32 %v5312, 0.044715
  %v5377 = vmul.f32 %v5313, 0.044715
  %v5378 = vmul.f32 %v5314, 0.044715
  %v5379 = vmul.f32 %v5315, 0.044715
  %v5380 = vmul.f32 %v5316, 0.044715
  %v5381 = vmul.f32 %v5317, 0.044715
  %v5382 = vmul.f32 %v5318, 0.044715
  %v5383 = vmul.f32 %v5319, 0.044715
  %v5384 = vmul.f32 %v5320, 0.044715
  %v5385 = vmul.f32 %v5321, 0.044715
  %v5386 = vmul.f32 %v5322, 0.044715
  %v5387 = vmul.f32 %v5323, 0.044715
  %v5388 = vmul.f32 %v5324, 0.044715
  %v5389 = vmul.f32 %v5325, 0.044715
  %v5390 = vmul.f32 %v5326, 0.044715
  %v5391 = vmul.f32 %v5327, 0.044715
  %v5392 = vmul.f32 %v5328, 0.044715
  %v5393 = vmul.f32 %v5329, 0.044715
  %v5394 = vmul.f32 %v5330, 0.044715
  %v5395 = vmul.f32 %v5331, 0.044715
  %v5396 = vmul.f32 %v5332, 0.044715
  %v5397 = vmul.f32 %v5333, 0.044715
  %v5398 = vmul.f32 %v5334, 0.044715
  %v5399 = vmul.f32 %v5335, 0.044715
  %v5400 = vmul.f32 %v5336, 0.044715
  %v5401 = vmul.f32 %v5337, 0.044715
  %v5402 = vmul.f32 %v5338, 0.044715
  %v5403 = vmul.f32 %v5339, 0.044715
  %v5404 = vmul.f32 %v5340, 0.044715
  %v5405 = vmul.f32 %v5341, 0.044715
  %v5406 = vmul.f32 %v5342, 0.044715
  %v5407 = vmul.f32 %v5343, 0.044715
  %v5408 = vmul.f32 %v5344, 0.044715
  %v5409 = vmul.f32 %v5345, 0.044715
  %v5410 = vmul.f32 %v5346, 0.044715
  %v5411 = vmul.f32 %v5347, 0.044715
  %v5412 = vmul.f32 %v5348, 0.044715
  %v5413 = vmul.f32 %v5349, 0.044715
  %v5414 = vmul.f32 %v5350, 0.044715
  %v5415 = vmul.f32 %v5351, 0.044715
  %v5416 = vmul.f32 %v5352, 0.044715
  %v5417 = vmul.f32 %v5353, 0.044715
  %v5418 = vmul.f32 %v5354, 0.044715
  %v5419 = vmul.f32 %v5355, 0.044715
  %v5420 = vmul.f32 %v5356, 0.044715
  %v5421 = vmul.f32 %v5357, 0.044715
  %v5422 = vmul.f32 %v5358, 0.044715
  %v5423 = vmul.f32 %v5359, 0.044715
  %v5424 = vmul.f32 %v5360, 0.044715
  %v5425 = vmul.f32 %v5361, 0.044715
  %v5426 = vmul.f32 %v5362, 0.044715
  %v5427 = vmul.f32 %v5363, 0.044715
  %v5428 = vmul.f32 %v5364, 0.044715
  %v5429 = vmul.f32 %v5365, 0.044715
  %v5430 = vmul.f32 %v5366, 0.044715
  %v5431 = vmul.f32 %v5367, 0.044715
  %v5432 = vmul.f32 %v5368, 0.044715
  %v5433 = vmul.f32 %v5369, 0.044715
  %v5434 = vadd.f32 %v5056, %v5370
  %v5435 = vadd.f32 %v5105, %v5371
  %v5436 = vadd.f32 %v5154, %v5372
  %v5437 = vadd.f32 %v5203, %v5373
  %v5438 = vadd.f32 %v5058, %v5374
  %v5439 = vadd.f32 %v5107, %v5375
  %v5440 = vadd.f32 %v5156, %v5376
  %v5441 = vadd.f32 %v5205, %v5377
  %v5442 = vadd.f32 %v5061, %v5378
  %v5443 = vadd.f32 %v5110, %v5379
  %v5444 = vadd.f32 %v5159, %v5380
  %v5445 = vadd.f32 %v5208, %v5381
  %v5446 = vadd.f32 %v5063, %v5382
  %v5447 = vadd.f32 %v5112, %v5383
  %v5448 = vadd.f32 %v5161, %v5384
  %v5449 = vadd.f32 %v5210, %v5385
  %v5450 = vadd.f32 %v5066, %v5386
  %v5451 = vadd.f32 %v5115, %v5387
  %v5452 = vadd.f32 %v5164, %v5388
  %v5453 = vadd.f32 %v5213, %v5389
  %v5454 = vadd.f32 %v5068, %v5390
  %v5455 = vadd.f32 %v5117, %v5391
  %v5456 = vadd.f32 %v5166, %v5392
  %v5457 = vadd.f32 %v5215, %v5393
  %v5458 = vadd.f32 %v5071, %v5394
  %v5459 = vadd.f32 %v5120, %v5395
  %v5460 = vadd.f32 %v5169, %v5396
  %v5461 = vadd.f32 %v5218, %v5397
  %v5462 = vadd.f32 %v5073, %v5398
  %v5463 = vadd.f32 %v5122, %v5399
  %v5464 = vadd.f32 %v5171, %v5400
  %v5465 = vadd.f32 %v5220, %v5401
  %v5466 = vadd.f32 %v5076, %v5402
  %v5467 = vadd.f32 %v5125, %v5403
  %v5468 = vadd.f32 %v5174, %v5404
  %v5469 = vadd.f32 %v5223, %v5405
  %v5470 = vadd.f32 %v5078, %v5406
  %v5471 = vadd.f32 %v5127, %v5407
  %v5472 = vadd.f32 %v5176, %v5408
  %v5473 = vadd.f32 %v5225, %v5409
  %v5474 = vadd.f32 %v5081, %v5410
  %v5475 = vadd.f32 %v5130, %v5411
  %v5476 = vadd.f32 %v5179, %v5412
  %v5477 = vadd.f32 %v5228, %v5413
  %v5478 = vadd.f32 %v5083, %v5414
  %v5479 = vadd.f32 %v5132, %v5415
  %v5480 = vadd.f32 %v5181, %v5416
  %v5481 = vadd.f32 %v5230, %v5417
  %v5482 = vadd.f32 %v5086, %v5418
  %v5483 = vadd.f32 %v5135, %v5419
  %v5484 = vadd.f32 %v5184, %v5420
  %v5485 = vadd.f32 %v5233, %v5421
  %v5486 = vadd.f32 %v5088, %v5422
  %v5487 = vadd.f32 %v5137, %v5423
  %v5488 = vadd.f32 %v5186, %v5424
  %v5489 = vadd.f32 %v5235, %v5425
  %v5490 = vadd.f32 %v5091, %v5426
  %v5491 = vadd.f32 %v5140, %v5427
  %v5492 = vadd.f32 %v5189, %v5428
  %v5493 = vadd.f32 %v5238, %v5429
  %v5494 = vadd.f32 %v5093, %v5430
  %v5495 = vadd.f32 %v5142, %v5431
  %v5496 = vadd.f32 %v5191, %v5432
  %v5497 = vadd.f32 %v5240, %v5433
  %v5498 = vmul.f32 %v5434, 0.7978846
  %v5499 = vmul.f32 %v5435, 0.7978846
  %v5500 = vmul.f32 %v5436, 0.7978846
  %v5501 = vmul.f32 %v5437, 0.7978846
  %v5502 = vmul.f32 %v5438, 0.7978846
  %v5503 = vmul.f32 %v5439, 0.7978846
  %v5504 = vmul.f32 %v5440, 0.7978846
  %v5505 = vmul.f32 %v5441, 0.7978846
  %v5506 = vmul.f32 %v5442, 0.7978846
  %v5507 = vmul.f32 %v5443, 0.7978846
  %v5508 = vmul.f32 %v5444, 0.7978846
  %v5509 = vmul.f32 %v5445, 0.7978846
  %v5510 = vmul.f32 %v5446, 0.7978846
  %v5511 = vmul.f32 %v5447, 0.7978846
  %v5512 = vmul.f32 %v5448, 0.7978846
  %v5513 = vmul.f32 %v5449, 0.7978846
  %v5514 = vmul.f32 %v5450, 0.7978846
  %v5515 = vmul.f32 %v5451, 0.7978846
  %v5516 = vmul.f32 %v5452, 0.7978846
  %v5517 = vmul.f32 %v5453, 0.7978846
  %v5518 = vmul.f32 %v5454, 0.7978846
  %v5519 = vmul.f32 %v5455, 0.7978846
  %v5520 = vmul.f32 %v5456, 0.7978846
  %v5521 = vmul.f32 %v5457, 0.7978846
  %v5522 = vmul.f32 %v5458, 0.7978846
  %v5523 = vmul.f32 %v5459, 0.7978846
  %v5524 = vmul.f32 %v5460, 0.7978846
  %v5525 = vmul.f32 %v5461, 0.7978846
  %v5526 = vmul.f32 %v5462, 0.7978846
  %v5527 = vmul.f32 %v5463, 0.7978846
  %v5528 = vmul.f32 %v5464, 0.7978846
  %v5529 = vmul.f32 %v5465, 0.7978846
  %v5530 = vmul.f32 %v5466, 0.7978846
  %v5531 = vmul.f32 %v5467, 0.7978846
  %v5532 = vmul.f32 %v5468, 0.7978846
  %v5533 = vmul.f32 %v5469, 0.7978846
  %v5534 = vmul.f32 %v5470, 0.7978846
  %v5535 = vmul.f32 %v5471, 0.7978846
  %v5536 = vmul.f32 %v5472, 0.7978846
  %v5537 = vmul.f32 %v5473, 0.7978846
  %v5538 = vmul.f32 %v5474, 0.7978846
  %v5539 = vmul.f32 %v5475, 0.7978846
  %v5540 = vmul.f32 %v5476, 0.7978846
  %v5541 = vmul.f32 %v5477, 0.7978846
  %v5542 = vmul.f32 %v5478, 0.7978846
  %v5543 = vmul.f32 %v5479, 0.7978846
  %v5544 = vmul.f32 %v5480, 0.7978846
  %v5545 = vmul.f32 %v5481, 0.7978846
  %v5546 = vmul.f32 %v5482, 0.7978846
  %v5547 = vmul.f32 %v5483, 0.7978846
  %v5548 = vmul.f32 %v5484, 0.7978846
  %v5549 = vmul.f32 %v5485, 0.7978846
  %v5550 = vmul.f32 %v5486, 0.7978846
  %v5551 = vmul.f32 %v5487, 0.7978846
  %v5552 = vmul.f32 %v5488, 0.7978846
  %v5553 = vmul.f32 %v5489, 0.7978846
  %v5554 = vmul.f32 %v5490, 0.7978846
  %v5555 = vmul.f32 %v5491, 0.7978846
  %v5556 = vmul.f32 %v5492, 0.7978846
  %v5557 = vmul.f32 %v5493, 0.7978846
  %v5558 = vmul.f32 %v5494, 0.7978846
  %v5559 = vmul.f32 %v5495, 0.7978846
  %v5560 = vmul.f32 %v5496, 0.7978846
  %v5561 = vmul.f32 %v5497, 0.7978846
  %v5562 = vtanh.pop %v5498
  %v5563 = vtanh.pop %v5499
  %v5564 = vtanh.pop %v5500
  %v5565 = vtanh.pop %v5501
  %v5566 = vtanh.pop %v5502
  %v5567 = vtanh.pop %v5503
  %v5568 = vtanh.pop %v5504
  %v5569 = vtanh.pop %v5505
  %v5570 = vtanh.pop %v5506
  %v5571 = vtanh.pop %v5507
  %v5572 = vtanh.pop %v5508
  %v5573 = vtanh.pop %v5509
  %v5574 = vtanh.pop %v5510
  %v5575 = vtanh.pop %v5511
  %v5576 = vtanh.pop %v5512
  %v5577 = vtanh.pop %v5513
  %v5578 = vtanh.pop %v5514
  %v5579 = vtanh.pop %v5515
  %v5580 = vtanh.pop %v5516
  %v5581 = vtanh.pop %v5517
  %v5582 = vtanh.pop %v5518
  %v5583 = vtanh.pop %v5519
  %v5584 = vtanh.pop %v5520
  %v5585 = vtanh.pop %v5521
  %v5586 = vtanh.pop %v5522
  %v5587 = vtanh.pop %v5523
  %v5588 = vtanh.pop %v5524
  %v5589 = vtanh.pop %v5525
  %v5590 = vtanh.pop %v5526
  %v5591 = vtanh.pop %v5527
  %v5592 = vtanh.pop %v5528
  %v5593 = vtanh.pop %v5529
  %v5594 = vtanh.pop %v5530
  %v5595 = vtanh.pop %v5531
  %v5596 = vtanh.pop %v5532
  %v5597 = vtanh.pop %v5533
  %v5598 = vtanh.pop %v5534
  %v5599 = vtanh.pop %v5535
  %v5600 = vtanh.pop %v5536
  %v5601 = vtanh.pop %v5537
  %v5602 = vtanh.pop %v5538
  %v5603 = vtanh.pop %v5539
  %v5604 = vtanh.pop %v5540
  %v5605 = vtanh.pop %v5541
  %v5606 = vtanh.pop %v5542
  %v5607 = vtanh.pop %v5543
  %v5608 = vtanh.pop %v5544
  %v5609 = vtanh.pop %v5545
  %v5610 = vtanh.pop %v5546
  %v5611 = vtanh.pop %v5547
  %v5612 = vtanh.pop %v5548
  %v5613 = vtanh.pop %v5549
  %v5614 = vtanh.pop %v5550
  %v5615 = vtanh.pop %v5551
  %v5616 = vtanh.pop %v5552
  %v5617 = vtanh.pop %v5553
  %v5618 = vtanh.pop %v5554
  %v5619 = vtanh.pop %v5555
  %v5620 = vtanh.pop %v5556
  %v5621 = vtanh.pop %v5557
  %v5622 = vtanh.pop %v5558
  %v5623 = vtanh.pop %v5559
  %v5624 = vtanh.pop %v5560
  %v5625 = vtanh.pop %v5561
  %v5626 = vadd.f32 %v5562, 1.0
  %v5627 = vadd.f32 %v5563, 1.0
  %v5628 = vadd.f32 %v5564, 1.0
  %v5629 = vadd.f32 %v5565, 1.0
  %v5630 = vadd.f32 %v5566, 1.0
  %v5631 = vadd.f32 %v5567, 1.0
  %v5632 = vadd.f32 %v5568, 1.0
  %v5633 = vadd.f32 %v5569, 1.0
  %v5634 = vadd.f32 %v5570, 1.0
  %v5635 = vadd.f32 %v5571, 1.0
  %v5636 = vadd.f32 %v5572, 1.0
  %v5637 = vadd.f32 %v5573, 1.0
  %v5638 = vadd.f32 %v5574, 1.0
  %v5639 = vadd.f32 %v5575, 1.0
  %v5640 = vadd.f32 %v5576, 1.0
  %v5641 = vadd.f32 %v5577, 1.0
  %v5642 = vadd.f32 %v5578, 1.0
  %v5643 = vadd.f32 %v5579, 1.0
  %v5644 = vadd.f32 %v5580, 1.0
  %v5645 = vadd.f32 %v5581, 1.0
  %v5646 = vadd.f32 %v5582, 1.0
  %v5647 = vadd.f32 %v5583, 1.0
  %v5648 = vadd.f32 %v5584, 1.0
  %v5649 = vadd.f32 %v5585, 1.0
  %v5650 = vadd.f32 %v5586, 1.0
  %v5651 = vadd.f32 %v5587, 1.0
  %v5652 = vadd.f32 %v5588, 1.0
  %v5653 = vadd.f32 %v5589, 1.0
  %v5654 = vadd.f32 %v5590, 1.0
  %v5655 = vadd.f32 %v5591, 1.0
  %v5656 = vadd.f32 %v5592, 1.0
  %v5657 = vadd.f32 %v5593, 1.0
  %v5658 = vadd.f32 %v5594, 1.0
  %v5659 = vadd.f32 %v5595, 1.0
  %v5660 = vadd.f32 %v5596, 1.0
  %v5661 = vadd.f32 %v5597, 1.0
  %v5662 = vadd.f32 %v5598, 1.0
  %v5663 = vadd.f32 %v5599, 1.0
  %v5664 = vadd.f32 %v5600, 1.0
  %v5665 = vadd.f32 %v5601, 1.0
  %v5666 = vadd.f32 %v5602, 1.0
  %v5667 = vadd.f32 %v5603, 1.0
  %v5668 = vadd.f32 %v5604, 1.0
  %v5669 = vadd.f32 %v5605, 1.0
  %v5670 = vadd.f32 %v5606, 1.0
  %v5671 = vadd.f32 %v5607, 1.0
  %v5672 = vadd.f32 %v5608, 1.0
  %v5673 = vadd.f32 %v5609, 1.0
  %v5674 = vadd.f32 %v5610, 1.0
  %v5675 = vadd.f32 %v5611, 1.0
  %v5676 = vadd.f32 %v5612, 1.0
  %v5677 = vadd.f32 %v5613, 1.0
  %v5678 = vadd.f32 %v5614, 1.0
  %v5679 = vadd.f32 %v5615, 1.0
  %v5680 = vadd.f32 %v5616, 1.0
  %v5681 = vadd.f32 %v5617, 1.0
  %v5682 = vadd.f32 %v5618, 1.0
  %v5683 = vadd.f32 %v5619, 1.0
  %v5684 = vadd.f32 %v5620, 1.0
  %v5685 = vadd.f32 %v5621, 1.0
  %v5686 = vadd.f32 %v5622, 1.0
  %v5687 = vadd.f32 %v5623, 1.0
  %v5688 = vadd.f32 %v5624, 1.0
  %v5689 = vadd.f32 %v5625, 1.0
  %v5690 = vmul.f32 %v5626, 0.5
  %v5691 = vmul.f32 %v5627, 0.5
  %v5692 = vmul.f32 %v5628, 0.5
  %v5693 = vmul.f32 %v5629, 0.5
  %v5694 = vmul.f32 %v5630, 0.5
  %v5695 = vmul.f32 %v5631, 0.5
  %v5696 = vmul.f32 %v5632, 0.5
  %v5697 = vmul.f32 %v5633, 0.5
  %v5698 = vmul.f32 %v5634, 0.5
  %v5699 = vmul.f32 %v5635, 0.5
  %v5700 = vmul.f32 %v5636, 0.5
  %v5701 = vmul.f32 %v5637, 0.5
  %v5702 = vmul.f32 %v5638, 0.5
  %v5703 = vmul.f32 %v5639, 0.5
  %v5704 = vmul.f32 %v5640, 0.5
  %v5705 = vmul.f32 %v5641, 0.5
  %v5706 = vmul.f32 %v5642, 0.5
  %v5707 = vmul.f32 %v5643, 0.5
  %v5708 = vmul.f32 %v5644, 0.5
  %v5709 = vmul.f32 %v5645, 0.5
  %v5710 = vmul.f32 %v5646, 0.5
  %v5711 = vmul.f32 %v5647, 0.5
  %v5712 = vmul.f32 %v5648, 0.5
  %v5713 = vmul.f32 %v5649, 0.5
  %v5714 = vmul.f32 %v5650, 0.5
  %v5715 = vmul.f32 %v5651, 0.5
  %v5716 = vmul.f32 %v5652, 0.5
  %v5717 = vmul.f32 %v5653, 0.5
  %v5718 = vmul.f32 %v5654, 0.5
  %v5719 = vmul.f32 %v5655, 0.5
  %v5720 = vmul.f32 %v5656, 0.5
  %v5721 = vmul.f32 %v5657, 0.5
  %v5722 = vmul.f32 %v5658, 0.5
  %v5723 = vmul.f32 %v5659, 0.5
  %v5724 = vmul.f32 %v5660, 0.5
  %v5725 = vmul.f32 %v5661, 0.5
  %v5726 = vmul.f32 %v5662, 0.5
  %v5727 = vmul.f32 %v5663, 0.5
  %v5728 = vmul.f32 %v5664, 0.5
  %v5729 = vmul.f32 %v5665, 0.5
  %v5730 = vmul.f32 %v5666, 0.5
  %v5731 = vmul.f32 %v5667, 0.5
  %v5732 = vmul.f32 %v5668, 0.5
  %v5733 = vmul.f32 %v5669, 0.5
  %v5734 = vmul.f32 %v5670, 0.5
  %v5735 = vmul.f32 %v5671, 0.5
  %v5736 = vmul.f32 %v5672, 0.5
  %v5737 = vmul.f32 %v5673, 0.5
  %v5738 = vmul.f32 %v5674, 0.5
  %v5739 = vmul.f32 %v5675, 0.5
  %v5740 = vmul.f32 %v5676, 0.5
  %v5741 = vmul.f32 %v5677, 0.5
  %v5742 = vmul.f32 %v5678, 0.5
  %v5743 = vmul.f32 %v5679, 0.5
  %v5744 = vmul.f32 %v5680, 0.5
  %v5745 = vmul.f32 %v5681, 0.5
  %v5746 = vmul.f32 %v5682, 0.5
  %v5747 = vmul.f32 %v5683, 0.5
  %v5748 = vmul.f32 %v5684, 0.5
  %v5749 = vmul.f32 %v5685, 0.5
  %v5750 = vmul.f32 %v5686, 0.5
  %v5751 = vmul.f32 %v5687, 0.5
  %v5752 = vmul.f32 %v5688, 0.5
  %v5753 = vmul.f32 %v5689, 0.5
  %v5754 = vmul.f32 %v5056, %v5690
  %v5755 = vmul.f32 %v5105, %v5691
  %v5756 = vmul.f32 %v5154, %v5692
  %v5757 = vmul.f32 %v5203, %v5693
  %v5758 = vmul.f32 %v5058, %v5694
  %v5759 = vmul.f32 %v5107, %v5695
  %v5760 = vmul.f32 %v5156, %v5696
  %v5761 = vmul.f32 %v5205, %v5697
  %v5762 = vmul.f32 %v5061, %v5698
  %v5763 = vmul.f32 %v5110, %v5699
  %v5764 = vmul.f32 %v5159, %v5700
  %v5765 = vmul.f32 %v5208, %v5701
  %v5766 = vmul.f32 %v5063, %v5702
  %v5767 = vmul.f32 %v5112, %v5703
  %v5768 = vmul.f32 %v5161, %v5704
  %v5769 = vmul.f32 %v5210, %v5705
  %v5770 = vmul.f32 %v5066, %v5706
  %v5771 = vmul.f32 %v5115, %v5707
  %v5772 = vmul.f32 %v5164, %v5708
  %v5773 = vmul.f32 %v5213, %v5709
  %v5774 = vmul.f32 %v5068, %v5710
  %v5775 = vmul.f32 %v5117, %v5711
  %v5776 = vmul.f32 %v5166, %v5712
  %v5777 = vmul.f32 %v5215, %v5713
  %v5778 = vmul.f32 %v5071, %v5714
  %v5779 = vmul.f32 %v5120, %v5715
  %v5780 = vmul.f32 %v5169, %v5716
  %v5781 = vmul.f32 %v5218, %v5717
  %v5782 = vmul.f32 %v5073, %v5718
  %v5783 = vmul.f32 %v5122, %v5719
  %v5784 = vmul.f32 %v5171, %v5720
  %v5785 = vmul.f32 %v5220, %v5721
  %v5786 = vmul.f32 %v5076, %v5722
  %v5787 = vmul.f32 %v5125, %v5723
  %v5788 = vmul.f32 %v5174, %v5724
  %v5789 = vmul.f32 %v5223, %v5725
  %v5790 = vmul.f32 %v5078, %v5726
  %v5791 = vmul.f32 %v5127, %v5727
  %v5792 = vmul.f32 %v5176, %v5728
  %v5793 = vmul.f32 %v5225, %v5729
  %v5794 = vmul.f32 %v5081, %v5730
  %v5795 = vmul.f32 %v5130, %v5731
  %v5796 = vmul.f32 %v5179, %v5732
  %v5797 = vmul.f32 %v5228, %v5733
  %v5798 = vmul.f32 %v5083, %v5734
  %v5799 = vmul.f32 %v5132, %v5735
  %v5800 = vmul.f32 %v5181, %v5736
  %v5801 = vmul.f32 %v5230, %v5737
  %v5802 = vmul.f32 %v5086, %v5738
  %v5803 = vmul.f32 %v5135, %v5739
  %v5804 = vmul.f32 %v5184, %v5740
  %v5805 = vmul.f32 %v5233, %v5741
  %v5806 = vmul.f32 %v5088, %v5742
  %v5807 = vmul.f32 %v5137, %v5743
  %v5808 = vmul.f32 %v5186, %v5744
  %v5809 = vmul.f32 %v5235, %v5745
  %v5810 = vmul.f32 %v5091, %v5746
  %v5811 = vmul.f32 %v5140, %v5747
  %v5812 = vmul.f32 %v5189, %v5748
  %v5813 = vmul.f32 %v5238, %v5749
  %v5814 = vmul.f32 %v5093, %v5750
  %v5815 = vmul.f32 %v5142, %v5751
  %v5816 = vmul.f32 %v5191, %v5752
  %v5817 = vmul.f32 %v5240, %v5753
  %v5818 = vpack.c.bf16 %v5758, %v5754
  %v5819 = vpack.c.bf16 %v5759, %v5755
  %v5820 = vpack.c.bf16 %v5760, %v5756
  %v5821 = vpack.c.bf16 %v5761, %v5757
  %v5822 = vpack.c.bf16 %v5766, %v5762
  %v5823 = vpack.c.bf16 %v5767, %v5763
  %v5824 = vpack.c.bf16 %v5768, %v5764
  %v5825 = vpack.c.bf16 %v5769, %v5765
  %v5826 = vpack.c.bf16 %v5774, %v5770
  %v5827 = vpack.c.bf16 %v5775, %v5771
  %v5828 = vpack.c.bf16 %v5776, %v5772
  %v5829 = vpack.c.bf16 %v5777, %v5773
  %v5830 = vpack.c.bf16 %v5782, %v5778
  %v5831 = vpack.c.bf16 %v5783, %v5779
  %v5832 = vpack.c.bf16 %v5784, %v5780
  %v5833 = vpack.c.bf16 %v5785, %v5781
  %v5834 = vpack.c.bf16 %v5790, %v5786
  %v5835 = vpack.c.bf16 %v5791, %v5787
  %v5836 = vpack.c.bf16 %v5792, %v5788
  %v5837 = vpack.c.bf16 %v5793, %v5789
  %v5838 = vpack.c.bf16 %v5798, %v5794
  %v5839 = vpack.c.bf16 %v5799, %v5795
  %v5840 = vpack.c.bf16 %v5800, %v5796
  %v5841 = vpack.c.bf16 %v5801, %v5797
  %v5842 = vpack.c.bf16 %v5806, %v5802
  %v5843 = vpack.c.bf16 %v5807, %v5803
  %v5844 = vpack.c.bf16 %v5808, %v5804
  %v5845 = vpack.c.bf16 %v5809, %v5805
  %v5846 = vpack.c.bf16 %v5814, %v5810
  %v5847 = vpack.c.bf16 %v5815, %v5811
  %v5848 = vpack.c.bf16 %v5816, %v5812
  %v5849 = vpack.c.bf16 %v5817, %v5813
  %v5850 = vld [vmem:[%s15] sm:$0xf]
  %v5851 = vld [vmem:[%s15 + $0x4] sm:$0xf]
  %v5852 = vld [vmem:[%s15 + $0x8] sm:$0xf]
  %v5853 = vld [vmem:[%s15 + $0xc] sm:$0xf]
  %v5854 = vld [vmem:[%s15 + $0x10] sm:$0xf]
  %v5855 = vld [vmem:[%s15 + $0x14] sm:$0xf]
  %v5856 = vld [vmem:[%s15 + $0x18] sm:$0xf]
  %v5857 = vld [vmem:[%s15 + $0x1c] sm:$0xf]
  %v5858 = vld [vmem:[%s15 + $0x20] sm:$0xf]
  %v5859 = vld [vmem:[%s15 + $0x24] sm:$0xf]
  %v5860 = vld [vmem:[%s15 + $0x28] sm:$0xf]
  %v5861 = vld [vmem:[%s15 + $0x2c] sm:$0xf]
  %v5862 = vld [vmem:[%s15 + $0x30] sm:$0xf]
  %v5863 = vld [vmem:[%s15 + $0x34] sm:$0xf]
  %v5864 = vld [vmem:[%s15 + $0x38] sm:$0xf]
  %v5865 = vld [vmem:[%s15 + $0x3c] sm:$0xf]
  %v5866 = vld [vmem:[%s15 + $0x40] sm:$0xf]
  %v5867 = vld [vmem:[%s15 + $0x44] sm:$0xf]
  %v5868 = vld [vmem:[%s15 + $0x48] sm:$0xf]
  %v5869 = vld [vmem:[%s15 + $0x4c] sm:$0xf]
  %v5870 = vld [vmem:[%s15 + $0x50] sm:$0xf]
  %v5871 = vld [vmem:[%s15 + $0x54] sm:$0xf]
  %v5872 = vld [vmem:[%s15 + $0x58] sm:$0xf]
  %v5873 = vld [vmem:[%s15 + $0x5c] sm:$0xf]
  %v5874 = vld [vmem:[%s15 + $0x60] sm:$0xf]
  %v5875 = vld [vmem:[%s15 + $0x64] sm:$0xf]
  %v5876 = vld [vmem:[%s15 + $0x68] sm:$0xf]
  %v5877 = vld [vmem:[%s15 + $0x6c] sm:$0xf]
  %v5878 = vld [vmem:[%s15 + $0x70] sm:$0xf]
  %v5879 = vld [vmem:[%s15 + $0x74] sm:$0xf]
  %v5880 = vld [vmem:[%s15 + $0x78] sm:$0xf]
  %v5881 = vld [vmem:[%s15 + $0x7c] sm:$0xf]
  %v5882 = vld [vmem:[%s15 + $0x80] sm:$0xf]
  %v5883 = vld [vmem:[%s15 + $0x84] sm:$0xf]
  %v5884 = vld [vmem:[%s15 + $0x88] sm:$0xf]
  %v5885 = vld [vmem:[%s15 + $0x8c] sm:$0xf]
  %v5886 = vld [vmem:[%s15 + $0x90] sm:$0xf]
  %v5887 = vld [vmem:[%s15 + $0x94] sm:$0xf]
  %v5888 = vld [vmem:[%s15 + $0x98] sm:$0xf]
  %v5889 = vld [vmem:[%s15 + $0x9c] sm:$0xf]
  %v5890 = vld [vmem:[%s15 + $0xa0] sm:$0xf]
  %v5891 = vld [vmem:[%s15 + $0xa4] sm:$0xf]
  %v5892 = vld [vmem:[%s15 + $0xa8] sm:$0xf]
  %v5893 = vld [vmem:[%s15 + $0xac] sm:$0xf]
  %v5894 = vld [vmem:[%s15 + $0xb0] sm:$0xf]
  %v5895 = vld [vmem:[%s15 + $0xb4] sm:$0xf]
  %v5896 = vld [vmem:[%s15 + $0xb8] sm:$0xf]
  %v5897 = vld [vmem:[%s15 + $0xbc] sm:$0xf]
  %v5898 = vld [vmem:[%s15 + $0xc0] sm:$0xf]
  %v5899 = vld [vmem:[%s15 + $0xc4] sm:$0xf]
  %v5900 = vld [vmem:[%s15 + $0xc8] sm:$0xf]
  %v5901 = vld [vmem:[%s15 + $0xcc] sm:$0xf]
  %v5902 = vld [vmem:[%s15 + $0xd0] sm:$0xf]
  %v5903 = vld [vmem:[%s15 + $0xd4] sm:$0xf]
  %v5904 = vld [vmem:[%s15 + $0xd8] sm:$0xf]
  %v5905 = vld [vmem:[%s15 + $0xdc] sm:$0xf]
  %v5906 = vld [vmem:[%s15 + $0xe0] sm:$0xf]
  %v5907 = vld [vmem:[%s15 + $0xe4] sm:$0xf]
  %v5908 = vld [vmem:[%s15 + $0xe8] sm:$0xf]
  %v5909 = vld [vmem:[%s15 + $0xec] sm:$0xf]
  %v5910 = vld [vmem:[%s15 + $0xf0] sm:$0xf]
  %v5911 = vld [vmem:[%s15 + $0xf4] sm:$0xf]
  %v5912 = vld [vmem:[%s15 + $0xf8] sm:$0xf]
  %v5913 = vld [vmem:[%s15 + $0xfc] sm:$0xf]
  %v5914 = vld [vmem:[%s16] sm:$0x1]
  %v5916 = vperm.slane %v5914, 0
  %v5982 = vunpack.c.l.b16 %v5850
  %v5983 = vunpack.c.l.b16 %v5851
  %v5984 = vunpack.c.l.b16 %v5852
  %v5985 = vunpack.c.l.b16 %v5853
  %v5986 = vunpack.c.l.b16 %v5854
  %v5987 = vunpack.c.l.b16 %v5855
  %v5988 = vunpack.c.l.b16 %v5856
  %v5989 = vunpack.c.l.b16 %v5857
  %v5990 = vunpack.c.l.b16 %v5858
  %v5991 = vunpack.c.l.b16 %v5859
  %v5992 = vunpack.c.l.b16 %v5860
  %v5993 = vunpack.c.l.b16 %v5861
  %v5994 = vunpack.c.l.b16 %v5862
  %v5995 = vunpack.c.l.b16 %v5863
  %v5996 = vunpack.c.l.b16 %v5864
  %v5997 = vunpack.c.l.b16 %v5865
  %v5998 = vunpack.c.l.b16 %v5866
  %v5999 = vunpack.c.l.b16 %v5867
  %v6000 = vunpack.c.l.b16 %v5868
  %v6001 = vunpack.c.l.b16 %v5869
  %v6002 = vunpack.c.l.b16 %v5870
  %v6003 = vunpack.c.l.b16 %v5871
  %v6004 = vunpack.c.l.b16 %v5872
  %v6005 = vunpack.c.l.b16 %v5873
  %v6006 = vunpack.c.l.b16 %v5874
  %v6007 = vunpack.c.l.b16 %v5875
  %v6008 = vunpack.c.l.b16 %v5876
  %v6009 = vunpack.c.l.b16 %v5877
  %v6010 = vunpack.c.l.b16 %v5878
  %v6011 = vunpack.c.l.b16 %v5879
  %v6012 = vunpack.c.l.b16 %v5880
  %v6013 = vunpack.c.l.b16 %v5881
  %v6014 = vunpack.c.l.b16 %v5882
  %v6015 = vunpack.c.l.b16 %v5883
  %v6016 = vunpack.c.l.b16 %v5884
  %v6017 = vunpack.c.l.b16 %v5885
  %v6018 = vunpack.c.l.b16 %v5886
  %v6019 = vunpack.c.l.b16 %v5887
  %v6020 = vunpack.c.l.b16 %v5888
  %v6021 = vunpack.c.l.b16 %v5889
  %v6022 = vunpack.c.l.b16 %v5890
  %v6023 = vunpack.c.l.b16 %v5891
  %v6024 = vunpack.c.l.b16 %v5892
  %v6025 = vunpack.c.l.b16 %v5893
  %v6026 = vunpack.c.l.b16 %v5894
  %v6027 = vunpack.c.l.b16 %v5895
  %v6028 = vunpack.c.l.b16 %v5896
  %v6029 = vunpack.c.l.b16 %v5897
  %v6030 = vunpack.c.l.b16 %v5898
  %v6031 = vunpack.c.l.b16 %v5899
  %v6032 = vunpack.c.l.b16 %v5900
  %v6033 = vunpack.c.l.b16 %v5901
  %v6034 = vunpack.c.l.b16 %v5902
  %v6035 = vunpack.c.l.b16 %v5903
  %v6036 = vunpack.c.l.b16 %v5904
  %v6037 = vunpack.c.l.b16 %v5905
  %v6038 = vunpack.c.l.b16 %v5906
  %v6039 = vunpack.c.l.b16 %v5907
  %v6040 = vunpack.c.l.b16 %v5908
  %v6041 = vunpack.c.l.b16 %v5909
  %v6042 = vunpack.c.l.b16 %v5910
  %v6043 = vunpack.c.l.b16 %v5911
  %v6044 = vunpack.c.l.b16 %v5912
  %v6045 = vunpack.c.l.b16 %v5913
  %v6046 = vpack.c.b16 %v5983, %v5982
  %v6047 = vpack.c.b16 %v5985, %v5984
  %v6048 = vpack.c.b16 %v5987, %v5986
  %v6049 = vpack.c.b16 %v5989, %v5988
  %v6050 = vpack.c.b16 %v5991, %v5990
  %v6051 = vpack.c.b16 %v5993, %v5992
  %v6052 = vpack.c.b16 %v5995, %v5994
  %v6053 = vpack.c.b16 %v5997, %v5996
  %v6054 = vpack.c.b16 %v5999, %v5998
  %v6055 = vpack.c.b16 %v6001, %v6000
  %v6056 = vpack.c.b16 %v6003, %v6002
  %v6057 = vpack.c.b16 %v6005, %v6004
  %v6058 = vpack.c.b16 %v6007, %v6006
  %v6059 = vpack.c.b16 %v6009, %v6008
  %v6060 = vpack.c.b16 %v6011, %v6010
  %v6061 = vpack.c.b16 %v6013, %v6012
  %v6062 = vpack.c.b16 %v6015, %v6014
  %v6063 = vpack.c.b16 %v6017, %v6016
  %v6064 = vpack.c.b16 %v6019, %v6018
  %v6065 = vpack.c.b16 %v6021, %v6020
  %v6066 = vpack.c.b16 %v6023, %v6022
  %v6067 = vpack.c.b16 %v6025, %v6024
  %v6068 = vpack.c.b16 %v6027, %v6026
  %v6069 = vpack.c.b16 %v6029, %v6028
  %v6070 = vpack.c.b16 %v6031, %v6030
  %v6071 = vpack.c.b16 %v6033, %v6032
  %v6072 = vpack.c.b16 %v6035, %v6034
  %v6073 = vpack.c.b16 %v6037, %v6036
  %v6074 = vpack.c.b16 %v6039, %v6038
  %v6075 = vpack.c.b16 %v6041, %v6040
  %v6076 = vpack.c.b16 %v6043, %v6042
  %v6077 = vpack.c.b16 %v6045, %v6044
  %6110 = vmatpush.bf16.msra.mxu0 %v6053
  %6111 = vmatpush.bf16.msra.mxu0 %v6052
  %6112 = vmatpush.bf16.msra.mxu0 %v6051
  %6113 = vmatpush.bf16.msra.mxu0 %v6050
  %6114 = vmatpush.bf16.msra.mxu0 %v6049
  %6115 = vmatpush.bf16.msra.mxu0 %v6048
  %6116 = vmatpush.bf16.msra.mxu0 %v6047
  %6117 = vmatpush.bf16.msra.mxu0 %v6046
  %6118 = vmatmul.bf16.gmra.mxu0 %v5818
  %v6119 = vpop.f32.mrf.mxu0
  %v6120 = vadd.f32 %v5916, %v6119
  %v6121 = vpop.f32.mrf.mxu0
  %v6122 = vadd.f32 %v5916, %v6121
  %6123 = vmatmul.bf16.gmra.mxu0 %v5822
  %v6124 = vpop.f32.mrf.mxu0
  %v6125 = vadd.f32 %v5916, %v6124
  %v6126 = vpop.f32.mrf.mxu0
  %v6127 = vadd.f32 %v5916, %v6126
  %6128 = vmatmul.bf16.gmra.mxu0 %v5826
  %v6129 = vpop.f32.mrf.mxu0
  %v6130 = vadd.f32 %v5916, %v6129
  %v6131 = vpop.f32.mrf.mxu0
  %v6132 = vadd.f32 %v5916, %v6131
  %6133 = vmatmul.bf16.gmra.mxu0 %v5830
  %v6134 = vpop.f32.mrf.mxu0
  %v6135 = vadd.f32 %v5916, %v6134
  %v6136 = vpop.f32.mrf.mxu0
  %v6137 = vadd.f32 %v5916, %v6136
  %6138 = vmatmul.bf16.gmra.mxu0 %v5834
  %v6139 = vpop.f32.mrf.mxu0
  %v6140 = vadd.f32 %v5916, %v6139
  %v6141 = vpop.f32.mrf.mxu0
  %v6142 = vadd.f32 %v5916, %v6141
  %6143 = vmatmul.bf16.gmra.mxu0 %v5838
  %v6144 = vpop.f32.mrf.mxu0
  %v6145 = vadd.f32 %v5916, %v6144
  %v6146 = vpop.f32.mrf.mxu0
  %v6147 = vadd.f32 %v5916, %v6146
  %6148 = vmatmul.bf16.gmra.mxu0 %v5842
  %v6149 = vpop.f32.mrf.mxu0
  %v6150 = vadd.f32 %v5916, %v6149
  %v6151 = vpop.f32.mrf.mxu0
  %v6152 = vadd.f32 %v5916, %v6151
  %6153 = vmatmul.bf16.gmra.mxu0 %v5846
  %v6154 = vpop.f32.mrf.mxu0
  %v6155 = vadd.f32 %v5916, %v6154
  %v6156 = vpop.f32.mrf.mxu0
  %v6157 = vadd.f32 %v5916, %v6156
  %6158 = vdwg.mxu0
  %6159 = vmatpush.bf16.msra.mxu0 %v6061
  %6160 = vmatpush.bf16.msra.mxu0 %v6060
  %6161 = vmatpush.bf16.msra.mxu0 %v6059
  %6162 = vmatpush.bf16.msra.mxu0 %v6058
  %6163 = vmatpush.bf16.msra.mxu0 %v6057
  %6164 = vmatpush.bf16.msra.mxu0 %v6056
  %6165 = vmatpush.bf16.msra.mxu0 %v6055
  %6166 = vmatpush.bf16.msra.mxu0 %v6054
  %6167 = vmatmul.bf16.gmra.mxu0 %v5819
  %v6168 = vpop.f32.mrf.mxu0
  %v6169 = vadd.f32 %v6120, %v6168
  %v6170 = vpop.f32.mrf.mxu0
  %v6171 = vadd.f32 %v6122, %v6170
  %6172 = vmatmul.bf16.gmra.mxu0 %v5823
  %v6173 = vpop.f32.mrf.mxu0
  %v6174 = vadd.f32 %v6125, %v6173
  %v6175 = vpop.f32.mrf.mxu0
  %v6176 = vadd.f32 %v6127, %v6175
  %6177 = vmatmul.bf16.gmra.mxu0 %v5827
  %v6178 = vpop.f32.mrf.mxu0
  %v6179 = vadd.f32 %v6130, %v6178
  %v6180 = vpop.f32.mrf.mxu0
  %v6181 = vadd.f32 %v6132, %v6180
  %6182 = vmatmul.bf16.gmra.mxu0 %v5831
  %v6183 = vpop.f32.mrf.mxu0
  %v6184 = vadd.f32 %v6135, %v6183
  %v6185 = vpop.f32.mrf.mxu0
  %v6186 = vadd.f32 %v6137, %v6185
  %6187 = vmatmul.bf16.gmra.mxu0 %v5835
  %v6188 = vpop.f32.mrf.mxu0
  %v6189 = vadd.f32 %v6140, %v6188
  %v6190 = vpop.f32.mrf.mxu0
  %v6191 = vadd.f32 %v6142, %v6190
  %6192 = vmatmul.bf16.gmra.mxu0 %v5839
  %v6193 = vpop.f32.mrf.mxu0
  %v6194 = vadd.f32 %v6145, %v6193
  %v6195 = vpop.f32.mrf.mxu0
  %v6196 = vadd.f32 %v6147, %v6195
  %6197 = vmatmul.bf16.gmra.mxu0 %v5843
  %v6198 = vpop.f32.mrf.mxu0
  %v6199 = vadd.f32 %v6150, %v6198
  %v6200 = vpop.f32.mrf.mxu0
  %v6201 = vadd.f32 %v6152, %v6200
  %6202 = vmatmul.bf16.gmra.mxu0 %v5847
  %v6203 = vpop.f32.mrf.mxu0
  %v6204 = vadd.f32 %v6155, %v6203
  %v6205 = vpop.f32.mrf.mxu0
  %v6206 = vadd.f32 %v6157, %v6205
  %6207 = vdwg.mxu0
  %6208 = vmatpush.bf16.msra.mxu0 %v6069
  %6209 = vmatpush.bf16.msra.mxu0 %v6068
  %6210 = vmatpush.bf16.msra.mxu0 %v6067
  %6211 = vmatpush.bf16.msra.mxu0 %v6066
  %6212 = vmatpush.bf16.msra.mxu0 %v6065
  %6213 = vmatpush.bf16.msra.mxu0 %v6064
  %6214 = vmatpush.bf16.msra.mxu0 %v6063
  %6215 = vmatpush.bf16.msra.mxu0 %v6062
  %6216 = vmatmul.bf16.gmra.mxu0 %v5820
  %v6217 = vpop.f32.mrf.mxu0
  %v6218 = vadd.f32 %v6169, %v6217
  %v6219 = vpop.f32.mrf.mxu0
  %v6220 = vadd.f32 %v6171, %v6219
  %6221 = vmatmul.bf16.gmra.mxu0 %v5824
  %v6222 = vpop.f32.mrf.mxu0
  %v6223 = vadd.f32 %v6174, %v6222
  %v6224 = vpop.f32.mrf.mxu0
  %v6225 = vadd.f32 %v6176, %v6224
  %6226 = vmatmul.bf16.gmra.mxu0 %v5828
  %v6227 = vpop.f32.mrf.mxu0
  %v6228 = vadd.f32 %v6179, %v6227
  %v6229 = vpop.f32.mrf.mxu0
  %v6230 = vadd.f32 %v6181, %v6229
  %6231 = vmatmul.bf16.gmra.mxu0 %v5832
  %v6232 = vpop.f32.mrf.mxu0
  %v6233 = vadd.f32 %v6184, %v6232
  %v6234 = vpop.f32.mrf.mxu0
  %v6235 = vadd.f32 %v6186, %v6234
  %6236 = vmatmul.bf16.gmra.mxu0 %v5836
  %v6237 = vpop.f32.mrf.mxu0
  %v6238 = vadd.f32 %v6189, %v6237
  %v6239 = vpop.f32.mrf.mxu0
  %v6240 = vadd.f32 %v6191, %v6239
  %6241 = vmatmul.bf16.gmra.mxu0 %v5840
  %v6242 = vpop.f32.mrf.mxu0
  %v6243 = vadd.f32 %v6194, %v6242
  %v6244 = vpop.f32.mrf.mxu0
  %v6245 = vadd.f32 %v6196, %v6244
  %6246 = vmatmul.bf16.gmra.mxu0 %v5844
  %v6247 = vpop.f32.mrf.mxu0
  %v6248 = vadd.f32 %v6199, %v6247
  %v6249 = vpop.f32.mrf.mxu0
  %v6250 = vadd.f32 %v6201, %v6249
  %6251 = vmatmul.bf16.gmra.mxu0 %v5848
  %v6252 = vpop.f32.mrf.mxu0
  %v6253 = vadd.f32 %v6204, %v6252
  %v6254 = vpop.f32.mrf.mxu0
  %v6255 = vadd.f32 %v6206, %v6254
  %6256 = vdwg.mxu0
  %6257 = vmatpush.bf16.msra.mxu0 %v6077
  %6258 = vmatpush.bf16.msra.mxu0 %v6076
  %6259 = vmatpush.bf16.msra.mxu0 %v6075
  %6260 = vmatpush.bf16.msra.mxu0 %v6074
  %6261 = vmatpush.bf16.msra.mxu0 %v6073
  %6262 = vmatpush.bf16.msra.mxu0 %v6072
  %6263 = vmatpush.bf16.msra.mxu0 %v6071
  %6264 = vmatpush.bf16.msra.mxu0 %v6070
  %6265 = vmatmul.bf16.gmra.mxu0 %v5821
  %v6266 = vpop.f32.mrf.mxu0
  %v6267 = vadd.f32 %v6218, %v6266
  %v6268 = vpop.f32.mrf.mxu0
  %v6269 = vadd.f32 %v6220, %v6268
  %6270 = vmatmul.bf16.gmra.mxu0 %v5825
  %v6271 = vpop.f32.mrf.mxu0
  %v6272 = vadd.f32 %v6223, %v6271
  %v6273 = vpop.f32.mrf.mxu0
  %v6274 = vadd.f32 %v6225, %v6273
  %6275 = vmatmul.bf16.gmra.mxu0 %v5829
  %v6276 = vpop.f32.mrf.mxu0
  %v6277 = vadd.f32 %v6228, %v6276
  %v6278 = vpop.f32.mrf.mxu0
  %v6279 = vadd.f32 %v6230, %v6278
  %6280 = vmatmul.bf16.gmra.mxu0 %v5833
  %v6281 = vpop.f32.mrf.mxu0
  %v6282 = vadd.f32 %v6233, %v6281
  %v6283 = vpop.f32.mrf.mxu0
  %v6284 = vadd.f32 %v6235, %v6283
  %6285 = vmatmul.bf16.gmra.mxu0 %v5837
  %v6286 = vpop.f32.mrf.mxu0
  %v6287 = vadd.f32 %v6238, %v6286
  %v6288 = vpop.f32.mrf.mxu0
  %v6289 = vadd.f32 %v6240, %v6288
  %6290 = vmatmul.bf16.gmra.mxu0 %v5841
  %v6291 = vpop.f32.mrf.mxu0
  %v6292 = vadd.f32 %v6243, %v6291
  %v6293 = vpop.f32.mrf.mxu0
  %v6294 = vadd.f32 %v6245, %v6293
  %6295 = vmatmul.bf16.gmra.mxu0 %v5845
  %v6296 = vpop.f32.mrf.mxu0
  %v6297 = vadd.f32 %v6248, %v6296
  %v6298 = vpop.f32.mrf.mxu0
  %v6299 = vadd.f32 %v6250, %v6298
  %6300 = vmatmul.bf16.gmra.mxu0 %v5849
  %v6301 = vpop.f32.mrf.mxu0
  %v6302 = vadd.f32 %v6253, %v6301
  %v6303 = vpop.f32.mrf.mxu0
  %v6304 = vadd.f32 %v6255, %v6303
  %6305 = vdwg.mxu0
  %v6306 = vadd.f32 %v4460, %v6267
  %v6307 = vadd.f32 %v4461, %v6269
  %v6308 = vadd.f32 %v4462, %v6272
  %v6309 = vadd.f32 %v4463, %v6274
  %v6310 = vadd.f32 %v4464, %v6277
  %v6311 = vadd.f32 %v4465, %v6279
  %v6312 = vadd.f32 %v4466, %v6282
  %v6313 = vadd.f32 %v4467, %v6284
  %v6314 = vadd.f32 %v4468, %v6287
  %v6315 = vadd.f32 %v4469, %v6289
  %v6316 = vadd.f32 %v4470, %v6292
  %v6317 = vadd.f32 %v4471, %v6294
  %v6318 = vadd.f32 %v4472, %v6297
  %v6319 = vadd.f32 %v4473, %v6299
  %v6320 = vadd.f32 %v4474, %v6302
  %v6321 = vadd.f32 %v4475, %v6304
  %s6322 = scalar_lea.vmem %s5, 1
  %v6323 = vld [vmem:[%s6322] sm:$0x1]
  %s6324 = scalar_lea.vmem %s6, 1
  %v6325 = vld [vmem:[%s6324] sm:$0x1]
  %6326 = vadd.xlane.f32.xlu0 %v6306
  %v6327 = vpop.xlane.xlu0 %6326
  %6328 = vadd.xlane.f32.xlu0 %v6307
  %v6329 = vpop.xlane.xlu0 %6328
  %6330 = vadd.xlane.f32.xlu0 %v6308
  %v6331 = vpop.xlane.xlu0 %6330
  %6332 = vadd.xlane.f32.xlu0 %v6309
  %v6333 = vpop.xlane.xlu0 %6332
  %6334 = vadd.xlane.f32.xlu0 %v6310
  %v6335 = vpop.xlane.xlu0 %6334
  %6336 = vadd.xlane.f32.xlu0 %v6311
  %v6337 = vpop.xlane.xlu0 %6336
  %6338 = vadd.xlane.f32.xlu0 %v6312
  %v6339 = vpop.xlane.xlu0 %6338
  %6340 = vadd.xlane.f32.xlu0 %v6313
  %v6341 = vpop.xlane.xlu0 %6340
  %6342 = vadd.xlane.f32.xlu0 %v6314
  %v6343 = vpop.xlane.xlu0 %6342
  %6344 = vadd.xlane.f32.xlu0 %v6315
  %v6345 = vpop.xlane.xlu0 %6344
  %6346 = vadd.xlane.f32.xlu0 %v6316
  %v6347 = vpop.xlane.xlu0 %6346
  %6348 = vadd.xlane.f32.xlu0 %v6317
  %v6349 = vpop.xlane.xlu0 %6348
  %6350 = vadd.xlane.f32.xlu0 %v6318
  %v6351 = vpop.xlane.xlu0 %6350
  %6352 = vadd.xlane.f32.xlu0 %v6319
  %v6353 = vpop.xlane.xlu0 %6352
  %6354 = vadd.xlane.f32.xlu0 %v6320
  %v6355 = vpop.xlane.xlu0 %6354
  %6356 = vadd.xlane.f32.xlu0 %v6321
  %v6357 = vpop.xlane.xlu0 %6356
  %v6358 = vmul.f32 %v6327, %v1218
  %v6359 = vmul.f32 %v6329, %v1218
  %v6360 = vmul.f32 %v6331, %v1218
  %v6361 = vmul.f32 %v6333, %v1218
  %v6362 = vmul.f32 %v6335, %v1218
  %v6363 = vmul.f32 %v6337, %v1218
  %v6364 = vmul.f32 %v6339, %v1218
  %v6365 = vmul.f32 %v6341, %v1218
  %v6366 = vmul.f32 %v6343, %v1218
  %v6367 = vmul.f32 %v6345, %v1218
  %v6368 = vmul.f32 %v6347, %v1218
  %v6369 = vmul.f32 %v6349, %v1218
  %v6370 = vmul.f32 %v6351, %v1218
  %v6371 = vmul.f32 %v6353, %v1218
  %v6372 = vmul.f32 %v6355, %v1218
  %v6373 = vmul.f32 %v6357, %v1218
  %v6374 = vsub.f32 %v6306, %v6358
  %v6375 = vsub.f32 %v6307, %v6359
  %v6376 = vsub.f32 %v6308, %v6360
  %v6377 = vsub.f32 %v6309, %v6361
  %v6378 = vsub.f32 %v6310, %v6362
  %v6379 = vsub.f32 %v6311, %v6363
  %v6380 = vsub.f32 %v6312, %v6364
  %v6381 = vsub.f32 %v6313, %v6365
  %v6382 = vsub.f32 %v6314, %v6366
  %v6383 = vsub.f32 %v6315, %v6367
  %v6384 = vsub.f32 %v6316, %v6368
  %v6385 = vsub.f32 %v6317, %v6369
  %v6386 = vsub.f32 %v6318, %v6370
  %v6387 = vsub.f32 %v6319, %v6371
  %v6388 = vsub.f32 %v6320, %v6372
  %v6389 = vsub.f32 %v6321, %v6373
  %v6390 = vmul.f32 %v6374, %v6374
  %v6391 = vmul.f32 %v6375, %v6375
  %v6392 = vmul.f32 %v6376, %v6376
  %v6393 = vmul.f32 %v6377, %v6377
  %v6394 = vmul.f32 %v6378, %v6378
  %v6395 = vmul.f32 %v6379, %v6379
  %v6396 = vmul.f32 %v6380, %v6380
  %v6397 = vmul.f32 %v6381, %v6381
  %v6398 = vmul.f32 %v6382, %v6382
  %v6399 = vmul.f32 %v6383, %v6383
  %v6400 = vmul.f32 %v6384, %v6384
  %v6401 = vmul.f32 %v6385, %v6385
  %v6402 = vmul.f32 %v6386, %v6386
  %v6403 = vmul.f32 %v6387, %v6387
  %v6404 = vmul.f32 %v6388, %v6388
  %v6405 = vmul.f32 %v6389, %v6389
  %6406 = vadd.xlane.f32.xlu0 %v6390
  %v6407 = vpop.xlane.xlu0 %6406
  %6408 = vadd.xlane.f32.xlu0 %v6391
  %v6409 = vpop.xlane.xlu0 %6408
  %6410 = vadd.xlane.f32.xlu0 %v6392
  %v6411 = vpop.xlane.xlu0 %6410
  %6412 = vadd.xlane.f32.xlu0 %v6393
  %v6413 = vpop.xlane.xlu0 %6412
  %6414 = vadd.xlane.f32.xlu0 %v6394
  %v6415 = vpop.xlane.xlu0 %6414
  %6416 = vadd.xlane.f32.xlu0 %v6395
  %v6417 = vpop.xlane.xlu0 %6416
  %6418 = vadd.xlane.f32.xlu0 %v6396
  %v6419 = vpop.xlane.xlu0 %6418
  %6420 = vadd.xlane.f32.xlu0 %v6397
  %v6421 = vpop.xlane.xlu0 %6420
  %6422 = vadd.xlane.f32.xlu0 %v6398
  %v6423 = vpop.xlane.xlu0 %6422
  %6424 = vadd.xlane.f32.xlu0 %v6399
  %v6425 = vpop.xlane.xlu0 %6424
  %6426 = vadd.xlane.f32.xlu0 %v6400
  %v6427 = vpop.xlane.xlu0 %6426
  %6428 = vadd.xlane.f32.xlu0 %v6401
  %v6429 = vpop.xlane.xlu0 %6428
  %6430 = vadd.xlane.f32.xlu0 %v6402
  %v6431 = vpop.xlane.xlu0 %6430
  %6432 = vadd.xlane.f32.xlu0 %v6403
  %v6433 = vpop.xlane.xlu0 %6432
  %6434 = vadd.xlane.f32.xlu0 %v6404
  %v6435 = vpop.xlane.xlu0 %6434
  %6436 = vadd.xlane.f32.xlu0 %v6405
  %v6437 = vpop.xlane.xlu0 %6436
  %v6438 = vmul.f32 %v6407, %v1218
  %v6439 = vmul.f32 %v6409, %v1218
  %v6440 = vmul.f32 %v6411, %v1218
  %v6441 = vmul.f32 %v6413, %v1218
  %v6442 = vmul.f32 %v6415, %v1218
  %v6443 = vmul.f32 %v6417, %v1218
  %v6444 = vmul.f32 %v6419, %v1218
  %v6445 = vmul.f32 %v6421, %v1218
  %v6446 = vmul.f32 %v6423, %v1218
  %v6447 = vmul.f32 %v6425, %v1218
  %v6448 = vmul.f32 %v6427, %v1218
  %v6449 = vmul.f32 %v6429, %v1218
  %v6450 = vmul.f32 %v6431, %v1218
  %v6451 = vmul.f32 %v6433, %v1218
  %v6452 = vmul.f32 %v6435, %v1218
  %v6453 = vmul.f32 %v6437, %v1218
  %v6454 = vadd.f32 %v6438, 1e-06
  %v6455 = vadd.f32 %v6439, 1e-06
  %v6456 = vadd.f32 %v6440, 1e-06
  %v6457 = vadd.f32 %v6441, 1e-06
  %v6458 = vadd.f32 %v6442, 1e-06
  %v6459 = vadd.f32 %v6443, 1e-06
  %v6460 = vadd.f32 %v6444, 1e-06
  %v6461 = vadd.f32 %v6445, 1e-06
  %v6462 = vadd.f32 %v6446, 1e-06
  %v6463 = vadd.f32 %v6447, 1e-06
  %v6464 = vadd.f32 %v6448, 1e-06
  %v6465 = vadd.f32 %v6449, 1e-06
  %v6466 = vadd.f32 %v6450, 1e-06
  %v6467 = vadd.f32 %v6451, 1e-06
  %v6468 = vadd.f32 %v6452, 1e-06
  %v6469 = vadd.f32 %v6453, 1e-06
  %v6470 = vrsqrt.pop %v6454
  %v6471 = vmul.f32 %v6470, %v6454
  %v6472 = vmul.f32 %v6471, %v6470
  %v6473 = vmul.f32 0.5, %v6472
  %v6474 = vsub.f32 1.5, %v6473
  %v6475 = vmul.f32 %v6470, %v6474
  %vm6476 = vweird.f32 %v6454
  %vm6477 = vweird.f32 %v6470
  %vm6478 = vmor %vm6476, %vm6477
  %v6479 = vsel %vm6478, %v6470, %v6475
  %v6480 = vrsqrt.pop %v6455
  %v6481 = vmul.f32 %v6480, %v6455
  %v6482 = vmul.f32 %v6481, %v6480
  %v6483 = vmul.f32 0.5, %v6482
  %v6484 = vsub.f32 1.5, %v6483
  %v6485 = vmul.f32 %v6480, %v6484
  %vm6486 = vweird.f32 %v6455
  %vm6487 = vweird.f32 %v6480
  %vm6488 = vmor %vm6486, %vm6487
  %v6489 = vsel %vm6488, %v6480, %v6485
  %v6490 = vrsqrt.pop %v6456
  %v6491 = vmul.f32 %v6490, %v6456
  %v6492 = vmul.f32 %v6491, %v6490
  %v6493 = vmul.f32 0.5, %v6492
  %v6494 = vsub.f32 1.5, %v6493
  %v6495 = vmul.f32 %v6490, %v6494
  %vm6496 = vweird.f32 %v6456
  %vm6497 = vweird.f32 %v6490
  %vm6498 = vmor %vm6496, %vm6497
  %v6499 = vsel %vm6498, %v6490, %v6495
  %v6500 = vrsqrt.pop %v6457
  %v6501 = vmul.f32 %v6500, %v6457
  %v6502 = vmul.f32 %v6501, %v6500
  %v6503 = vmul.f32 0.5, %v6502
  %v6504 = vsub.f32 1.5, %v6503
  %v6505 = vmul.f32 %v6500, %v6504
  %vm6506 = vweird.f32 %v6457
  %vm6507 = vweird.f32 %v6500
  %vm6508 = vmor %vm6506, %vm6507
  %v6509 = vsel %vm6508, %v6500, %v6505
  %v6510 = vrsqrt.pop %v6458
  %v6511 = vmul.f32 %v6510, %v6458
  %v6512 = vmul.f32 %v6511, %v6510
  %v6513 = vmul.f32 0.5, %v6512
  %v6514 = vsub.f32 1.5, %v6513
  %v6515 = vmul.f32 %v6510, %v6514
  %vm6516 = vweird.f32 %v6458
  %vm6517 = vweird.f32 %v6510
  %vm6518 = vmor %vm6516, %vm6517
  %v6519 = vsel %vm6518, %v6510, %v6515
  %v6520 = vrsqrt.pop %v6459
  %v6521 = vmul.f32 %v6520, %v6459
  %v6522 = vmul.f32 %v6521, %v6520
  %v6523 = vmul.f32 0.5, %v6522
  %v6524 = vsub.f32 1.5, %v6523
  %v6525 = vmul.f32 %v6520, %v6524
  %vm6526 = vweird.f32 %v6459
  %vm6527 = vweird.f32 %v6520
  %vm6528 = vmor %vm6526, %vm6527
  %v6529 = vsel %vm6528, %v6520, %v6525
  %v6530 = vrsqrt.pop %v6460
  %v6531 = vmul.f32 %v6530, %v6460
  %v6532 = vmul.f32 %v6531, %v6530
  %v6533 = vmul.f32 0.5, %v6532
  %v6534 = vsub.f32 1.5, %v6533
  %v6535 = vmul.f32 %v6530, %v6534
  %vm6536 = vweird.f32 %v6460
  %vm6537 = vweird.f32 %v6530
  %vm6538 = vmor %vm6536, %vm6537
  %v6539 = vsel %vm6538, %v6530, %v6535
  %v6540 = vrsqrt.pop %v6461
  %v6541 = vmul.f32 %v6540, %v6461
  %v6542 = vmul.f32 %v6541, %v6540
  %v6543 = vmul.f32 0.5, %v6542
  %v6544 = vsub.f32 1.5, %v6543
  %v6545 = vmul.f32 %v6540, %v6544
  %vm6546 = vweird.f32 %v6461
  %vm6547 = vweird.f32 %v6540
  %vm6548 = vmor %vm6546, %vm6547
  %v6549 = vsel %vm6548, %v6540, %v6545
  %v6550 = vrsqrt.pop %v6462
  %v6551 = vmul.f32 %v6550, %v6462
  %v6552 = vmul.f32 %v6551, %v6550
  %v6553 = vmul.f32 0.5, %v6552
  %v6554 = vsub.f32 1.5, %v6553
  %v6555 = vmul.f32 %v6550, %v6554
  %vm6556 = vweird.f32 %v6462
  %vm6557 = vweird.f32 %v6550
  %vm6558 = vmor %vm6556, %vm6557
  %v6559 = vsel %vm6558, %v6550, %v6555
  %v6560 = vrsqrt.pop %v6463
  %v6561 = vmul.f32 %v6560, %v6463
  %v6562 = vmul.f32 %v6561, %v6560
  %v6563 = vmul.f32 0.5, %v6562
  %v6564 = vsub.f32 1.5, %v6563
  %v6565 = vmul.f32 %v6560, %v6564
  %vm6566 = vweird.f32 %v6463
  %vm6567 = vweird.f32 %v6560
  %vm6568 = vmor %vm6566, %vm6567
  %v6569 = vsel %vm6568, %v6560, %v6565
  %v6570 = vrsqrt.pop %v6464
  %v6571 = vmul.f32 %v6570, %v6464
  %v6572 = vmul.f32 %v6571, %v6570
  %v6573 = vmul.f32 0.5, %v6572
  %v6574 = vsub.f32 1.5, %v6573
  %v6575 = vmul.f32 %v6570, %v6574
  %vm6576 = vweird.f32 %v6464
  %vm6577 = vweird.f32 %v6570
  %vm6578 = vmor %vm6576, %vm6577
  %v6579 = vsel %vm6578, %v6570, %v6575
  %v6580 = vrsqrt.pop %v6465
  %v6581 = vmul.f32 %v6580, %v6465
  %v6582 = vmul.f32 %v6581, %v6580
  %v6583 = vmul.f32 0.5, %v6582
  %v6584 = vsub.f32 1.5, %v6583
  %v6585 = vmul.f32 %v6580, %v6584
  %vm6586 = vweird.f32 %v6465
  %vm6587 = vweird.f32 %v6580
  %vm6588 = vmor %vm6586, %vm6587
  %v6589 = vsel %vm6588, %v6580, %v6585
  %v6590 = vrsqrt.pop %v6466
  %v6591 = vmul.f32 %v6590, %v6466
  %v6592 = vmul.f32 %v6591, %v6590
  %v6593 = vmul.f32 0.5, %v6592
  %v6594 = vsub.f32 1.5, %v6593
  %v6595 = vmul.f32 %v6590, %v6594
  %vm6596 = vweird.f32 %v6466
  %vm6597 = vweird.f32 %v6590
  %vm6598 = vmor %vm6596, %vm6597
  %v6599 = vsel %vm6598, %v6590, %v6595
  %v6600 = vrsqrt.pop %v6467
  %v6601 = vmul.f32 %v6600, %v6467
  %v6602 = vmul.f32 %v6601, %v6600
  %v6603 = vmul.f32 0.5, %v6602
  %v6604 = vsub.f32 1.5, %v6603
  %v6605 = vmul.f32 %v6600, %v6604
  %vm6606 = vweird.f32 %v6467
  %vm6607 = vweird.f32 %v6600
  %vm6608 = vmor %vm6606, %vm6607
  %v6609 = vsel %vm6608, %v6600, %v6605
  %v6610 = vrsqrt.pop %v6468
  %v6611 = vmul.f32 %v6610, %v6468
  %v6612 = vmul.f32 %v6611, %v6610
  %v6613 = vmul.f32 0.5, %v6612
  %v6614 = vsub.f32 1.5, %v6613
  %v6615 = vmul.f32 %v6610, %v6614
  %vm6616 = vweird.f32 %v6468
  %vm6617 = vweird.f32 %v6610
  %vm6618 = vmor %vm6616, %vm6617
  %v6619 = vsel %vm6618, %v6610, %v6615
  %v6620 = vrsqrt.pop %v6469
  %v6621 = vmul.f32 %v6620, %v6469
  %v6622 = vmul.f32 %v6621, %v6620
  %v6623 = vmul.f32 0.5, %v6622
  %v6624 = vsub.f32 1.5, %v6623
  %v6625 = vmul.f32 %v6620, %v6624
  %vm6626 = vweird.f32 %v6469
  %vm6627 = vweird.f32 %v6620
  %vm6628 = vmor %vm6626, %vm6627
  %v6629 = vsel %vm6628, %v6620, %v6625
  %v6630 = vmul.f32 %v6374, %v6479
  %v6631 = vmul.f32 %v6375, %v6489
  %v6632 = vmul.f32 %v6376, %v6499
  %v6633 = vmul.f32 %v6377, %v6509
  %v6634 = vmul.f32 %v6378, %v6519
  %v6635 = vmul.f32 %v6379, %v6529
  %v6636 = vmul.f32 %v6380, %v6539
  %v6637 = vmul.f32 %v6381, %v6549
  %v6638 = vmul.f32 %v6382, %v6559
  %v6639 = vmul.f32 %v6383, %v6569
  %v6640 = vmul.f32 %v6384, %v6579
  %v6641 = vmul.f32 %v6385, %v6589
  %v6642 = vmul.f32 %v6386, %v6599
  %v6643 = vmul.f32 %v6387, %v6609
  %v6644 = vmul.f32 %v6388, %v6619
  %v6645 = vmul.f32 %v6389, %v6629
  %v6647 = vperm.slane %v6323, 0
  %v6649 = vmul.f32 %v6630, %v6647
  %v6650 = vmul.f32 %v6631, %v6647
  %v6651 = vmul.f32 %v6632, %v6647
  %v6652 = vmul.f32 %v6633, %v6647
  %v6653 = vmul.f32 %v6634, %v6647
  %v6654 = vmul.f32 %v6635, %v6647
  %v6655 = vmul.f32 %v6636, %v6647
  %v6656 = vmul.f32 %v6637, %v6647
  %v6657 = vmul.f32 %v6638, %v6647
  %v6658 = vmul.f32 %v6639, %v6647
  %v6659 = vmul.f32 %v6640, %v6647
  %v6660 = vmul.f32 %v6641, %v6647
  %v6661 = vmul.f32 %v6642, %v6647
  %v6662 = vmul.f32 %v6643, %v6647
  %v6663 = vmul.f32 %v6644, %v6647
  %v6664 = vmul.f32 %v6645, %v6647
  %v6666 = vperm.slane %v6325, 0
  %v6668 = vadd.f32 %v6649, %v6666
  %v6669 = vadd.f32 %v6650, %v6666
  %v6670 = vadd.f32 %v6651, %v6666
  %v6671 = vadd.f32 %v6652, %v6666
  %v6672 = vadd.f32 %v6653, %v6666
  %v6673 = vadd.f32 %v6654, %v6666
  %v6674 = vadd.f32 %v6655, %v6666
  %v6675 = vadd.f32 %v6656, %v6666
  %v6676 = vadd.f32 %v6657, %v6666
  %v6677 = vadd.f32 %v6658, %v6666
  %v6678 = vadd.f32 %v6659, %v6666
  %v6679 = vadd.f32 %v6660, %v6666
  %v6680 = vadd.f32 %v6661, %v6666
  %v6681 = vadd.f32 %v6662, %v6666
  %v6682 = vadd.f32 %v6663, %v6666
  %v6683 = vadd.f32 %v6664, %v6666
  %v6684 = vpack.c.bf16 %v6669, %v6668
  %v6685 = vpack.c.bf16 %v6671, %v6670
  %v6686 = vpack.c.bf16 %v6673, %v6672
  %v6687 = vpack.c.bf16 %v6675, %v6674
  %v6688 = vpack.c.bf16 %v6677, %v6676
  %v6689 = vpack.c.bf16 %v6679, %v6678
  %v6690 = vpack.c.bf16 %v6681, %v6680
  %v6691 = vpack.c.bf16 %v6683, %v6682
  %s6692 = scalar_lea.vmem %s7, 192
  %v6693 = vld [vmem:[%s6692] sm:$0xff]
  %v6694 = vld [vmem:[%s6692 + $0x8] sm:$0xf]
  %v6695 = vld [vmem:[%s6692 + $0xc] sm:$0xff]
  %v6696 = vld [vmem:[%s6692 + $0x14] sm:$0xf]
  %v6697 = vld [vmem:[%s6692 + $0x18] sm:$0xff]
  %v6698 = vld [vmem:[%s6692 + $0x20] sm:$0xf]
  %v6699 = vld [vmem:[%s6692 + $0x24] sm:$0xff]
  %v6700 = vld [vmem:[%s6692 + $0x2c] sm:$0xf]
  %v6701 = vld [vmem:[%s6692 + $0x30] sm:$0xff]
  %v6702 = vld [vmem:[%s6692 + $0x38] sm:$0xf]
  %v6703 = vld [vmem:[%s6692 + $0x3c] sm:$0xff]
  %v6704 = vld [vmem:[%s6692 + $0x44] sm:$0xf]
  %v6705 = vld [vmem:[%s6692 + $0x48] sm:$0xff]
  %v6706 = vld [vmem:[%s6692 + $0x50] sm:$0xf]
  %v6707 = vld [vmem:[%s6692 + $0x54] sm:$0xff]
  %v6708 = vld [vmem:[%s6692 + $0x5c] sm:$0xf]
  %v6709 = vld [vmem:[%s6692 + $0x60] sm:$0xff]
  %v6710 = vld [vmem:[%s6692 + $0x68] sm:$0xf]
  %v6711 = vld [vmem:[%s6692 + $0x6c] sm:$0xff]
  %v6712 = vld [vmem:[%s6692 + $0x74] sm:$0xf]
  %v6713 = vld [vmem:[%s6692 + $0x78] sm:$0xff]
  %v6714 = vld [vmem:[%s6692 + $0x80] sm:$0xf]
  %v6715 = vld [vmem:[%s6692 + $0x84] sm:$0xff]
  %v6716 = vld [vmem:[%s6692 + $0x8c] sm:$0xf]
  %v6717 = vld [vmem:[%s6692 + $0x90] sm:$0xff]
  %v6718 = vld [vmem:[%s6692 + $0x98] sm:$0xf]
  %v6719 = vld [vmem:[%s6692 + $0x9c] sm:$0xff]
  %v6720 = vld [vmem:[%s6692 + $0xa4] sm:$0xf]
  %v6721 = vld [vmem:[%s6692 + $0xa8] sm:$0xff]
  %v6722 = vld [vmem:[%s6692 + $0xb0] sm:$0xf]
  %v6723 = vld [vmem:[%s6692 + $0xb4] sm:$0xff]
  %v6724 = vld [vmem:[%s6692 + $0xbc] sm:$0xf]
  %s6725 = scalar_lea.vmem %s8, 3
  %v6726 = vld [vmem:[%s6725] sm:$0x7]
  %v6728 = vperm.slane %v6726, 0
  %v6729 = vperm.slane %v6726, 1
  %v6730 = vperm.slane %v6726, 2
  %v6766 = vunpack.c.l.b16 %v6693
  %v6767 = vunpack.c.h.b16 %v6693
  %v6768 = vunpack.c.l.b16 %v6694
  %v6769 = vunpack.c.l.b16 %v6695
  %v6770 = vunpack.c.h.b16 %v6695
  %v6771 = vunpack.c.l.b16 %v6696
  %v6772 = vunpack.c.l.b16 %v6697
  %v6773 = vunpack.c.h.b16 %v6697
  %v6774 = vunpack.c.l.b16 %v6698
  %v6775 = vunpack.c.l.b16 %v6699
  %v6776 = vunpack.c.h.b16 %v6699
  %v6777 = vunpack.c.l.b16 %v6700
  %v6778 = vunpack.c.l.b16 %v6701
  %v6779 = vunpack.c.h.b16 %v6701
  %v6780 = vunpack.c.l.b16 %v6702
  %v6781 = vunpack.c.l.b16 %v6703
  %v6782 = vunpack.c.h.b16 %v6703
  %v6783 = vunpack.c.l.b16 %v6704
  %v6784 = vunpack.c.l.b16 %v6705
  %v6785 = vunpack.c.h.b16 %v6705
  %v6786 = vunpack.c.l.b16 %v6706
  %v6787 = vunpack.c.l.b16 %v6707
  %v6788 = vunpack.c.h.b16 %v6707
  %v6789 = vunpack.c.l.b16 %v6708
  %v6790 = vunpack.c.l.b16 %v6709
  %v6791 = vunpack.c.h.b16 %v6709
  %v6792 = vunpack.c.l.b16 %v6710
  %v6793 = vunpack.c.l.b16 %v6711
  %v6794 = vunpack.c.h.b16 %v6711
  %v6795 = vunpack.c.l.b16 %v6712
  %v6796 = vunpack.c.l.b16 %v6713
  %v6797 = vunpack.c.h.b16 %v6713
  %v6798 = vunpack.c.l.b16 %v6714
  %v6799 = vunpack.c.l.b16 %v6715
  %v6800 = vunpack.c.h.b16 %v6715
  %v6801 = vunpack.c.l.b16 %v6716
  %v6802 = vunpack.c.l.b16 %v6717
  %v6803 = vunpack.c.h.b16 %v6717
  %v6804 = vunpack.c.l.b16 %v6718
  %v6805 = vunpack.c.l.b16 %v6719
  %v6806 = vunpack.c.h.b16 %v6719
  %v6807 = vunpack.c.l.b16 %v6720
  %v6808 = vunpack.c.l.b16 %v6721
  %v6809 = vunpack.c.h.b16 %v6721
  %v6810 = vunpack.c.l.b16 %v6722
  %v6811 = vunpack.c.l.b16 %v6723
  %v6812 = vunpack.c.h.b16 %v6723
  %v6813 = vunpack.c.l.b16 %v6724
  %v6814 = vpack.c.b16 %v6769, %v6766
  %v6815 = vpack.c.b16 %v6770, %v6767
  %v6816 = vpack.c.b16 %v6771, %v6768
  %v6817 = vpack.c.b16 %v6775, %v6772
  %v6818 = vpack.c.b16 %v6776, %v6773
  %v6819 = vpack.c.b16 %v6777, %v6774
  %v6820 = vpack.c.b16 %v6781, %v6778
  %v6821 = vpack.c.b16 %v6782, %v6779
  %v6822 = vpack.c.b16 %v6783, %v6780
  %v6823 = vpack.c.b16 %v6787, %v6784
  %v6824 = vpack.c.b16 %v6788, %v6785
  %v6825 = vpack.c.b16 %v6789, %v6786
  %v6826 = vpack.c.b16 %v6793, %v6790
  %v6827 = vpack.c.b16 %v6794, %v6791
  %v6828 = vpack.c.b16 %v6795, %v6792
  %v6829 = vpack.c.b16 %v6799, %v6796
  %v6830 = vpack.c.b16 %v6800, %v6797
  %v6831 = vpack.c.b16 %v6801, %v6798
  %v6832 = vpack.c.b16 %v6805, %v6802
  %v6833 = vpack.c.b16 %v6806, %v6803
  %v6834 = vpack.c.b16 %v6807, %v6804
  %v6835 = vpack.c.b16 %v6811, %v6808
  %v6836 = vpack.c.b16 %v6812, %v6809
  %v6837 = vpack.c.b16 %v6813, %v6810
  %6862 = vmatpush.bf16.msra.mxu0 %v6835
  %6863 = vmatpush.bf16.msra.mxu0 %v6832
  %6864 = vmatpush.bf16.msra.mxu0 %v6829
  %6865 = vmatpush.bf16.msra.mxu0 %v6826
  %6866 = vmatpush.bf16.msra.mxu0 %v6823
  %6867 = vmatpush.bf16.msra.mxu0 %v6820
  %6868 = vmatpush.bf16.msra.mxu0 %v6817
  %6869 = vmatpush.bf16.msra.mxu0 %v6814
  %6870 = vmatmul.bf16.gmra.mxu0 %v6684
  %v6871 = vpop.f32.mrf.mxu0
  %v6872 = vadd.f32 %v6728, %v6871
  %v6873 = vpop.f32.mrf.mxu0
  %v6874 = vadd.f32 %v6728, %v6873
  %6875 = vmatmul.bf16.gmra.mxu0 %v6685
  %v6876 = vpop.f32.mrf.mxu0
  %v6877 = vadd.f32 %v6728, %v6876
  %v6878 = vpop.f32.mrf.mxu0
  %v6879 = vadd.f32 %v6728, %v6878
  %6880 = vmatmul.bf16.gmra.mxu0 %v6686
  %v6881 = vpop.f32.mrf.mxu0
  %v6882 = vadd.f32 %v6728, %v6881
  %v6883 = vpop.f32.mrf.mxu0
  %v6884 = vadd.f32 %v6728, %v6883
  %6885 = vmatmul.bf16.gmra.mxu0 %v6687
  %v6886 = vpop.f32.mrf.mxu0
  %v6887 = vadd.f32 %v6728, %v6886
  %v6888 = vpop.f32.mrf.mxu0
  %v6889 = vadd.f32 %v6728, %v6888
  %6890 = vmatmul.bf16.gmra.mxu0 %v6688
  %v6891 = vpop.f32.mrf.mxu0
  %v6892 = vadd.f32 %v6728, %v6891
  %v6893 = vpop.f32.mrf.mxu0
  %v6894 = vadd.f32 %v6728, %v6893
  %6895 = vmatmul.bf16.gmra.mxu0 %v6689
  %v6896 = vpop.f32.mrf.mxu0
  %v6897 = vadd.f32 %v6728, %v6896
  %v6898 = vpop.f32.mrf.mxu0
  %v6899 = vadd.f32 %v6728, %v6898
  %6900 = vmatmul.bf16.gmra.mxu0 %v6690
  %v6901 = vpop.f32.mrf.mxu0
  %v6902 = vadd.f32 %v6728, %v6901
  %v6903 = vpop.f32.mrf.mxu0
  %v6904 = vadd.f32 %v6728, %v6903
  %6905 = vmatmul.bf16.gmra.mxu0 %v6691
  %v6906 = vpop.f32.mrf.mxu0
  %v6907 = vadd.f32 %v6728, %v6906
  %v6908 = vpop.f32.mrf.mxu0
  %v6909 = vadd.f32 %v6728, %v6908
  %6910 = vdwg.mxu0
  %6911 = vmatpush.bf16.msra.mxu0 %v6836
  %6912 = vmatpush.bf16.msra.mxu0 %v6833
  %6913 = vmatpush.bf16.msra.mxu0 %v6830
  %6914 = vmatpush.bf16.msra.mxu0 %v6827
  %6915 = vmatpush.bf16.msra.mxu0 %v6824
  %6916 = vmatpush.bf16.msra.mxu0 %v6821
  %6917 = vmatpush.bf16.msra.mxu0 %v6818
  %6918 = vmatpush.bf16.msra.mxu0 %v6815
  %6919 = vmatmul.bf16.gmra.mxu0 %v6684
  %v6920 = vpop.f32.mrf.mxu0
  %v6921 = vadd.f32 %v6729, %v6920
  %v6922 = vpop.f32.mrf.mxu0
  %v6923 = vadd.f32 %v6729, %v6922
  %6924 = vmatmul.bf16.gmra.mxu0 %v6685
  %v6925 = vpop.f32.mrf.mxu0
  %v6926 = vadd.f32 %v6729, %v6925
  %v6927 = vpop.f32.mrf.mxu0
  %v6928 = vadd.f32 %v6729, %v6927
  %6929 = vmatmul.bf16.gmra.mxu0 %v6686
  %v6930 = vpop.f32.mrf.mxu0
  %v6931 = vadd.f32 %v6729, %v6930
  %v6932 = vpop.f32.mrf.mxu0
  %v6933 = vadd.f32 %v6729, %v6932
  %6934 = vmatmul.bf16.gmra.mxu0 %v6687
  %v6935 = vpop.f32.mrf.mxu0
  %v6936 = vadd.f32 %v6729, %v6935
  %v6937 = vpop.f32.mrf.mxu0
  %v6938 = vadd.f32 %v6729, %v6937
  %6939 = vmatmul.bf16.gmra.mxu0 %v6688
  %v6940 = vpop.f32.mrf.mxu0
  %v6941 = vadd.f32 %v6729, %v6940
  %v6942 = vpop.f32.mrf.mxu0
  %v6943 = vadd.f32 %v6729, %v6942
  %6944 = vmatmul.bf16.gmra.mxu0 %v6689
  %v6945 = vpop.f32.mrf.mxu0
  %v6946 = vadd.f32 %v6729, %v6945
  %v6947 = vpop.f32.mrf.mxu0
  %v6948 = vadd.f32 %v6729, %v6947
  %6949 = vmatmul.bf16.gmra.mxu0 %v6690
  %v6950 = vpop.f32.mrf.mxu0
  %v6951 = vadd.f32 %v6729, %v6950
  %v6952 = vpop.f32.mrf.mxu0
  %v6953 = vadd.f32 %v6729, %v6952
  %6954 = vmatmul.bf16.gmra.mxu0 %v6691
  %v6955 = vpop.f32.mrf.mxu0
  %v6956 = vadd.f32 %v6729, %v6955
  %v6957 = vpop.f32.mrf.mxu0
  %v6958 = vadd.f32 %v6729, %v6957
  %6959 = vdwg.mxu0
  %6960 = vmatpush.bf16.msra.mxu0 %v6837
  %6961 = vmatpush.bf16.msra.mxu0 %v6834
  %6962 = vmatpush.bf16.msra.mxu0 %v6831
  %6963 = vmatpush.bf16.msra.mxu0 %v6828
  %6964 = vmatpush.bf16.msra.mxu0 %v6825
  %6965 = vmatpush.bf16.msra.mxu0 %v6822
  %6966 = vmatpush.bf16.msra.mxu0 %v6819
  %6967 = vmatpush.bf16.msra.mxu0 %v6816
  %6968 = vmatmul.bf16.gmra.mxu0 %v6684
  %v6969 = vpop.f32.mrf.mxu0
  %v6970 = vadd.f32 %v6730, %v6969
  %v6971 = vpop.f32.mrf.mxu0
  %v6972 = vadd.f32 %v6730, %v6971
  %6973 = vmatmul.bf16.gmra.mxu0 %v6685
  %v6974 = vpop.f32.mrf.mxu0
  %v6975 = vadd.f32 %v6730, %v6974
  %v6976 = vpop.f32.mrf.mxu0
  %v6977 = vadd.f32 %v6730, %v6976
  %6978 = vmatmul.bf16.gmra.mxu0 %v6686
  %v6979 = vpop.f32.mrf.mxu0
  %v6980 = vadd.f32 %v6730, %v6979
  %v6981 = vpop.f32.mrf.mxu0
  %v6982 = vadd.f32 %v6730, %v6981
  %6983 = vmatmul.bf16.gmra.mxu0 %v6687
  %v6984 = vpop.f32.mrf.mxu0
  %v6985 = vadd.f32 %v6730, %v6984
  %v6986 = vpop.f32.mrf.mxu0
  %v6987 = vadd.f32 %v6730, %v6986
  %6988 = vmatmul.bf16.gmra.mxu0 %v6688
  %v6989 = vpop.f32.mrf.mxu0
  %v6990 = vadd.f32 %v6730, %v6989
  %v6991 = vpop.f32.mrf.mxu0
  %v6992 = vadd.f32 %v6730, %v6991
  %6993 = vmatmul.bf16.gmra.mxu0 %v6689
  %v6994 = vpop.f32.mrf.mxu0
  %v6995 = vadd.f32 %v6730, %v6994
  %v6996 = vpop.f32.mrf.mxu0
  %v6997 = vadd.f32 %v6730, %v6996
  %6998 = vmatmul.bf16.gmra.mxu0 %v6690
  %v6999 = vpop.f32.mrf.mxu0
  %v7000 = vadd.f32 %v6730, %v6999
  %v7001 = vpop.f32.mrf.mxu0
  %v7002 = vadd.f32 %v6730, %v7001
  %7003 = vmatmul.bf16.gmra.mxu0 %v6691
  %v7004 = vpop.f32.mrf.mxu0
  %v7005 = vadd.f32 %v6730, %v7004
  %v7006 = vpop.f32.mrf.mxu0
  %v7007 = vadd.f32 %v6730, %v7006
  %7008 = vdwg.mxu0
  %v7009 = vpack.c.bf16 %v6872, %v6872
  %v7010 = vpack.c.bf16 %v6874, %v6874
  %v7011 = vpack.c.bf16 %v6877, %v6877
  %v7012 = vpack.c.bf16 %v6879, %v6879
  %v7013 = vpack.c.bf16 %v6882, %v6882
  %v7014 = vpack.c.bf16 %v6884, %v6884
  %v7015 = vpack.c.bf16 %v6887, %v6887
  %v7016 = vpack.c.bf16 %v6889, %v6889
  %v7017 = vpack.c.bf16 %v6892, %v6892
  %v7018 = vpack.c.bf16 %v6894, %v6894
  %v7019 = vpack.c.bf16 %v6897, %v6897
  %v7020 = vpack.c.bf16 %v6899, %v6899
  %v7021 = vpack.c.bf16 %v6902, %v6902
  %v7022 = vpack.c.bf16 %v6904, %v6904
  %v7023 = vpack.c.bf16 %v6907, %v6907
  %v7024 = vpack.c.bf16 %v6909, %v6909
  %v7025 = vpack.c.bf16 %v6921, %v6921
  %v7026 = vpack.c.bf16 %v6923, %v6923
  %v7027 = vpack.c.bf16 %v6926, %v6926
  %v7028 = vpack.c.bf16 %v6928, %v6928
  %v7029 = vpack.c.bf16 %v6931, %v6931
  %v7030 = vpack.c.bf16 %v6933, %v6933
  %v7031 = vpack.c.bf16 %v6936, %v6936
  %v7032 = vpack.c.bf16 %v6938, %v6938
  %v7033 = vpack.c.bf16 %v6941, %v6941
  %v7034 = vpack.c.bf16 %v6943, %v6943
  %v7035 = vpack.c.bf16 %v6946, %v6946
  %v7036 = vpack.c.bf16 %v6948, %v6948
  %v7037 = vpack.c.bf16 %v6951, %v6951
  %v7038 = vpack.c.bf16 %v6953, %v6953
  %v7039 = vpack.c.bf16 %v6956, %v6956
  %v7040 = vpack.c.bf16 %v6958, %v6958
  %v7041 = vpack.c.bf16 %v6970, %v6970
  %v7042 = vpack.c.bf16 %v6972, %v6972
  %v7043 = vpack.c.bf16 %v6975, %v6975
  %v7044 = vpack.c.bf16 %v6977, %v6977
  %v7045 = vpack.c.bf16 %v6980, %v6980
  %v7046 = vpack.c.bf16 %v6982, %v6982
  %v7047 = vpack.c.bf16 %v6985, %v6985
  %v7048 = vpack.c.bf16 %v6987, %v6987
  %v7049 = vpack.c.bf16 %v6990, %v6990
  %v7050 = vpack.c.bf16 %v6992, %v6992
  %v7051 = vpack.c.bf16 %v6995, %v6995
  %v7052 = vpack.c.bf16 %v6997, %v6997
  %v7053 = vpack.c.bf16 %v7000, %v7000
  %v7054 = vpack.c.bf16 %v7002, %v7002
  %v7055 = vpack.c.bf16 %v7005, %v7005
  %v7056 = vpack.c.bf16 %v7007, %v7007
  %v7058 = vsel %vm1916, %v7009, 0
  %v7061 = vsel %vm1916, %v7025, 0
  %7063 = vmatpush.bf16.xpose.msra.mxu0 0
  %7064 = vmatpush.bf16.xpose.msra.mxu0 0
  %7065 = vmatpush.bf16.xpose.msra.mxu0 0
  %7066 = vmatpush.bf16.xpose.msra.mxu0 0
  %7067 = vmatpush.bf16.xpose.msra.mxu0 0
  %7068 = vmatpush.bf16.xpose.msra.mxu0 0
  %7069 = vmatpush.bf16.xpose.msra.mxu0 0
  %7070 = vmatpush.bf16.xpose.msra.mxu0 %v7061
  %7071 = vmatmul.bf16.gmra.mxu0 %v7058
  %v7072 = vpop.f32.mrf.mxu0
  %v7073 = vadd.f32 0.0, %v7072
  %v7074 = vpop.f32.mrf.mxu0
  %7075 = vdwg.mxu0
  %v7077 = vsel %vm1916, %v7010, 0
  %v7080 = vsel %vm1916, %v7026, 0
  %7082 = vmatpush.bf16.xpose.msra.mxu0 0
  %7083 = vmatpush.bf16.xpose.msra.mxu0 0
  %7084 = vmatpush.bf16.xpose.msra.mxu0 0
  %7085 = vmatpush.bf16.xpose.msra.mxu0 0
  %7086 = vmatpush.bf16.xpose.msra.mxu0 0
  %7087 = vmatpush.bf16.xpose.msra.mxu0 0
  %7088 = vmatpush.bf16.xpose.msra.mxu0 0
  %7089 = vmatpush.bf16.xpose.msra.mxu0 %v7080
  %7090 = vmatmul.bf16.gmra.mxu0 %v7077
  %v7091 = vpop.f32.mrf.mxu0
  %v7092 = vadd.f32 0.0, %v7091
  %v7093 = vpop.f32.mrf.mxu0
  %7094 = vdwg.mxu0
  %v7096 = vsel %vm1916, %v7011, 0
  %v7099 = vsel %vm1916, %v7027, 0
  %7101 = vmatpush.bf16.xpose.msra.mxu0 0
  %7102 = vmatpush.bf16.xpose.msra.mxu0 0
  %7103 = vmatpush.bf16.xpose.msra.mxu0 0
  %7104 = vmatpush.bf16.xpose.msra.mxu0 0
  %7105 = vmatpush.bf16.xpose.msra.mxu0 0
  %7106 = vmatpush.bf16.xpose.msra.mxu0 0
  %7107 = vmatpush.bf16.xpose.msra.mxu0 0
  %7108 = vmatpush.bf16.xpose.msra.mxu0 %v7099
  %7109 = vmatmul.bf16.gmra.mxu0 %v7096
  %v7110 = vpop.f32.mrf.mxu0
  %v7111 = vadd.f32 0.0, %v7110
  %v7112 = vpop.f32.mrf.mxu0
  %7113 = vdwg.mxu0
  %v7115 = vsel %vm1916, %v7012, 0
  %v7118 = vsel %vm1916, %v7028, 0
  %7120 = vmatpush.bf16.xpose.msra.mxu0 0
  %7121 = vmatpush.bf16.xpose.msra.mxu0 0
  %7122 = vmatpush.bf16.xpose.msra.mxu0 0
  %7123 = vmatpush.bf16.xpose.msra.mxu0 0
  %7124 = vmatpush.bf16.xpose.msra.mxu0 0
  %7125 = vmatpush.bf16.xpose.msra.mxu0 0
  %7126 = vmatpush.bf16.xpose.msra.mxu0 0
  %7127 = vmatpush.bf16.xpose.msra.mxu0 %v7118
  %7128 = vmatmul.bf16.gmra.mxu0 %v7115
  %v7129 = vpop.f32.mrf.mxu0
  %v7130 = vadd.f32 0.0, %v7129
  %v7131 = vpop.f32.mrf.mxu0
  %7132 = vdwg.mxu0
  %v7134 = vsel %vm1916, %v7013, 0
  %v7137 = vsel %vm1916, %v7029, 0
  %7139 = vmatpush.bf16.xpose.msra.mxu0 0
  %7140 = vmatpush.bf16.xpose.msra.mxu0 0
  %7141 = vmatpush.bf16.xpose.msra.mxu0 0
  %7142 = vmatpush.bf16.xpose.msra.mxu0 0
  %7143 = vmatpush.bf16.xpose.msra.mxu0 0
  %7144 = vmatpush.bf16.xpose.msra.mxu0 0
  %7145 = vmatpush.bf16.xpose.msra.mxu0 0
  %7146 = vmatpush.bf16.xpose.msra.mxu0 %v7137
  %7147 = vmatmul.bf16.gmra.mxu0 %v7134
  %v7148 = vpop.f32.mrf.mxu0
  %v7149 = vadd.f32 0.0, %v7148
  %v7150 = vpop.f32.mrf.mxu0
  %7151 = vdwg.mxu0
  %v7153 = vsel %vm1916, %v7014, 0
  %v7156 = vsel %vm1916, %v7030, 0
  %7158 = vmatpush.bf16.xpose.msra.mxu0 0
  %7159 = vmatpush.bf16.xpose.msra.mxu0 0
  %7160 = vmatpush.bf16.xpose.msra.mxu0 0
  %7161 = vmatpush.bf16.xpose.msra.mxu0 0
  %7162 = vmatpush.bf16.xpose.msra.mxu0 0
  %7163 = vmatpush.bf16.xpose.msra.mxu0 0
  %7164 = vmatpush.bf16.xpose.msra.mxu0 0
  %7165 = vmatpush.bf16.xpose.msra.mxu0 %v7156
  %7166 = vmatmul.bf16.gmra.mxu0 %v7153
  %v7167 = vpop.f32.mrf.mxu0
  %v7168 = vadd.f32 0.0, %v7167
  %v7169 = vpop.f32.mrf.mxu0
  %7170 = vdwg.mxu0
  %v7172 = vsel %vm1916, %v7015, 0
  %v7175 = vsel %vm1916, %v7031, 0
  %7177 = vmatpush.bf16.xpose.msra.mxu0 0
  %7178 = vmatpush.bf16.xpose.msra.mxu0 0
  %7179 = vmatpush.bf16.xpose.msra.mxu0 0
  %7180 = vmatpush.bf16.xpose.msra.mxu0 0
  %7181 = vmatpush.bf16.xpose.msra.mxu0 0
  %7182 = vmatpush.bf16.xpose.msra.mxu0 0
  %7183 = vmatpush.bf16.xpose.msra.mxu0 0
  %7184 = vmatpush.bf16.xpose.msra.mxu0 %v7175
  %7185 = vmatmul.bf16.gmra.mxu0 %v7172
  %v7186 = vpop.f32.mrf.mxu0
  %v7187 = vadd.f32 0.0, %v7186
  %v7188 = vpop.f32.mrf.mxu0
  %7189 = vdwg.mxu0
  %v7191 = vsel %vm1916, %v7016, 0
  %v7194 = vsel %vm1916, %v7032, 0
  %7196 = vmatpush.bf16.xpose.msra.mxu0 0
  %7197 = vmatpush.bf16.xpose.msra.mxu0 0
  %7198 = vmatpush.bf16.xpose.msra.mxu0 0
  %7199 = vmatpush.bf16.xpose.msra.mxu0 0
  %7200 = vmatpush.bf16.xpose.msra.mxu0 0
  %7201 = vmatpush.bf16.xpose.msra.mxu0 0
  %7202 = vmatpush.bf16.xpose.msra.mxu0 0
  %7203 = vmatpush.bf16.xpose.msra.mxu0 %v7194
  %7204 = vmatmul.bf16.gmra.mxu0 %v7191
  %v7205 = vpop.f32.mrf.mxu0
  %v7206 = vadd.f32 0.0, %v7205
  %v7207 = vpop.f32.mrf.mxu0
  %7208 = vdwg.mxu0
  %v7210 = vsel %vm1916, %v7017, 0
  %v7213 = vsel %vm1916, %v7033, 0
  %7215 = vmatpush.bf16.xpose.msra.mxu0 0
  %7216 = vmatpush.bf16.xpose.msra.mxu0 0
  %7217 = vmatpush.bf16.xpose.msra.mxu0 0
  %7218 = vmatpush.bf16.xpose.msra.mxu0 0
  %7219 = vmatpush.bf16.xpose.msra.mxu0 0
  %7220 = vmatpush.bf16.xpose.msra.mxu0 0
  %7221 = vmatpush.bf16.xpose.msra.mxu0 0
  %7222 = vmatpush.bf16.xpose.msra.mxu0 %v7213
  %7223 = vmatmul.bf16.gmra.mxu0 %v7210
  %v7224 = vpop.f32.mrf.mxu0
  %v7225 = vadd.f32 0.0, %v7224
  %v7226 = vpop.f32.mrf.mxu0
  %7227 = vdwg.mxu0
  %v7229 = vsel %vm1916, %v7018, 0
  %v7232 = vsel %vm1916, %v7034, 0
  %7234 = vmatpush.bf16.xpose.msra.mxu0 0
  %7235 = vmatpush.bf16.xpose.msra.mxu0 0
  %7236 = vmatpush.bf16.xpose.msra.mxu0 0
  %7237 = vmatpush.bf16.xpose.msra.mxu0 0
  %7238 = vmatpush.bf16.xpose.msra.mxu0 0
  %7239 = vmatpush.bf16.xpose.msra.mxu0 0
  %7240 = vmatpush.bf16.xpose.msra.mxu0 0
  %7241 = vmatpush.bf16.xpose.msra.mxu0 %v7232
  %7242 = vmatmul.bf16.gmra.mxu0 %v7229
  %v7243 = vpop.f32.mrf.mxu0
  %v7244 = vadd.f32 0.0, %v7243
  %v7245 = vpop.f32.mrf.mxu0
  %7246 = vdwg.mxu0
  %v7248 = vsel %vm1916, %v7019, 0
  %v7251 = vsel %vm1916, %v7035, 0
  %7253 = vmatpush.bf16.xpose.msra.mxu0 0
  %7254 = vmatpush.bf16.xpose.msra.mxu0 0
  %7255 = vmatpush.bf16.xpose.msra.mxu0 0
  %7256 = vmatpush.bf16.xpose.msra.mxu0 0
  %7257 = vmatpush.bf16.xpose.msra.mxu0 0
  %7258 = vmatpush.bf16.xpose.msra.mxu0 0
  %7259 = vmatpush.bf16.xpose.msra.mxu0 0
  %7260 = vmatpush.bf16.xpose.msra.mxu0 %v7251
  %7261 = vmatmul.bf16.gmra.mxu0 %v7248
  %v7262 = vpop.f32.mrf.mxu0
  %v7263 = vadd.f32 0.0, %v7262
  %v7264 = vpop.f32.mrf.mxu0
  %7265 = vdwg.mxu0
  %v7267 = vsel %vm1916, %v7020, 0
  %v7270 = vsel %vm1916, %v7036, 0
  %7272 = vmatpush.bf16.xpose.msra.mxu0 0
  %7273 = vmatpush.bf16.xpose.msra.mxu0 0
  %7274 = vmatpush.bf16.xpose.msra.mxu0 0
  %7275 = vmatpush.bf16.xpose.msra.mxu0 0
  %7276 = vmatpush.bf16.xpose.msra.mxu0 0
  %7277 = vmatpush.bf16.xpose.msra.mxu0 0
  %7278 = vmatpush.bf16.xpose.msra.mxu0 0
  %7279 = vmatpush.bf16.xpose.msra.mxu0 %v7270
  %7280 = vmatmul.bf16.gmra.mxu0 %v7267
  %v7281 = vpop.f32.mrf.mxu0
  %v7282 = vadd.f32 0.0, %v7281
  %v7283 = vpop.f32.mrf.mxu0
  %7284 = vdwg.mxu0
  %v7286 = vsel %vm1916, %v7021, 0
  %v7289 = vsel %vm1916, %v7037, 0
  %7291 = vmatpush.bf16.xpose.msra.mxu0 0
  %7292 = vmatpush.bf16.xpose.msra.mxu0 0
  %7293 = vmatpush.bf16.xpose.msra.mxu0 0
  %7294 = vmatpush.bf16.xpose.msra.mxu0 0
  %7295 = vmatpush.bf16.xpose.msra.mxu0 0
  %7296 = vmatpush.bf16.xpose.msra.mxu0 0
  %7297 = vmatpush.bf16.xpose.msra.mxu0 0
  %7298 = vmatpush.bf16.xpose.msra.mxu0 %v7289
  %7299 = vmatmul.bf16.gmra.mxu0 %v7286
  %v7300 = vpop.f32.mrf.mxu0
  %v7301 = vadd.f32 0.0, %v7300
  %v7302 = vpop.f32.mrf.mxu0
  %7303 = vdwg.mxu0
  %v7305 = vsel %vm1916, %v7022, 0
  %v7308 = vsel %vm1916, %v7038, 0
  %7310 = vmatpush.bf16.xpose.msra.mxu0 0
  %7311 = vmatpush.bf16.xpose.msra.mxu0 0
  %7312 = vmatpush.bf16.xpose.msra.mxu0 0
  %7313 = vmatpush.bf16.xpose.msra.mxu0 0
  %7314 = vmatpush.bf16.xpose.msra.mxu0 0
  %7315 = vmatpush.bf16.xpose.msra.mxu0 0
  %7316 = vmatpush.bf16.xpose.msra.mxu0 0
  %7317 = vmatpush.bf16.xpose.msra.mxu0 %v7308
  %7318 = vmatmul.bf16.gmra.mxu0 %v7305
  %v7319 = vpop.f32.mrf.mxu0
  %v7320 = vadd.f32 0.0, %v7319
  %v7321 = vpop.f32.mrf.mxu0
  %7322 = vdwg.mxu0
  %v7324 = vsel %vm1916, %v7023, 0
  %v7327 = vsel %vm1916, %v7039, 0
  %7329 = vmatpush.bf16.xpose.msra.mxu0 0
  %7330 = vmatpush.bf16.xpose.msra.mxu0 0
  %7331 = vmatpush.bf16.xpose.msra.mxu0 0
  %7332 = vmatpush.bf16.xpose.msra.mxu0 0
  %7333 = vmatpush.bf16.xpose.msra.mxu0 0
  %7334 = vmatpush.bf16.xpose.msra.mxu0 0
  %7335 = vmatpush.bf16.xpose.msra.mxu0 0
  %7336 = vmatpush.bf16.xpose.msra.mxu0 %v7327
  %7337 = vmatmul.bf16.gmra.mxu0 %v7324
  %v7338 = vpop.f32.mrf.mxu0
  %v7339 = vadd.f32 0.0, %v7338
  %v7340 = vpop.f32.mrf.mxu0
  %7341 = vdwg.mxu0
  %v7343 = vsel %vm1916, %v7024, 0
  %v7346 = vsel %vm1916, %v7040, 0
  %7348 = vmatpush.bf16.xpose.msra.mxu0 0
  %7349 = vmatpush.bf16.xpose.msra.mxu0 0
  %7350 = vmatpush.bf16.xpose.msra.mxu0 0
  %7351 = vmatpush.bf16.xpose.msra.mxu0 0
  %7352 = vmatpush.bf16.xpose.msra.mxu0 0
  %7353 = vmatpush.bf16.xpose.msra.mxu0 0
  %7354 = vmatpush.bf16.xpose.msra.mxu0 0
  %7355 = vmatpush.bf16.xpose.msra.mxu0 %v7346
  %7356 = vmatmul.bf16.gmra.mxu0 %v7343
  %v7357 = vpop.f32.mrf.mxu0
  %v7358 = vadd.f32 0.0, %v7357
  %v7359 = vpop.f32.mrf.mxu0
  %7360 = vdwg.mxu0
  %v7361 = vmul.f32 %v7073, 0.125
  %v7362 = vmul.f32 %v7092, 0.125
  %v7363 = vmul.f32 %v7111, 0.125
  %v7364 = vmul.f32 %v7130, 0.125
  %v7365 = vmul.f32 %v7149, 0.125
  %v7366 = vmul.f32 %v7168, 0.125
  %v7367 = vmul.f32 %v7187, 0.125
  %v7368 = vmul.f32 %v7206, 0.125
  %v7369 = vmul.f32 %v7225, 0.125
  %v7370 = vmul.f32 %v7244, 0.125
  %v7371 = vmul.f32 %v7263, 0.125
  %v7372 = vmul.f32 %v7282, 0.125
  %v7373 = vmul.f32 %v7301, 0.125
  %v7374 = vmul.f32 %v7320, 0.125
  %v7375 = vmul.f32 %v7339, 0.125
  %v7376 = vmul.f32 %v7358, 0.125
  %v7377 = vadd.f32 %v7361, %v1177
  %v7378 = vadd.f32 %v7362, %v1177
  %v7379 = vadd.f32 %v7363, %v1177
  %v7380 = vadd.f32 %v7364, %v1177
  %v7381 = vadd.f32 %v7365, %v1177
  %v7382 = vadd.f32 %v7366, %v1177
  %v7383 = vadd.f32 %v7367, %v1177
  %v7384 = vadd.f32 %v7368, %v1177
  %v7385 = vadd.f32 %v7369, %v1177
  %v7386 = vadd.f32 %v7370, %v1177
  %v7387 = vadd.f32 %v7371, %v1177
  %v7388 = vadd.f32 %v7372, %v1177
  %v7389 = vadd.f32 %v7373, %v1177
  %v7390 = vadd.f32 %v7374, %v1177
  %v7391 = vadd.f32 %v7375, %v1177
  %v7392 = vadd.f32 %v7376, %v1177
  %v7393 = vsel %vm2253, %v7377, -inf
  %7394 = vmax.xlane.f32.xlu0 %v7393
  %v7395 = vpop.xlane.xlu0 %7394
  %v7396 = vsel %vm2253, %v7378, -inf
  %7397 = vmax.xlane.f32.xlu0 %v7396
  %v7398 = vpop.xlane.xlu0 %7397
  %v7399 = vsel %vm2253, %v7379, -inf
  %7400 = vmax.xlane.f32.xlu0 %v7399
  %v7401 = vpop.xlane.xlu0 %7400
  %v7402 = vsel %vm2253, %v7380, -inf
  %7403 = vmax.xlane.f32.xlu0 %v7402
  %v7404 = vpop.xlane.xlu0 %7403
  %v7405 = vsel %vm2253, %v7381, -inf
  %7406 = vmax.xlane.f32.xlu0 %v7405
  %v7407 = vpop.xlane.xlu0 %7406
  %v7408 = vsel %vm2253, %v7382, -inf
  %7409 = vmax.xlane.f32.xlu0 %v7408
  %v7410 = vpop.xlane.xlu0 %7409
  %v7411 = vsel %vm2253, %v7383, -inf
  %7412 = vmax.xlane.f32.xlu0 %v7411
  %v7413 = vpop.xlane.xlu0 %7412
  %v7414 = vsel %vm2253, %v7384, -inf
  %7415 = vmax.xlane.f32.xlu0 %v7414
  %v7416 = vpop.xlane.xlu0 %7415
  %v7417 = vsel %vm2253, %v7385, -inf
  %7418 = vmax.xlane.f32.xlu0 %v7417
  %v7419 = vpop.xlane.xlu0 %7418
  %v7420 = vsel %vm2253, %v7386, -inf
  %7421 = vmax.xlane.f32.xlu0 %v7420
  %v7422 = vpop.xlane.xlu0 %7421
  %v7423 = vsel %vm2253, %v7387, -inf
  %7424 = vmax.xlane.f32.xlu0 %v7423
  %v7425 = vpop.xlane.xlu0 %7424
  %v7426 = vsel %vm2253, %v7388, -inf
  %7427 = vmax.xlane.f32.xlu0 %v7426
  %v7428 = vpop.xlane.xlu0 %7427
  %v7429 = vsel %vm2253, %v7389, -inf
  %7430 = vmax.xlane.f32.xlu0 %v7429
  %v7431 = vpop.xlane.xlu0 %7430
  %v7432 = vsel %vm2253, %v7390, -inf
  %7433 = vmax.xlane.f32.xlu0 %v7432
  %v7434 = vpop.xlane.xlu0 %7433
  %v7435 = vsel %vm2253, %v7391, -inf
  %7436 = vmax.xlane.f32.xlu0 %v7435
  %v7437 = vpop.xlane.xlu0 %7436
  %v7438 = vsel %vm2253, %v7392, -inf
  %7439 = vmax.xlane.f32.xlu0 %v7438
  %v7440 = vpop.xlane.xlu0 %7439
  %v7441 = vsub.f32 %v7377, %v7395
  %v7442 = vsub.f32 %v7378, %v7398
  %v7443 = vsub.f32 %v7379, %v7401
  %v7444 = vsub.f32 %v7380, %v7404
  %v7445 = vsub.f32 %v7381, %v7407
  %v7446 = vsub.f32 %v7382, %v7410
  %v7447 = vsub.f32 %v7383, %v7413
  %v7448 = vsub.f32 %v7384, %v7416
  %v7449 = vsub.f32 %v7385, %v7419
  %v7450 = vsub.f32 %v7386, %v7422
  %v7451 = vsub.f32 %v7387, %v7425
  %v7452 = vsub.f32 %v7388, %v7428
  %v7453 = vsub.f32 %v7389, %v7431
  %v7454 = vsub.f32 %v7390, %v7434
  %v7455 = vsub.f32 %v7391, %v7437
  %v7456 = vsub.f32 %v7392, %v7440
  %v7457 = vmul.f32 %v7441, 1.442695
  %v7458 = vpow.pop %v7457
  %v7459 = vmul.f32 %v7442, 1.442695
  %v7460 = vpow.pop %v7459
  %v7461 = vmul.f32 %v7443, 1.442695
  %v7462 = vpow.pop %v7461
  %v7463 = vmul.f32 %v7444, 1.442695
  %v7464 = vpow.pop %v7463
  %v7465 = vmul.f32 %v7445, 1.442695
  %v7466 = vpow.pop %v7465
  %v7467 = vmul.f32 %v7446, 1.442695
  %v7468 = vpow.pop %v7467
  %v7469 = vmul.f32 %v7447, 1.442695
  %v7470 = vpow.pop %v7469
  %v7471 = vmul.f32 %v7448, 1.442695
  %v7472 = vpow.pop %v7471
  %v7473 = vmul.f32 %v7449, 1.442695
  %v7474 = vpow.pop %v7473
  %v7475 = vmul.f32 %v7450, 1.442695
  %v7476 = vpow.pop %v7475
  %v7477 = vmul.f32 %v7451, 1.442695
  %v7478 = vpow.pop %v7477
  %v7479 = vmul.f32 %v7452, 1.442695
  %v7480 = vpow.pop %v7479
  %v7481 = vmul.f32 %v7453, 1.442695
  %v7482 = vpow.pop %v7481
  %v7483 = vmul.f32 %v7454, 1.442695
  %v7484 = vpow.pop %v7483
  %v7485 = vmul.f32 %v7455, 1.442695
  %v7486 = vpow.pop %v7485
  %v7487 = vmul.f32 %v7456, 1.442695
  %v7488 = vpow.pop %v7487
  %v7489 = vsel %vm2253, %v7458, 0.0
  %7490 = vadd.xlane.f32.xlu0 %v7489
  %v7491 = vpop.xlane.xlu0 %7490
  %v7492 = vsel %vm2253, %v7460, 0.0
  %7493 = vadd.xlane.f32.xlu0 %v7492
  %v7494 = vpop.xlane.xlu0 %7493
  %v7495 = vsel %vm2253, %v7462, 0.0
  %7496 = vadd.xlane.f32.xlu0 %v7495
  %v7497 = vpop.xlane.xlu0 %7496
  %v7498 = vsel %vm2253, %v7464, 0.0
  %7499 = vadd.xlane.f32.xlu0 %v7498
  %v7500 = vpop.xlane.xlu0 %7499
  %v7501 = vsel %vm2253, %v7466, 0.0
  %7502 = vadd.xlane.f32.xlu0 %v7501
  %v7503 = vpop.xlane.xlu0 %7502
  %v7504 = vsel %vm2253, %v7468, 0.0
  %7505 = vadd.xlane.f32.xlu0 %v7504
  %v7506 = vpop.xlane.xlu0 %7505
  %v7507 = vsel %vm2253, %v7470, 0.0
  %7508 = vadd.xlane.f32.xlu0 %v7507
  %v7509 = vpop.xlane.xlu0 %7508
  %v7510 = vsel %vm2253, %v7472, 0.0
  %7511 = vadd.xlane.f32.xlu0 %v7510
  %v7512 = vpop.xlane.xlu0 %7511
  %v7513 = vsel %vm2253, %v7474, 0.0
  %7514 = vadd.xlane.f32.xlu0 %v7513
  %v7515 = vpop.xlane.xlu0 %7514
  %v7516 = vsel %vm2253, %v7476, 0.0
  %7517 = vadd.xlane.f32.xlu0 %v7516
  %v7518 = vpop.xlane.xlu0 %7517
  %v7519 = vsel %vm2253, %v7478, 0.0
  %7520 = vadd.xlane.f32.xlu0 %v7519
  %v7521 = vpop.xlane.xlu0 %7520
  %v7522 = vsel %vm2253, %v7480, 0.0
  %7523 = vadd.xlane.f32.xlu0 %v7522
  %v7524 = vpop.xlane.xlu0 %7523
  %v7525 = vsel %vm2253, %v7482, 0.0
  %7526 = vadd.xlane.f32.xlu0 %v7525
  %v7527 = vpop.xlane.xlu0 %7526
  %v7528 = vsel %vm2253, %v7484, 0.0
  %7529 = vadd.xlane.f32.xlu0 %v7528
  %v7530 = vpop.xlane.xlu0 %7529
  %v7531 = vsel %vm2253, %v7486, 0.0
  %7532 = vadd.xlane.f32.xlu0 %v7531
  %v7533 = vpop.xlane.xlu0 %7532
  %v7534 = vsel %vm2253, %v7488, 0.0
  %7535 = vadd.xlane.f32.xlu0 %v7534
  %v7536 = vpop.xlane.xlu0 %7535
  %v7537 = vrcp.pop %v7491
  %v7538 = vmul.f32 %v7491, %v7537
  %v7539 = vsub.f32 1.0, %v7538
  %v7540 = vmul.f32 %v7537, %v7539
  %v7541 = vadd.f32 %v7537, %v7540
  %vm7542 = vweird.f32 %v7491
  %vm7543 = vweird.f32 %v7537
  %vm7544 = vmor %vm7542, %vm7543
  %v7545 = vsel %vm7544, %v7537, %v7541
  %v7546 = vand.u32 2147483647, %v7491
  %vm7547 = vcmp.eq.f32.partialorder %v7546, 8.507059e+37
  %v7548 = vand.u32 %v7491, 2147483648
  %v7549 = vor.u32 1.1754944e-38, %v7548
  %v7550 = vsel %vm7547, %v7549, %v7545
  %v7551 = vrcp.pop %v7494
  %v7552 = vmul.f32 %v7494, %v7551
  %v7553 = vsub.f32 1.0, %v7552
  %v7554 = vmul.f32 %v7551, %v7553
  %v7555 = vadd.f32 %v7551, %v7554
  %vm7556 = vweird.f32 %v7494
  %vm7557 = vweird.f32 %v7551
  %vm7558 = vmor %vm7556, %vm7557
  %v7559 = vsel %vm7558, %v7551, %v7555
  %v7560 = vand.u32 2147483647, %v7494
  %vm7561 = vcmp.eq.f32.partialorder %v7560, 8.507059e+37
  %v7562 = vand.u32 %v7494, 2147483648
  %v7563 = vor.u32 1.1754944e-38, %v7562
  %v7564 = vsel %vm7561, %v7563, %v7559
  %v7565 = vrcp.pop %v7497
  %v7566 = vmul.f32 %v7497, %v7565
  %v7567 = vsub.f32 1.0, %v7566
  %v7568 = vmul.f32 %v7565, %v7567
  %v7569 = vadd.f32 %v7565, %v7568
  %vm7570 = vweird.f32 %v7497
  %vm7571 = vweird.f32 %v7565
  %vm7572 = vmor %vm7570, %vm7571
  %v7573 = vsel %vm7572, %v7565, %v7569
  %v7574 = vand.u32 2147483647, %v7497
  %vm7575 = vcmp.eq.f32.partialorder %v7574, 8.507059e+37
  %v7576 = vand.u32 %v7497, 2147483648
  %v7577 = vor.u32 1.1754944e-38, %v7576
  %v7578 = vsel %vm7575, %v7577, %v7573
  %v7579 = vrcp.pop %v7500
  %v7580 = vmul.f32 %v7500, %v7579
  %v7581 = vsub.f32 1.0, %v7580
  %v7582 = vmul.f32 %v7579, %v7581
  %v7583 = vadd.f32 %v7579, %v7582
  %vm7584 = vweird.f32 %v7500
  %vm7585 = vweird.f32 %v7579
  %vm7586 = vmor %vm7584, %vm7585
  %v7587 = vsel %vm7586, %v7579, %v7583
  %v7588 = vand.u32 2147483647, %v7500
  %vm7589 = vcmp.eq.f32.partialorder %v7588, 8.507059e+37
  %v7590 = vand.u32 %v7500, 2147483648
  %v7591 = vor.u32 1.1754944e-38, %v7590
  %v7592 = vsel %vm7589, %v7591, %v7587
  %v7593 = vrcp.pop %v7503
  %v7594 = vmul.f32 %v7503, %v7593
  %v7595 = vsub.f32 1.0, %v7594
  %v7596 = vmul.f32 %v7593, %v7595
  %v7597 = vadd.f32 %v7593, %v7596
  %vm7598 = vweird.f32 %v7503
  %vm7599 = vweird.f32 %v7593
  %vm7600 = vmor %vm7598, %vm7599
  %v7601 = vsel %vm7600, %v7593, %v7597
  %v7602 = vand.u32 2147483647, %v7503
  %vm7603 = vcmp.eq.f32.partialorder %v7602, 8.507059e+37
  %v7604 = vand.u32 %v7503, 2147483648
  %v7605 = vor.u32 1.1754944e-38, %v7604
  %v7606 = vsel %vm7603, %v7605, %v7601
  %v7607 = vrcp.pop %v7506
  %v7608 = vmul.f32 %v7506, %v7607
  %v7609 = vsub.f32 1.0, %v7608
  %v7610 = vmul.f32 %v7607, %v7609
  %v7611 = vadd.f32 %v7607, %v7610
  %vm7612 = vweird.f32 %v7506
  %vm7613 = vweird.f32 %v7607
  %vm7614 = vmor %vm7612, %vm7613
  %v7615 = vsel %vm7614, %v7607, %v7611
  %v7616 = vand.u32 2147483647, %v7506
  %vm7617 = vcmp.eq.f32.partialorder %v7616, 8.507059e+37
  %v7618 = vand.u32 %v7506, 2147483648
  %v7619 = vor.u32 1.1754944e-38, %v7618
  %v7620 = vsel %vm7617, %v7619, %v7615
  %v7621 = vrcp.pop %v7509
  %v7622 = vmul.f32 %v7509, %v7621
  %v7623 = vsub.f32 1.0, %v7622
  %v7624 = vmul.f32 %v7621, %v7623
  %v7625 = vadd.f32 %v7621, %v7624
  %vm7626 = vweird.f32 %v7509
  %vm7627 = vweird.f32 %v7621
  %vm7628 = vmor %vm7626, %vm7627
  %v7629 = vsel %vm7628, %v7621, %v7625
  %v7630 = vand.u32 2147483647, %v7509
  %vm7631 = vcmp.eq.f32.partialorder %v7630, 8.507059e+37
  %v7632 = vand.u32 %v7509, 2147483648
  %v7633 = vor.u32 1.1754944e-38, %v7632
  %v7634 = vsel %vm7631, %v7633, %v7629
  %v7635 = vrcp.pop %v7512
  %v7636 = vmul.f32 %v7512, %v7635
  %v7637 = vsub.f32 1.0, %v7636
  %v7638 = vmul.f32 %v7635, %v7637
  %v7639 = vadd.f32 %v7635, %v7638
  %vm7640 = vweird.f32 %v7512
  %vm7641 = vweird.f32 %v7635
  %vm7642 = vmor %vm7640, %vm7641
  %v7643 = vsel %vm7642, %v7635, %v7639
  %v7644 = vand.u32 2147483647, %v7512
  %vm7645 = vcmp.eq.f32.partialorder %v7644, 8.507059e+37
  %v7646 = vand.u32 %v7512, 2147483648
  %v7647 = vor.u32 1.1754944e-38, %v7646
  %v7648 = vsel %vm7645, %v7647, %v7643
  %v7649 = vrcp.pop %v7515
  %v7650 = vmul.f32 %v7515, %v7649
  %v7651 = vsub.f32 1.0, %v7650
  %v7652 = vmul.f32 %v7649, %v7651
  %v7653 = vadd.f32 %v7649, %v7652
  %vm7654 = vweird.f32 %v7515
  %vm7655 = vweird.f32 %v7649
  %vm7656 = vmor %vm7654, %vm7655
  %v7657 = vsel %vm7656, %v7649, %v7653
  %v7658 = vand.u32 2147483647, %v7515
  %vm7659 = vcmp.eq.f32.partialorder %v7658, 8.507059e+37
  %v7660 = vand.u32 %v7515, 2147483648
  %v7661 = vor.u32 1.1754944e-38, %v7660
  %v7662 = vsel %vm7659, %v7661, %v7657
  %v7663 = vrcp.pop %v7518
  %v7664 = vmul.f32 %v7518, %v7663
  %v7665 = vsub.f32 1.0, %v7664
  %v7666 = vmul.f32 %v7663, %v7665
  %v7667 = vadd.f32 %v7663, %v7666
  %vm7668 = vweird.f32 %v7518
  %vm7669 = vweird.f32 %v7663
  %vm7670 = vmor %vm7668, %vm7669
  %v7671 = vsel %vm7670, %v7663, %v7667
  %v7672 = vand.u32 2147483647, %v7518
  %vm7673 = vcmp.eq.f32.partialorder %v7672, 8.507059e+37
  %v7674 = vand.u32 %v7518, 2147483648
  %v7675 = vor.u32 1.1754944e-38, %v7674
  %v7676 = vsel %vm7673, %v7675, %v7671
  %v7677 = vrcp.pop %v7521
  %v7678 = vmul.f32 %v7521, %v7677
  %v7679 = vsub.f32 1.0, %v7678
  %v7680 = vmul.f32 %v7677, %v7679
  %v7681 = vadd.f32 %v7677, %v7680
  %vm7682 = vweird.f32 %v7521
  %vm7683 = vweird.f32 %v7677
  %vm7684 = vmor %vm7682, %vm7683
  %v7685 = vsel %vm7684, %v7677, %v7681
  %v7686 = vand.u32 2147483647, %v7521
  %vm7687 = vcmp.eq.f32.partialorder %v7686, 8.507059e+37
  %v7688 = vand.u32 %v7521, 2147483648
  %v7689 = vor.u32 1.1754944e-38, %v7688
  %v7690 = vsel %vm7687, %v7689, %v7685
  %v7691 = vrcp.pop %v7524
  %v7692 = vmul.f32 %v7524, %v7691
  %v7693 = vsub.f32 1.0, %v7692
  %v7694 = vmul.f32 %v7691, %v7693
  %v7695 = vadd.f32 %v7691, %v7694
  %vm7696 = vweird.f32 %v7524
  %vm7697 = vweird.f32 %v7691
  %vm7698 = vmor %vm7696, %vm7697
  %v7699 = vsel %vm7698, %v7691, %v7695
  %v7700 = vand.u32 2147483647, %v7524
  %vm7701 = vcmp.eq.f32.partialorder %v7700, 8.507059e+37
  %v7702 = vand.u32 %v7524, 2147483648
  %v7703 = vor.u32 1.1754944e-38, %v7702
  %v7704 = vsel %vm7701, %v7703, %v7699
  %v7705 = vrcp.pop %v7527
  %v7706 = vmul.f32 %v7527, %v7705
  %v7707 = vsub.f32 1.0, %v7706
  %v7708 = vmul.f32 %v7705, %v7707
  %v7709 = vadd.f32 %v7705, %v7708
  %vm7710 = vweird.f32 %v7527
  %vm7711 = vweird.f32 %v7705
  %vm7712 = vmor %vm7710, %vm7711
  %v7713 = vsel %vm7712, %v7705, %v7709
  %v7714 = vand.u32 2147483647, %v7527
  %vm7715 = vcmp.eq.f32.partialorder %v7714, 8.507059e+37
  %v7716 = vand.u32 %v7527, 2147483648
  %v7717 = vor.u32 1.1754944e-38, %v7716
  %v7718 = vsel %vm7715, %v7717, %v7713
  %v7719 = vrcp.pop %v7530
  %v7720 = vmul.f32 %v7530, %v7719
  %v7721 = vsub.f32 1.0, %v7720
  %v7722 = vmul.f32 %v7719, %v7721
  %v7723 = vadd.f32 %v7719, %v7722
  %vm7724 = vweird.f32 %v7530
  %vm7725 = vweird.f32 %v7719
  %vm7726 = vmor %vm7724, %vm7725
  %v7727 = vsel %vm7726, %v7719, %v7723
  %v7728 = vand.u32 2147483647, %v7530
  %vm7729 = vcmp.eq.f32.partialorder %v7728, 8.507059e+37
  %v7730 = vand.u32 %v7530, 2147483648
  %v7731 = vor.u32 1.1754944e-38, %v7730
  %v7732 = vsel %vm7729, %v7731, %v7727
  %v7733 = vrcp.pop %v7533
  %v7734 = vmul.f32 %v7533, %v7733
  %v7735 = vsub.f32 1.0, %v7734
  %v7736 = vmul.f32 %v7733, %v7735
  %v7737 = vadd.f32 %v7733, %v7736
  %vm7738 = vweird.f32 %v7533
  %vm7739 = vweird.f32 %v7733
  %vm7740 = vmor %vm7738, %vm7739
  %v7741 = vsel %vm7740, %v7733, %v7737
  %v7742 = vand.u32 2147483647, %v7533
  %vm7743 = vcmp.eq.f32.partialorder %v7742, 8.507059e+37
  %v7744 = vand.u32 %v7533, 2147483648
  %v7745 = vor.u32 1.1754944e-38, %v7744
  %v7746 = vsel %vm7743, %v7745, %v7741
  %v7747 = vrcp.pop %v7536
  %v7748 = vmul.f32 %v7536, %v7747
  %v7749 = vsub.f32 1.0, %v7748
  %v7750 = vmul.f32 %v7747, %v7749
  %v7751 = vadd.f32 %v7747, %v7750
  %vm7752 = vweird.f32 %v7536
  %vm7753 = vweird.f32 %v7747
  %vm7754 = vmor %vm7752, %vm7753
  %v7755 = vsel %vm7754, %v7747, %v7751
  %v7756 = vand.u32 2147483647, %v7536
  %vm7757 = vcmp.eq.f32.partialorder %v7756, 8.507059e+37
  %v7758 = vand.u32 %v7536, 2147483648
  %v7759 = vor.u32 1.1754944e-38, %v7758
  %v7760 = vsel %vm7757, %v7759, %v7755
  %v7761 = vmul.f32 %v7458, %v7550
  %v7762 = vmul.f32 %v7460, %v7564
  %v7763 = vmul.f32 %v7462, %v7578
  %v7764 = vmul.f32 %v7464, %v7592
  %v7765 = vmul.f32 %v7466, %v7606
  %v7766 = vmul.f32 %v7468, %v7620
  %v7767 = vmul.f32 %v7470, %v7634
  %v7768 = vmul.f32 %v7472, %v7648
  %v7769 = vmul.f32 %v7474, %v7662
  %v7770 = vmul.f32 %v7476, %v7676
  %v7771 = vmul.f32 %v7478, %v7690
  %v7772 = vmul.f32 %v7480, %v7704
  %v7773 = vmul.f32 %v7482, %v7718
  %v7774 = vmul.f32 %v7484, %v7732
  %v7775 = vmul.f32 %v7486, %v7746
  %v7776 = vmul.f32 %v7488, %v7760
  %v7777 = vpack.c.bf16 %v7761, %v7761
  %v7778 = vpack.c.bf16 %v7762, %v7762
  %v7779 = vpack.c.bf16 %v7763, %v7763
  %v7780 = vpack.c.bf16 %v7764, %v7764
  %v7781 = vpack.c.bf16 %v7765, %v7765
  %v7782 = vpack.c.bf16 %v7766, %v7766
  %v7783 = vpack.c.bf16 %v7767, %v7767
  %v7784 = vpack.c.bf16 %v7768, %v7768
  %v7785 = vpack.c.bf16 %v7769, %v7769
  %v7786 = vpack.c.bf16 %v7770, %v7770
  %v7787 = vpack.c.bf16 %v7771, %v7771
  %v7788 = vpack.c.bf16 %v7772, %v7772
  %v7789 = vpack.c.bf16 %v7773, %v7773
  %v7790 = vpack.c.bf16 %v7774, %v7774
  %v7791 = vpack.c.bf16 %v7775, %v7775
  %v7792 = vpack.c.bf16 %v7776, %v7776
  %v7794 = vsel %vm2253, %v7777, 0
  %v7797 = vsel %vm2657, %v7041, 0
  %7799 = vmatpush.bf16.msra.mxu0 0
  %7800 = vmatpush.bf16.msra.mxu0 0
  %7801 = vmatpush.bf16.msra.mxu0 0
  %7802 = vmatpush.bf16.msra.mxu0 0
  %7803 = vmatpush.bf16.msra.mxu0 0
  %7804 = vmatpush.bf16.msra.mxu0 0
  %7805 = vmatpush.bf16.msra.mxu0 0
  %7806 = vmatpush.bf16.msra.mxu0 %v7797
  %7807 = vmatmul.bf16.gmra.mxu0 %v7794
  %v7808 = vpop.f32.mrf.mxu0
  %v7809 = vadd.f32 0.0, %v7808
  %v7810 = vpop.f32.mrf.mxu0
  %7811 = vdwg.mxu0
  %v7813 = vsel %vm2253, %v7778, 0
  %v7816 = vsel %vm2657, %v7042, 0
  %7818 = vmatpush.bf16.msra.mxu0 0
  %7819 = vmatpush.bf16.msra.mxu0 0
  %7820 = vmatpush.bf16.msra.mxu0 0
  %7821 = vmatpush.bf16.msra.mxu0 0
  %7822 = vmatpush.bf16.msra.mxu0 0
  %7823 = vmatpush.bf16.msra.mxu0 0
  %7824 = vmatpush.bf16.msra.mxu0 0
  %7825 = vmatpush.bf16.msra.mxu0 %v7816
  %7826 = vmatmul.bf16.gmra.mxu0 %v7813
  %v7827 = vpop.f32.mrf.mxu0
  %v7828 = vadd.f32 0.0, %v7827
  %v7829 = vpop.f32.mrf.mxu0
  %7830 = vdwg.mxu0
  %v7832 = vsel %vm2253, %v7779, 0
  %v7835 = vsel %vm2657, %v7043, 0
  %7837 = vmatpush.bf16.msra.mxu0 0
  %7838 = vmatpush.bf16.msra.mxu0 0
  %7839 = vmatpush.bf16.msra.mxu0 0
  %7840 = vmatpush.bf16.msra.mxu0 0
  %7841 = vmatpush.bf16.msra.mxu0 0
  %7842 = vmatpush.bf16.msra.mxu0 0
  %7843 = vmatpush.bf16.msra.mxu0 0
  %7844 = vmatpush.bf16.msra.mxu0 %v7835
  %7845 = vmatmul.bf16.gmra.mxu0 %v7832
  %v7846 = vpop.f32.mrf.mxu0
  %v7847 = vadd.f32 0.0, %v7846
  %v7848 = vpop.f32.mrf.mxu0
  %7849 = vdwg.mxu0
  %v7851 = vsel %vm2253, %v7780, 0
  %v7854 = vsel %vm2657, %v7044, 0
  %7856 = vmatpush.bf16.msra.mxu0 0
  %7857 = vmatpush.bf16.msra.mxu0 0
  %7858 = vmatpush.bf16.msra.mxu0 0
  %7859 = vmatpush.bf16.msra.mxu0 0
  %7860 = vmatpush.bf16.msra.mxu0 0
  %7861 = vmatpush.bf16.msra.mxu0 0
  %7862 = vmatpush.bf16.msra.mxu0 0
  %7863 = vmatpush.bf16.msra.mxu0 %v7854
  %7864 = vmatmul.bf16.gmra.mxu0 %v7851
  %v7865 = vpop.f32.mrf.mxu0
  %v7866 = vadd.f32 0.0, %v7865
  %v7867 = vpop.f32.mrf.mxu0
  %7868 = vdwg.mxu0
  %v7870 = vsel %vm2253, %v7781, 0
  %v7873 = vsel %vm2657, %v7045, 0
  %7875 = vmatpush.bf16.msra.mxu0 0
  %7876 = vmatpush.bf16.msra.mxu0 0
  %7877 = vmatpush.bf16.msra.mxu0 0
  %7878 = vmatpush.bf16.msra.mxu0 0
  %7879 = vmatpush.bf16.msra.mxu0 0
  %7880 = vmatpush.bf16.msra.mxu0 0
  %7881 = vmatpush.bf16.msra.mxu0 0
  %7882 = vmatpush.bf16.msra.mxu0 %v7873
  %7883 = vmatmul.bf16.gmra.mxu0 %v7870
  %v7884 = vpop.f32.mrf.mxu0
  %v7885 = vadd.f32 0.0, %v7884
  %v7886 = vpop.f32.mrf.mxu0
  %7887 = vdwg.mxu0
  %v7889 = vsel %vm2253, %v7782, 0
  %v7892 = vsel %vm2657, %v7046, 0
  %7894 = vmatpush.bf16.msra.mxu0 0
  %7895 = vmatpush.bf16.msra.mxu0 0
  %7896 = vmatpush.bf16.msra.mxu0 0
  %7897 = vmatpush.bf16.msra.mxu0 0
  %7898 = vmatpush.bf16.msra.mxu0 0
  %7899 = vmatpush.bf16.msra.mxu0 0
  %7900 = vmatpush.bf16.msra.mxu0 0
  %7901 = vmatpush.bf16.msra.mxu0 %v7892
  %7902 = vmatmul.bf16.gmra.mxu0 %v7889
  %v7903 = vpop.f32.mrf.mxu0
  %v7904 = vadd.f32 0.0, %v7903
  %v7905 = vpop.f32.mrf.mxu0
  %7906 = vdwg.mxu0
  %v7908 = vsel %vm2253, %v7783, 0
  %v7911 = vsel %vm2657, %v7047, 0
  %7913 = vmatpush.bf16.msra.mxu0 0
  %7914 = vmatpush.bf16.msra.mxu0 0
  %7915 = vmatpush.bf16.msra.mxu0 0
  %7916 = vmatpush.bf16.msra.mxu0 0
  %7917 = vmatpush.bf16.msra.mxu0 0
  %7918 = vmatpush.bf16.msra.mxu0 0
  %7919 = vmatpush.bf16.msra.mxu0 0
  %7920 = vmatpush.bf16.msra.mxu0 %v7911
  %7921 = vmatmul.bf16.gmra.mxu0 %v7908
  %v7922 = vpop.f32.mrf.mxu0
  %v7923 = vadd.f32 0.0, %v7922
  %v7924 = vpop.f32.mrf.mxu0
  %7925 = vdwg.mxu0
  %v7927 = vsel %vm2253, %v7784, 0
  %v7930 = vsel %vm2657, %v7048, 0
  %7932 = vmatpush.bf16.msra.mxu0 0
  %7933 = vmatpush.bf16.msra.mxu0 0
  %7934 = vmatpush.bf16.msra.mxu0 0
  %7935 = vmatpush.bf16.msra.mxu0 0
  %7936 = vmatpush.bf16.msra.mxu0 0
  %7937 = vmatpush.bf16.msra.mxu0 0
  %7938 = vmatpush.bf16.msra.mxu0 0
  %7939 = vmatpush.bf16.msra.mxu0 %v7930
  %7940 = vmatmul.bf16.gmra.mxu0 %v7927
  %v7941 = vpop.f32.mrf.mxu0
  %v7942 = vadd.f32 0.0, %v7941
  %v7943 = vpop.f32.mrf.mxu0
  %7944 = vdwg.mxu0
  %v7946 = vsel %vm2253, %v7785, 0
  %v7949 = vsel %vm2657, %v7049, 0
  %7951 = vmatpush.bf16.msra.mxu0 0
  %7952 = vmatpush.bf16.msra.mxu0 0
  %7953 = vmatpush.bf16.msra.mxu0 0
  %7954 = vmatpush.bf16.msra.mxu0 0
  %7955 = vmatpush.bf16.msra.mxu0 0
  %7956 = vmatpush.bf16.msra.mxu0 0
  %7957 = vmatpush.bf16.msra.mxu0 0
  %7958 = vmatpush.bf16.msra.mxu0 %v7949
  %7959 = vmatmul.bf16.gmra.mxu0 %v7946
  %v7960 = vpop.f32.mrf.mxu0
  %v7961 = vadd.f32 0.0, %v7960
  %v7962 = vpop.f32.mrf.mxu0
  %7963 = vdwg.mxu0
  %v7965 = vsel %vm2253, %v7786, 0
  %v7968 = vsel %vm2657, %v7050, 0
  %7970 = vmatpush.bf16.msra.mxu0 0
  %7971 = vmatpush.bf16.msra.mxu0 0
  %7972 = vmatpush.bf16.msra.mxu0 0
  %7973 = vmatpush.bf16.msra.mxu0 0
  %7974 = vmatpush.bf16.msra.mxu0 0
  %7975 = vmatpush.bf16.msra.mxu0 0
  %7976 = vmatpush.bf16.msra.mxu0 0
  %7977 = vmatpush.bf16.msra.mxu0 %v7968
  %7978 = vmatmul.bf16.gmra.mxu0 %v7965
  %v7979 = vpop.f32.mrf.mxu0
  %v7980 = vadd.f32 0.0, %v7979
  %v7981 = vpop.f32.mrf.mxu0
  %7982 = vdwg.mxu0
  %v7984 = vsel %vm2253, %v7787, 0
  %v7987 = vsel %vm2657, %v7051, 0
  %7989 = vmatpush.bf16.msra.mxu0 0
  %7990 = vmatpush.bf16.msra.mxu0 0
  %7991 = vmatpush.bf16.msra.mxu0 0
  %7992 = vmatpush.bf16.msra.mxu0 0
  %7993 = vmatpush.bf16.msra.mxu0 0
  %7994 = vmatpush.bf16.msra.mxu0 0
  %7995 = vmatpush.bf16.msra.mxu0 0
  %7996 = vmatpush.bf16.msra.mxu0 %v7987
  %7997 = vmatmul.bf16.gmra.mxu0 %v7984
  %v7998 = vpop.f32.mrf.mxu0
  %v7999 = vadd.f32 0.0, %v7998
  %v8000 = vpop.f32.mrf.mxu0
  %8001 = vdwg.mxu0
  %v8003 = vsel %vm2253, %v7788, 0
  %v8006 = vsel %vm2657, %v7052, 0
  %8008 = vmatpush.bf16.msra.mxu0 0
  %8009 = vmatpush.bf16.msra.mxu0 0
  %8010 = vmatpush.bf16.msra.mxu0 0
  %8011 = vmatpush.bf16.msra.mxu0 0
  %8012 = vmatpush.bf16.msra.mxu0 0
  %8013 = vmatpush.bf16.msra.mxu0 0
  %8014 = vmatpush.bf16.msra.mxu0 0
  %8015 = vmatpush.bf16.msra.mxu0 %v8006
  %8016 = vmatmul.bf16.gmra.mxu0 %v8003
  %v8017 = vpop.f32.mrf.mxu0
  %v8018 = vadd.f32 0.0, %v8017
  %v8019 = vpop.f32.mrf.mxu0
  %8020 = vdwg.mxu0
  %v8022 = vsel %vm2253, %v7789, 0
  %v8025 = vsel %vm2657, %v7053, 0
  %8027 = vmatpush.bf16.msra.mxu0 0
  %8028 = vmatpush.bf16.msra.mxu0 0
  %8029 = vmatpush.bf16.msra.mxu0 0
  %8030 = vmatpush.bf16.msra.mxu0 0
  %8031 = vmatpush.bf16.msra.mxu0 0
  %8032 = vmatpush.bf16.msra.mxu0 0
  %8033 = vmatpush.bf16.msra.mxu0 0
  %8034 = vmatpush.bf16.msra.mxu0 %v8025
  %8035 = vmatmul.bf16.gmra.mxu0 %v8022
  %v8036 = vpop.f32.mrf.mxu0
  %v8037 = vadd.f32 0.0, %v8036
  %v8038 = vpop.f32.mrf.mxu0
  %8039 = vdwg.mxu0
  %v8041 = vsel %vm2253, %v7790, 0
  %v8044 = vsel %vm2657, %v7054, 0
  %8046 = vmatpush.bf16.msra.mxu0 0
  %8047 = vmatpush.bf16.msra.mxu0 0
  %8048 = vmatpush.bf16.msra.mxu0 0
  %8049 = vmatpush.bf16.msra.mxu0 0
  %8050 = vmatpush.bf16.msra.mxu0 0
  %8051 = vmatpush.bf16.msra.mxu0 0
  %8052 = vmatpush.bf16.msra.mxu0 0
  %8053 = vmatpush.bf16.msra.mxu0 %v8044
  %8054 = vmatmul.bf16.gmra.mxu0 %v8041
  %v8055 = vpop.f32.mrf.mxu0
  %v8056 = vadd.f32 0.0, %v8055
  %v8057 = vpop.f32.mrf.mxu0
  %8058 = vdwg.mxu0
  %v8060 = vsel %vm2253, %v7791, 0
  %v8063 = vsel %vm2657, %v7055, 0
  %8065 = vmatpush.bf16.msra.mxu0 0
  %8066 = vmatpush.bf16.msra.mxu0 0
  %8067 = vmatpush.bf16.msra.mxu0 0
  %8068 = vmatpush.bf16.msra.mxu0 0
  %8069 = vmatpush.bf16.msra.mxu0 0
  %8070 = vmatpush.bf16.msra.mxu0 0
  %8071 = vmatpush.bf16.msra.mxu0 0
  %8072 = vmatpush.bf16.msra.mxu0 %v8063
  %8073 = vmatmul.bf16.gmra.mxu0 %v8060
  %v8074 = vpop.f32.mrf.mxu0
  %v8075 = vadd.f32 0.0, %v8074
  %v8076 = vpop.f32.mrf.mxu0
  %8077 = vdwg.mxu0
  %v8079 = vsel %vm2253, %v7792, 0
  %v8082 = vsel %vm2657, %v7056, 0
  %8084 = vmatpush.bf16.msra.mxu0 0
  %8085 = vmatpush.bf16.msra.mxu0 0
  %8086 = vmatpush.bf16.msra.mxu0 0
  %8087 = vmatpush.bf16.msra.mxu0 0
  %8088 = vmatpush.bf16.msra.mxu0 0
  %8089 = vmatpush.bf16.msra.mxu0 0
  %8090 = vmatpush.bf16.msra.mxu0 0
  %8091 = vmatpush.bf16.msra.mxu0 %v8082
  %8092 = vmatmul.bf16.gmra.mxu0 %v8079
  %v8093 = vpop.f32.mrf.mxu0
  %v8094 = vadd.f32 0.0, %v8093
  %v8095 = vpop.f32.mrf.mxu0
  %8096 = vdwg.mxu0
  %v8098 = vunpack.c.l.b16 %v7009
  %v8099 = vpack.c.b16 %v8098, %v8098
  %8100 = vrot.lane.b32.xlu0 %v8099, 64
  %v8101 = vpop.permute.xlu0 %8100
  %v8103 = vunpack.c.l.b16 %v7025
  %v8104 = vpack.c.b16 %v8103, %v8103
  %8105 = vrot.lane.b32.xlu0 %v8104, 64
  %v8106 = vpop.permute.xlu0 %8105
  %v8108 = vsel %vm1916, %v8101, 0
  %v8111 = vsel %vm1916, %v8106, 0
  %8113 = vmatpush.bf16.xpose.msra.mxu0 0
  %8114 = vmatpush.bf16.xpose.msra.mxu0 0
  %8115 = vmatpush.bf16.xpose.msra.mxu0 0
  %8116 = vmatpush.bf16.xpose.msra.mxu0 0
  %8117 = vmatpush.bf16.xpose.msra.mxu0 0
  %8118 = vmatpush.bf16.xpose.msra.mxu0 0
  %8119 = vmatpush.bf16.xpose.msra.mxu0 0
  %8120 = vmatpush.bf16.xpose.msra.mxu0 %v8111
  %8121 = vmatmul.bf16.gmra.mxu0 %v8108
  %v8122 = vpop.f32.mrf.mxu0
  %v8123 = vadd.f32 0.0, %v8122
  %v8124 = vpop.f32.mrf.mxu0
  %8125 = vdwg.mxu0
  %v8127 = vunpack.c.l.b16 %v7010
  %v8128 = vpack.c.b16 %v8127, %v8127
  %8129 = vrot.lane.b32.xlu0 %v8128, 64
  %v8130 = vpop.permute.xlu0 %8129
  %v8132 = vunpack.c.l.b16 %v7026
  %v8133 = vpack.c.b16 %v8132, %v8132
  %8134 = vrot.lane.b32.xlu0 %v8133, 64
  %v8135 = vpop.permute.xlu0 %8134
  %v8137 = vsel %vm1916, %v8130, 0
  %v8140 = vsel %vm1916, %v8135, 0
  %8142 = vmatpush.bf16.xpose.msra.mxu0 0
  %8143 = vmatpush.bf16.xpose.msra.mxu0 0
  %8144 = vmatpush.bf16.xpose.msra.mxu0 0
  %8145 = vmatpush.bf16.xpose.msra.mxu0 0
  %8146 = vmatpush.bf16.xpose.msra.mxu0 0
  %8147 = vmatpush.bf16.xpose.msra.mxu0 0
  %8148 = vmatpush.bf16.xpose.msra.mxu0 0
  %8149 = vmatpush.bf16.xpose.msra.mxu0 %v8140
  %8150 = vmatmul.bf16.gmra.mxu0 %v8137
  %v8151 = vpop.f32.mrf.mxu0
  %v8152 = vadd.f32 0.0, %v8151
  %v8153 = vpop.f32.mrf.mxu0
  %8154 = vdwg.mxu0
  %v8156 = vunpack.c.l.b16 %v7011
  %v8157 = vpack.c.b16 %v8156, %v8156
  %8158 = vrot.lane.b32.xlu0 %v8157, 64
  %v8159 = vpop.permute.xlu0 %8158
  %v8161 = vunpack.c.l.b16 %v7027
  %v8162 = vpack.c.b16 %v8161, %v8161
  %8163 = vrot.lane.b32.xlu0 %v8162, 64
  %v8164 = vpop.permute.xlu0 %8163
  %v8166 = vsel %vm1916, %v8159, 0
  %v8169 = vsel %vm1916, %v8164, 0
  %8171 = vmatpush.bf16.xpose.msra.mxu0 0
  %8172 = vmatpush.bf16.xpose.msra.mxu0 0
  %8173 = vmatpush.bf16.xpose.msra.mxu0 0
  %8174 = vmatpush.bf16.xpose.msra.mxu0 0
  %8175 = vmatpush.bf16.xpose.msra.mxu0 0
  %8176 = vmatpush.bf16.xpose.msra.mxu0 0
  %8177 = vmatpush.bf16.xpose.msra.mxu0 0
  %8178 = vmatpush.bf16.xpose.msra.mxu0 %v8169
  %8179 = vmatmul.bf16.gmra.mxu0 %v8166
  %v8180 = vpop.f32.mrf.mxu0
  %v8181 = vadd.f32 0.0, %v8180
  %v8182 = vpop.f32.mrf.mxu0
  %8183 = vdwg.mxu0
  %v8185 = vunpack.c.l.b16 %v7012
  %v8186 = vpack.c.b16 %v8185, %v8185
  %8187 = vrot.lane.b32.xlu0 %v8186, 64
  %v8188 = vpop.permute.xlu0 %8187
  %v8190 = vunpack.c.l.b16 %v7028
  %v8191 = vpack.c.b16 %v8190, %v8190
  %8192 = vrot.lane.b32.xlu0 %v8191, 64
  %v8193 = vpop.permute.xlu0 %8192
  %v8195 = vsel %vm1916, %v8188, 0
  %v8198 = vsel %vm1916, %v8193, 0
  %8200 = vmatpush.bf16.xpose.msra.mxu0 0
  %8201 = vmatpush.bf16.xpose.msra.mxu0 0
  %8202 = vmatpush.bf16.xpose.msra.mxu0 0
  %8203 = vmatpush.bf16.xpose.msra.mxu0 0
  %8204 = vmatpush.bf16.xpose.msra.mxu0 0
  %8205 = vmatpush.bf16.xpose.msra.mxu0 0
  %8206 = vmatpush.bf16.xpose.msra.mxu0 0
  %8207 = vmatpush.bf16.xpose.msra.mxu0 %v8198
  %8208 = vmatmul.bf16.gmra.mxu0 %v8195
  %v8209 = vpop.f32.mrf.mxu0
  %v8210 = vadd.f32 0.0, %v8209
  %v8211 = vpop.f32.mrf.mxu0
  %8212 = vdwg.mxu0
  %v8214 = vunpack.c.l.b16 %v7013
  %v8215 = vpack.c.b16 %v8214, %v8214
  %8216 = vrot.lane.b32.xlu0 %v8215, 64
  %v8217 = vpop.permute.xlu0 %8216
  %v8219 = vunpack.c.l.b16 %v7029
  %v8220 = vpack.c.b16 %v8219, %v8219
  %8221 = vrot.lane.b32.xlu0 %v8220, 64
  %v8222 = vpop.permute.xlu0 %8221
  %v8224 = vsel %vm1916, %v8217, 0
  %v8227 = vsel %vm1916, %v8222, 0
  %8229 = vmatpush.bf16.xpose.msra.mxu0 0
  %8230 = vmatpush.bf16.xpose.msra.mxu0 0
  %8231 = vmatpush.bf16.xpose.msra.mxu0 0
  %8232 = vmatpush.bf16.xpose.msra.mxu0 0
  %8233 = vmatpush.bf16.xpose.msra.mxu0 0
  %8234 = vmatpush.bf16.xpose.msra.mxu0 0
  %8235 = vmatpush.bf16.xpose.msra.mxu0 0
  %8236 = vmatpush.bf16.xpose.msra.mxu0 %v8227
  %8237 = vmatmul.bf16.gmra.mxu0 %v8224
  %v8238 = vpop.f32.mrf.mxu0
  %v8239 = vadd.f32 0.0, %v8238
  %v8240 = vpop.f32.mrf.mxu0
  %8241 = vdwg.mxu0
  %v8243 = vunpack.c.l.b16 %v7014
  %v8244 = vpack.c.b16 %v8243, %v8243
  %8245 = vrot.lane.b32.xlu0 %v8244, 64
  %v8246 = vpop.permute.xlu0 %8245
  %v8248 = vunpack.c.l.b16 %v7030
  %v8249 = vpack.c.b16 %v8248, %v8248
  %8250 = vrot.lane.b32.xlu0 %v8249, 64
  %v8251 = vpop.permute.xlu0 %8250
  %v8253 = vsel %vm1916, %v8246, 0
  %v8256 = vsel %vm1916, %v8251, 0
  %8258 = vmatpush.bf16.xpose.msra.mxu0 0
  %8259 = vmatpush.bf16.xpose.msra.mxu0 0
  %8260 = vmatpush.bf16.xpose.msra.mxu0 0
  %8261 = vmatpush.bf16.xpose.msra.mxu0 0
  %8262 = vmatpush.bf16.xpose.msra.mxu0 0
  %8263 = vmatpush.bf16.xpose.msra.mxu0 0
  %8264 = vmatpush.bf16.xpose.msra.mxu0 0
  %8265 = vmatpush.bf16.xpose.msra.mxu0 %v8256
  %8266 = vmatmul.bf16.gmra.mxu0 %v8253
  %v8267 = vpop.f32.mrf.mxu0
  %v8268 = vadd.f32 0.0, %v8267
  %v8269 = vpop.f32.mrf.mxu0
  %8270 = vdwg.mxu0
  %v8272 = vunpack.c.l.b16 %v7015
  %v8273 = vpack.c.b16 %v8272, %v8272
  %8274 = vrot.lane.b32.xlu0 %v8273, 64
  %v8275 = vpop.permute.xlu0 %8274
  %v8277 = vunpack.c.l.b16 %v7031
  %v8278 = vpack.c.b16 %v8277, %v8277
  %8279 = vrot.lane.b32.xlu0 %v8278, 64
  %v8280 = vpop.permute.xlu0 %8279
  %v8282 = vsel %vm1916, %v8275, 0
  %v8285 = vsel %vm1916, %v8280, 0
  %8287 = vmatpush.bf16.xpose.msra.mxu0 0
  %8288 = vmatpush.bf16.xpose.msra.mxu0 0
  %8289 = vmatpush.bf16.xpose.msra.mxu0 0
  %8290 = vmatpush.bf16.xpose.msra.mxu0 0
  %8291 = vmatpush.bf16.xpose.msra.mxu0 0
  %8292 = vmatpush.bf16.xpose.msra.mxu0 0
  %8293 = vmatpush.bf16.xpose.msra.mxu0 0
  %8294 = vmatpush.bf16.xpose.msra.mxu0 %v8285
  %8295 = vmatmul.bf16.gmra.mxu0 %v8282
  %v8296 = vpop.f32.mrf.mxu0
  %v8297 = vadd.f32 0.0, %v8296
  %v8298 = vpop.f32.mrf.mxu0
  %8299 = vdwg.mxu0
  %v8301 = vunpack.c.l.b16 %v7016
  %v8302 = vpack.c.b16 %v8301, %v8301
  %8303 = vrot.lane.b32.xlu0 %v8302, 64
  %v8304 = vpop.permute.xlu0 %8303
  %v8306 = vunpack.c.l.b16 %v7032
  %v8307 = vpack.c.b16 %v8306, %v8306
  %8308 = vrot.lane.b32.xlu0 %v8307, 64
  %v8309 = vpop.permute.xlu0 %8308
  %v8311 = vsel %vm1916, %v8304, 0
  %v8314 = vsel %vm1916, %v8309, 0
  %8316 = vmatpush.bf16.xpose.msra.mxu0 0
  %8317 = vmatpush.bf16.xpose.msra.mxu0 0
  %8318 = vmatpush.bf16.xpose.msra.mxu0 0
  %8319 = vmatpush.bf16.xpose.msra.mxu0 0
  %8320 = vmatpush.bf16.xpose.msra.mxu0 0
  %8321 = vmatpush.bf16.xpose.msra.mxu0 0
  %8322 = vmatpush.bf16.xpose.msra.mxu0 0
  %8323 = vmatpush.bf16.xpose.msra.mxu0 %v8314
  %8324 = vmatmul.bf16.gmra.mxu0 %v8311
  %v8325 = vpop.f32.mrf.mxu0
  %v8326 = vadd.f32 0.0, %v8325
  %v8327 = vpop.f32.mrf.mxu0
  %8328 = vdwg.mxu0
  %v8330 = vunpack.c.l.b16 %v7017
  %v8331 = vpack.c.b16 %v8330, %v8330
  %8332 = vrot.lane.b32.xlu0 %v8331, 64
  %v8333 = vpop.permute.xlu0 %8332
  %v8335 = vunpack.c.l.b16 %v7033
  %v8336 = vpack.c.b16 %v8335, %v8335
  %8337 = vrot.lane.b32.xlu0 %v8336, 64
  %v8338 = vpop.permute.xlu0 %8337
  %v8340 = vsel %vm1916, %v8333, 0
  %v8343 = vsel %vm1916, %v8338, 0
  %8345 = vmatpush.bf16.xpose.msra.mxu0 0
  %8346 = vmatpush.bf16.xpose.msra.mxu0 0
  %8347 = vmatpush.bf16.xpose.msra.mxu0 0
  %8348 = vmatpush.bf16.xpose.msra.mxu0 0
  %8349 = vmatpush.bf16.xpose.msra.mxu0 0
  %8350 = vmatpush.bf16.xpose.msra.mxu0 0
  %8351 = vmatpush.bf16.xpose.msra.mxu0 0
  %8352 = vmatpush.bf16.xpose.msra.mxu0 %v8343
  %8353 = vmatmul.bf16.gmra.mxu0 %v8340
  %v8354 = vpop.f32.mrf.mxu0
  %v8355 = vadd.f32 0.0, %v8354
  %v8356 = vpop.f32.mrf.mxu0
  %8357 = vdwg.mxu0
  %v8359 = vunpack.c.l.b16 %v7018
  %v8360 = vpack.c.b16 %v8359, %v8359
  %8361 = vrot.lane.b32.xlu0 %v8360, 64
  %v8362 = vpop.permute.xlu0 %8361
  %v8364 = vunpack.c.l.b16 %v7034
  %v8365 = vpack.c.b16 %v8364, %v8364
  %8366 = vrot.lane.b32.xlu0 %v8365, 64
  %v8367 = vpop.permute.xlu0 %8366
  %v8369 = vsel %vm1916, %v8362, 0
  %v8372 = vsel %vm1916, %v8367, 0
  %8374 = vmatpush.bf16.xpose.msra.mxu0 0
  %8375 = vmatpush.bf16.xpose.msra.mxu0 0
  %8376 = vmatpush.bf16.xpose.msra.mxu0 0
  %8377 = vmatpush.bf16.xpose.msra.mxu0 0
  %8378 = vmatpush.bf16.xpose.msra.mxu0 0
  %8379 = vmatpush.bf16.xpose.msra.mxu0 0
  %8380 = vmatpush.bf16.xpose.msra.mxu0 0
  %8381 = vmatpush.bf16.xpose.msra.mxu0 %v8372
  %8382 = vmatmul.bf16.gmra.mxu0 %v8369
  %v8383 = vpop.f32.mrf.mxu0
  %v8384 = vadd.f32 0.0, %v8383
  %v8385 = vpop.f32.mrf.mxu0
  %8386 = vdwg.mxu0
  %v8388 = vunpack.c.l.b16 %v7019
  %v8389 = vpack.c.b16 %v8388, %v8388
  %8390 = vrot.lane.b32.xlu0 %v8389, 64
  %v8391 = vpop.permute.xlu0 %8390
  %v8393 = vunpack.c.l.b16 %v7035
  %v8394 = vpack.c.b16 %v8393, %v8393
  %8395 = vrot.lane.b32.xlu0 %v8394, 64
  %v8396 = vpop.permute.xlu0 %8395
  %v8398 = vsel %vm1916, %v8391, 0
  %v8401 = vsel %vm1916, %v8396, 0
  %8403 = vmatpush.bf16.xpose.msra.mxu0 0
  %8404 = vmatpush.bf16.xpose.msra.mxu0 0
  %8405 = vmatpush.bf16.xpose.msra.mxu0 0
  %8406 = vmatpush.bf16.xpose.msra.mxu0 0
  %8407 = vmatpush.bf16.xpose.msra.mxu0 0
  %8408 = vmatpush.bf16.xpose.msra.mxu0 0
  %8409 = vmatpush.bf16.xpose.msra.mxu0 0
  %8410 = vmatpush.bf16.xpose.msra.mxu0 %v8401
  %8411 = vmatmul.bf16.gmra.mxu0 %v8398
  %v8412 = vpop.f32.mrf.mxu0
  %v8413 = vadd.f32 0.0, %v8412
  %v8414 = vpop.f32.mrf.mxu0
  %8415 = vdwg.mxu0
  %v8417 = vunpack.c.l.b16 %v7020
  %v8418 = vpack.c.b16 %v8417, %v8417
  %8419 = vrot.lane.b32.xlu0 %v8418, 64
  %v8420 = vpop.permute.xlu0 %8419
  %v8422 = vunpack.c.l.b16 %v7036
  %v8423 = vpack.c.b16 %v8422, %v8422
  %8424 = vrot.lane.b32.xlu0 %v8423, 64
  %v8425 = vpop.permute.xlu0 %8424
  %v8427 = vsel %vm1916, %v8420, 0
  %v8430 = vsel %vm1916, %v8425, 0
  %8432 = vmatpush.bf16.xpose.msra.mxu0 0
  %8433 = vmatpush.bf16.xpose.msra.mxu0 0
  %8434 = vmatpush.bf16.xpose.msra.mxu0 0
  %8435 = vmatpush.bf16.xpose.msra.mxu0 0
  %8436 = vmatpush.bf16.xpose.msra.mxu0 0
  %8437 = vmatpush.bf16.xpose.msra.mxu0 0
  %8438 = vmatpush.bf16.xpose.msra.mxu0 0
  %8439 = vmatpush.bf16.xpose.msra.mxu0 %v8430
  %8440 = vmatmul.bf16.gmra.mxu0 %v8427
  %v8441 = vpop.f32.mrf.mxu0
  %v8442 = vadd.f32 0.0, %v8441
  %v8443 = vpop.f32.mrf.mxu0
  %8444 = vdwg.mxu0
  %v8446 = vunpack.c.l.b16 %v7021
  %v8447 = vpack.c.b16 %v8446, %v8446
  %8448 = vrot.lane.b32.xlu0 %v8447, 64
  %v8449 = vpop.permute.xlu0 %8448
  %v8451 = vunpack.c.l.b16 %v7037
  %v8452 = vpack.c.b16 %v8451, %v8451
  %8453 = vrot.lane.b32.xlu0 %v8452, 64
  %v8454 = vpop.permute.xlu0 %8453
  %v8456 = vsel %vm1916, %v8449, 0
  %v8459 = vsel %vm1916, %v8454, 0
  %8461 = vmatpush.bf16.xpose.msra.mxu0 0
  %8462 = vmatpush.bf16.xpose.msra.mxu0 0
  %8463 = vmatpush.bf16.xpose.msra.mxu0 0
  %8464 = vmatpush.bf16.xpose.msra.mxu0 0
  %8465 = vmatpush.bf16.xpose.msra.mxu0 0
  %8466 = vmatpush.bf16.xpose.msra.mxu0 0
  %8467 = vmatpush.bf16.xpose.msra.mxu0 0
  %8468 = vmatpush.bf16.xpose.msra.mxu0 %v8459
  %8469 = vmatmul.bf16.gmra.mxu0 %v8456
  %v8470 = vpop.f32.mrf.mxu0
  %v8471 = vadd.f32 0.0, %v8470
  %v8472 = vpop.f32.mrf.mxu0
  %8473 = vdwg.mxu0
  %v8475 = vunpack.c.l.b16 %v7022
  %v8476 = vpack.c.b16 %v8475, %v8475
  %8477 = vrot.lane.b32.xlu0 %v8476, 64
  %v8478 = vpop.permute.xlu0 %8477
  %v8480 = vunpack.c.l.b16 %v7038
  %v8481 = vpack.c.b16 %v8480, %v8480
  %8482 = vrot.lane.b32.xlu0 %v8481, 64
  %v8483 = vpop.permute.xlu0 %8482
  %v8485 = vsel %vm1916, %v8478, 0
  %v8488 = vsel %vm1916, %v8483, 0
  %8490 = vmatpush.bf16.xpose.msra.mxu0 0
  %8491 = vmatpush.bf16.xpose.msra.mxu0 0
  %8492 = vmatpush.bf16.xpose.msra.mxu0 0
  %8493 = vmatpush.bf16.xpose.msra.mxu0 0
  %8494 = vmatpush.bf16.xpose.msra.mxu0 0
  %8495 = vmatpush.bf16.xpose.msra.mxu0 0
  %8496 = vmatpush.bf16.xpose.msra.mxu0 0
  %8497 = vmatpush.bf16.xpose.msra.mxu0 %v8488
  %8498 = vmatmul.bf16.gmra.mxu0 %v8485
  %v8499 = vpop.f32.mrf.mxu0
  %v8500 = vadd.f32 0.0, %v8499
  %v8501 = vpop.f32.mrf.mxu0
  %8502 = vdwg.mxu0
  %v8504 = vunpack.c.l.b16 %v7023
  %v8505 = vpack.c.b16 %v8504, %v8504
  %8506 = vrot.lane.b32.xlu0 %v8505, 64
  %v8507 = vpop.permute.xlu0 %8506
  %v8509 = vunpack.c.l.b16 %v7039
  %v8510 = vpack.c.b16 %v8509, %v8509
  %8511 = vrot.lane.b32.xlu0 %v8510, 64
  %v8512 = vpop.permute.xlu0 %8511
  %v8514 = vsel %vm1916, %v8507, 0
  %v8517 = vsel %vm1916, %v8512, 0
  %8519 = vmatpush.bf16.xpose.msra.mxu0 0
  %8520 = vmatpush.bf16.xpose.msra.mxu0 0
  %8521 = vmatpush.bf16.xpose.msra.mxu0 0
  %8522 = vmatpush.bf16.xpose.msra.mxu0 0
  %8523 = vmatpush.bf16.xpose.msra.mxu0 0
  %8524 = vmatpush.bf16.xpose.msra.mxu0 0
  %8525 = vmatpush.bf16.xpose.msra.mxu0 0
  %8526 = vmatpush.bf16.xpose.msra.mxu0 %v8517
  %8527 = vmatmul.bf16.gmra.mxu0 %v8514
  %v8528 = vpop.f32.mrf.mxu0
  %v8529 = vadd.f32 0.0, %v8528
  %v8530 = vpop.f32.mrf.mxu0
  %8531 = vdwg.mxu0
  %v8533 = vunpack.c.l.b16 %v7024
  %v8534 = vpack.c.b16 %v8533, %v8533
  %8535 = vrot.lane.b32.xlu0 %v8534, 64
  %v8536 = vpop.permute.xlu0 %8535
  %v8538 = vunpack.c.l.b16 %v7040
  %v8539 = vpack.c.b16 %v8538, %v8538
  %8540 = vrot.lane.b32.xlu0 %v8539, 64
  %v8541 = vpop.permute.xlu0 %8540
  %v8543 = vsel %vm1916, %v8536, 0
  %v8546 = vsel %vm1916, %v8541, 0
  %8548 = vmatpush.bf16.xpose.msra.mxu0 0
  %8549 = vmatpush.bf16.xpose.msra.mxu0 0
  %8550 = vmatpush.bf16.xpose.msra.mxu0 0
  %8551 = vmatpush.bf16.xpose.msra.mxu0 0
  %8552 = vmatpush.bf16.xpose.msra.mxu0 0
  %8553 = vmatpush.bf16.xpose.msra.mxu0 0
  %8554 = vmatpush.bf16.xpose.msra.mxu0 0
  %8555 = vmatpush.bf16.xpose.msra.mxu0 %v8546
  %8556 = vmatmul.bf16.gmra.mxu0 %v8543
  %v8557 = vpop.f32.mrf.mxu0
  %v8558 = vadd.f32 0.0, %v8557
  %v8559 = vpop.f32.mrf.mxu0
  %8560 = vdwg.mxu0
  %v8561 = vmul.f32 %v8123, 0.125
  %v8562 = vmul.f32 %v8152, 0.125
  %v8563 = vmul.f32 %v8181, 0.125
  %v8564 = vmul.f32 %v8210, 0.125
  %v8565 = vmul.f32 %v8239, 0.125
  %v8566 = vmul.f32 %v8268, 0.125
  %v8567 = vmul.f32 %v8297, 0.125
  %v8568 = vmul.f32 %v8326, 0.125
  %v8569 = vmul.f32 %v8355, 0.125
  %v8570 = vmul.f32 %v8384, 0.125
  %v8571 = vmul.f32 %v8413, 0.125
  %v8572 = vmul.f32 %v8442, 0.125
  %v8573 = vmul.f32 %v8471, 0.125
  %v8574 = vmul.f32 %v8500, 0.125
  %v8575 = vmul.f32 %v8529, 0.125
  %v8576 = vmul.f32 %v8558, 0.125
  %v8577 = vadd.f32 %v8561, %v1177
  %v8578 = vadd.f32 %v8562, %v1177
  %v8579 = vadd.f32 %v8563, %v1177
  %v8580 = vadd.f32 %v8564, %v1177
  %v8581 = vadd.f32 %v8565, %v1177
  %v8582 = vadd.f32 %v8566, %v1177
  %v8583 = vadd.f32 %v8567, %v1177
  %v8584 = vadd.f32 %v8568, %v1177
  %v8585 = vadd.f32 %v8569, %v1177
  %v8586 = vadd.f32 %v8570, %v1177
  %v8587 = vadd.f32 %v8571, %v1177
  %v8588 = vadd.f32 %v8572, %v1177
  %v8589 = vadd.f32 %v8573, %v1177
  %v8590 = vadd.f32 %v8574, %v1177
  %v8591 = vadd.f32 %v8575, %v1177
  %v8592 = vadd.f32 %v8576, %v1177
  %v8593 = vsel %vm2253, %v8577, -inf
  %8594 = vmax.xlane.f32.xlu0 %v8593
  %v8595 = vpop.xlane.xlu0 %8594
  %v8596 = vsel %vm2253, %v8578, -inf
  %8597 = vmax.xlane.f32.xlu0 %v8596
  %v8598 = vpop.xlane.xlu0 %8597
  %v8599 = vsel %vm2253, %v8579, -inf
  %8600 = vmax.xlane.f32.xlu0 %v8599
  %v8601 = vpop.xlane.xlu0 %8600
  %v8602 = vsel %vm2253, %v8580, -inf
  %8603 = vmax.xlane.f32.xlu0 %v8602
  %v8604 = vpop.xlane.xlu0 %8603
  %v8605 = vsel %vm2253, %v8581, -inf
  %8606 = vmax.xlane.f32.xlu0 %v8605
  %v8607 = vpop.xlane.xlu0 %8606
  %v8608 = vsel %vm2253, %v8582, -inf
  %8609 = vmax.xlane.f32.xlu0 %v8608
  %v8610 = vpop.xlane.xlu0 %8609
  %v8611 = vsel %vm2253, %v8583, -inf
  %8612 = vmax.xlane.f32.xlu0 %v8611
  %v8613 = vpop.xlane.xlu0 %8612
  %v8614 = vsel %vm2253, %v8584, -inf
  %8615 = vmax.xlane.f32.xlu0 %v8614
  %v8616 = vpop.xlane.xlu0 %8615
  %v8617 = vsel %vm2253, %v8585, -inf
  %8618 = vmax.xlane.f32.xlu0 %v8617
  %v8619 = vpop.xlane.xlu0 %8618
  %v8620 = vsel %vm2253, %v8586, -inf
  %8621 = vmax.xlane.f32.xlu0 %v8620
  %v8622 = vpop.xlane.xlu0 %8621
  %v8623 = vsel %vm2253, %v8587, -inf
  %8624 = vmax.xlane.f32.xlu0 %v8623
  %v8625 = vpop.xlane.xlu0 %8624
  %v8626 = vsel %vm2253, %v8588, -inf
  %8627 = vmax.xlane.f32.xlu0 %v8626
  %v8628 = vpop.xlane.xlu0 %8627
  %v8629 = vsel %vm2253, %v8589, -inf
  %8630 = vmax.xlane.f32.xlu0 %v8629
  %v8631 = vpop.xlane.xlu0 %8630
  %v8632 = vsel %vm2253, %v8590, -inf
  %8633 = vmax.xlane.f32.xlu0 %v8632
  %v8634 = vpop.xlane.xlu0 %8633
  %v8635 = vsel %vm2253, %v8591, -inf
  %8636 = vmax.xlane.f32.xlu0 %v8635
  %v8637 = vpop.xlane.xlu0 %8636
  %v8638 = vsel %vm2253, %v8592, -inf
  %8639 = vmax.xlane.f32.xlu0 %v8638
  %v8640 = vpop.xlane.xlu0 %8639
  %v8641 = vsub.f32 %v8577, %v8595
  %v8642 = vsub.f32 %v8578, %v8598
  %v8643 = vsub.f32 %v8579, %v8601
  %v8644 = vsub.f32 %v8580, %v8604
  %v8645 = vsub.f32 %v8581, %v8607
  %v8646 = vsub.f32 %v8582, %v8610
  %v8647 = vsub.f32 %v8583, %v8613
  %v8648 = vsub.f32 %v8584, %v8616
  %v8649 = vsub.f32 %v8585, %v8619
  %v8650 = vsub.f32 %v8586, %v8622
  %v8651 = vsub.f32 %v8587, %v8625
  %v8652 = vsub.f32 %v8588, %v8628
  %v8653 = vsub.f32 %v8589, %v8631
  %v8654 = vsub.f32 %v8590, %v8634
  %v8655 = vsub.f32 %v8591, %v8637
  %v8656 = vsub.f32 %v8592, %v8640
  %v8657 = vmul.f32 %v8641, 1.442695
  %v8658 = vpow.pop %v8657
  %v8659 = vmul.f32 %v8642, 1.442695
  %v8660 = vpow.pop %v8659
  %v8661 = vmul.f32 %v8643, 1.442695
  %v8662 = vpow.pop %v8661
  %v8663 = vmul.f32 %v8644, 1.442695
  %v8664 = vpow.pop %v8663
  %v8665 = vmul.f32 %v8645, 1.442695
  %v8666 = vpow.pop %v8665
  %v8667 = vmul.f32 %v8646, 1.442695
  %v8668 = vpow.pop %v8667
  %v8669 = vmul.f32 %v8647, 1.442695
  %v8670 = vpow.pop %v8669
  %v8671 = vmul.f32 %v8648, 1.442695
  %v8672 = vpow.pop %v8671
  %v8673 = vmul.f32 %v8649, 1.442695
  %v8674 = vpow.pop %v8673
  %v8675 = vmul.f32 %v8650, 1.442695
  %v8676 = vpow.pop %v8675
  %v8677 = vmul.f32 %v8651, 1.442695
  %v8678 = vpow.pop %v8677
  %v8679 = vmul.f32 %v8652, 1.442695
  %v8680 = vpow.pop %v8679
  %v8681 = vmul.f32 %v8653, 1.442695
  %v8682 = vpow.pop %v8681
  %v8683 = vmul.f32 %v8654, 1.442695
  %v8684 = vpow.pop %v8683
  %v8685 = vmul.f32 %v8655, 1.442695
  %v8686 = vpow.pop %v8685
  %v8687 = vmul.f32 %v8656, 1.442695
  %v8688 = vpow.pop %v8687
  %v8689 = vsel %vm2253, %v8658, 0.0
  %8690 = vadd.xlane.f32.xlu0 %v8689
  %v8691 = vpop.xlane.xlu0 %8690
  %v8692 = vsel %vm2253, %v8660, 0.0
  %8693 = vadd.xlane.f32.xlu0 %v8692
  %v8694 = vpop.xlane.xlu0 %8693
  %v8695 = vsel %vm2253, %v8662, 0.0
  %8696 = vadd.xlane.f32.xlu0 %v8695
  %v8697 = vpop.xlane.xlu0 %8696
  %v8698 = vsel %vm2253, %v8664, 0.0
  %8699 = vadd.xlane.f32.xlu0 %v8698
  %v8700 = vpop.xlane.xlu0 %8699
  %v8701 = vsel %vm2253, %v8666, 0.0
  %8702 = vadd.xlane.f32.xlu0 %v8701
  %v8703 = vpop.xlane.xlu0 %8702
  %v8704 = vsel %vm2253, %v8668, 0.0
  %8705 = vadd.xlane.f32.xlu0 %v8704
  %v8706 = vpop.xlane.xlu0 %8705
  %v8707 = vsel %vm2253, %v8670, 0.0
  %8708 = vadd.xlane.f32.xlu0 %v8707
  %v8709 = vpop.xlane.xlu0 %8708
  %v8710 = vsel %vm2253, %v8672, 0.0
  %8711 = vadd.xlane.f32.xlu0 %v8710
  %v8712 = vpop.xlane.xlu0 %8711
  %v8713 = vsel %vm2253, %v8674, 0.0
  %8714 = vadd.xlane.f32.xlu0 %v8713
  %v8715 = vpop.xlane.xlu0 %8714
  %v8716 = vsel %vm2253, %v8676, 0.0
  %8717 = vadd.xlane.f32.xlu0 %v8716
  %v8718 = vpop.xlane.xlu0 %8717
  %v8719 = vsel %vm2253, %v8678, 0.0
  %8720 = vadd.xlane.f32.xlu0 %v8719
  %v8721 = vpop.xlane.xlu0 %8720
  %v8722 = vsel %vm2253, %v8680, 0.0
  %8723 = vadd.xlane.f32.xlu0 %v8722
  %v8724 = vpop.xlane.xlu0 %8723
  %v8725 = vsel %vm2253, %v8682, 0.0
  %8726 = vadd.xlane.f32.xlu0 %v8725
  %v8727 = vpop.xlane.xlu0 %8726
  %v8728 = vsel %vm2253, %v8684, 0.0
  %8729 = vadd.xlane.f32.xlu0 %v8728
  %v8730 = vpop.xlane.xlu0 %8729
  %v8731 = vsel %vm2253, %v8686, 0.0
  %8732 = vadd.xlane.f32.xlu0 %v8731
  %v8733 = vpop.xlane.xlu0 %8732
  %v8734 = vsel %vm2253, %v8688, 0.0
  %8735 = vadd.xlane.f32.xlu0 %v8734
  %v8736 = vpop.xlane.xlu0 %8735
  %v8737 = vrcp.pop %v8691
  %v8738 = vmul.f32 %v8691, %v8737
  %v8739 = vsub.f32 1.0, %v8738
  %v8740 = vmul.f32 %v8737, %v8739
  %v8741 = vadd.f32 %v8737, %v8740
  %vm8742 = vweird.f32 %v8691
  %vm8743 = vweird.f32 %v8737
  %vm8744 = vmor %vm8742, %vm8743
  %v8745 = vsel %vm8744, %v8737, %v8741
  %v8746 = vand.u32 2147483647, %v8691
  %vm8747 = vcmp.eq.f32.partialorder %v8746, 8.507059e+37
  %v8748 = vand.u32 %v8691, 2147483648
  %v8749 = vor.u32 1.1754944e-38, %v8748
  %v8750 = vsel %vm8747, %v8749, %v8745
  %v8751 = vrcp.pop %v8694
  %v8752 = vmul.f32 %v8694, %v8751
  %v8753 = vsub.f32 1.0, %v8752
  %v8754 = vmul.f32 %v8751, %v8753
  %v8755 = vadd.f32 %v8751, %v8754
  %vm8756 = vweird.f32 %v8694
  %vm8757 = vweird.f32 %v8751
  %vm8758 = vmor %vm8756, %vm8757
  %v8759 = vsel %vm8758, %v8751, %v8755
  %v8760 = vand.u32 2147483647, %v8694
  %vm8761 = vcmp.eq.f32.partialorder %v8760, 8.507059e+37
  %v8762 = vand.u32 %v8694, 2147483648
  %v8763 = vor.u32 1.1754944e-38, %v8762
  %v8764 = vsel %vm8761, %v8763, %v8759
  %v8765 = vrcp.pop %v8697
  %v8766 = vmul.f32 %v8697, %v8765
  %v8767 = vsub.f32 1.0, %v8766
  %v8768 = vmul.f32 %v8765, %v8767
  %v8769 = vadd.f32 %v8765, %v8768
  %vm8770 = vweird.f32 %v8697
  %vm8771 = vweird.f32 %v8765
  %vm8772 = vmor %vm8770, %vm8771
  %v8773 = vsel %vm8772, %v8765, %v8769
  %v8774 = vand.u32 2147483647, %v8697
  %vm8775 = vcmp.eq.f32.partialorder %v8774, 8.507059e+37
  %v8776 = vand.u32 %v8697, 2147483648
  %v8777 = vor.u32 1.1754944e-38, %v8776
  %v8778 = vsel %vm8775, %v8777, %v8773
  %v8779 = vrcp.pop %v8700
  %v8780 = vmul.f32 %v8700, %v8779
  %v8781 = vsub.f32 1.0, %v8780
  %v8782 = vmul.f32 %v8779, %v8781
  %v8783 = vadd.f32 %v8779, %v8782
  %vm8784 = vweird.f32 %v8700
  %vm8785 = vweird.f32 %v8779
  %vm8786 = vmor %vm8784, %vm8785
  %v8787 = vsel %vm8786, %v8779, %v8783
  %v8788 = vand.u32 2147483647, %v8700
  %vm8789 = vcmp.eq.f32.partialorder %v8788, 8.507059e+37
  %v8790 = vand.u32 %v8700, 2147483648
  %v8791 = vor.u32 1.1754944e-38, %v8790
  %v8792 = vsel %vm8789, %v8791, %v8787
  %v8793 = vrcp.pop %v8703
  %v8794 = vmul.f32 %v8703, %v8793
  %v8795 = vsub.f32 1.0, %v8794
  %v8796 = vmul.f32 %v8793, %v8795
  %v8797 = vadd.f32 %v8793, %v8796
  %vm8798 = vweird.f32 %v8703
  %vm8799 = vweird.f32 %v8793
  %vm8800 = vmor %vm8798, %vm8799
  %v8801 = vsel %vm8800, %v8793, %v8797
  %v8802 = vand.u32 2147483647, %v8703
  %vm8803 = vcmp.eq.f32.partialorder %v8802, 8.507059e+37
  %v8804 = vand.u32 %v8703, 2147483648
  %v8805 = vor.u32 1.1754944e-38, %v8804
  %v8806 = vsel %vm8803, %v8805, %v8801
  %v8807 = vrcp.pop %v8706
  %v8808 = vmul.f32 %v8706, %v8807
  %v8809 = vsub.f32 1.0, %v8808
  %v8810 = vmul.f32 %v8807, %v8809
  %v8811 = vadd.f32 %v8807, %v8810
  %vm8812 = vweird.f32 %v8706
  %vm8813 = vweird.f32 %v8807
  %vm8814 = vmor %vm8812, %vm8813
  %v8815 = vsel %vm8814, %v8807, %v8811
  %v8816 = vand.u32 2147483647, %v8706
  %vm8817 = vcmp.eq.f32.partialorder %v8816, 8.507059e+37
  %v8818 = vand.u32 %v8706, 2147483648
  %v8819 = vor.u32 1.1754944e-38, %v8818
  %v8820 = vsel %vm8817, %v8819, %v8815
  %v8821 = vrcp.pop %v8709
  %v8822 = vmul.f32 %v8709, %v8821
  %v8823 = vsub.f32 1.0, %v8822
  %v8824 = vmul.f32 %v8821, %v8823
  %v8825 = vadd.f32 %v8821, %v8824
  %vm8826 = vweird.f32 %v8709
  %vm8827 = vweird.f32 %v8821
  %vm8828 = vmor %vm8826, %vm8827
  %v8829 = vsel %vm8828, %v8821, %v8825
  %v8830 = vand.u32 2147483647, %v8709
  %vm8831 = vcmp.eq.f32.partialorder %v8830, 8.507059e+37
  %v8832 = vand.u32 %v8709, 2147483648
  %v8833 = vor.u32 1.1754944e-38, %v8832
  %v8834 = vsel %vm8831, %v8833, %v8829
  %v8835 = vrcp.pop %v8712
  %v8836 = vmul.f32 %v8712, %v8835
  %v8837 = vsub.f32 1.0, %v8836
  %v8838 = vmul.f32 %v8835, %v8837
  %v8839 = vadd.f32 %v8835, %v8838
  %vm8840 = vweird.f32 %v8712
  %vm8841 = vweird.f32 %v8835
  %vm8842 = vmor %vm8840, %vm8841
  %v8843 = vsel %vm8842, %v8835, %v8839
  %v8844 = vand.u32 2147483647, %v8712
  %vm8845 = vcmp.eq.f32.partialorder %v8844, 8.507059e+37
  %v8846 = vand.u32 %v8712, 2147483648
  %v8847 = vor.u32 1.1754944e-38, %v8846
  %v8848 = vsel %vm8845, %v8847, %v8843
  %v8849 = vrcp.pop %v8715
  %v8850 = vmul.f32 %v8715, %v8849
  %v8851 = vsub.f32 1.0, %v8850
  %v8852 = vmul.f32 %v8849, %v8851
  %v8853 = vadd.f32 %v8849, %v8852
  %vm8854 = vweird.f32 %v8715
  %vm8855 = vweird.f32 %v8849
  %vm8856 = vmor %vm8854, %vm8855
  %v8857 = vsel %vm8856, %v8849, %v8853
  %v8858 = vand.u32 2147483647, %v8715
  %vm8859 = vcmp.eq.f32.partialorder %v8858, 8.507059e+37
  %v8860 = vand.u32 %v8715, 2147483648
  %v8861 = vor.u32 1.1754944e-38, %v8860
  %v8862 = vsel %vm8859, %v8861, %v8857
  %v8863 = vrcp.pop %v8718
  %v8864 = vmul.f32 %v8718, %v8863
  %v8865 = vsub.f32 1.0, %v8864
  %v8866 = vmul.f32 %v8863, %v8865
  %v8867 = vadd.f32 %v8863, %v8866
  %vm8868 = vweird.f32 %v8718
  %vm8869 = vweird.f32 %v8863
  %vm8870 = vmor %vm8868, %vm8869
  %v8871 = vsel %vm8870, %v8863, %v8867
  %v8872 = vand.u32 2147483647, %v8718
  %vm8873 = vcmp.eq.f32.partialorder %v8872, 8.507059e+37
  %v8874 = vand.u32 %v8718, 2147483648
  %v8875 = vor.u32 1.1754944e-38, %v8874
  %v8876 = vsel %vm8873, %v8875, %v8871
  %v8877 = vrcp.pop %v8721
  %v8878 = vmul.f32 %v8721, %v8877
  %v8879 = vsub.f32 1.0, %v8878
  %v8880 = vmul.f32 %v8877, %v8879
  %v8881 = vadd.f32 %v8877, %v8880
  %vm8882 = vweird.f32 %v8721
  %vm8883 = vweird.f32 %v8877
  %vm8884 = vmor %vm8882, %vm8883
  %v8885 = vsel %vm8884, %v8877, %v8881
  %v8886 = vand.u32 2147483647, %v8721
  %vm8887 = vcmp.eq.f32.partialorder %v8886, 8.507059e+37
  %v8888 = vand.u32 %v8721, 2147483648
  %v8889 = vor.u32 1.1754944e-38, %v8888
  %v8890 = vsel %vm8887, %v8889, %v8885
  %v8891 = vrcp.pop %v8724
  %v8892 = vmul.f32 %v8724, %v8891
  %v8893 = vsub.f32 1.0, %v8892
  %v8894 = vmul.f32 %v8891, %v8893
  %v8895 = vadd.f32 %v8891, %v8894
  %vm8896 = vweird.f32 %v8724
  %vm8897 = vweird.f32 %v8891
  %vm8898 = vmor %vm8896, %vm8897
  %v8899 = vsel %vm8898, %v8891, %v8895
  %v8900 = vand.u32 2147483647, %v8724
  %vm8901 = vcmp.eq.f32.partialorder %v8900, 8.507059e+37
  %v8902 = vand.u32 %v8724, 2147483648
  %v8903 = vor.u32 1.1754944e-38, %v8902
  %v8904 = vsel %vm8901, %v8903, %v8899
  %v8905 = vrcp.pop %v8727
  %v8906 = vmul.f32 %v8727, %v8905
  %v8907 = vsub.f32 1.0, %v8906
  %v8908 = vmul.f32 %v8905, %v8907
  %v8909 = vadd.f32 %v8905, %v8908
  %vm8910 = vweird.f32 %v8727
  %vm8911 = vweird.f32 %v8905
  %vm8912 = vmor %vm8910, %vm8911
  %v8913 = vsel %vm8912, %v8905, %v8909
  %v8914 = vand.u32 2147483647, %v8727
  %vm8915 = vcmp.eq.f32.partialorder %v8914, 8.507059e+37
  %v8916 = vand.u32 %v8727, 2147483648
  %v8917 = vor.u32 1.1754944e-38, %v8916
  %v8918 = vsel %vm8915, %v8917, %v8913
  %v8919 = vrcp.pop %v8730
  %v8920 = vmul.f32 %v8730, %v8919
  %v8921 = vsub.f32 1.0, %v8920
  %v8922 = vmul.f32 %v8919, %v8921
  %v8923 = vadd.f32 %v8919, %v8922
  %vm8924 = vweird.f32 %v8730
  %vm8925 = vweird.f32 %v8919
  %vm8926 = vmor %vm8924, %vm8925
  %v8927 = vsel %vm8926, %v8919, %v8923
  %v8928 = vand.u32 2147483647, %v8730
  %vm8929 = vcmp.eq.f32.partialorder %v8928, 8.507059e+37
  %v8930 = vand.u32 %v8730, 2147483648
  %v8931 = vor.u32 1.1754944e-38, %v8930
  %v8932 = vsel %vm8929, %v8931, %v8927
  %v8933 = vrcp.pop %v8733
  %v8934 = vmul.f32 %v8733, %v8933
  %v8935 = vsub.f32 1.0, %v8934
  %v8936 = vmul.f32 %v8933, %v8935
  %v8937 = vadd.f32 %v8933, %v8936
  %vm8938 = vweird.f32 %v8733
  %vm8939 = vweird.f32 %v8933
  %vm8940 = vmor %vm8938, %vm8939
  %v8941 = vsel %vm8940, %v8933, %v8937
  %v8942 = vand.u32 2147483647, %v8733
  %vm8943 = vcmp.eq.f32.partialorder %v8942, 8.507059e+37
  %v8944 = vand.u32 %v8733, 2147483648
  %v8945 = vor.u32 1.1754944e-38, %v8944
  %v8946 = vsel %vm8943, %v8945, %v8941
  %v8947 = vrcp.pop %v8736
  %v8948 = vmul.f32 %v8736, %v8947
  %v8949 = vsub.f32 1.0, %v8948
  %v8950 = vmul.f32 %v8947, %v8949
  %v8951 = vadd.f32 %v8947, %v8950
  %vm8952 = vweird.f32 %v8736
  %vm8953 = vweird.f32 %v8947
  %vm8954 = vmor %vm8952, %vm8953
  %v8955 = vsel %vm8954, %v8947, %v8951
  %v8956 = vand.u32 2147483647, %v8736
  %vm8957 = vcmp.eq.f32.partialorder %v8956, 8.507059e+37
  %v8958 = vand.u32 %v8736, 2147483648
  %v8959 = vor.u32 1.1754944e-38, %v8958
  %v8960 = vsel %vm8957, %v8959, %v8955
  %v8961 = vmul.f32 %v8658, %v8750
  %v8962 = vmul.f32 %v8660, %v8764
  %v8963 = vmul.f32 %v8662, %v8778
  %v8964 = vmul.f32 %v8664, %v8792
  %v8965 = vmul.f32 %v8666, %v8806
  %v8966 = vmul.f32 %v8668, %v8820
  %v8967 = vmul.f32 %v8670, %v8834
  %v8968 = vmul.f32 %v8672, %v8848
  %v8969 = vmul.f32 %v8674, %v8862
  %v8970 = vmul.f32 %v8676, %v8876
  %v8971 = vmul.f32 %v8678, %v8890
  %v8972 = vmul.f32 %v8680, %v8904
  %v8973 = vmul.f32 %v8682, %v8918
  %v8974 = vmul.f32 %v8684, %v8932
  %v8975 = vmul.f32 %v8686, %v8946
  %v8976 = vmul.f32 %v8688, %v8960
  %v8977 = vpack.c.bf16 %v8961, %v8961
  %v8978 = vpack.c.bf16 %v8962, %v8962
  %v8979 = vpack.c.bf16 %v8963, %v8963
  %v8980 = vpack.c.bf16 %v8964, %v8964
  %v8981 = vpack.c.bf16 %v8965, %v8965
  %v8982 = vpack.c.bf16 %v8966, %v8966
  %v8983 = vpack.c.bf16 %v8967, %v8967
  %v8984 = vpack.c.bf16 %v8968, %v8968
  %v8985 = vpack.c.bf16 %v8969, %v8969
  %v8986 = vpack.c.bf16 %v8970, %v8970
  %v8987 = vpack.c.bf16 %v8971, %v8971
  %v8988 = vpack.c.bf16 %v8972, %v8972
  %v8989 = vpack.c.bf16 %v8973, %v8973
  %v8990 = vpack.c.bf16 %v8974, %v8974
  %v8991 = vpack.c.bf16 %v8975, %v8975
  %v8992 = vpack.c.bf16 %v8976, %v8976
  %v8994 = vunpack.c.l.b16 %v7041
  %v8995 = vpack.c.b16 %v8994, %v8994
  %8996 = vrot.lane.b32.xlu0 %v8995, 64
  %v8997 = vpop.permute.xlu0 %8996
  %v8999 = vsel %vm2253, %v8977, 0
  %v9002 = vsel %vm2657, %v8997, 0
  %9004 = vmatpush.bf16.msra.mxu0 0
  %9005 = vmatpush.bf16.msra.mxu0 0
  %9006 = vmatpush.bf16.msra.mxu0 0
  %9007 = vmatpush.bf16.msra.mxu0 0
  %9008 = vmatpush.bf16.msra.mxu0 0
  %9009 = vmatpush.bf16.msra.mxu0 0
  %9010 = vmatpush.bf16.msra.mxu0 0
  %9011 = vmatpush.bf16.msra.mxu0 %v9002
  %9012 = vmatmul.bf16.gmra.mxu0 %v8999
  %v9013 = vpop.f32.mrf.mxu0
  %v9014 = vadd.f32 0.0, %v9013
  %v9015 = vpop.f32.mrf.mxu0
  %9016 = vdwg.mxu0
  %v9018 = vunpack.c.l.b16 %v7042
  %v9019 = vpack.c.b16 %v9018, %v9018
  %9020 = vrot.lane.b32.xlu0 %v9019, 64
  %v9021 = vpop.permute.xlu0 %9020
  %v9023 = vsel %vm2253, %v8978, 0
  %v9026 = vsel %vm2657, %v9021, 0
  %9028 = vmatpush.bf16.msra.mxu0 0
  %9029 = vmatpush.bf16.msra.mxu0 0
  %9030 = vmatpush.bf16.msra.mxu0 0
  %9031 = vmatpush.bf16.msra.mxu0 0
  %9032 = vmatpush.bf16.msra.mxu0 0
  %9033 = vmatpush.bf16.msra.mxu0 0
  %9034 = vmatpush.bf16.msra.mxu0 0
  %9035 = vmatpush.bf16.msra.mxu0 %v9026
  %9036 = vmatmul.bf16.gmra.mxu0 %v9023
  %v9037 = vpop.f32.mrf.mxu0
  %v9038 = vadd.f32 0.0, %v9037
  %v9039 = vpop.f32.mrf.mxu0
  %9040 = vdwg.mxu0
  %v9042 = vunpack.c.l.b16 %v7043
  %v9043 = vpack.c.b16 %v9042, %v9042
  %9044 = vrot.lane.b32.xlu0 %v9043, 64
  %v9045 = vpop.permute.xlu0 %9044
  %v9047 = vsel %vm2253, %v8979, 0
  %v9050 = vsel %vm2657, %v9045, 0
  %9052 = vmatpush.bf16.msra.mxu0 0
  %9053 = vmatpush.bf16.msra.mxu0 0
  %9054 = vmatpush.bf16.msra.mxu0 0
  %9055 = vmatpush.bf16.msra.mxu0 0
  %9056 = vmatpush.bf16.msra.mxu0 0
  %9057 = vmatpush.bf16.msra.mxu0 0
  %9058 = vmatpush.bf16.msra.mxu0 0
  %9059 = vmatpush.bf16.msra.mxu0 %v9050
  %9060 = vmatmul.bf16.gmra.mxu0 %v9047
  %v9061 = vpop.f32.mrf.mxu0
  %v9062 = vadd.f32 0.0, %v9061
  %v9063 = vpop.f32.mrf.mxu0
  %9064 = vdwg.mxu0
  %v9066 = vunpack.c.l.b16 %v7044
  %v9067 = vpack.c.b16 %v9066, %v9066
  %9068 = vrot.lane.b32.xlu0 %v9067, 64
  %v9069 = vpop.permute.xlu0 %9068
  %v9071 = vsel %vm2253, %v8980, 0
  %v9074 = vsel %vm2657, %v9069, 0
  %9076 = vmatpush.bf16.msra.mxu0 0
  %9077 = vmatpush.bf16.msra.mxu0 0
  %9078 = vmatpush.bf16.msra.mxu0 0
  %9079 = vmatpush.bf16.msra.mxu0 0
  %9080 = vmatpush.bf16.msra.mxu0 0
  %9081 = vmatpush.bf16.msra.mxu0 0
  %9082 = vmatpush.bf16.msra.mxu0 0
  %9083 = vmatpush.bf16.msra.mxu0 %v9074
  %9084 = vmatmul.bf16.gmra.mxu0 %v9071
  %v9085 = vpop.f32.mrf.mxu0
  %v9086 = vadd.f32 0.0, %v9085
  %v9087 = vpop.f32.mrf.mxu0
  %9088 = vdwg.mxu0
  %v9090 = vunpack.c.l.b16 %v7045
  %v9091 = vpack.c.b16 %v9090, %v9090
  %9092 = vrot.lane.b32.xlu0 %v9091, 64
  %v9093 = vpop.permute.xlu0 %9092
  %v9095 = vsel %vm2253, %v8981, 0
  %v9098 = vsel %vm2657, %v9093, 0
  %9100 = vmatpush.bf16.msra.mxu0 0
  %9101 = vmatpush.bf16.msra.mxu0 0
  %9102 = vmatpush.bf16.msra.mxu0 0
  %9103 = vmatpush.bf16.msra.mxu0 0
  %9104 = vmatpush.bf16.msra.mxu0 0
  %9105 = vmatpush.bf16.msra.mxu0 0
  %9106 = vmatpush.bf16.msra.mxu0 0
  %9107 = vmatpush.bf16.msra.mxu0 %v9098
  %9108 = vmatmul.bf16.gmra.mxu0 %v9095
  %v9109 = vpop.f32.mrf.mxu0
  %v9110 = vadd.f32 0.0, %v9109
  %v9111 = vpop.f32.mrf.mxu0
  %9112 = vdwg.mxu0
  %v9114 = vunpack.c.l.b16 %v7046
  %v9115 = vpack.c.b16 %v9114, %v9114
  %9116 = vrot.lane.b32.xlu0 %v9115, 64
  %v9117 = vpop.permute.xlu0 %9116
  %v9119 = vsel %vm2253, %v8982, 0
  %v9122 = vsel %vm2657, %v9117, 0
  %9124 = vmatpush.bf16.msra.mxu0 0
  %9125 = vmatpush.bf16.msra.mxu0 0
  %9126 = vmatpush.bf16.msra.mxu0 0
  %9127 = vmatpush.bf16.msra.mxu0 0
  %9128 = vmatpush.bf16.msra.mxu0 0
  %9129 = vmatpush.bf16.msra.mxu0 0
  %9130 = vmatpush.bf16.msra.mxu0 0
  %9131 = vmatpush.bf16.msra.mxu0 %v9122
  %9132 = vmatmul.bf16.gmra.mxu0 %v9119
  %v9133 = vpop.f32.mrf.mxu0
  %v9134 = vadd.f32 0.0, %v9133
  %v9135 = vpop.f32.mrf.mxu0
  %9136 = vdwg.mxu0
  %v9138 = vunpack.c.l.b16 %v7047
  %v9139 = vpack.c.b16 %v9138, %v9138
  %9140 = vrot.lane.b32.xlu0 %v9139, 64
  %v9141 = vpop.permute.xlu0 %9140
  %v9143 = vsel %vm2253, %v8983, 0
  %v9146 = vsel %vm2657, %v9141, 0
  %9148 = vmatpush.bf16.msra.mxu0 0
  %9149 = vmatpush.bf16.msra.mxu0 0
  %9150 = vmatpush.bf16.msra.mxu0 0
  %9151 = vmatpush.bf16.msra.mxu0 0
  %9152 = vmatpush.bf16.msra.mxu0 0
  %9153 = vmatpush.bf16.msra.mxu0 0
  %9154 = vmatpush.bf16.msra.mxu0 0
  %9155 = vmatpush.bf16.msra.mxu0 %v9146
  %9156 = vmatmul.bf16.gmra.mxu0 %v9143
  %v9157 = vpop.f32.mrf.mxu0
  %v9158 = vadd.f32 0.0, %v9157
  %v9159 = vpop.f32.mrf.mxu0
  %9160 = vdwg.mxu0
  %v9162 = vunpack.c.l.b16 %v7048
  %v9163 = vpack.c.b16 %v9162, %v9162
  %9164 = vrot.lane.b32.xlu0 %v9163, 64
  %v9165 = vpop.permute.xlu0 %9164
  %v9167 = vsel %vm2253, %v8984, 0
  %v9170 = vsel %vm2657, %v9165, 0
  %9172 = vmatpush.bf16.msra.mxu0 0
  %9173 = vmatpush.bf16.msra.mxu0 0
  %9174 = vmatpush.bf16.msra.mxu0 0
  %9175 = vmatpush.bf16.msra.mxu0 0
  %9176 = vmatpush.bf16.msra.mxu0 0
  %9177 = vmatpush.bf16.msra.mxu0 0
  %9178 = vmatpush.bf16.msra.mxu0 0
  %9179 = vmatpush.bf16.msra.mxu0 %v9170
  %9180 = vmatmul.bf16.gmra.mxu0 %v9167
  %v9181 = vpop.f32.mrf.mxu0
  %v9182 = vadd.f32 0.0, %v9181
  %v9183 = vpop.f32.mrf.mxu0
  %9184 = vdwg.mxu0
  %v9186 = vunpack.c.l.b16 %v7049
  %v9187 = vpack.c.b16 %v9186, %v9186
  %9188 = vrot.lane.b32.xlu0 %v9187, 64
  %v9189 = vpop.permute.xlu0 %9188
  %v9191 = vsel %vm2253, %v8985, 0
  %v9194 = vsel %vm2657, %v9189, 0
  %9196 = vmatpush.bf16.msra.mxu0 0
  %9197 = vmatpush.bf16.msra.mxu0 0
  %9198 = vmatpush.bf16.msra.mxu0 0
  %9199 = vmatpush.bf16.msra.mxu0 0
  %9200 = vmatpush.bf16.msra.mxu0 0
  %9201 = vmatpush.bf16.msra.mxu0 0
  %9202 = vmatpush.bf16.msra.mxu0 0
  %9203 = vmatpush.bf16.msra.mxu0 %v9194
  %9204 = vmatmul.bf16.gmra.mxu0 %v9191
  %v9205 = vpop.f32.mrf.mxu0
  %v9206 = vadd.f32 0.0, %v9205
  %v9207 = vpop.f32.mrf.mxu0
  %9208 = vdwg.mxu0
  %v9210 = vunpack.c.l.b16 %v7050
  %v9211 = vpack.c.b16 %v9210, %v9210
  %9212 = vrot.lane.b32.xlu0 %v9211, 64
  %v9213 = vpop.permute.xlu0 %9212
  %v9215 = vsel %vm2253, %v8986, 0
  %v9218 = vsel %vm2657, %v9213, 0
  %9220 = vmatpush.bf16.msra.mxu0 0
  %9221 = vmatpush.bf16.msra.mxu0 0
  %9222 = vmatpush.bf16.msra.mxu0 0
  %9223 = vmatpush.bf16.msra.mxu0 0
  %9224 = vmatpush.bf16.msra.mxu0 0
  %9225 = vmatpush.bf16.msra.mxu0 0
  %9226 = vmatpush.bf16.msra.mxu0 0
  %9227 = vmatpush.bf16.msra.mxu0 %v9218
  %9228 = vmatmul.bf16.gmra.mxu0 %v9215
  %v9229 = vpop.f32.mrf.mxu0
  %v9230 = vadd.f32 0.0, %v9229
  %v9231 = vpop.f32.mrf.mxu0
  %9232 = vdwg.mxu0
  %v9234 = vunpack.c.l.b16 %v7051
  %v9235 = vpack.c.b16 %v9234, %v9234
  %9236 = vrot.lane.b32.xlu0 %v9235, 64
  %v9237 = vpop.permute.xlu0 %9236
  %v9239 = vsel %vm2253, %v8987, 0
  %v9242 = vsel %vm2657, %v9237, 0
  %9244 = vmatpush.bf16.msra.mxu0 0
  %9245 = vmatpush.bf16.msra.mxu0 0
  %9246 = vmatpush.bf16.msra.mxu0 0
  %9247 = vmatpush.bf16.msra.mxu0 0
  %9248 = vmatpush.bf16.msra.mxu0 0
  %9249 = vmatpush.bf16.msra.mxu0 0
  %9250 = vmatpush.bf16.msra.mxu0 0
  %9251 = vmatpush.bf16.msra.mxu0 %v9242
  %9252 = vmatmul.bf16.gmra.mxu0 %v9239
  %v9253 = vpop.f32.mrf.mxu0
  %v9254 = vadd.f32 0.0, %v9253
  %v9255 = vpop.f32.mrf.mxu0
  %9256 = vdwg.mxu0
  %v9258 = vunpack.c.l.b16 %v7052
  %v9259 = vpack.c.b16 %v9258, %v9258
  %9260 = vrot.lane.b32.xlu0 %v9259, 64
  %v9261 = vpop.permute.xlu0 %9260
  %v9263 = vsel %vm2253, %v8988, 0
  %v9266 = vsel %vm2657, %v9261, 0
  %9268 = vmatpush.bf16.msra.mxu0 0
  %9269 = vmatpush.bf16.msra.mxu0 0
  %9270 = vmatpush.bf16.msra.mxu0 0
  %9271 = vmatpush.bf16.msra.mxu0 0
  %9272 = vmatpush.bf16.msra.mxu0 0
  %9273 = vmatpush.bf16.msra.mxu0 0
  %9274 = vmatpush.bf16.msra.mxu0 0
  %9275 = vmatpush.bf16.msra.mxu0 %v9266
  %9276 = vmatmul.bf16.gmra.mxu0 %v9263
  %v9277 = vpop.f32.mrf.mxu0
  %v9278 = vadd.f32 0.0, %v9277
  %v9279 = vpop.f32.mrf.mxu0
  %9280 = vdwg.mxu0
  %v9282 = vunpack.c.l.b16 %v7053
  %v9283 = vpack.c.b16 %v9282, %v9282
  %9284 = vrot.lane.b32.xlu0 %v9283, 64
  %v9285 = vpop.permute.xlu0 %9284
  %v9287 = vsel %vm2253, %v8989, 0
  %v9290 = vsel %vm2657, %v9285, 0
  %9292 = vmatpush.bf16.msra.mxu0 0
  %9293 = vmatpush.bf16.msra.mxu0 0
  %9294 = vmatpush.bf16.msra.mxu0 0
  %9295 = vmatpush.bf16.msra.mxu0 0
  %9296 = vmatpush.bf16.msra.mxu0 0
  %9297 = vmatpush.bf16.msra.mxu0 0
  %9298 = vmatpush.bf16.msra.mxu0 0
  %9299 = vmatpush.bf16.msra.mxu0 %v9290
  %9300 = vmatmul.bf16.gmra.mxu0 %v9287
  %v9301 = vpop.f32.mrf.mxu0
  %v9302 = vadd.f32 0.0, %v9301
  %v9303 = vpop.f32.mrf.mxu0
  %9304 = vdwg.mxu0
  %v9306 = vunpack.c.l.b16 %v7054
  %v9307 = vpack.c.b16 %v9306, %v9306
  %9308 = vrot.lane.b32.xlu0 %v9307, 64
  %v9309 = vpop.permute.xlu0 %9308
  %v9311 = vsel %vm2253, %v8990, 0
  %v9314 = vsel %vm2657, %v9309, 0
  %9316 = vmatpush.bf16.msra.mxu0 0
  %9317 = vmatpush.bf16.msra.mxu0 0
  %9318 = vmatpush.bf16.msra.mxu0 0
  %9319 = vmatpush.bf16.msra.mxu0 0
  %9320 = vmatpush.bf16.msra.mxu0 0
  %9321 = vmatpush.bf16.msra.mxu0 0
  %9322 = vmatpush.bf16.msra.mxu0 0
  %9323 = vmatpush.bf16.msra.mxu0 %v9314
  %9324 = vmatmul.bf16.gmra.mxu0 %v9311
  %v9325 = vpop.f32.mrf.mxu0
  %v9326 = vadd.f32 0.0, %v9325
  %v9327 = vpop.f32.mrf.mxu0
  %9328 = vdwg.mxu0
  %v9330 = vunpack.c.l.b16 %v7055
  %v9331 = vpack.c.b16 %v9330, %v9330
  %9332 = vrot.lane.b32.xlu0 %v9331, 64
  %v9333 = vpop.permute.xlu0 %9332
  %v9335 = vsel %vm2253, %v8991, 0
  %v9338 = vsel %vm2657, %v9333, 0
  %9340 = vmatpush.bf16.msra.mxu0 0
  %9341 = vmatpush.bf16.msra.mxu0 0
  %9342 = vmatpush.bf16.msra.mxu0 0
  %9343 = vmatpush.bf16.msra.mxu0 0
  %9344 = vmatpush.bf16.msra.mxu0 0
  %9345 = vmatpush.bf16.msra.mxu0 0
  %9346 = vmatpush.bf16.msra.mxu0 0
  %9347 = vmatpush.bf16.msra.mxu0 %v9338
  %9348 = vmatmul.bf16.gmra.mxu0 %v9335
  %v9349 = vpop.f32.mrf.mxu0
  %v9350 = vadd.f32 0.0, %v9349
  %v9351 = vpop.f32.mrf.mxu0
  %9352 = vdwg.mxu0
  %v9354 = vunpack.c.l.b16 %v7056
  %v9355 = vpack.c.b16 %v9354, %v9354
  %9356 = vrot.lane.b32.xlu0 %v9355, 64
  %v9357 = vpop.permute.xlu0 %9356
  %v9359 = vsel %vm2253, %v8992, 0
  %v9362 = vsel %vm2657, %v9357, 0
  %9364 = vmatpush.bf16.msra.mxu0 0
  %9365 = vmatpush.bf16.msra.mxu0 0
  %9366 = vmatpush.bf16.msra.mxu0 0
  %9367 = vmatpush.bf16.msra.mxu0 0
  %9368 = vmatpush.bf16.msra.mxu0 0
  %9369 = vmatpush.bf16.msra.mxu0 0
  %9370 = vmatpush.bf16.msra.mxu0 0
  %9371 = vmatpush.bf16.msra.mxu0 %v9362
  %9372 = vmatmul.bf16.gmra.mxu0 %v9359
  %v9373 = vpop.f32.mrf.mxu0
  %v9374 = vadd.f32 0.0, %v9373
  %v9375 = vpop.f32.mrf.mxu0
  %9376 = vdwg.mxu0
  %9393 = vrot.lane.b32.xlu0 %v9014, 64
  %v9394 = vpop.permute.xlu0 %9393
  %9395 = vrot.lane.b32.xlu0 %v9038, 64
  %v9396 = vpop.permute.xlu0 %9395
  %9397 = vrot.lane.b32.xlu0 %v9062, 64
  %v9398 = vpop.permute.xlu0 %9397
  %9399 = vrot.lane.b32.xlu0 %v9086, 64
  %v9400 = vpop.permute.xlu0 %9399
  %9401 = vrot.lane.b32.xlu0 %v9110, 64
  %v9402 = vpop.permute.xlu0 %9401
  %9403 = vrot.lane.b32.xlu0 %v9134, 64
  %v9404 = vpop.permute.xlu0 %9403
  %9405 = vrot.lane.b32.xlu0 %v9158, 64
  %v9406 = vpop.permute.xlu0 %9405
  %9407 = vrot.lane.b32.xlu0 %v9182, 64
  %v9408 = vpop.permute.xlu0 %9407
  %9409 = vrot.lane.b32.xlu0 %v9206, 64
  %v9410 = vpop.permute.xlu0 %9409
  %9411 = vrot.lane.b32.xlu0 %v9230, 64
  %v9412 = vpop.permute.xlu0 %9411
  %9413 = vrot.lane.b32.xlu0 %v9254, 64
  %v9414 = vpop.permute.xlu0 %9413
  %9415 = vrot.lane.b32.xlu0 %v9278, 64
  %v9416 = vpop.permute.xlu0 %9415
  %9417 = vrot.lane.b32.xlu0 %v9302, 64
  %v9418 = vpop.permute.xlu0 %9417
  %9419 = vrot.lane.b32.xlu0 %v9326, 64
  %v9420 = vpop.permute.xlu0 %9419
  %9421 = vrot.lane.b32.xlu0 %v9350, 64
  %v9422 = vpop.permute.xlu0 %9421
  %9423 = vrot.lane.b32.xlu0 %v9374, 64
  %v9424 = vpop.permute.xlu0 %9423
  %v9441 = vsel %vm1916, %v7809, %v9394
  %v9442 = vsel %vm1916, %v7828, %v9396
  %v9443 = vsel %vm1916, %v7847, %v9398
  %v9444 = vsel %vm1916, %v7866, %v9400
  %v9445 = vsel %vm1916, %v7885, %v9402
  %v9446 = vsel %vm1916, %v7904, %v9404
  %v9447 = vsel %vm1916, %v7923, %v9406
  %v9448 = vsel %vm1916, %v7942, %v9408
  %v9449 = vsel %vm1916, %v7961, %v9410
  %v9450 = vsel %vm1916, %v7980, %v9412
  %v9451 = vsel %vm1916, %v7999, %v9414
  %v9452 = vsel %vm1916, %v8018, %v9416
  %v9453 = vsel %vm1916, %v8037, %v9418
  %v9454 = vsel %vm1916, %v8056, %v9420
  %v9455 = vsel %vm1916, %v8075, %v9422
  %v9456 = vsel %vm1916, %v8094, %v9424
  %v9457 = vpack.c.bf16 %v9442, %v9441
  %v9458 = vpack.c.bf16 %v9444, %v9443
  %v9459 = vpack.c.bf16 %v9446, %v9445
  %v9460 = vpack.c.bf16 %v9448, %v9447
  %v9461 = vpack.c.bf16 %v9450, %v9449
  %v9462 = vpack.c.bf16 %v9452, %v9451
  %v9463 = vpack.c.bf16 %v9454, %v9453
  %v9464 = vpack.c.bf16 %v9456, %v9455
  %s9465 = scalar_lea.vmem %s9, 64
  %v9466 = vld [vmem:[%s9465] sm:$0xf]
  %v9467 = vld [vmem:[%s9465 + $0x4] sm:$0xf]
  %v9468 = vld [vmem:[%s9465 + $0x8] sm:$0xf]
  %v9469 = vld [vmem:[%s9465 + $0xc] sm:$0xf]
  %v9470 = vld [vmem:[%s9465 + $0x10] sm:$0xf]
  %v9471 = vld [vmem:[%s9465 + $0x14] sm:$0xf]
  %v9472 = vld [vmem:[%s9465 + $0x18] sm:$0xf]
  %v9473 = vld [vmem:[%s9465 + $0x1c] sm:$0xf]
  %v9474 = vld [vmem:[%s9465 + $0x20] sm:$0xf]
  %v9475 = vld [vmem:[%s9465 + $0x24] sm:$0xf]
  %v9476 = vld [vmem:[%s9465 + $0x28] sm:$0xf]
  %v9477 = vld [vmem:[%s9465 + $0x2c] sm:$0xf]
  %v9478 = vld [vmem:[%s9465 + $0x30] sm:$0xf]
  %v9479 = vld [vmem:[%s9465 + $0x34] sm:$0xf]
  %v9480 = vld [vmem:[%s9465 + $0x38] sm:$0xf]
  %v9481 = vld [vmem:[%s9465 + $0x3c] sm:$0xf]
  %v9498 = vunpack.c.l.b16 %v9466
  %v9499 = vunpack.c.l.b16 %v9467
  %v9500 = vunpack.c.l.b16 %v9468
  %v9501 = vunpack.c.l.b16 %v9469
  %v9502 = vunpack.c.l.b16 %v9470
  %v9503 = vunpack.c.l.b16 %v9471
  %v9504 = vunpack.c.l.b16 %v9472
  %v9505 = vunpack.c.l.b16 %v9473
  %v9506 = vunpack.c.l.b16 %v9474
  %v9507 = vunpack.c.l.b16 %v9475
  %v9508 = vunpack.c.l.b16 %v9476
  %v9509 = vunpack.c.l.b16 %v9477
  %v9510 = vunpack.c.l.b16 %v9478
  %v9511 = vunpack.c.l.b16 %v9479
  %v9512 = vunpack.c.l.b16 %v9480
  %v9513 = vunpack.c.l.b16 %v9481
  %v9514 = vpack.c.b16 %v9499, %v9498
  %v9515 = vpack.c.b16 %v9501, %v9500
  %v9516 = vpack.c.b16 %v9503, %v9502
  %v9517 = vpack.c.b16 %v9505, %v9504
  %v9518 = vpack.c.b16 %v9507, %v9506
  %v9519 = vpack.c.b16 %v9509, %v9508
  %v9520 = vpack.c.b16 %v9511, %v9510
  %v9521 = vpack.c.b16 %v9513, %v9512
  %9530 = vmatpush.bf16.msra.mxu0 %v9521
  %9531 = vmatpush.bf16.msra.mxu0 %v9520
  %9532 = vmatpush.bf16.msra.mxu0 %v9519
  %9533 = vmatpush.bf16.msra.mxu0 %v9518
  %9534 = vmatpush.bf16.msra.mxu0 %v9517
  %9535 = vmatpush.bf16.msra.mxu0 %v9516
  %9536 = vmatpush.bf16.msra.mxu0 %v9515
  %9537 = vmatpush.bf16.msra.mxu0 %v9514
  %9538 = vmatmul.bf16.gmra.mxu0 %v9457
  %v9539 = vpop.f32.mrf.mxu0
  %v9540 = vadd.f32 0.0, %v9539
  %v9541 = vpop.f32.mrf.mxu0
  %v9542 = vadd.f32 0.0, %v9541
  %9543 = vmatmul.bf16.gmra.mxu0 %v9458
  %v9544 = vpop.f32.mrf.mxu0
  %v9545 = vadd.f32 0.0, %v9544
  %v9546 = vpop.f32.mrf.mxu0
  %v9547 = vadd.f32 0.0, %v9546
  %9548 = vmatmul.bf16.gmra.mxu0 %v9459
  %v9549 = vpop.f32.mrf.mxu0
  %v9550 = vadd.f32 0.0, %v9549
  %v9551 = vpop.f32.mrf.mxu0
  %v9552 = vadd.f32 0.0, %v9551
  %9553 = vmatmul.bf16.gmra.mxu0 %v9460
  %v9554 = vpop.f32.mrf.mxu0
  %v9555 = vadd.f32 0.0, %v9554
  %v9556 = vpop.f32.mrf.mxu0
  %v9557 = vadd.f32 0.0, %v9556
  %9558 = vmatmul.bf16.gmra.mxu0 %v9461
  %v9559 = vpop.f32.mrf.mxu0
  %v9560 = vadd.f32 0.0, %v9559
  %v9561 = vpop.f32.mrf.mxu0
  %v9562 = vadd.f32 0.0, %v9561
  %9563 = vmatmul.bf16.gmra.mxu0 %v9462
  %v9564 = vpop.f32.mrf.mxu0
  %v9565 = vadd.f32 0.0, %v9564
  %v9566 = vpop.f32.mrf.mxu0
  %v9567 = vadd.f32 0.0, %v9566
  %9568 = vmatmul.bf16.gmra.mxu0 %v9463
  %v9569 = vpop.f32.mrf.mxu0
  %v9570 = vadd.f32 0.0, %v9569
  %v9571 = vpop.f32.mrf.mxu0
  %v9572 = vadd.f32 0.0, %v9571
  %9573 = vmatmul.bf16.gmra.mxu0 %v9464
  %v9574 = vpop.f32.mrf.mxu0
  %v9575 = vadd.f32 0.0, %v9574
  %v9576 = vpop.f32.mrf.mxu0
  %v9577 = vadd.f32 0.0, %v9576
  %9578 = vdwg.mxu0
  %v9579 = vadd.f32 %v6306, %v9540
  %v9580 = vadd.f32 %v6307, %v9542
  %v9581 = vadd.f32 %v6308, %v9545
  %v9582 = vadd.f32 %v6309, %v9547
  %v9583 = vadd.f32 %v6310, %v9550
  %v9584 = vadd.f32 %v6311, %v9552
  %v9585 = vadd.f32 %v6312, %v9555
  %v9586 = vadd.f32 %v6313, %v9557
  %v9587 = vadd.f32 %v6314, %v9560
  %v9588 = vadd.f32 %v6315, %v9562
  %v9589 = vadd.f32 %v6316, %v9565
  %v9590 = vadd.f32 %v6317, %v9567
  %v9591 = vadd.f32 %v6318, %v9570
  %v9592 = vadd.f32 %v6319, %v9572
  %v9593 = vadd.f32 %v6320, %v9575
  %v9594 = vadd.f32 %v6321, %v9577
  %s9595 = scalar_lea.vmem %s10, 1
  %v9596 = vld [vmem:[%s9595] sm:$0x1]
  %v9598 = vperm.slane %v9596, 0
  %v9600 = vadd.f32 %v9579, %v9598
  %v9601 = vadd.f32 %v9580, %v9598
  %v9602 = vadd.f32 %v9581, %v9598
  %v9603 = vadd.f32 %v9582, %v9598
  %v9604 = vadd.f32 %v9583, %v9598
  %v9605 = vadd.f32 %v9584, %v9598
  %v9606 = vadd.f32 %v9585, %v9598
  %v9607 = vadd.f32 %v9586, %v9598
  %v9608 = vadd.f32 %v9587, %v9598
  %v9609 = vadd.f32 %v9588, %v9598
  %v9610 = vadd.f32 %v9589, %v9598
  %v9611 = vadd.f32 %v9590, %v9598
  %v9612 = vadd.f32 %v9591, %v9598
  %v9613 = vadd.f32 %v9592, %v9598
  %v9614 = vadd.f32 %v9593, %v9598
  %v9615 = vadd.f32 %v9594, %v9598
  %s9616 = scalar_lea.vmem %s11, 1
  %v9617 = vld [vmem:[%s9616] sm:$0x1]
  %s9618 = scalar_lea.vmem %s12, 1
  %v9619 = vld [vmem:[%s9618] sm:$0x1]
  %9620 = vadd.xlane.f32.xlu0 %v9600
  %v9621 = vpop.xlane.xlu0 %9620
  %9622 = vadd.xlane.f32.xlu0 %v9601
  %v9623 = vpop.xlane.xlu0 %9622
  %9624 = vadd.xlane.f32.xlu0 %v9602
  %v9625 = vpop.xlane.xlu0 %9624
  %9626 = vadd.xlane.f32.xlu0 %v9603
  %v9627 = vpop.xlane.xlu0 %9626
  %9628 = vadd.xlane.f32.xlu0 %v9604
  %v9629 = vpop.xlane.xlu0 %9628
  %9630 = vadd.xlane.f32.xlu0 %v9605
  %v9631 = vpop.xlane.xlu0 %9630
  %9632 = vadd.xlane.f32.xlu0 %v9606
  %v9633 = vpop.xlane.xlu0 %9632
  %9634 = vadd.xlane.f32.xlu0 %v9607
  %v9635 = vpop.xlane.xlu0 %9634
  %9636 = vadd.xlane.f32.xlu0 %v9608
  %v9637 = vpop.xlane.xlu0 %9636
  %9638 = vadd.xlane.f32.xlu0 %v9609
  %v9639 = vpop.xlane.xlu0 %9638
  %9640 = vadd.xlane.f32.xlu0 %v9610
  %v9641 = vpop.xlane.xlu0 %9640
  %9642 = vadd.xlane.f32.xlu0 %v9611
  %v9643 = vpop.xlane.xlu0 %9642
  %9644 = vadd.xlane.f32.xlu0 %v9612
  %v9645 = vpop.xlane.xlu0 %9644
  %9646 = vadd.xlane.f32.xlu0 %v9613
  %v9647 = vpop.xlane.xlu0 %9646
  %9648 = vadd.xlane.f32.xlu0 %v9614
  %v9649 = vpop.xlane.xlu0 %9648
  %9650 = vadd.xlane.f32.xlu0 %v9615
  %v9651 = vpop.xlane.xlu0 %9650
  %v9652 = vmul.f32 %v9621, %v1218
  %v9653 = vmul.f32 %v9623, %v1218
  %v9654 = vmul.f32 %v9625, %v1218
  %v9655 = vmul.f32 %v9627, %v1218
  %v9656 = vmul.f32 %v9629, %v1218
  %v9657 = vmul.f32 %v9631, %v1218
  %v9658 = vmul.f32 %v9633, %v1218
  %v9659 = vmul.f32 %v9635, %v1218
  %v9660 = vmul.f32 %v9637, %v1218
  %v9661 = vmul.f32 %v9639, %v1218
  %v9662 = vmul.f32 %v9641, %v1218
  %v9663 = vmul.f32 %v9643, %v1218
  %v9664 = vmul.f32 %v9645, %v1218
  %v9665 = vmul.f32 %v9647, %v1218
  %v9666 = vmul.f32 %v9649, %v1218
  %v9667 = vmul.f32 %v9651, %v1218
  %v9668 = vsub.f32 %v9600, %v9652
  %v9669 = vsub.f32 %v9601, %v9653
  %v9670 = vsub.f32 %v9602, %v9654
  %v9671 = vsub.f32 %v9603, %v9655
  %v9672 = vsub.f32 %v9604, %v9656
  %v9673 = vsub.f32 %v9605, %v9657
  %v9674 = vsub.f32 %v9606, %v9658
  %v9675 = vsub.f32 %v9607, %v9659
  %v9676 = vsub.f32 %v9608, %v9660
  %v9677 = vsub.f32 %v9609, %v9661
  %v9678 = vsub.f32 %v9610, %v9662
  %v9679 = vsub.f32 %v9611, %v9663
  %v9680 = vsub.f32 %v9612, %v9664
  %v9681 = vsub.f32 %v9613, %v9665
  %v9682 = vsub.f32 %v9614, %v9666
  %v9683 = vsub.f32 %v9615, %v9667
  %v9684 = vmul.f32 %v9668, %v9668
  %v9685 = vmul.f32 %v9669, %v9669
  %v9686 = vmul.f32 %v9670, %v9670
  %v9687 = vmul.f32 %v9671, %v9671
  %v9688 = vmul.f32 %v9672, %v9672
  %v9689 = vmul.f32 %v9673, %v9673
  %v9690 = vmul.f32 %v9674, %v9674
  %v9691 = vmul.f32 %v9675, %v9675
  %v9692 = vmul.f32 %v9676, %v9676
  %v9693 = vmul.f32 %v9677, %v9677
  %v9694 = vmul.f32 %v9678, %v9678
  %v9695 = vmul.f32 %v9679, %v9679
  %v9696 = vmul.f32 %v9680, %v9680
  %v9697 = vmul.f32 %v9681, %v9681
  %v9698 = vmul.f32 %v9682, %v9682
  %v9699 = vmul.f32 %v9683, %v9683
  %9700 = vadd.xlane.f32.xlu0 %v9684
  %v9701 = vpop.xlane.xlu0 %9700
  %9702 = vadd.xlane.f32.xlu0 %v9685
  %v9703 = vpop.xlane.xlu0 %9702
  %9704 = vadd.xlane.f32.xlu0 %v9686
  %v9705 = vpop.xlane.xlu0 %9704
  %9706 = vadd.xlane.f32.xlu0 %v9687
  %v9707 = vpop.xlane.xlu0 %9706
  %9708 = vadd.xlane.f32.xlu0 %v9688
  %v9709 = vpop.xlane.xlu0 %9708
  %9710 = vadd.xlane.f32.xlu0 %v9689
  %v9711 = vpop.xlane.xlu0 %9710
  %9712 = vadd.xlane.f32.xlu0 %v9690
  %v9713 = vpop.xlane.xlu0 %9712
  %9714 = vadd.xlane.f32.xlu0 %v9691
  %v9715 = vpop.xlane.xlu0 %9714
  %9716 = vadd.xlane.f32.xlu0 %v9692
  %v9717 = vpop.xlane.xlu0 %9716
  %9718 = vadd.xlane.f32.xlu0 %v9693
  %v9719 = vpop.xlane.xlu0 %9718
  %9720 = vadd.xlane.f32.xlu0 %v9694
  %v9721 = vpop.xlane.xlu0 %9720
  %9722 = vadd.xlane.f32.xlu0 %v9695
  %v9723 = vpop.xlane.xlu0 %9722
  %9724 = vadd.xlane.f32.xlu0 %v9696
  %v9725 = vpop.xlane.xlu0 %9724
  %9726 = vadd.xlane.f32.xlu0 %v9697
  %v9727 = vpop.xlane.xlu0 %9726
  %9728 = vadd.xlane.f32.xlu0 %v9698
  %v9729 = vpop.xlane.xlu0 %9728
  %9730 = vadd.xlane.f32.xlu0 %v9699
  %v9731 = vpop.xlane.xlu0 %9730
  %v9732 = vmul.f32 %v9701, %v1218
  %v9733 = vmul.f32 %v9703, %v1218
  %v9734 = vmul.f32 %v9705, %v1218
  %v9735 = vmul.f32 %v9707, %v1218
  %v9736 = vmul.f32 %v9709, %v1218
  %v9737 = vmul.f32 %v9711, %v1218
  %v9738 = vmul.f32 %v9713, %v1218
  %v9739 = vmul.f32 %v9715, %v1218
  %v9740 = vmul.f32 %v9717, %v1218
  %v9741 = vmul.f32 %v9719, %v1218
  %v9742 = vmul.f32 %v9721, %v1218
  %v9743 = vmul.f32 %v9723, %v1218
  %v9744 = vmul.f32 %v9725, %v1218
  %v9745 = vmul.f32 %v9727, %v1218
  %v9746 = vmul.f32 %v9729, %v1218
  %v9747 = vmul.f32 %v9731, %v1218
  %v9748 = vadd.f32 %v9732, 1e-06
  %v9749 = vadd.f32 %v9733, 1e-06
  %v9750 = vadd.f32 %v9734, 1e-06
  %v9751 = vadd.f32 %v9735, 1e-06
  %v9752 = vadd.f32 %v9736, 1e-06
  %v9753 = vadd.f32 %v9737, 1e-06
  %v9754 = vadd.f32 %v9738, 1e-06
  %v9755 = vadd.f32 %v9739, 1e-06
  %v9756 = vadd.f32 %v9740, 1e-06
  %v9757 = vadd.f32 %v9741, 1e-06
  %v9758 = vadd.f32 %v9742, 1e-06
  %v9759 = vadd.f32 %v9743, 1e-06
  %v9760 = vadd.f32 %v9744, 1e-06
  %v9761 = vadd.f32 %v9745, 1e-06
  %v9762 = vadd.f32 %v9746, 1e-06
  %v9763 = vadd.f32 %v9747, 1e-06
  %v9764 = vrsqrt.pop %v9748
  %v9765 = vmul.f32 %v9764, %v9748
  %v9766 = vmul.f32 %v9765, %v9764
  %v9767 = vmul.f32 0.5, %v9766
  %v9768 = vsub.f32 1.5, %v9767
  %v9769 = vmul.f32 %v9764, %v9768
  %vm9770 = vweird.f32 %v9748
  %vm9771 = vweird.f32 %v9764
  %vm9772 = vmor %vm9770, %vm9771
  %v9773 = vsel %vm9772, %v9764, %v9769
  %v9774 = vrsqrt.pop %v9749
  %v9775 = vmul.f32 %v9774, %v9749
  %v9776 = vmul.f32 %v9775, %v9774
  %v9777 = vmul.f32 0.5, %v9776
  %v9778 = vsub.f32 1.5, %v9777
  %v9779 = vmul.f32 %v9774, %v9778
  %vm9780 = vweird.f32 %v9749
  %vm9781 = vweird.f32 %v9774
  %vm9782 = vmor %vm9780, %vm9781
  %v9783 = vsel %vm9782, %v9774, %v9779
  %v9784 = vrsqrt.pop %v9750
  %v9785 = vmul.f32 %v9784, %v9750
  %v9786 = vmul.f32 %v9785, %v9784
  %v9787 = vmul.f32 0.5, %v9786
  %v9788 = vsub.f32 1.5, %v9787
  %v9789 = vmul.f32 %v9784, %v9788
  %vm9790 = vweird.f32 %v9750
  %vm9791 = vweird.f32 %v9784
  %vm9792 = vmor %vm9790, %vm9791
  %v9793 = vsel %vm9792, %v9784, %v9789
  %v9794 = vrsqrt.pop %v9751
  %v9795 = vmul.f32 %v9794, %v9751
  %v9796 = vmul.f32 %v9795, %v9794
  %v9797 = vmul.f32 0.5, %v9796
  %v9798 = vsub.f32 1.5, %v9797
  %v9799 = vmul.f32 %v9794, %v9798
  %vm9800 = vweird.f32 %v9751
  %vm9801 = vweird.f32 %v9794
  %vm9802 = vmor %vm9800, %vm9801
  %v9803 = vsel %vm9802, %v9794, %v9799
  %v9804 = vrsqrt.pop %v9752
  %v9805 = vmul.f32 %v9804, %v9752
  %v9806 = vmul.f32 %v9805, %v9804
  %v9807 = vmul.f32 0.5, %v9806
  %v9808 = vsub.f32 1.5, %v9807
  %v9809 = vmul.f32 %v9804, %v9808
  %vm9810 = vweird.f32 %v9752
  %vm9811 = vweird.f32 %v9804
  %vm9812 = vmor %vm9810, %vm9811
  %v9813 = vsel %vm9812, %v9804, %v9809
  %v9814 = vrsqrt.pop %v9753
  %v9815 = vmul.f32 %v9814, %v9753
  %v9816 = vmul.f32 %v9815, %v9814
  %v9817 = vmul.f32 0.5, %v9816
  %v9818 = vsub.f32 1.5, %v9817
  %v9819 = vmul.f32 %v9814, %v9818
  %vm9820 = vweird.f32 %v9753
  %vm9821 = vweird.f32 %v9814
  %vm9822 = vmor %vm9820, %vm9821
  %v9823 = vsel %vm9822, %v9814, %v9819
  %v9824 = vrsqrt.pop %v9754
  %v9825 = vmul.f32 %v9824, %v9754
  %v9826 = vmul.f32 %v9825, %v9824
  %v9827 = vmul.f32 0.5, %v9826
  %v9828 = vsub.f32 1.5, %v9827
  %v9829 = vmul.f32 %v9824, %v9828
  %vm9830 = vweird.f32 %v9754
  %vm9831 = vweird.f32 %v9824
  %vm9832 = vmor %vm9830, %vm9831
  %v9833 = vsel %vm9832, %v9824, %v9829
  %v9834 = vrsqrt.pop %v9755
  %v9835 = vmul.f32 %v9834, %v9755
  %v9836 = vmul.f32 %v9835, %v9834
  %v9837 = vmul.f32 0.5, %v9836
  %v9838 = vsub.f32 1.5, %v9837
  %v9839 = vmul.f32 %v9834, %v9838
  %vm9840 = vweird.f32 %v9755
  %vm9841 = vweird.f32 %v9834
  %vm9842 = vmor %vm9840, %vm9841
  %v9843 = vsel %vm9842, %v9834, %v9839
  %v9844 = vrsqrt.pop %v9756
  %v9845 = vmul.f32 %v9844, %v9756
  %v9846 = vmul.f32 %v9845, %v9844
  %v9847 = vmul.f32 0.5, %v9846
  %v9848 = vsub.f32 1.5, %v9847
  %v9849 = vmul.f32 %v9844, %v9848
  %vm9850 = vweird.f32 %v9756
  %vm9851 = vweird.f32 %v9844
  %vm9852 = vmor %vm9850, %vm9851
  %v9853 = vsel %vm9852, %v9844, %v9849
  %v9854 = vrsqrt.pop %v9757
  %v9855 = vmul.f32 %v9854, %v9757
  %v9856 = vmul.f32 %v9855, %v9854
  %v9857 = vmul.f32 0.5, %v9856
  %v9858 = vsub.f32 1.5, %v9857
  %v9859 = vmul.f32 %v9854, %v9858
  %vm9860 = vweird.f32 %v9757
  %vm9861 = vweird.f32 %v9854
  %vm9862 = vmor %vm9860, %vm9861
  %v9863 = vsel %vm9862, %v9854, %v9859
  %v9864 = vrsqrt.pop %v9758
  %v9865 = vmul.f32 %v9864, %v9758
  %v9866 = vmul.f32 %v9865, %v9864
  %v9867 = vmul.f32 0.5, %v9866
  %v9868 = vsub.f32 1.5, %v9867
  %v9869 = vmul.f32 %v9864, %v9868
  %vm9870 = vweird.f32 %v9758
  %vm9871 = vweird.f32 %v9864
  %vm9872 = vmor %vm9870, %vm9871
  %v9873 = vsel %vm9872, %v9864, %v9869
  %v9874 = vrsqrt.pop %v9759
  %v9875 = vmul.f32 %v9874, %v9759
  %v9876 = vmul.f32 %v9875, %v9874
  %v9877 = vmul.f32 0.5, %v9876
  %v9878 = vsub.f32 1.5, %v9877
  %v9879 = vmul.f32 %v9874, %v9878
  %vm9880 = vweird.f32 %v9759
  %vm9881 = vweird.f32 %v9874
  %vm9882 = vmor %vm9880, %vm9881
  %v9883 = vsel %vm9882, %v9874, %v9879
  %v9884 = vrsqrt.pop %v9760
  %v9885 = vmul.f32 %v9884, %v9760
  %v9886 = vmul.f32 %v9885, %v9884
  %v9887 = vmul.f32 0.5, %v9886
  %v9888 = vsub.f32 1.5, %v9887
  %v9889 = vmul.f32 %v9884, %v9888
  %vm9890 = vweird.f32 %v9760
  %vm9891 = vweird.f32 %v9884
  %vm9892 = vmor %vm9890, %vm9891
  %v9893 = vsel %vm9892, %v9884, %v9889
  %v9894 = vrsqrt.pop %v9761
  %v9895 = vmul.f32 %v9894, %v9761
  %v9896 = vmul.f32 %v9895, %v9894
  %v9897 = vmul.f32 0.5, %v9896
  %v9898 = vsub.f32 1.5, %v9897
  %v9899 = vmul.f32 %v9894, %v9898
  %vm9900 = vweird.f32 %v9761
  %vm9901 = vweird.f32 %v9894
  %vm9902 = vmor %vm9900, %vm9901
  %v9903 = vsel %vm9902, %v9894, %v9899
  %v9904 = vrsqrt.pop %v9762
  %v9905 = vmul.f32 %v9904, %v9762
  %v9906 = vmul.f32 %v9905, %v9904
  %v9907 = vmul.f32 0.5, %v9906
  %v9908 = vsub.f32 1.5, %v9907
  %v9909 = vmul.f32 %v9904, %v9908
  %vm9910 = vweird.f32 %v9762
  %vm9911 = vweird.f32 %v9904
  %vm9912 = vmor %vm9910, %vm9911
  %v9913 = vsel %vm9912, %v9904, %v9909
  %v9914 = vrsqrt.pop %v9763
  %v9915 = vmul.f32 %v9914, %v9763
  %v9916 = vmul.f32 %v9915, %v9914
  %v9917 = vmul.f32 0.5, %v9916
  %v9918 = vsub.f32 1.5, %v9917
  %v9919 = vmul.f32 %v9914, %v9918
  %vm9920 = vweird.f32 %v9763
  %vm9921 = vweird.f32 %v9914
  %vm9922 = vmor %vm9920, %vm9921
  %v9923 = vsel %vm9922, %v9914, %v9919
  %v9924 = vmul.f32 %v9668, %v9773
  %v9925 = vmul.f32 %v9669, %v9783
  %v9926 = vmul.f32 %v9670, %v9793
  %v9927 = vmul.f32 %v9671, %v9803
  %v9928 = vmul.f32 %v9672, %v9813
  %v9929 = vmul.f32 %v9673, %v9823
  %v9930 = vmul.f32 %v9674, %v9833
  %v9931 = vmul.f32 %v9675, %v9843
  %v9932 = vmul.f32 %v9676, %v9853
  %v9933 = vmul.f32 %v9677, %v9863
  %v9934 = vmul.f32 %v9678, %v9873
  %v9935 = vmul.f32 %v9679, %v9883
  %v9936 = vmul.f32 %v9680, %v9893
  %v9937 = vmul.f32 %v9681, %v9903
  %v9938 = vmul.f32 %v9682, %v9913
  %v9939 = vmul.f32 %v9683, %v9923
  %v9941 = vperm.slane %v9617, 0
  %v9943 = vmul.f32 %v9924, %v9941
  %v9944 = vmul.f32 %v9925, %v9941
  %v9945 = vmul.f32 %v9926, %v9941
  %v9946 = vmul.f32 %v9927, %v9941
  %v9947 = vmul.f32 %v9928, %v9941
  %v9948 = vmul.f32 %v9929, %v9941
  %v9949 = vmul.f32 %v9930, %v9941
  %v9950 = vmul.f32 %v9931, %v9941
  %v9951 = vmul.f32 %v9932, %v9941
  %v9952 = vmul.f32 %v9933, %v9941
  %v9953 = vmul.f32 %v9934, %v9941
  %v9954 = vmul.f32 %v9935, %v9941
  %v9955 = vmul.f32 %v9936, %v9941
  %v9956 = vmul.f32 %v9937, %v9941
  %v9957 = vmul.f32 %v9938, %v9941
  %v9958 = vmul.f32 %v9939, %v9941
  %v9960 = vperm.slane %v9619, 0
  %v9962 = vadd.f32 %v9943, %v9960
  %v9963 = vadd.f32 %v9944, %v9960
  %v9964 = vadd.f32 %v9945, %v9960
  %v9965 = vadd.f32 %v9946, %v9960
  %v9966 = vadd.f32 %v9947, %v9960
  %v9967 = vadd.f32 %v9948, %v9960
  %v9968 = vadd.f32 %v9949, %v9960
  %v9969 = vadd.f32 %v9950, %v9960
  %v9970 = vadd.f32 %v9951, %v9960
  %v9971 = vadd.f32 %v9952, %v9960
  %v9972 = vadd.f32 %v9953, %v9960
  %v9973 = vadd.f32 %v9954, %v9960
  %v9974 = vadd.f32 %v9955, %v9960
  %v9975 = vadd.f32 %v9956, %v9960
  %v9976 = vadd.f32 %v9957, %v9960
  %v9977 = vadd.f32 %v9958, %v9960
  %v9978 = vpack.c.bf16 %v9963, %v9962
  %v9979 = vpack.c.bf16 %v9965, %v9964
  %v9980 = vpack.c.bf16 %v9967, %v9966
  %v9981 = vpack.c.bf16 %v9969, %v9968
  %v9982 = vpack.c.bf16 %v9971, %v9970
  %v9983 = vpack.c.bf16 %v9973, %v9972
  %v9984 = vpack.c.bf16 %v9975, %v9974
  %v9985 = vpack.c.bf16 %v9977, %v9976
  %s9986 = scalar_lea.vmem %s13, 256
  %v9987 = vld [vmem:[%s9986] sm:$0xff]
  %v9988 = vld [vmem:[%s9986 + $0x8] sm:$0xff]
  %v9989 = vld [vmem:[%s9986 + $0x10] sm:$0xff]
  %v9990 = vld [vmem:[%s9986 + $0x18] sm:$0xff]
  %v9991 = vld [vmem:[%s9986 + $0x20] sm:$0xff]
  %v9992 = vld [vmem:[%s9986 + $0x28] sm:$0xff]
  %v9993 = vld [vmem:[%s9986 + $0x30] sm:$0xff]
  %v9994 = vld [vmem:[%s9986 + $0x38] sm:$0xff]
  %v9995 = vld [vmem:[%s9986 + $0x40] sm:$0xff]
  %v9996 = vld [vmem:[%s9986 + $0x48] sm:$0xff]
  %v9997 = vld [vmem:[%s9986 + $0x50] sm:$0xff]
  %v9998 = vld [vmem:[%s9986 + $0x58] sm:$0xff]
  %v9999 = vld [vmem:[%s9986 + $0x60] sm:$0xff]
  %v10000 = vld [vmem:[%s9986 + $0x68] sm:$0xff]
  %v10001 = vld [vmem:[%s9986 + $0x70] sm:$0xff]
  %v10002 = vld [vmem:[%s9986 + $0x78] sm:$0xff]
  %v10003 = vld [vmem:[%s9986 + $0x80] sm:$0xff]
  %v10004 = vld [vmem:[%s9986 + $0x88] sm:$0xff]
  %v10005 = vld [vmem:[%s9986 + $0x90] sm:$0xff]
  %v10006 = vld [vmem:[%s9986 + $0x98] sm:$0xff]
  %v10007 = vld [vmem:[%s9986 + $0xa0] sm:$0xff]
  %v10008 = vld [vmem:[%s9986 + $0xa8] sm:$0xff]
  %v10009 = vld [vmem:[%s9986 + $0xb0] sm:$0xff]
  %v10010 = vld [vmem:[%s9986 + $0xb8] sm:$0xff]
  %v10011 = vld [vmem:[%s9986 + $0xc0] sm:$0xff]
  %v10012 = vld [vmem:[%s9986 + $0xc8] sm:$0xff]
  %v10013 = vld [vmem:[%s9986 + $0xd0] sm:$0xff]
  %v10014 = vld [vmem:[%s9986 + $0xd8] sm:$0xff]
  %v10015 = vld [vmem:[%s9986 + $0xe0] sm:$0xff]
  %v10016 = vld [vmem:[%s9986 + $0xe8] sm:$0xff]
  %v10017 = vld [vmem:[%s9986 + $0xf0] sm:$0xff]
  %v10018 = vld [vmem:[%s9986 + $0xf8] sm:$0xff]
  %s10019 = scalar_lea.vmem %s14, 4
  %v10020 = vld [vmem:[%s10019] sm:$0xf]
  %v10022 = vperm.slane %v10020, 0
  %v10023 = vperm.slane %v10020, 1
  %v10024 = vperm.slane %v10020, 2
  %v10025 = vperm.slane %v10020, 3
  %v10062 = vunpack.c.l.b16 %v9987
  %v10063 = vunpack.c.h.b16 %v9987
  %v10064 = vunpack.c.l.b16 %v9988
  %v10065 = vunpack.c.h.b16 %v9988
  %v10066 = vunpack.c.l.b16 %v9989
  %v10067 = vunpack.c.h.b16 %v9989
  %v10068 = vunpack.c.l.b16 %v9990
  %v10069 = vunpack.c.h.b16 %v9990
  %v10070 = vunpack.c.l.b16 %v9991
  %v10071 = vunpack.c.h.b16 %v9991
  %v10072 = vunpack.c.l.b16 %v9992
  %v10073 = vunpack.c.h.b16 %v9992
  %v10074 = vunpack.c.l.b16 %v9993
  %v10075 = vunpack.c.h.b16 %v9993
  %v10076 = vunpack.c.l.b16 %v9994
  %v10077 = vunpack.c.h.b16 %v9994
  %v10078 = vunpack.c.l.b16 %v9995
  %v10079 = vunpack.c.h.b16 %v9995
  %v10080 = vunpack.c.l.b16 %v9996
  %v10081 = vunpack.c.h.b16 %v9996
  %v10082 = vunpack.c.l.b16 %v9997
  %v10083 = vunpack.c.h.b16 %v9997
  %v10084 = vunpack.c.l.b16 %v9998
  %v10085 = vunpack.c.h.b16 %v9998
  %v10086 = vunpack.c.l.b16 %v9999
  %v10087 = vunpack.c.h.b16 %v9999
  %v10088 = vunpack.c.l.b16 %v10000
  %v10089 = vunpack.c.h.b16 %v10000
  %v10090 = vunpack.c.l.b16 %v10001
  %v10091 = vunpack.c.h.b16 %v10001
  %v10092 = vunpack.c.l.b16 %v10002
  %v10093 = vunpack.c.h.b16 %v10002
  %v10094 = vunpack.c.l.b16 %v10003
  %v10095 = vunpack.c.h.b16 %v10003
  %v10096 = vunpack.c.l.b16 %v10004
  %v10097 = vunpack.c.h.b16 %v10004
  %v10098 = vunpack.c.l.b16 %v10005
  %v10099 = vunpack.c.h.b16 %v10005
  %v10100 = vunpack.c.l.b16 %v10006
  %v10101 = vunpack.c.h.b16 %v10006
  %v10102 = vunpack.c.l.b16 %v10007
  %v10103 = vunpack.c.h.b16 %v10007
  %v10104 = vunpack.c.l.b16 %v10008
  %v10105 = vunpack.c.h.b16 %v10008
  %v10106 = vunpack.c.l.b16 %v10009
  %v10107 = vunpack.c.h.b16 %v10009
  %v10108 = vunpack.c.l.b16 %v10010
  %v10109 = vunpack.c.h.b16 %v10010
  %v10110 = vunpack.c.l.b16 %v10011
  %v10111 = vunpack.c.h.b16 %v10011
  %v10112 = vunpack.c.l.b16 %v10012
  %v10113 = vunpack.c.h.b16 %v10012
  %v10114 = vunpack.c.l.b16 %v10013
  %v10115 = vunpack.c.h.b16 %v10013
  %v10116 = vunpack.c.l.b16 %v10014
  %v10117 = vunpack.c.h.b16 %v10014
  %v10118 = vunpack.c.l.b16 %v10015
  %v10119 = vunpack.c.h.b16 %v10015
  %v10120 = vunpack.c.l.b16 %v10016
  %v10121 = vunpack.c.h.b16 %v10016
  %v10122 = vunpack.c.l.b16 %v10017
  %v10123 = vunpack.c.h.b16 %v10017
  %v10124 = vunpack.c.l.b16 %v10018
  %v10125 = vunpack.c.h.b16 %v10018
  %v10126 = vpack.c.b16 %v10066, %v10062
  %v10127 = vpack.c.b16 %v10067, %v10063
  %v10128 = vpack.c.b16 %v10068, %v10064
  %v10129 = vpack.c.b16 %v10069, %v10065
  %v10130 = vpack.c.b16 %v10074, %v10070
  %v10131 = vpack.c.b16 %v10075, %v10071
  %v10132 = vpack.c.b16 %v10076, %v10072
  %v10133 = vpack.c.b16 %v10077, %v10073
  %v10134 = vpack.c.b16 %v10082, %v10078
  %v10135 = vpack.c.b16 %v10083, %v10079
  %v10136 = vpack.c.b16 %v10084, %v10080
  %v10137 = vpack.c.b16 %v10085, %v10081
  %v10138 = vpack.c.b16 %v10090, %v10086
  %v10139 = vpack.c.b16 %v10091, %v10087
  %v10140 = vpack.c.b16 %v10092, %v10088
  %v10141 = vpack.c.b16 %v10093, %v10089
  %v10142 = vpack.c.b16 %v10098, %v10094
  %v10143 = vpack.c.b16 %v10099, %v10095
  %v10144 = vpack.c.b16 %v10100, %v10096
  %v10145 = vpack.c.b16 %v10101, %v10097
  %v10146 = vpack.c.b16 %v10106, %v10102
  %v10147 = vpack.c.b16 %v10107, %v10103
  %v10148 = vpack.c.b16 %v10108, %v10104
  %v10149 = vpack.c.b16 %v10109, %v10105
  %v10150 = vpack.c.b16 %v10114, %v10110
  %v10151 = vpack.c.b16 %v10115, %v10111
  %v10152 = vpack.c.b16 %v10116, %v10112
  %v10153 = vpack.c.b16 %v10117, %v10113
  %v10154 = vpack.c.b16 %v10122, %v10118
  %v10155 = vpack.c.b16 %v10123, %v10119
  %v10156 = vpack.c.b16 %v10124, %v10120
  %v10157 = vpack.c.b16 %v10125, %v10121
  %10190 = vmatpush.bf16.msra.mxu0 %v10154
  %10191 = vmatpush.bf16.msra.mxu0 %v10150
  %10192 = vmatpush.bf16.msra.mxu0 %v10146
  %10193 = vmatpush.bf16.msra.mxu0 %v10142
  %10194 = vmatpush.bf16.msra.mxu0 %v10138
  %10195 = vmatpush.bf16.msra.mxu0 %v10134
  %10196 = vmatpush.bf16.msra.mxu0 %v10130
  %10197 = vmatpush.bf16.msra.mxu0 %v10126
  %10198 = vmatmul.bf16.gmra.mxu0 %v9978
  %v10199 = vpop.f32.mrf.mxu0
  %v10200 = vadd.f32 %v10022, %v10199
  %v10201 = vpop.f32.mrf.mxu0
  %v10202 = vadd.f32 %v10022, %v10201
  %10203 = vmatmul.bf16.gmra.mxu0 %v9979
  %v10204 = vpop.f32.mrf.mxu0
  %v10205 = vadd.f32 %v10022, %v10204
  %v10206 = vpop.f32.mrf.mxu0
  %v10207 = vadd.f32 %v10022, %v10206
  %10208 = vmatmul.bf16.gmra.mxu0 %v9980
  %v10209 = vpop.f32.mrf.mxu0
  %v10210 = vadd.f32 %v10022, %v10209
  %v10211 = vpop.f32.mrf.mxu0
  %v10212 = vadd.f32 %v10022, %v10211
  %10213 = vmatmul.bf16.gmra.mxu0 %v9981
  %v10214 = vpop.f32.mrf.mxu0
  %v10215 = vadd.f32 %v10022, %v10214
  %v10216 = vpop.f32.mrf.mxu0
  %v10217 = vadd.f32 %v10022, %v10216
  %10218 = vmatmul.bf16.gmra.mxu0 %v9982
  %v10219 = vpop.f32.mrf.mxu0
  %v10220 = vadd.f32 %v10022, %v10219
  %v10221 = vpop.f32.mrf.mxu0
  %v10222 = vadd.f32 %v10022, %v10221
  %10223 = vmatmul.bf16.gmra.mxu0 %v9983
  %v10224 = vpop.f32.mrf.mxu0
  %v10225 = vadd.f32 %v10022, %v10224
  %v10226 = vpop.f32.mrf.mxu0
  %v10227 = vadd.f32 %v10022, %v10226
  %10228 = vmatmul.bf16.gmra.mxu0 %v9984
  %v10229 = vpop.f32.mrf.mxu0
  %v10230 = vadd.f32 %v10022, %v10229
  %v10231 = vpop.f32.mrf.mxu0
  %v10232 = vadd.f32 %v10022, %v10231
  %10233 = vmatmul.bf16.gmra.mxu0 %v9985
  %v10234 = vpop.f32.mrf.mxu0
  %v10235 = vadd.f32 %v10022, %v10234
  %v10236 = vpop.f32.mrf.mxu0
  %v10237 = vadd.f32 %v10022, %v10236
  %10238 = vdwg.mxu0
  %10239 = vmatpush.bf16.msra.mxu0 %v10155
  %10240 = vmatpush.bf16.msra.mxu0 %v10151
  %10241 = vmatpush.bf16.msra.mxu0 %v10147
  %10242 = vmatpush.bf16.msra.mxu0 %v10143
  %10243 = vmatpush.bf16.msra.mxu0 %v10139
  %10244 = vmatpush.bf16.msra.mxu0 %v10135
  %10245 = vmatpush.bf16.msra.mxu0 %v10131
  %10246 = vmatpush.bf16.msra.mxu0 %v10127
  %10247 = vmatmul.bf16.gmra.mxu0 %v9978
  %v10248 = vpop.f32.mrf.mxu0
  %v10249 = vadd.f32 %v10023, %v10248
  %v10250 = vpop.f32.mrf.mxu0
  %v10251 = vadd.f32 %v10023, %v10250
  %10252 = vmatmul.bf16.gmra.mxu0 %v9979
  %v10253 = vpop.f32.mrf.mxu0
  %v10254 = vadd.f32 %v10023, %v10253
  %v10255 = vpop.f32.mrf.mxu0
  %v10256 = vadd.f32 %v10023, %v10255
  %10257 = vmatmul.bf16.gmra.mxu0 %v9980
  %v10258 = vpop.f32.mrf.mxu0
  %v10259 = vadd.f32 %v10023, %v10258
  %v10260 = vpop.f32.mrf.mxu0
  %v10261 = vadd.f32 %v10023, %v10260
  %10262 = vmatmul.bf16.gmra.mxu0 %v9981
  %v10263 = vpop.f32.mrf.mxu0
  %v10264 = vadd.f32 %v10023, %v10263
  %v10265 = vpop.f32.mrf.mxu0
  %v10266 = vadd.f32 %v10023, %v10265
  %10267 = vmatmul.bf16.gmra.mxu0 %v9982
  %v10268 = vpop.f32.mrf.mxu0
  %v10269 = vadd.f32 %v10023, %v10268
  %v10270 = vpop.f32.mrf.mxu0
  %v10271 = vadd.f32 %v10023, %v10270
  %10272 = vmatmul.bf16.gmra.mxu0 %v9983
  %v10273 = vpop.f32.mrf.mxu0
  %v10274 = vadd.f32 %v10023, %v10273
  %v10275 = vpop.f32.mrf.mxu0
  %v10276 = vadd.f32 %v10023, %v10275
  %10277 = vmatmul.bf16.gmra.mxu0 %v9984
  %v10278 = vpop.f32.mrf.mxu0
  %v10279 = vadd.f32 %v10023, %v10278
  %v10280 = vpop.f32.mrf.mxu0
  %v10281 = vadd.f32 %v10023, %v10280
  %10282 = vmatmul.bf16.gmra.mxu0 %v9985
  %v10283 = vpop.f32.mrf.mxu0
  %v10284 = vadd.f32 %v10023, %v10283
  %v10285 = vpop.f32.mrf.mxu0
  %v10286 = vadd.f32 %v10023, %v10285
  %10287 = vdwg.mxu0
  %10288 = vmatpush.bf16.msra.mxu0 %v10156
  %10289 = vmatpush.bf16.msra.mxu0 %v10152
  %10290 = vmatpush.bf16.msra.mxu0 %v10148
  %10291 = vmatpush.bf16.msra.mxu0 %v10144
  %10292 = vmatpush.bf16.msra.mxu0 %v10140
  %10293 = vmatpush.bf16.msra.mxu0 %v10136
  %10294 = vmatpush.bf16.msra.mxu0 %v10132
  %10295 = vmatpush.bf16.msra.mxu0 %v10128
  %10296 = vmatmul.bf16.gmra.mxu0 %v9978
  %v10297 = vpop.f32.mrf.mxu0
  %v10298 = vadd.f32 %v10024, %v10297
  %v10299 = vpop.f32.mrf.mxu0
  %v10300 = vadd.f32 %v10024, %v10299
  %10301 = vmatmul.bf16.gmra.mxu0 %v9979
  %v10302 = vpop.f32.mrf.mxu0
  %v10303 = vadd.f32 %v10024, %v10302
  %v10304 = vpop.f32.mrf.mxu0
  %v10305 = vadd.f32 %v10024, %v10304
  %10306 = vmatmul.bf16.gmra.mxu0 %v9980
  %v10307 = vpop.f32.mrf.mxu0
  %v10308 = vadd.f32 %v10024, %v10307
  %v10309 = vpop.f32.mrf.mxu0
  %v10310 = vadd.f32 %v10024, %v10309
  %10311 = vmatmul.bf16.gmra.mxu0 %v9981
  %v10312 = vpop.f32.mrf.mxu0
  %v10313 = vadd.f32 %v10024, %v10312
  %v10314 = vpop.f32.mrf.mxu0
  %v10315 = vadd.f32 %v10024, %v10314
  %10316 = vmatmul.bf16.gmra.mxu0 %v9982
  %v10317 = vpop.f32.mrf.mxu0
  %v10318 = vadd.f32 %v10024, %v10317
  %v10319 = vpop.f32.mrf.mxu0
  %v10320 = vadd.f32 %v10024, %v10319
  %10321 = vmatmul.bf16.gmra.mxu0 %v9983
  %v10322 = vpop.f32.mrf.mxu0
  %v10323 = vadd.f32 %v10024, %v10322
  %v10324 = vpop.f32.mrf.mxu0
  %v10325 = vadd.f32 %v10024, %v10324
  %10326 = vmatmul.bf16.gmra.mxu0 %v9984
  %v10327 = vpop.f32.mrf.mxu0
  %v10328 = vadd.f32 %v10024, %v10327
  %v10329 = vpop.f32.mrf.mxu0
  %v10330 = vadd.f32 %v10024, %v10329
  %10331 = vmatmul.bf16.gmra.mxu0 %v9985
  %v10332 = vpop.f32.mrf.mxu0
  %v10333 = vadd.f32 %v10024, %v10332
  %v10334 = vpop.f32.mrf.mxu0
  %v10335 = vadd.f32 %v10024, %v10334
  %10336 = vdwg.mxu0
  %10337 = vmatpush.bf16.msra.mxu0 %v10157
  %10338 = vmatpush.bf16.msra.mxu0 %v10153
  %10339 = vmatpush.bf16.msra.mxu0 %v10149
  %10340 = vmatpush.bf16.msra.mxu0 %v10145
  %10341 = vmatpush.bf16.msra.mxu0 %v10141
  %10342 = vmatpush.bf16.msra.mxu0 %v10137
  %10343 = vmatpush.bf16.msra.mxu0 %v10133
  %10344 = vmatpush.bf16.msra.mxu0 %v10129
  %10345 = vmatmul.bf16.gmra.mxu0 %v9978
  %v10346 = vpop.f32.mrf.mxu0
  %v10347 = vadd.f32 %v10025, %v10346
  %v10348 = vpop.f32.mrf.mxu0
  %v10349 = vadd.f32 %v10025, %v10348
  %10350 = vmatmul.bf16.gmra.mxu0 %v9979
  %v10351 = vpop.f32.mrf.mxu0
  %v10352 = vadd.f32 %v10025, %v10351
  %v10353 = vpop.f32.mrf.mxu0
  %v10354 = vadd.f32 %v10025, %v10353
  %10355 = vmatmul.bf16.gmra.mxu0 %v9980
  %v10356 = vpop.f32.mrf.mxu0
  %v10357 = vadd.f32 %v10025, %v10356
  %v10358 = vpop.f32.mrf.mxu0
  %v10359 = vadd.f32 %v10025, %v10358
  %10360 = vmatmul.bf16.gmra.mxu0 %v9981
  %v10361 = vpop.f32.mrf.mxu0
  %v10362 = vadd.f32 %v10025, %v10361
  %v10363 = vpop.f32.mrf.mxu0
  %v10364 = vadd.f32 %v10025, %v10363
  %10365 = vmatmul.bf16.gmra.mxu0 %v9982
  %v10366 = vpop.f32.mrf.mxu0
  %v10367 = vadd.f32 %v10025, %v10366
  %v10368 = vpop.f32.mrf.mxu0
  %v10369 = vadd.f32 %v10025, %v10368
  %10370 = vmatmul.bf16.gmra.mxu0 %v9983
  %v10371 = vpop.f32.mrf.mxu0
  %v10372 = vadd.f32 %v10025, %v10371
  %v10373 = vpop.f32.mrf.mxu0
  %v10374 = vadd.f32 %v10025, %v10373
  %10375 = vmatmul.bf16.gmra.mxu0 %v9984
  %v10376 = vpop.f32.mrf.mxu0
  %v10377 = vadd.f32 %v10025, %v10376
  %v10378 = vpop.f32.mrf.mxu0
  %v10379 = vadd.f32 %v10025, %v10378
  %10380 = vmatmul.bf16.gmra.mxu0 %v9985
  %v10381 = vpop.f32.mrf.mxu0
  %v10382 = vadd.f32 %v10025, %v10381
  %v10383 = vpop.f32.mrf.mxu0
  %v10384 = vadd.f32 %v10025, %v10383
  %10385 = vdwg.mxu0
  %v10386 = vmul.f32 %v10200, %v10200
  %v10387 = vmul.f32 %v10249, %v10249
  %v10388 = vmul.f32 %v10298, %v10298
  %v10389 = vmul.f32 %v10347, %v10347
  %v10390 = vmul.f32 %v10202, %v10202
  %v10391 = vmul.f32 %v10251, %v10251
  %v10392 = vmul.f32 %v10300, %v10300
  %v10393 = vmul.f32 %v10349, %v10349
  %v10394 = vmul.f32 %v10205, %v10205
  %v10395 = vmul.f32 %v10254, %v10254
  %v10396 = vmul.f32 %v10303, %v10303
  %v10397 = vmul.f32 %v10352, %v10352
  %v10398 = vmul.f32 %v10207, %v10207
  %v10399 = vmul.f32 %v10256, %v10256
  %v10400 = vmul.f32 %v10305, %v10305
  %v10401 = vmul.f32 %v10354, %v10354
  %v10402 = vmul.f32 %v10210, %v10210
  %v10403 = vmul.f32 %v10259, %v10259
  %v10404 = vmul.f32 %v10308, %v10308
  %v10405 = vmul.f32 %v10357, %v10357
  %v10406 = vmul.f32 %v10212, %v10212
  %v10407 = vmul.f32 %v10261, %v10261
  %v10408 = vmul.f32 %v10310, %v10310
  %v10409 = vmul.f32 %v10359, %v10359
  %v10410 = vmul.f32 %v10215, %v10215
  %v10411 = vmul.f32 %v10264, %v10264
  %v10412 = vmul.f32 %v10313, %v10313
  %v10413 = vmul.f32 %v10362, %v10362
  %v10414 = vmul.f32 %v10217, %v10217
  %v10415 = vmul.f32 %v10266, %v10266
  %v10416 = vmul.f32 %v10315, %v10315
  %v10417 = vmul.f32 %v10364, %v10364
  %v10418 = vmul.f32 %v10220, %v10220
  %v10419 = vmul.f32 %v10269, %v10269
  %v10420 = vmul.f32 %v10318, %v10318
  %v10421 = vmul.f32 %v10367, %v10367
  %v10422 = vmul.f32 %v10222, %v10222
  %v10423 = vmul.f32 %v10271, %v10271
  %v10424 = vmul.f32 %v10320, %v10320
  %v10425 = vmul.f32 %v10369, %v10369
  %v10426 = vmul.f32 %v10225, %v10225
  %v10427 = vmul.f32 %v10274, %v10274
  %v10428 = vmul.f32 %v10323, %v10323
  %v10429 = vmul.f32 %v10372, %v10372
  %v10430 = vmul.f32 %v10227, %v10227
  %v10431 = vmul.f32 %v10276, %v10276
  %v10432 = vmul.f32 %v10325, %v10325
  %v10433 = vmul.f32 %v10374, %v10374
  %v10434 = vmul.f32 %v10230, %v10230
  %v10435 = vmul.f32 %v10279, %v10279
  %v10436 = vmul.f32 %v10328, %v10328
  %v10437 = vmul.f32 %v10377, %v10377
  %v10438 = vmul.f32 %v10232, %v10232
  %v10439 = vmul.f32 %v10281, %v10281
  %v10440 = vmul.f32 %v10330, %v10330
  %v10441 = vmul.f32 %v10379, %v10379
  %v10442 = vmul.f32 %v10235, %v10235
  %v10443 = vmul.f32 %v10284, %v10284
  %v10444 = vmul.f32 %v10333, %v10333
  %v10445 = vmul.f32 %v10382, %v10382
  %v10446 = vmul.f32 %v10237, %v10237
  %v10447 = vmul.f32 %v10286, %v10286
  %v10448 = vmul.f32 %v10335, %v10335
  %v10449 = vmul.f32 %v10384, %v10384
  %v10450 = vmul.f32 %v10200, %v10386
  %v10451 = vmul.f32 %v10249, %v10387
  %v10452 = vmul.f32 %v10298, %v10388
  %v10453 = vmul.f32 %v10347, %v10389
  %v10454 = vmul.f32 %v10202, %v10390
  %v10455 = vmul.f32 %v10251, %v10391
  %v10456 = vmul.f32 %v10300, %v10392
  %v10457 = vmul.f32 %v10349, %v10393
  %v10458 = vmul.f32 %v10205, %v10394
  %v10459 = vmul.f32 %v10254, %v10395
  %v10460 = vmul.f32 %v10303, %v10396
  %v10461 = vmul.f32 %v10352, %v10397
  %v10462 = vmul.f32 %v10207, %v10398
  %v10463 = vmul.f32 %v10256, %v10399
  %v10464 = vmul.f32 %v10305, %v10400
  %v10465 = vmul.f32 %v10354, %v10401
  %v10466 = vmul.f32 %v10210, %v10402
  %v10467 = vmul.f32 %v10259, %v10403
  %v10468 = vmul.f32 %v10308, %v10404
  %v10469 = vmul.f32 %v10357, %v10405
  %v10470 = vmul.f32 %v10212, %v10406
  %v10471 = vmul.f32 %v10261, %v10407
  %v10472 = vmul.f32 %v10310, %v10408
  %v10473 = vmul.f32 %v10359, %v10409
  %v10474 = vmul.f32 %v10215, %v10410
  %v10475 = vmul.f32 %v10264, %v10411
  %v10476 = vmul.f32 %v10313, %v10412
  %v10477 = vmul.f32 %v10362, %v10413
  %v10478 = vmul.f32 %v10217, %v10414
  %v10479 = vmul.f32 %v10266, %v10415
  %v10480 = vmul.f32 %v10315, %v10416
  %v10481 = vmul.f32 %v10364, %v10417
  %v10482 = vmul.f32 %v10220, %v10418
  %v10483 = vmul.f32 %v10269, %v10419
  %v10484 = vmul.f32 %v10318, %v10420
  %v10485 = vmul.f32 %v10367, %v10421
  %v10486 = vmul.f32 %v10222, %v10422
  %v10487 = vmul.f32 %v10271, %v10423
  %v10488 = vmul.f32 %v10320, %v10424
  %v10489 = vmul.f32 %v10369, %v10425
  %v10490 = vmul.f32 %v10225, %v10426
  %v10491 = vmul.f32 %v10274, %v10427
  %v10492 = vmul.f32 %v10323, %v10428
  %v10493 = vmul.f32 %v10372, %v10429
  %v10494 = vmul.f32 %v10227, %v10430
  %v10495 = vmul.f32 %v10276, %v10431
  %v10496 = vmul.f32 %v10325, %v10432
  %v10497 = vmul.f32 %v10374, %v10433
  %v10498 = vmul.f32 %v10230, %v10434
  %v10499 = vmul.f32 %v10279, %v10435
  %v10500 = vmul.f32 %v10328, %v10436
  %v10501 = vmul.f32 %v10377, %v10437
  %v10502 = vmul.f32 %v10232, %v10438
  %v10503 = vmul.f32 %v10281, %v10439
  %v10504 = vmul.f32 %v10330, %v10440
  %v10505 = vmul.f32 %v10379, %v10441
  %v10506 = vmul.f32 %v10235, %v10442
  %v10507 = vmul.f32 %v10284, %v10443
  %v10508 = vmul.f32 %v10333, %v10444
  %v10509 = vmul.f32 %v10382, %v10445
  %v10510 = vmul.f32 %v10237, %v10446
  %v10511 = vmul.f32 %v10286, %v10447
  %v10512 = vmul.f32 %v10335, %v10448
  %v10513 = vmul.f32 %v10384, %v10449
  %v10514 = vmul.f32 %v10450, 0.044715
  %v10515 = vmul.f32 %v10451, 0.044715
  %v10516 = vmul.f32 %v10452, 0.044715
  %v10517 = vmul.f32 %v10453, 0.044715
  %v10518 = vmul.f32 %v10454, 0.044715
  %v10519 = vmul.f32 %v10455, 0.044715
  %v10520 = vmul.f32 %v10456, 0.044715
  %v10521 = vmul.f32 %v10457, 0.044715
  %v10522 = vmul.f32 %v10458, 0.044715
  %v10523 = vmul.f32 %v10459, 0.044715
  %v10524 = vmul.f32 %v10460, 0.044715
  %v10525 = vmul.f32 %v10461, 0.044715
  %v10526 = vmul.f32 %v10462, 0.044715
  %v10527 = vmul.f32 %v10463, 0.044715
  %v10528 = vmul.f32 %v10464, 0.044715
  %v10529 = vmul.f32 %v10465, 0.044715
  %v10530 = vmul.f32 %v10466, 0.044715
  %v10531 = vmul.f32 %v10467, 0.044715
  %v10532 = vmul.f32 %v10468, 0.044715
  %v10533 = vmul.f32 %v10469, 0.044715
  %v10534 = vmul.f32 %v10470, 0.044715
  %v10535 = vmul.f32 %v10471, 0.044715
  %v10536 = vmul.f32 %v10472, 0.044715
  %v10537 = vmul.f32 %v10473, 0.044715
  %v10538 = vmul.f32 %v10474, 0.044715
  %v10539 = vmul.f32 %v10475, 0.044715
  %v10540 = vmul.f32 %v10476, 0.044715
  %v10541 = vmul.f32 %v10477, 0.044715
  %v10542 = vmul.f32 %v10478, 0.044715
  %v10543 = vmul.f32 %v10479, 0.044715
  %v10544 = vmul.f32 %v10480, 0.044715
  %v10545 = vmul.f32 %v10481, 0.044715
  %v10546 = vmul.f32 %v10482, 0.044715
  %v10547 = vmul.f32 %v10483, 0.044715
  %v10548 = vmul.f32 %v10484, 0.044715
  %v10549 = vmul.f32 %v10485, 0.044715
  %v10550 = vmul.f32 %v10486, 0.044715
  %v10551 = vmul.f32 %v10487, 0.044715
  %v10552 = vmul.f32 %v10488, 0.044715
  %v10553 = vmul.f32 %v10489, 0.044715
  %v10554 = vmul.f32 %v10490, 0.044715
  %v10555 = vmul.f32 %v10491, 0.044715
  %v10556 = vmul.f32 %v10492, 0.044715
  %v10557 = vmul.f32 %v10493, 0.044715
  %v10558 = vmul.f32 %v10494, 0.044715
  %v10559 = vmul.f32 %v10495, 0.044715
  %v10560 = vmul.f32 %v10496, 0.044715
  %v10561 = vmul.f32 %v10497, 0.044715
  %v10562 = vmul.f32 %v10498, 0.044715
  %v10563 = vmul.f32 %v10499, 0.044715
  %v10564 = vmul.f32 %v10500, 0.044715
  %v10565 = vmul.f32 %v10501, 0.044715
  %v10566 = vmul.f32 %v10502, 0.044715
  %v10567 = vmul.f32 %v10503, 0.044715
  %v10568 = vmul.f32 %v10504, 0.044715
  %v10569 = vmul.f32 %v10505, 0.044715
  %v10570 = vmul.f32 %v10506, 0.044715
  %v10571 = vmul.f32 %v10507, 0.044715
  %v10572 = vmul.f32 %v10508, 0.044715
  %v10573 = vmul.f32 %v10509, 0.044715
  %v10574 = vmul.f32 %v10510, 0.044715
  %v10575 = vmul.f32 %v10511, 0.044715
  %v10576 = vmul.f32 %v10512, 0.044715
  %v10577 = vmul.f32 %v10513, 0.044715
  %v10578 = vadd.f32 %v10200, %v10514
  %v10579 = vadd.f32 %v10249, %v10515
  %v10580 = vadd.f32 %v10298, %v10516
  %v10581 = vadd.f32 %v10347, %v10517
  %v10582 = vadd.f32 %v10202, %v10518
  %v10583 = vadd.f32 %v10251, %v10519
  %v10584 = vadd.f32 %v10300, %v10520
  %v10585 = vadd.f32 %v10349, %v10521
  %v10586 = vadd.f32 %v10205, %v10522
  %v10587 = vadd.f32 %v10254, %v10523
  %v10588 = vadd.f32 %v10303, %v10524
  %v10589 = vadd.f32 %v10352, %v10525
  %v10590 = vadd.f32 %v10207, %v10526
  %v10591 = vadd.f32 %v10256, %v10527
  %v10592 = vadd.f32 %v10305, %v10528
  %v10593 = vadd.f32 %v10354, %v10529
  %v10594 = vadd.f32 %v10210, %v10530
  %v10595 = vadd.f32 %v10259, %v10531
  %v10596 = vadd.f32 %v10308, %v10532
  %v10597 = vadd.f32 %v10357, %v10533
  %v10598 = vadd.f32 %v10212, %v10534
  %v10599 = vadd.f32 %v10261, %v10535
  %v10600 = vadd.f32 %v10310, %v10536
  %v10601 = vadd.f32 %v10359, %v10537
  %v10602 = vadd.f32 %v10215, %v10538
  %v10603 = vadd.f32 %v10264, %v10539
  %v10604 = vadd.f32 %v10313, %v10540
  %v10605 = vadd.f32 %v10362, %v10541
  %v10606 = vadd.f32 %v10217, %v10542
  %v10607 = vadd.f32 %v10266, %v10543
  %v10608 = vadd.f32 %v10315, %v10544
  %v10609 = vadd.f32 %v10364, %v10545
  %v10610 = vadd.f32 %v10220, %v10546
  %v10611 = vadd.f32 %v10269, %v10547
  %v10612 = vadd.f32 %v10318, %v10548
  %v10613 = vadd.f32 %v10367, %v10549
  %v10614 = vadd.f32 %v10222, %v10550
  %v10615 = vadd.f32 %v10271, %v10551
  %v10616 = vadd.f32 %v10320, %v10552
  %v10617 = vadd.f32 %v10369, %v10553
  %v10618 = vadd.f32 %v10225, %v10554
  %v10619 = vadd.f32 %v10274, %v10555
  %v10620 = vadd.f32 %v10323, %v10556
  %v10621 = vadd.f32 %v10372, %v10557
  %v10622 = vadd.f32 %v10227, %v10558
  %v10623 = vadd.f32 %v10276, %v10559
  %v10624 = vadd.f32 %v10325, %v10560
  %v10625 = vadd.f32 %v10374, %v10561
  %v10626 = vadd.f32 %v10230, %v10562
  %v10627 = vadd.f32 %v10279, %v10563
  %v10628 = vadd.f32 %v10328, %v10564
  %v10629 = vadd.f32 %v10377, %v10565
  %v10630 = vadd.f32 %v10232, %v10566
  %v10631 = vadd.f32 %v10281, %v10567
  %v10632 = vadd.f32 %v10330, %v10568
  %v10633 = vadd.f32 %v10379, %v10569
  %v10634 = vadd.f32 %v10235, %v10570
  %v10635 = vadd.f32 %v10284, %v10571
  %v10636 = vadd.f32 %v10333, %v10572
  %v10637 = vadd.f32 %v10382, %v10573
  %v10638 = vadd.f32 %v10237, %v10574
  %v10639 = vadd.f32 %v10286, %v10575
  %v10640 = vadd.f32 %v10335, %v10576
  %v10641 = vadd.f32 %v10384, %v10577
  %v10642 = vmul.f32 %v10578, 0.7978846
  %v10643 = vmul.f32 %v10579, 0.7978846
  %v10644 = vmul.f32 %v10580, 0.7978846
  %v10645 = vmul.f32 %v10581, 0.7978846
  %v10646 = vmul.f32 %v10582, 0.7978846
  %v10647 = vmul.f32 %v10583, 0.7978846
  %v10648 = vmul.f32 %v10584, 0.7978846
  %v10649 = vmul.f32 %v10585, 0.7978846
  %v10650 = vmul.f32 %v10586, 0.7978846
  %v10651 = vmul.f32 %v10587, 0.7978846
  %v10652 = vmul.f32 %v10588, 0.7978846
  %v10653 = vmul.f32 %v10589, 0.7978846
  %v10654 = vmul.f32 %v10590, 0.7978846
  %v10655 = vmul.f32 %v10591, 0.7978846
  %v10656 = vmul.f32 %v10592, 0.7978846
  %v10657 = vmul.f32 %v10593, 0.7978846
  %v10658 = vmul.f32 %v10594, 0.7978846
  %v10659 = vmul.f32 %v10595, 0.7978846
  %v10660 = vmul.f32 %v10596, 0.7978846
  %v10661 = vmul.f32 %v10597, 0.7978846
  %v10662 = vmul.f32 %v10598, 0.7978846
  %v10663 = vmul.f32 %v10599, 0.7978846
  %v10664 = vmul.f32 %v10600, 0.7978846
  %v10665 = vmul.f32 %v10601, 0.7978846
  %v10666 = vmul.f32 %v10602, 0.7978846
  %v10667 = vmul.f32 %v10603, 0.7978846
  %v10668 = vmul.f32 %v10604, 0.7978846
  %v10669 = vmul.f32 %v10605, 0.7978846
  %v10670 = vmul.f32 %v10606, 0.7978846
  %v10671 = vmul.f32 %v10607, 0.7978846
  %v10672 = vmul.f32 %v10608, 0.7978846
  %v10673 = vmul.f32 %v10609, 0.7978846
  %v10674 = vmul.f32 %v10610, 0.7978846
  %v10675 = vmul.f32 %v10611, 0.7978846
  %v10676 = vmul.f32 %v10612, 0.7978846
  %v10677 = vmul.f32 %v10613, 0.7978846
  %v10678 = vmul.f32 %v10614, 0.7978846
  %v10679 = vmul.f32 %v10615, 0.7978846
  %v10680 = vmul.f32 %v10616, 0.7978846
  %v10681 = vmul.f32 %v10617, 0.7978846
  %v10682 = vmul.f32 %v10618, 0.7978846
  %v10683 = vmul.f32 %v10619, 0.7978846
  %v10684 = vmul.f32 %v10620, 0.7978846
  %v10685 = vmul.f32 %v10621, 0.7978846
  %v10686 = vmul.f32 %v10622, 0.7978846
  %v10687 = vmul.f32 %v10623, 0.7978846
  %v10688 = vmul.f32 %v10624, 0.7978846
  %v10689 = vmul.f32 %v10625, 0.7978846
  %v10690 = vmul.f32 %v10626, 0.7978846
  %v10691 = vmul.f32 %v10627, 0.7978846
  %v10692 = vmul.f32 %v10628, 0.7978846
  %v10693 = vmul.f32 %v10629, 0.7978846
  %v10694 = vmul.f32 %v10630, 0.7978846
  %v10695 = vmul.f32 %v10631, 0.7978846
  %v10696 = vmul.f32 %v10632, 0.7978846
  %v10697 = vmul.f32 %v10633, 0.7978846
  %v10698 = vmul.f32 %v10634, 0.7978846
  %v10699 = vmul.f32 %v10635, 0.7978846
  %v10700 = vmul.f32 %v10636, 0.7978846
  %v10701 = vmul.f32 %v10637, 0.7978846
  %v10702 = vmul.f32 %v10638, 0.7978846
  %v10703 = vmul.f32 %v10639, 0.7978846
  %v10704 = vmul.f32 %v10640, 0.7978846
  %v10705 = vmul.f32 %v10641, 0.7978846
  %v10706 = vtanh.pop %v10642
  %v10707 = vtanh.pop %v10643
  %v10708 = vtanh.pop %v10644
  %v10709 = vtanh.pop %v10645
  %v10710 = vtanh.pop %v10646
  %v10711 = vtanh.pop %v10647
  %v10712 = vtanh.pop %v10648
  %v10713 = vtanh.pop %v10649
  %v10714 = vtanh.pop %v10650
  %v10715 = vtanh.pop %v10651
  %v10716 = vtanh.pop %v10652
  %v10717 = vtanh.pop %v10653
  %v10718 = vtanh.pop %v10654
  %v10719 = vtanh.pop %v10655
  %v10720 = vtanh.pop %v10656
  %v10721 = vtanh.pop %v10657
  %v10722 = vtanh.pop %v10658
  %v10723 = vtanh.pop %v10659
  %v10724 = vtanh.pop %v10660
  %v10725 = vtanh.pop %v10661
  %v10726 = vtanh.pop %v10662
  %v10727 = vtanh.pop %v10663
  %v10728 = vtanh.pop %v10664
  %v10729 = vtanh.pop %v10665
  %v10730 = vtanh.pop %v10666
  %v10731 = vtanh.pop %v10667
  %v10732 = vtanh.pop %v10668
  %v10733 = vtanh.pop %v10669
  %v10734 = vtanh.pop %v10670
  %v10735 = vtanh.pop %v10671
  %v10736 = vtanh.pop %v10672
  %v10737 = vtanh.pop %v10673
  %v10738 = vtanh.pop %v10674
  %v10739 = vtanh.pop %v10675
  %v10740 = vtanh.pop %v10676
  %v10741 = vtanh.pop %v10677
  %v10742 = vtanh.pop %v10678
  %v10743 = vtanh.pop %v10679
  %v10744 = vtanh.pop %v10680
  %v10745 = vtanh.pop %v10681
  %v10746 = vtanh.pop %v10682
  %v10747 = vtanh.pop %v10683
  %v10748 = vtanh.pop %v10684
  %v10749 = vtanh.pop %v10685
  %v10750 = vtanh.pop %v10686
  %v10751 = vtanh.pop %v10687
  %v10752 = vtanh.pop %v10688
  %v10753 = vtanh.pop %v10689
  %v10754 = vtanh.pop %v10690
  %v10755 = vtanh.pop %v10691
  %v10756 = vtanh.pop %v10692
  %v10757 = vtanh.pop %v10693
  %v10758 = vtanh.pop %v10694
  %v10759 = vtanh.pop %v10695
  %v10760 = vtanh.pop %v10696
  %v10761 = vtanh.pop %v10697
  %v10762 = vtanh.pop %v10698
  %v10763 = vtanh.pop %v10699
  %v10764 = vtanh.pop %v10700
  %v10765 = vtanh.pop %v10701
  %v10766 = vtanh.pop %v10702
  %v10767 = vtanh.pop %v10703
  %v10768 = vtanh.pop %v10704
  %v10769 = vtanh.pop %v10705
  %v10770 = vadd.f32 %v10706, 1.0
  %v10771 = vadd.f32 %v10707, 1.0
  %v10772 = vadd.f32 %v10708, 1.0
  %v10773 = vadd.f32 %v10709, 1.0
  %v10774 = vadd.f32 %v10710, 1.0
  %v10775 = vadd.f32 %v10711, 1.0
  %v10776 = vadd.f32 %v10712, 1.0
  %v10777 = vadd.f32 %v10713, 1.0
  %v10778 = vadd.f32 %v10714, 1.0
  %v10779 = vadd.f32 %v10715, 1.0
  %v10780 = vadd.f32 %v10716, 1.0
  %v10781 = vadd.f32 %v10717, 1.0
  %v10782 = vadd.f32 %v10718, 1.0
  %v10783 = vadd.f32 %v10719, 1.0
  %v10784 = vadd.f32 %v10720, 1.0
  %v10785 = vadd.f32 %v10721, 1.0
  %v10786 = vadd.f32 %v10722, 1.0
  %v10787 = vadd.f32 %v10723, 1.0
  %v10788 = vadd.f32 %v10724, 1.0
  %v10789 = vadd.f32 %v10725, 1.0
  %v10790 = vadd.f32 %v10726, 1.0
  %v10791 = vadd.f32 %v10727, 1.0
  %v10792 = vadd.f32 %v10728, 1.0
  %v10793 = vadd.f32 %v10729, 1.0
  %v10794 = vadd.f32 %v10730, 1.0
  %v10795 = vadd.f32 %v10731, 1.0
  %v10796 = vadd.f32 %v10732, 1.0
  %v10797 = vadd.f32 %v10733, 1.0
  %v10798 = vadd.f32 %v10734, 1.0
  %v10799 = vadd.f32 %v10735, 1.0
  %v10800 = vadd.f32 %v10736, 1.0
  %v10801 = vadd.f32 %v10737, 1.0
  %v10802 = vadd.f32 %v10738, 1.0
  %v10803 = vadd.f32 %v10739, 1.0
  %v10804 = vadd.f32 %v10740, 1.0
  %v10805 = vadd.f32 %v10741, 1.0
  %v10806 = vadd.f32 %v10742, 1.0
  %v10807 = vadd.f32 %v10743, 1.0
  %v10808 = vadd.f32 %v10744, 1.0
  %v10809 = vadd.f32 %v10745, 1.0
  %v10810 = vadd.f32 %v10746, 1.0
  %v10811 = vadd.f32 %v10747, 1.0
  %v10812 = vadd.f32 %v10748, 1.0
  %v10813 = vadd.f32 %v10749, 1.0
  %v10814 = vadd.f32 %v10750, 1.0
  %v10815 = vadd.f32 %v10751, 1.0
  %v10816 = vadd.f32 %v10752, 1.0
  %v10817 = vadd.f32 %v10753, 1.0
  %v10818 = vadd.f32 %v10754, 1.0
  %v10819 = vadd.f32 %v10755, 1.0
  %v10820 = vadd.f32 %v10756, 1.0
  %v10821 = vadd.f32 %v10757, 1.0
  %v10822 = vadd.f32 %v10758, 1.0
  %v10823 = vadd.f32 %v10759, 1.0
  %v10824 = vadd.f32 %v10760, 1.0
  %v10825 = vadd.f32 %v10761, 1.0
  %v10826 = vadd.f32 %v10762, 1.0
  %v10827 = vadd.f32 %v10763, 1.0
  %v10828 = vadd.f32 %v10764, 1.0
  %v10829 = vadd.f32 %v10765, 1.0
  %v10830 = vadd.f32 %v10766, 1.0
  %v10831 = vadd.f32 %v10767, 1.0
  %v10832 = vadd.f32 %v10768, 1.0
  %v10833 = vadd.f32 %v10769, 1.0
  %v10834 = vmul.f32 %v10770, 0.5
  %v10835 = vmul.f32 %v10771, 0.5
  %v10836 = vmul.f32 %v10772, 0.5
  %v10837 = vmul.f32 %v10773, 0.5
  %v10838 = vmul.f32 %v10774, 0.5
  %v10839 = vmul.f32 %v10775, 0.5
  %v10840 = vmul.f32 %v10776, 0.5
  %v10841 = vmul.f32 %v10777, 0.5
  %v10842 = vmul.f32 %v10778, 0.5
  %v10843 = vmul.f32 %v10779, 0.5
  %v10844 = vmul.f32 %v10780, 0.5
  %v10845 = vmul.f32 %v10781, 0.5
  %v10846 = vmul.f32 %v10782, 0.5
  %v10847 = vmul.f32 %v10783, 0.5
  %v10848 = vmul.f32 %v10784, 0.5
  %v10849 = vmul.f32 %v10785, 0.5
  %v10850 = vmul.f32 %v10786, 0.5
  %v10851 = vmul.f32 %v10787, 0.5
  %v10852 = vmul.f32 %v10788, 0.5
  %v10853 = vmul.f32 %v10789, 0.5
  %v10854 = vmul.f32 %v10790, 0.5
  %v10855 = vmul.f32 %v10791, 0.5
  %v10856 = vmul.f32 %v10792, 0.5
  %v10857 = vmul.f32 %v10793, 0.5
  %v10858 = vmul.f32 %v10794, 0.5
  %v10859 = vmul.f32 %v10795, 0.5
  %v10860 = vmul.f32 %v10796, 0.5
  %v10861 = vmul.f32 %v10797, 0.5
  %v10862 = vmul.f32 %v10798, 0.5
  %v10863 = vmul.f32 %v10799, 0.5
  %v10864 = vmul.f32 %v10800, 0.5
  %v10865 = vmul.f32 %v10801, 0.5
  %v10866 = vmul.f32 %v10802, 0.5
  %v10867 = vmul.f32 %v10803, 0.5
  %v10868 = vmul.f32 %v10804, 0.5
  %v10869 = vmul.f32 %v10805, 0.5
  %v10870 = vmul.f32 %v10806, 0.5
  %v10871 = vmul.f32 %v10807, 0.5
  %v10872 = vmul.f32 %v10808, 0.5
  %v10873 = vmul.f32 %v10809, 0.5
  %v10874 = vmul.f32 %v10810, 0.5
  %v10875 = vmul.f32 %v10811, 0.5
  %v10876 = vmul.f32 %v10812, 0.5
  %v10877 = vmul.f32 %v10813, 0.5
  %v10878 = vmul.f32 %v10814, 0.5
  %v10879 = vmul.f32 %v10815, 0.5
  %v10880 = vmul.f32 %v10816, 0.5
  %v10881 = vmul.f32 %v10817, 0.5
  %v10882 = vmul.f32 %v10818, 0.5
  %v10883 = vmul.f32 %v10819, 0.5
  %v10884 = vmul.f32 %v10820, 0.5
  %v10885 = vmul.f32 %v10821, 0.5
  %v10886 = vmul.f32 %v10822, 0.5
  %v10887 = vmul.f32 %v10823, 0.5
  %v10888 = vmul.f32 %v10824, 0.5
  %v10889 = vmul.f32 %v10825, 0.5
  %v10890 = vmul.f32 %v10826, 0.5
  %v10891 = vmul.f32 %v10827, 0.5
  %v10892 = vmul.f32 %v10828, 0.5
  %v10893 = vmul.f32 %v10829, 0.5
  %v10894 = vmul.f32 %v10830, 0.5
  %v10895 = vmul.f32 %v10831, 0.5
  %v10896 = vmul.f32 %v10832, 0.5
  %v10897 = vmul.f32 %v10833, 0.5
  %v10898 = vmul.f32 %v10200, %v10834
  %v10899 = vmul.f32 %v10249, %v10835
  %v10900 = vmul.f32 %v10298, %v10836
  %v10901 = vmul.f32 %v10347, %v10837
  %v10902 = vmul.f32 %v10202, %v10838
  %v10903 = vmul.f32 %v10251, %v10839
  %v10904 = vmul.f32 %v10300, %v10840
  %v10905 = vmul.f32 %v10349, %v10841
  %v10906 = vmul.f32 %v10205, %v10842
  %v10907 = vmul.f32 %v10254, %v10843
  %v10908 = vmul.f32 %v10303, %v10844
  %v10909 = vmul.f32 %v10352, %v10845
  %v10910 = vmul.f32 %v10207, %v10846
  %v10911 = vmul.f32 %v10256, %v10847
  %v10912 = vmul.f32 %v10305, %v10848
  %v10913 = vmul.f32 %v10354, %v10849
  %v10914 = vmul.f32 %v10210, %v10850
  %v10915 = vmul.f32 %v10259, %v10851
  %v10916 = vmul.f32 %v10308, %v10852
  %v10917 = vmul.f32 %v10357, %v10853
  %v10918 = vmul.f32 %v10212, %v10854
  %v10919 = vmul.f32 %v10261, %v10855
  %v10920 = vmul.f32 %v10310, %v10856
  %v10921 = vmul.f32 %v10359, %v10857
  %v10922 = vmul.f32 %v10215, %v10858
  %v10923 = vmul.f32 %v10264, %v10859
  %v10924 = vmul.f32 %v10313, %v10860
  %v10925 = vmul.f32 %v10362, %v10861
  %v10926 = vmul.f32 %v10217, %v10862
  %v10927 = vmul.f32 %v10266, %v10863
  %v10928 = vmul.f32 %v10315, %v10864
  %v10929 = vmul.f32 %v10364, %v10865
  %v10930 = vmul.f32 %v10220, %v10866
  %v10931 = vmul.f32 %v10269, %v10867
  %v10932 = vmul.f32 %v10318, %v10868
  %v10933 = vmul.f32 %v10367, %v10869
  %v10934 = vmul.f32 %v10222, %v10870
  %v10935 = vmul.f32 %v10271, %v10871
  %v10936 = vmul.f32 %v10320, %v10872
  %v10937 = vmul.f32 %v10369, %v10873
  %v10938 = vmul.f32 %v10225, %v10874
  %v10939 = vmul.f32 %v10274, %v10875
  %v10940 = vmul.f32 %v10323, %v10876
  %v10941 = vmul.f32 %v10372, %v10877
  %v10942 = vmul.f32 %v10227, %v10878
  %v10943 = vmul.f32 %v10276, %v10879
  %v10944 = vmul.f32 %v10325, %v10880
  %v10945 = vmul.f32 %v10374, %v10881
  %v10946 = vmul.f32 %v10230, %v10882
  %v10947 = vmul.f32 %v10279, %v10883
  %v10948 = vmul.f32 %v10328, %v10884
  %v10949 = vmul.f32 %v10377, %v10885
  %v10950 = vmul.f32 %v10232, %v10886
  %v10951 = vmul.f32 %v10281, %v10887
  %v10952 = vmul.f32 %v10330, %v10888
  %v10953 = vmul.f32 %v10379, %v10889
  %v10954 = vmul.f32 %v10235, %v10890
  %v10955 = vmul.f32 %v10284, %v10891
  %v10956 = vmul.f32 %v10333, %v10892
  %v10957 = vmul.f32 %v10382, %v10893
  %v10958 = vmul.f32 %v10237, %v10894
  %v10959 = vmul.f32 %v10286, %v10895
  %v10960 = vmul.f32 %v10335, %v10896
  %v10961 = vmul.f32 %v10384, %v10897
  %v10962 = vpack.c.bf16 %v10902, %v10898
  %v10963 = vpack.c.bf16 %v10903, %v10899
  %v10964 = vpack.c.bf16 %v10904, %v10900
  %v10965 = vpack.c.bf16 %v10905, %v10901
  %v10966 = vpack.c.bf16 %v10910, %v10906
  %v10967 = vpack.c.bf16 %v10911, %v10907
  %v10968 = vpack.c.bf16 %v10912, %v10908
  %v10969 = vpack.c.bf16 %v10913, %v10909
  %v10970 = vpack.c.bf16 %v10918, %v10914
  %v10971 = vpack.c.bf16 %v10919, %v10915
  %v10972 = vpack.c.bf16 %v10920, %v10916
  %v10973 = vpack.c.bf16 %v10921, %v10917
  %v10974 = vpack.c.bf16 %v10926, %v10922
  %v10975 = vpack.c.bf16 %v10927, %v10923
  %v10976 = vpack.c.bf16 %v10928, %v10924
  %v10977 = vpack.c.bf16 %v10929, %v10925
  %v10978 = vpack.c.bf16 %v10934, %v10930
  %v10979 = vpack.c.bf16 %v10935, %v10931
  %v10980 = vpack.c.bf16 %v10936, %v10932
  %v10981 = vpack.c.bf16 %v10937, %v10933
  %v10982 = vpack.c.bf16 %v10942, %v10938
  %v10983 = vpack.c.bf16 %v10943, %v10939
  %v10984 = vpack.c.bf16 %v10944, %v10940
  %v10985 = vpack.c.bf16 %v10945, %v10941
  %v10986 = vpack.c.bf16 %v10950, %v10946
  %v10987 = vpack.c.bf16 %v10951, %v10947
  %v10988 = vpack.c.bf16 %v10952, %v10948
  %v10989 = vpack.c.bf16 %v10953, %v10949
  %v10990 = vpack.c.bf16 %v10958, %v10954
  %v10991 = vpack.c.bf16 %v10959, %v10955
  %v10992 = vpack.c.bf16 %v10960, %v10956
  %v10993 = vpack.c.bf16 %v10961, %v10957
  %s10994 = scalar_lea.vmem %s15, 256
  %v10995 = vld [vmem:[%s10994] sm:$0xf]
  %v10996 = vld [vmem:[%s10994 + $0x4] sm:$0xf]
  %v10997 = vld [vmem:[%s10994 + $0x8] sm:$0xf]
  %v10998 = vld [vmem:[%s10994 + $0xc] sm:$0xf]
  %v10999 = vld [vmem:[%s10994 + $0x10] sm:$0xf]
  %v11000 = vld [vmem:[%s10994 + $0x14] sm:$0xf]
  %v11001 = vld [vmem:[%s10994 + $0x18] sm:$0xf]
  %v11002 = vld [vmem:[%s10994 + $0x1c] sm:$0xf]
  %v11003 = vld [vmem:[%s10994 + $0x20] sm:$0xf]
  %v11004 = vld [vmem:[%s10994 + $0x24] sm:$0xf]
  %v11005 = vld [vmem:[%s10994 + $0x28] sm:$0xf]
  %v11006 = vld [vmem:[%s10994 + $0x2c] sm:$0xf]
  %v11007 = vld [vmem:[%s10994 + $0x30] sm:$0xf]
  %v11008 = vld [vmem:[%s10994 + $0x34] sm:$0xf]
  %v11009 = vld [vmem:[%s10994 + $0x38] sm:$0xf]
  %v11010 = vld [vmem:[%s10994 + $0x3c] sm:$0xf]
  %v11011 = vld [vmem:[%s10994 + $0x40] sm:$0xf]
  %v11012 = vld [vmem:[%s10994 + $0x44] sm:$0xf]
  %v11013 = vld [vmem:[%s10994 + $0x48] sm:$0xf]
  %v11014 = vld [vmem:[%s10994 + $0x4c] sm:$0xf]
  %v11015 = vld [vmem:[%s10994 + $0x50] sm:$0xf]
  %v11016 = vld [vmem:[%s10994 + $0x54] sm:$0xf]
  %v11017 = vld [vmem:[%s10994 + $0x58] sm:$0xf]
  %v11018 = vld [vmem:[%s10994 + $0x5c] sm:$0xf]
  %v11019 = vld [vmem:[%s10994 + $0x60] sm:$0xf]
  %v11020 = vld [vmem:[%s10994 + $0x64] sm:$0xf]
  %v11021 = vld [vmem:[%s10994 + $0x68] sm:$0xf]
  %v11022 = vld [vmem:[%s10994 + $0x6c] sm:$0xf]
  %v11023 = vld [vmem:[%s10994 + $0x70] sm:$0xf]
  %v11024 = vld [vmem:[%s10994 + $0x74] sm:$0xf]
  %v11025 = vld [vmem:[%s10994 + $0x78] sm:$0xf]
  %v11026 = vld [vmem:[%s10994 + $0x7c] sm:$0xf]
  %v11027 = vld [vmem:[%s10994 + $0x80] sm:$0xf]
  %v11028 = vld [vmem:[%s10994 + $0x84] sm:$0xf]
  %v11029 = vld [vmem:[%s10994 + $0x88] sm:$0xf]
  %v11030 = vld [vmem:[%s10994 + $0x8c] sm:$0xf]
  %v11031 = vld [vmem:[%s10994 + $0x90] sm:$0xf]
  %v11032 = vld [vmem:[%s10994 + $0x94] sm:$0xf]
  %v11033 = vld [vmem:[%s10994 + $0x98] sm:$0xf]
  %v11034 = vld [vmem:[%s10994 + $0x9c] sm:$0xf]
  %v11035 = vld [vmem:[%s10994 + $0xa0] sm:$0xf]
  %v11036 = vld [vmem:[%s10994 + $0xa4] sm:$0xf]
  %v11037 = vld [vmem:[%s10994 + $0xa8] sm:$0xf]
  %v11038 = vld [vmem:[%s10994 + $0xac] sm:$0xf]
  %v11039 = vld [vmem:[%s10994 + $0xb0] sm:$0xf]
  %v11040 = vld [vmem:[%s10994 + $0xb4] sm:$0xf]
  %v11041 = vld [vmem:[%s10994 + $0xb8] sm:$0xf]
  %v11042 = vld [vmem:[%s10994 + $0xbc] sm:$0xf]
  %v11043 = vld [vmem:[%s10994 + $0xc0] sm:$0xf]
  %v11044 = vld [vmem:[%s10994 + $0xc4] sm:$0xf]
  %v11045 = vld [vmem:[%s10994 + $0xc8] sm:$0xf]
  %v11046 = vld [vmem:[%s10994 + $0xcc] sm:$0xf]
  %v11047 = vld [vmem:[%s10994 + $0xd0] sm:$0xf]
  %v11048 = vld [vmem:[%s10994 + $0xd4] sm:$0xf]
  %v11049 = vld [vmem:[%s10994 + $0xd8] sm:$0xf]
  %v11050 = vld [vmem:[%s10994 + $0xdc] sm:$0xf]
  %v11051 = vld [vmem:[%s10994 + $0xe0] sm:$0xf]
  %v11052 = vld [vmem:[%s10994 + $0xe4] sm:$0xf]
  %v11053 = vld [vmem:[%s10994 + $0xe8] sm:$0xf]
  %v11054 = vld [vmem:[%s10994 + $0xec] sm:$0xf]
  %v11055 = vld [vmem:[%s10994 + $0xf0] sm:$0xf]
  %v11056 = vld [vmem:[%s10994 + $0xf4] sm:$0xf]
  %v11057 = vld [vmem:[%s10994 + $0xf8] sm:$0xf]
  %v11058 = vld [vmem:[%s10994 + $0xfc] sm:$0xf]
  %s11059 = scalar_lea.vmem %s16, 1
  %v11060 = vld [vmem:[%s11059] sm:$0x1]
  %v11062 = vperm.slane %v11060, 0
  %v11128 = vunpack.c.l.b16 %v10995
  %v11129 = vunpack.c.l.b16 %v10996
  %v11130 = vunpack.c.l.b16 %v10997
  %v11131 = vunpack.c.l.b16 %v10998
  %v11132 = vunpack.c.l.b16 %v10999
  %v11133 = vunpack.c.l.b16 %v11000
  %v11134 = vunpack.c.l.b16 %v11001
  %v11135 = vunpack.c.l.b16 %v11002
  %v11136 = vunpack.c.l.b16 %v11003
  %v11137 = vunpack.c.l.b16 %v11004
  %v11138 = vunpack.c.l.b16 %v11005
  %v11139 = vunpack.c.l.b16 %v11006
  %v11140 = vunpack.c.l.b16 %v11007
  %v11141 = vunpack.c.l.b16 %v11008
  %v11142 = vunpack.c.l.b16 %v11009
  %v11143 = vunpack.c.l.b16 %v11010
  %v11144 = vunpack.c.l.b16 %v11011
  %v11145 = vunpack.c.l.b16 %v11012
  %v11146 = vunpack.c.l.b16 %v11013
  %v11147 = vunpack.c.l.b16 %v11014
  %v11148 = vunpack.c.l.b16 %v11015
  %v11149 = vunpack.c.l.b16 %v11016
  %v11150 = vunpack.c.l.b16 %v11017
  %v11151 = vunpack.c.l.b16 %v11018
  %v11152 = vunpack.c.l.b16 %v11019
  %v11153 = vunpack.c.l.b16 %v11020
  %v11154 = vunpack.c.l.b16 %v11021
  %v11155 = vunpack.c.l.b16 %v11022
  %v11156 = vunpack.c.l.b16 %v11023
  %v11157 = vunpack.c.l.b16 %v11024
  %v11158 = vunpack.c.l.b16 %v11025
  %v11159 = vunpack.c.l.b16 %v11026
  %v11160 = vunpack.c.l.b16 %v11027
  %v11161 = vunpack.c.l.b16 %v11028
  %v11162 = vunpack.c.l.b16 %v11029
  %v11163 = vunpack.c.l.b16 %v11030
  %v11164 = vunpack.c.l.b16 %v11031
  %v11165 = vunpack.c.l.b16 %v11032
  %v11166 = vunpack.c.l.b16 %v11033
  %v11167 = vunpack.c.l.b16 %v11034
  %v11168 = vunpack.c.l.b16 %v11035
  %v11169 = vunpack.c.l.b16 %v11036
  %v11170 = vunpack.c.l.b16 %v11037
  %v11171 = vunpack.c.l.b16 %v11038
  %v11172 = vunpack.c.l.b16 %v11039
  %v11173 = vunpack.c.l.b16 %v11040
  %v11174 = vunpack.c.l.b16 %v11041
  %v11175 = vunpack.c.l.b16 %v11042
  %v11176 = vunpack.c.l.b16 %v11043
  %v11177 = vunpack.c.l.b16 %v11044
  %v11178 = vunpack.c.l.b16 %v11045
  %v11179 = vunpack.c.l.b16 %v11046
  %v11180 = vunpack.c.l.b16 %v11047
  %v11181 = vunpack.c.l.b16 %v11048
  %v11182 = vunpack.c.l.b16 %v11049
  %v11183 = vunpack.c.l.b16 %v11050
  %v11184 = vunpack.c.l.b16 %v11051
  %v11185 = vunpack.c.l.b16 %v11052
  %v11186 = vunpack.c.l.b16 %v11053
  %v11187 = vunpack.c.l.b16 %v11054
  %v11188 = vunpack.c.l.b16 %v11055
  %v11189 = vunpack.c.l.b16 %v11056
  %v11190 = vunpack.c.l.b16 %v11057
  %v11191 = vunpack.c.l.b16 %v11058
  %v11192 = vpack.c.b16 %v11129, %v11128
  %v11193 = vpack.c.b16 %v11131, %v11130
  %v11194 = vpack.c.b16 %v11133, %v11132
  %v11195 = vpack.c.b16 %v11135, %v11134
  %v11196 = vpack.c.b16 %v11137, %v11136
  %v11197 = vpack.c.b16 %v11139, %v11138
  %v11198 = vpack.c.b16 %v11141, %v11140
  %v11199 = vpack.c.b16 %v11143, %v11142
  %v11200 = vpack.c.b16 %v11145, %v11144
  %v11201 = vpack.c.b16 %v11147, %v11146
  %v11202 = vpack.c.b16 %v11149, %v11148
  %v11203 = vpack.c.b16 %v11151, %v11150
  %v11204 = vpack.c.b16 %v11153, %v11152
  %v11205 = vpack.c.b16 %v11155, %v11154
  %v11206 = vpack.c.b16 %v11157, %v11156
  %v11207 = vpack.c.b16 %v11159, %v11158
  %v11208 = vpack.c.b16 %v11161, %v11160
  %v11209 = vpack.c.b16 %v11163, %v11162
  %v11210 = vpack.c.b16 %v11165, %v11164
  %v11211 = vpack.c.b16 %v11167, %v11166
  %v11212 = vpack.c.b16 %v11169, %v11168
  %v11213 = vpack.c.b16 %v11171, %v11170
  %v11214 = vpack.c.b16 %v11173, %v11172
  %v11215 = vpack.c.b16 %v11175, %v11174
  %v11216 = vpack.c.b16 %v11177, %v11176
  %v11217 = vpack.c.b16 %v11179, %v11178
  %v11218 = vpack.c.b16 %v11181, %v11180
  %v11219 = vpack.c.b16 %v11183, %v11182
  %v11220 = vpack.c.b16 %v11185, %v11184
  %v11221 = vpack.c.b16 %v11187, %v11186
  %v11222 = vpack.c.b16 %v11189, %v11188
  %v11223 = vpack.c.b16 %v11191, %v11190
  %11256 = vmatpush.bf16.msra.mxu0 %v11199
  %11257 = vmatpush.bf16.msra.mxu0 %v11198
  %11258 = vmatpush.bf16.msra.mxu0 %v11197
  %11259 = vmatpush.bf16.msra.mxu0 %v11196
  %11260 = vmatpush.bf16.msra.mxu0 %v11195
  %11261 = vmatpush.bf16.msra.mxu0 %v11194
  %11262 = vmatpush.bf16.msra.mxu0 %v11193
  %11263 = vmatpush.bf16.msra.mxu0 %v11192
  %11264 = vmatmul.bf16.gmra.mxu0 %v10962
  %v11265 = vpop.f32.mrf.mxu0
  %v11266 = vadd.f32 %v11062, %v11265
  %v11267 = vpop.f32.mrf.mxu0
  %v11268 = vadd.f32 %v11062, %v11267
  %11269 = vmatmul.bf16.gmra.mxu0 %v10966
  %v11270 = vpop.f32.mrf.mxu0
  %v11271 = vadd.f32 %v11062, %v11270
  %v11272 = vpop.f32.mrf.mxu0
  %v11273 = vadd.f32 %v11062, %v11272
  %11274 = vmatmul.bf16.gmra.mxu0 %v10970
  %v11275 = vpop.f32.mrf.mxu0
  %v11276 = vadd.f32 %v11062, %v11275
  %v11277 = vpop.f32.mrf.mxu0
  %v11278 = vadd.f32 %v11062, %v11277
  %11279 = vmatmul.bf16.gmra.mxu0 %v10974
  %v11280 = vpop.f32.mrf.mxu0
  %v11281 = vadd.f32 %v11062, %v11280
  %v11282 = vpop.f32.mrf.mxu0
  %v11283 = vadd.f32 %v11062, %v11282
  %11284 = vmatmul.bf16.gmra.mxu0 %v10978
  %v11285 = vpop.f32.mrf.mxu0
  %v11286 = vadd.f32 %v11062, %v11285
  %v11287 = vpop.f32.mrf.mxu0
  %v11288 = vadd.f32 %v11062, %v11287
  %11289 = vmatmul.bf16.gmra.mxu0 %v10982
  %v11290 = vpop.f32.mrf.mxu0
  %v11291 = vadd.f32 %v11062, %v11290
  %v11292 = vpop.f32.mrf.mxu0
  %v11293 = vadd.f32 %v11062, %v11292
  %11294 = vmatmul.bf16.gmra.mxu0 %v10986
  %v11295 = vpop.f32.mrf.mxu0
  %v11296 = vadd.f32 %v11062, %v11295
  %v11297 = vpop.f32.mrf.mxu0
  %v11298 = vadd.f32 %v11062, %v11297
  %11299 = vmatmul.bf16.gmra.mxu0 %v10990
  %v11300 = vpop.f32.mrf.mxu0
  %v11301 = vadd.f32 %v11062, %v11300
  %v11302 = vpop.f32.mrf.mxu0
  %v11303 = vadd.f32 %v11062, %v11302
  %11304 = vdwg.mxu0
  %11305 = vmatpush.bf16.msra.mxu0 %v11207
  %11306 = vmatpush.bf16.msra.mxu0 %v11206
  %11307 = vmatpush.bf16.msra.mxu0 %v11205
  %11308 = vmatpush.bf16.msra.mxu0 %v11204
  %11309 = vmatpush.bf16.msra.mxu0 %v11203
  %11310 = vmatpush.bf16.msra.mxu0 %v11202
  %11311 = vmatpush.bf16.msra.mxu0 %v11201
  %11312 = vmatpush.bf16.msra.mxu0 %v11200
  %11313 = vmatmul.bf16.gmra.mxu0 %v10963
  %v11314 = vpop.f32.mrf.mxu0
  %v11315 = vadd.f32 %v11266, %v11314
  %v11316 = vpop.f32.mrf.mxu0
  %v11317 = vadd.f32 %v11268, %v11316
  %11318 = vmatmul.bf16.gmra.mxu0 %v10967
  %v11319 = vpop.f32.mrf.mxu0
  %v11320 = vadd.f32 %v11271, %v11319
  %v11321 = vpop.f32.mrf.mxu0
  %v11322 = vadd.f32 %v11273, %v11321
  %11323 = vmatmul.bf16.gmra.mxu0 %v10971
  %v11324 = vpop.f32.mrf.mxu0
  %v11325 = vadd.f32 %v11276, %v11324
  %v11326 = vpop.f32.mrf.mxu0
  %v11327 = vadd.f32 %v11278, %v11326
  %11328 = vmatmul.bf16.gmra.mxu0 %v10975
  %v11329 = vpop.f32.mrf.mxu0
  %v11330 = vadd.f32 %v11281, %v11329
  %v11331 = vpop.f32.mrf.mxu0
  %v11332 = vadd.f32 %v11283, %v11331
  %11333 = vmatmul.bf16.gmra.mxu0 %v10979
  %v11334 = vpop.f32.mrf.mxu0
  %v11335 = vadd.f32 %v11286, %v11334
  %v11336 = vpop.f32.mrf.mxu0
  %v11337 = vadd.f32 %v11288, %v11336
  %11338 = vmatmul.bf16.gmra.mxu0 %v10983
  %v11339 = vpop.f32.mrf.mxu0
  %v11340 = vadd.f32 %v11291, %v11339
  %v11341 = vpop.f32.mrf.mxu0
  %v11342 = vadd.f32 %v11293, %v11341
  %11343 = vmatmul.bf16.gmra.mxu0 %v10987
  %v11344 = vpop.f32.mrf.mxu0
  %v11345 = vadd.f32 %v11296, %v11344
  %v11346 = vpop.f32.mrf.mxu0
  %v11347 = vadd.f32 %v11298, %v11346
  %11348 = vmatmul.bf16.gmra.mxu0 %v10991
  %v11349 = vpop.f32.mrf.mxu0
  %v11350 = vadd.f32 %v11301, %v11349
  %v11351 = vpop.f32.mrf.mxu0
  %v11352 = vadd.f32 %v11303, %v11351
  %11353 = vdwg.mxu0
  %11354 = vmatpush.bf16.msra.mxu0 %v11215
  %11355 = vmatpush.bf16.msra.mxu0 %v11214
  %11356 = vmatpush.bf16.msra.mxu0 %v11213
  %11357 = vmatpush.bf16.msra.mxu0 %v11212
  %11358 = vmatpush.bf16.msra.mxu0 %v11211
  %11359 = vmatpush.bf16.msra.mxu0 %v11210
  %11360 = vmatpush.bf16.msra.mxu0 %v11209
  %11361 = vmatpush.bf16.msra.mxu0 %v11208
  %11362 = vmatmul.bf16.gmra.mxu0 %v10964
  %v11363 = vpop.f32.mrf.mxu0
  %v11364 = vadd.f32 %v11315, %v11363
  %v11365 = vpop.f32.mrf.mxu0
  %v11366 = vadd.f32 %v11317, %v11365
  %11367 = vmatmul.bf16.gmra.mxu0 %v10968
  %v11368 = vpop.f32.mrf.mxu0
  %v11369 = vadd.f32 %v11320, %v11368
  %v11370 = vpop.f32.mrf.mxu0
  %v11371 = vadd.f32 %v11322, %v11370
  %11372 = vmatmul.bf16.gmra.mxu0 %v10972
  %v11373 = vpop.f32.mrf.mxu0
  %v11374 = vadd.f32 %v11325, %v11373
  %v11375 = vpop.f32.mrf.mxu0
  %v11376 = vadd.f32 %v11327, %v11375
  %11377 = vmatmul.bf16.gmra.mxu0 %v10976
  %v11378 = vpop.f32.mrf.mxu0
  %v11379 = vadd.f32 %v11330, %v11378
  %v11380 = vpop.f32.mrf.mxu0
  %v11381 = vadd.f32 %v11332, %v11380
  %11382 = vmatmul.bf16.gmra.mxu0 %v10980
  %v11383 = vpop.f32.mrf.mxu0
  %v11384 = vadd.f32 %v11335, %v11383
  %v11385 = vpop.f32.mrf.mxu0
  %v11386 = vadd.f32 %v11337, %v11385
  %11387 = vmatmul.bf16.gmra.mxu0 %v10984
  %v11388 = vpop.f32.mrf.mxu0
  %v11389 = vadd.f32 %v11340, %v11388
  %v11390 = vpop.f32.mrf.mxu0
  %v11391 = vadd.f32 %v11342, %v11390
  %11392 = vmatmul.bf16.gmra.mxu0 %v10988
  %v11393 = vpop.f32.mrf.mxu0
  %v11394 = vadd.f32 %v11345, %v11393
  %v11395 = vpop.f32.mrf.mxu0
  %v11396 = vadd.f32 %v11347, %v11395
  %11397 = vmatmul.bf16.gmra.mxu0 %v10992
  %v11398 = vpop.f32.mrf.mxu0
  %v11399 = vadd.f32 %v11350, %v11398
  %v11400 = vpop.f32.mrf.mxu0
  %v11401 = vadd.f32 %v11352, %v11400
  %11402 = vdwg.mxu0
  %11403 = vmatpush.bf16.msra.mxu0 %v11223
  %11404 = vmatpush.bf16.msra.mxu0 %v11222
  %11405 = vmatpush.bf16.msra.mxu0 %v11221
  %11406 = vmatpush.bf16.msra.mxu0 %v11220
  %11407 = vmatpush.bf16.msra.mxu0 %v11219
  %11408 = vmatpush.bf16.msra.mxu0 %v11218
  %11409 = vmatpush.bf16.msra.mxu0 %v11217
  %11410 = vmatpush.bf16.msra.mxu0 %v11216
  %11411 = vmatmul.bf16.gmra.mxu0 %v10965
  %v11412 = vpop.f32.mrf.mxu0
  %v11413 = vadd.f32 %v11364, %v11412
  %v11414 = vpop.f32.mrf.mxu0
  %v11415 = vadd.f32 %v11366, %v11414
  %11416 = vmatmul.bf16.gmra.mxu0 %v10969
  %v11417 = vpop.f32.mrf.mxu0
  %v11418 = vadd.f32 %v11369, %v11417
  %v11419 = vpop.f32.mrf.mxu0
  %v11420 = vadd.f32 %v11371, %v11419
  %11421 = vmatmul.bf16.gmra.mxu0 %v10973
  %v11422 = vpop.f32.mrf.mxu0
  %v11423 = vadd.f32 %v11374, %v11422
  %v11424 = vpop.f32.mrf.mxu0
  %v11425 = vadd.f32 %v11376, %v11424
  %11426 = vmatmul.bf16.gmra.mxu0 %v10977
  %v11427 = vpop.f32.mrf.mxu0
  %v11428 = vadd.f32 %v11379, %v11427
  %v11429 = vpop.f32.mrf.mxu0
  %v11430 = vadd.f32 %v11381, %v11429
  %11431 = vmatmul.bf16.gmra.mxu0 %v10981
  %v11432 = vpop.f32.mrf.mxu0
  %v11433 = vadd.f32 %v11384, %v11432
  %v11434 = vpop.f32.mrf.mxu0
  %v11435 = vadd.f32 %v11386, %v11434
  %11436 = vmatmul.bf16.gmra.mxu0 %v10985
  %v11437 = vpop.f32.mrf.mxu0
  %v11438 = vadd.f32 %v11389, %v11437
  %v11439 = vpop.f32.mrf.mxu0
  %v11440 = vadd.f32 %v11391, %v11439
  %11441 = vmatmul.bf16.gmra.mxu0 %v10989
  %v11442 = vpop.f32.mrf.mxu0
  %v11443 = vadd.f32 %v11394, %v11442
  %v11444 = vpop.f32.mrf.mxu0
  %v11445 = vadd.f32 %v11396, %v11444
  %11446 = vmatmul.bf16.gmra.mxu0 %v10993
  %v11447 = vpop.f32.mrf.mxu0
  %v11448 = vadd.f32 %v11399, %v11447
  %v11449 = vpop.f32.mrf.mxu0
  %v11450 = vadd.f32 %v11401, %v11449
  %11451 = vdwg.mxu0
  %v11452 = vadd.f32 %v9600, %v11413
  %v11453 = vadd.f32 %v9601, %v11415
  %v11454 = vadd.f32 %v9602, %v11418
  %v11455 = vadd.f32 %v9603, %v11420
  %v11456 = vadd.f32 %v9604, %v11423
  %v11457 = vadd.f32 %v9605, %v11425
  %v11458 = vadd.f32 %v9606, %v11428
  %v11459 = vadd.f32 %v9607, %v11430
  %v11460 = vadd.f32 %v9608, %v11433
  %v11461 = vadd.f32 %v9609, %v11435
  %v11462 = vadd.f32 %v9610, %v11438
  %v11463 = vadd.f32 %v9611, %v11440
  %v11464 = vadd.f32 %v9612, %v11443
  %v11465 = vadd.f32 %v9613, %v11445
  %v11466 = vadd.f32 %v9614, %v11448
  %v11467 = vadd.f32 %v9615, %v11450
  %v11468 = vld [vmem:[%s17] sm:$0x1]
  %v11469 = vld [vmem:[%s18] sm:$0x1]
  %11470 = vadd.xlane.f32.xlu0 %v11452
  %v11471 = vpop.xlane.xlu0 %11470
  %11472 = vadd.xlane.f32.xlu0 %v11453
  %v11473 = vpop.xlane.xlu0 %11472
  %11474 = vadd.xlane.f32.xlu0 %v11454
  %v11475 = vpop.xlane.xlu0 %11474
  %11476 = vadd.xlane.f32.xlu0 %v11455
  %v11477 = vpop.xlane.xlu0 %11476
  %11478 = vadd.xlane.f32.xlu0 %v11456
  %v11479 = vpop.xlane.xlu0 %11478
  %11480 = vadd.xlane.f32.xlu0 %v11457
  %v11481 = vpop.xlane.xlu0 %11480
  %11482 = vadd.xlane.f32.xlu0 %v11458
  %v11483 = vpop.xlane.xlu0 %11482
  %11484 = vadd.xlane.f32.xlu0 %v11459
  %v11485 = vpop.xlane.xlu0 %11484
  %11486 = vadd.xlane.f32.xlu0 %v11460
  %v11487 = vpop.xlane.xlu0 %11486
  %11488 = vadd.xlane.f32.xlu0 %v11461
  %v11489 = vpop.xlane.xlu0 %11488
  %11490 = vadd.xlane.f32.xlu0 %v11462
  %v11491 = vpop.xlane.xlu0 %11490
  %11492 = vadd.xlane.f32.xlu0 %v11463
  %v11493 = vpop.xlane.xlu0 %11492
  %11494 = vadd.xlane.f32.xlu0 %v11464
  %v11495 = vpop.xlane.xlu0 %11494
  %11496 = vadd.xlane.f32.xlu0 %v11465
  %v11497 = vpop.xlane.xlu0 %11496
  %11498 = vadd.xlane.f32.xlu0 %v11466
  %v11499 = vpop.xlane.xlu0 %11498
  %11500 = vadd.xlane.f32.xlu0 %v11467
  %v11501 = vpop.xlane.xlu0 %11500
  %v11502 = vmul.f32 %v11471, %v1218
  %v11503 = vmul.f32 %v11473, %v1218
  %v11504 = vmul.f32 %v11475, %v1218
  %v11505 = vmul.f32 %v11477, %v1218
  %v11506 = vmul.f32 %v11479, %v1218
  %v11507 = vmul.f32 %v11481, %v1218
  %v11508 = vmul.f32 %v11483, %v1218
  %v11509 = vmul.f32 %v11485, %v1218
  %v11510 = vmul.f32 %v11487, %v1218
  %v11511 = vmul.f32 %v11489, %v1218
  %v11512 = vmul.f32 %v11491, %v1218
  %v11513 = vmul.f32 %v11493, %v1218
  %v11514 = vmul.f32 %v11495, %v1218
  %v11515 = vmul.f32 %v11497, %v1218
  %v11516 = vmul.f32 %v11499, %v1218
  %v11517 = vmul.f32 %v11501, %v1218
  %v11518 = vsub.f32 %v11452, %v11502
  %v11519 = vsub.f32 %v11453, %v11503
  %v11520 = vsub.f32 %v11454, %v11504
  %v11521 = vsub.f32 %v11455, %v11505
  %v11522 = vsub.f32 %v11456, %v11506
  %v11523 = vsub.f32 %v11457, %v11507
  %v11524 = vsub.f32 %v11458, %v11508
  %v11525 = vsub.f32 %v11459, %v11509
  %v11526 = vsub.f32 %v11460, %v11510
  %v11527 = vsub.f32 %v11461, %v11511
  %v11528 = vsub.f32 %v11462, %v11512
  %v11529 = vsub.f32 %v11463, %v11513
  %v11530 = vsub.f32 %v11464, %v11514
  %v11531 = vsub.f32 %v11465, %v11515
  %v11532 = vsub.f32 %v11466, %v11516
  %v11533 = vsub.f32 %v11467, %v11517
  %v11534 = vmul.f32 %v11518, %v11518
  %v11535 = vmul.f32 %v11519, %v11519
  %v11536 = vmul.f32 %v11520, %v11520
  %v11537 = vmul.f32 %v11521, %v11521
  %v11538 = vmul.f32 %v11522, %v11522
  %v11539 = vmul.f32 %v11523, %v11523
  %v11540 = vmul.f32 %v11524, %v11524
  %v11541 = vmul.f32 %v11525, %v11525
  %v11542 = vmul.f32 %v11526, %v11526
  %v11543 = vmul.f32 %v11527, %v11527
  %v11544 = vmul.f32 %v11528, %v11528
  %v11545 = vmul.f32 %v11529, %v11529
  %v11546 = vmul.f32 %v11530, %v11530
  %v11547 = vmul.f32 %v11531, %v11531
  %v11548 = vmul.f32 %v11532, %v11532
  %v11549 = vmul.f32 %v11533, %v11533
  %11550 = vadd.xlane.f32.xlu0 %v11534
  %v11551 = vpop.xlane.xlu0 %11550
  %11552 = vadd.xlane.f32.xlu0 %v11535
  %v11553 = vpop.xlane.xlu0 %11552
  %11554 = vadd.xlane.f32.xlu0 %v11536
  %v11555 = vpop.xlane.xlu0 %11554
  %11556 = vadd.xlane.f32.xlu0 %v11537
  %v11557 = vpop.xlane.xlu0 %11556
  %11558 = vadd.xlane.f32.xlu0 %v11538
  %v11559 = vpop.xlane.xlu0 %11558
  %11560 = vadd.xlane.f32.xlu0 %v11539
  %v11561 = vpop.xlane.xlu0 %11560
  %11562 = vadd.xlane.f32.xlu0 %v11540
  %v11563 = vpop.xlane.xlu0 %11562
  %11564 = vadd.xlane.f32.xlu0 %v11541
  %v11565 = vpop.xlane.xlu0 %11564
  %11566 = vadd.xlane.f32.xlu0 %v11542
  %v11567 = vpop.xlane.xlu0 %11566
  %11568 = vadd.xlane.f32.xlu0 %v11543
  %v11569 = vpop.xlane.xlu0 %11568
  %11570 = vadd.xlane.f32.xlu0 %v11544
  %v11571 = vpop.xlane.xlu0 %11570
  %11572 = vadd.xlane.f32.xlu0 %v11545
  %v11573 = vpop.xlane.xlu0 %11572
  %11574 = vadd.xlane.f32.xlu0 %v11546
  %v11575 = vpop.xlane.xlu0 %11574
  %11576 = vadd.xlane.f32.xlu0 %v11547
  %v11577 = vpop.xlane.xlu0 %11576
  %11578 = vadd.xlane.f32.xlu0 %v11548
  %v11579 = vpop.xlane.xlu0 %11578
  %11580 = vadd.xlane.f32.xlu0 %v11549
  %v11581 = vpop.xlane.xlu0 %11580
  %v11582 = vmul.f32 %v11551, %v1218
  %v11583 = vmul.f32 %v11553, %v1218
  %v11584 = vmul.f32 %v11555, %v1218
  %v11585 = vmul.f32 %v11557, %v1218
  %v11586 = vmul.f32 %v11559, %v1218
  %v11587 = vmul.f32 %v11561, %v1218
  %v11588 = vmul.f32 %v11563, %v1218
  %v11589 = vmul.f32 %v11565, %v1218
  %v11590 = vmul.f32 %v11567, %v1218
  %v11591 = vmul.f32 %v11569, %v1218
  %v11592 = vmul.f32 %v11571, %v1218
  %v11593 = vmul.f32 %v11573, %v1218
  %v11594 = vmul.f32 %v11575, %v1218
  %v11595 = vmul.f32 %v11577, %v1218
  %v11596 = vmul.f32 %v11579, %v1218
  %v11597 = vmul.f32 %v11581, %v1218
  %v11598 = vadd.f32 %v11582, 1e-06
  %v11599 = vadd.f32 %v11583, 1e-06
  %v11600 = vadd.f32 %v11584, 1e-06
  %v11601 = vadd.f32 %v11585, 1e-06
  %v11602 = vadd.f32 %v11586, 1e-06
  %v11603 = vadd.f32 %v11587, 1e-06
  %v11604 = vadd.f32 %v11588, 1e-06
  %v11605 = vadd.f32 %v11589, 1e-06
  %v11606 = vadd.f32 %v11590, 1e-06
  %v11607 = vadd.f32 %v11591, 1e-06
  %v11608 = vadd.f32 %v11592, 1e-06
  %v11609 = vadd.f32 %v11593, 1e-06
  %v11610 = vadd.f32 %v11594, 1e-06
  %v11611 = vadd.f32 %v11595, 1e-06
  %v11612 = vadd.f32 %v11596, 1e-06
  %v11613 = vadd.f32 %v11597, 1e-06
  %v11614 = vrsqrt.pop %v11598
  %v11615 = vmul.f32 %v11614, %v11598
  %v11616 = vmul.f32 %v11615, %v11614
  %v11617 = vmul.f32 0.5, %v11616
  %v11618 = vsub.f32 1.5, %v11617
  %v11619 = vmul.f32 %v11614, %v11618
  %vm11620 = vweird.f32 %v11598
  %vm11621 = vweird.f32 %v11614
  %vm11622 = vmor %vm11620, %vm11621
  %v11623 = vsel %vm11622, %v11614, %v11619
  %v11624 = vrsqrt.pop %v11599
  %v11625 = vmul.f32 %v11624, %v11599
  %v11626 = vmul.f32 %v11625, %v11624
  %v11627 = vmul.f32 0.5, %v11626
  %v11628 = vsub.f32 1.5, %v11627
  %v11629 = vmul.f32 %v11624, %v11628
  %vm11630 = vweird.f32 %v11599
  %vm11631 = vweird.f32 %v11624
  %vm11632 = vmor %vm11630, %vm11631
  %v11633 = vsel %vm11632, %v11624, %v11629
  %v11634 = vrsqrt.pop %v11600
  %v11635 = vmul.f32 %v11634, %v11600
  %v11636 = vmul.f32 %v11635, %v11634
  %v11637 = vmul.f32 0.5, %v11636
  %v11638 = vsub.f32 1.5, %v11637
  %v11639 = vmul.f32 %v11634, %v11638
  %vm11640 = vweird.f32 %v11600
  %vm11641 = vweird.f32 %v11634
  %vm11642 = vmor %vm11640, %vm11641
  %v11643 = vsel %vm11642, %v11634, %v11639
  %v11644 = vrsqrt.pop %v11601
  %v11645 = vmul.f32 %v11644, %v11601
  %v11646 = vmul.f32 %v11645, %v11644
  %v11647 = vmul.f32 0.5, %v11646
  %v11648 = vsub.f32 1.5, %v11647
  %v11649 = vmul.f32 %v11644, %v11648
  %vm11650 = vweird.f32 %v11601
  %vm11651 = vweird.f32 %v11644
  %vm11652 = vmor %vm11650, %vm11651
  %v11653 = vsel %vm11652, %v11644, %v11649
  %v11654 = vrsqrt.pop %v11602
  %v11655 = vmul.f32 %v11654, %v11602
  %v11656 = vmul.f32 %v11655, %v11654
  %v11657 = vmul.f32 0.5, %v11656
  %v11658 = vsub.f32 1.5, %v11657
  %v11659 = vmul.f32 %v11654, %v11658
  %vm11660 = vweird.f32 %v11602
  %vm11661 = vweird.f32 %v11654
  %vm11662 = vmor %vm11660, %vm11661
  %v11663 = vsel %vm11662, %v11654, %v11659
  %v11664 = vrsqrt.pop %v11603
  %v11665 = vmul.f32 %v11664, %v11603
  %v11666 = vmul.f32 %v11665, %v11664
  %v11667 = vmul.f32 0.5, %v11666
  %v11668 = vsub.f32 1.5, %v11667
  %v11669 = vmul.f32 %v11664, %v11668
  %vm11670 = vweird.f32 %v11603
  %vm11671 = vweird.f32 %v11664
  %vm11672 = vmor %vm11670, %vm11671
  %v11673 = vsel %vm11672, %v11664, %v11669
  %v11674 = vrsqrt.pop %v11604
  %v11675 = vmul.f32 %v11674, %v11604
  %v11676 = vmul.f32 %v11675, %v11674
  %v11677 = vmul.f32 0.5, %v11676
  %v11678 = vsub.f32 1.5, %v11677
  %v11679 = vmul.f32 %v11674, %v11678
  %vm11680 = vweird.f32 %v11604
  %vm11681 = vweird.f32 %v11674
  %vm11682 = vmor %vm11680, %vm11681
  %v11683 = vsel %vm11682, %v11674, %v11679
  %v11684 = vrsqrt.pop %v11605
  %v11685 = vmul.f32 %v11684, %v11605
  %v11686 = vmul.f32 %v11685, %v11684
  %v11687 = vmul.f32 0.5, %v11686
  %v11688 = vsub.f32 1.5, %v11687
  %v11689 = vmul.f32 %v11684, %v11688
  %vm11690 = vweird.f32 %v11605
  %vm11691 = vweird.f32 %v11684
  %vm11692 = vmor %vm11690, %vm11691
  %v11693 = vsel %vm11692, %v11684, %v11689
  %v11694 = vrsqrt.pop %v11606
  %v11695 = vmul.f32 %v11694, %v11606
  %v11696 = vmul.f32 %v11695, %v11694
  %v11697 = vmul.f32 0.5, %v11696
  %v11698 = vsub.f32 1.5, %v11697
  %v11699 = vmul.f32 %v11694, %v11698
  %vm11700 = vweird.f32 %v11606
  %vm11701 = vweird.f32 %v11694
  %vm11702 = vmor %vm11700, %vm11701
  %v11703 = vsel %vm11702, %v11694, %v11699
  %v11704 = vrsqrt.pop %v11607
  %v11705 = vmul.f32 %v11704, %v11607
  %v11706 = vmul.f32 %v11705, %v11704
  %v11707 = vmul.f32 0.5, %v11706
  %v11708 = vsub.f32 1.5, %v11707
  %v11709 = vmul.f32 %v11704, %v11708
  %vm11710 = vweird.f32 %v11607
  %vm11711 = vweird.f32 %v11704
  %vm11712 = vmor %vm11710, %vm11711
  %v11713 = vsel %vm11712, %v11704, %v11709
  %v11714 = vrsqrt.pop %v11608
  %v11715 = vmul.f32 %v11714, %v11608
  %v11716 = vmul.f32 %v11715, %v11714
  %v11717 = vmul.f32 0.5, %v11716
  %v11718 = vsub.f32 1.5, %v11717
  %v11719 = vmul.f32 %v11714, %v11718
  %vm11720 = vweird.f32 %v11608
  %vm11721 = vweird.f32 %v11714
  %vm11722 = vmor %vm11720, %vm11721
  %v11723 = vsel %vm11722, %v11714, %v11719
  %v11724 = vrsqrt.pop %v11609
  %v11725 = vmul.f32 %v11724, %v11609
  %v11726 = vmul.f32 %v11725, %v11724
  %v11727 = vmul.f32 0.5, %v11726
  %v11728 = vsub.f32 1.5, %v11727
  %v11729 = vmul.f32 %v11724, %v11728
  %vm11730 = vweird.f32 %v11609
  %vm11731 = vweird.f32 %v11724
  %vm11732 = vmor %vm11730, %vm11731
  %v11733 = vsel %vm11732, %v11724, %v11729
  %v11734 = vrsqrt.pop %v11610
  %v11735 = vmul.f32 %v11734, %v11610
  %v11736 = vmul.f32 %v11735, %v11734
  %v11737 = vmul.f32 0.5, %v11736
  %v11738 = vsub.f32 1.5, %v11737
  %v11739 = vmul.f32 %v11734, %v11738
  %vm11740 = vweird.f32 %v11610
  %vm11741 = vweird.f32 %v11734
  %vm11742 = vmor %vm11740, %vm11741
  %v11743 = vsel %vm11742, %v11734, %v11739
  %v11744 = vrsqrt.pop %v11611
  %v11745 = vmul.f32 %v11744, %v11611
  %v11746 = vmul.f32 %v11745, %v11744
  %v11747 = vmul.f32 0.5, %v11746
  %v11748 = vsub.f32 1.5, %v11747
  %v11749 = vmul.f32 %v11744, %v11748
  %vm11750 = vweird.f32 %v11611
  %vm11751 = vweird.f32 %v11744
  %vm11752 = vmor %vm11750, %vm11751
  %v11753 = vsel %vm11752, %v11744, %v11749
  %v11754 = vrsqrt.pop %v11612
  %v11755 = vmul.f32 %v11754, %v11612
  %v11756 = vmul.f32 %v11755, %v11754
  %v11757 = vmul.f32 0.5, %v11756
  %v11758 = vsub.f32 1.5, %v11757
  %v11759 = vmul.f32 %v11754, %v11758
  %vm11760 = vweird.f32 %v11612
  %vm11761 = vweird.f32 %v11754
  %vm11762 = vmor %vm11760, %vm11761
  %v11763 = vsel %vm11762, %v11754, %v11759
  %v11764 = vrsqrt.pop %v11613
  %v11765 = vmul.f32 %v11764, %v11613
  %v11766 = vmul.f32 %v11765, %v11764
  %v11767 = vmul.f32 0.5, %v11766
  %v11768 = vsub.f32 1.5, %v11767
  %v11769 = vmul.f32 %v11764, %v11768
  %vm11770 = vweird.f32 %v11613
  %vm11771 = vweird.f32 %v11764
  %vm11772 = vmor %vm11770, %vm11771
  %v11773 = vsel %vm11772, %v11764, %v11769
  %v11774 = vmul.f32 %v11518, %v11623
  %v11775 = vmul.f32 %v11519, %v11633
  %v11776 = vmul.f32 %v11520, %v11643
  %v11777 = vmul.f32 %v11521, %v11653
  %v11778 = vmul.f32 %v11522, %v11663
  %v11779 = vmul.f32 %v11523, %v11673
  %v11780 = vmul.f32 %v11524, %v11683
  %v11781 = vmul.f32 %v11525, %v11693
  %v11782 = vmul.f32 %v11526, %v11703
  %v11783 = vmul.f32 %v11527, %v11713
  %v11784 = vmul.f32 %v11528, %v11723
  %v11785 = vmul.f32 %v11529, %v11733
  %v11786 = vmul.f32 %v11530, %v11743
  %v11787 = vmul.f32 %v11531, %v11753
  %v11788 = vmul.f32 %v11532, %v11763
  %v11789 = vmul.f32 %v11533, %v11773
  %v11791 = vperm.slane %v11468, 0
  %v11793 = vmul.f32 %v11774, %v11791
  %v11794 = vmul.f32 %v11775, %v11791
  %v11795 = vmul.f32 %v11776, %v11791
  %v11796 = vmul.f32 %v11777, %v11791
  %v11797 = vmul.f32 %v11778, %v11791
  %v11798 = vmul.f32 %v11779, %v11791
  %v11799 = vmul.f32 %v11780, %v11791
  %v11800 = vmul.f32 %v11781, %v11791
  %v11801 = vmul.f32 %v11782, %v11791
  %v11802 = vmul.f32 %v11783, %v11791
  %v11803 = vmul.f32 %v11784, %v11791
  %v11804 = vmul.f32 %v11785, %v11791
  %v11805 = vmul.f32 %v11786, %v11791
  %v11806 = vmul.f32 %v11787, %v11791
  %v11807 = vmul.f32 %v11788, %v11791
  %v11808 = vmul.f32 %v11789, %v11791
  %v11810 = vperm.slane %v11469, 0
  %v11812 = vadd.f32 %v11793, %v11810
  %v11813 = vadd.f32 %v11794, %v11810
  %v11814 = vadd.f32 %v11795, %v11810
  %v11815 = vadd.f32 %v11796, %v11810
  %v11816 = vadd.f32 %v11797, %v11810
  %v11817 = vadd.f32 %v11798, %v11810
  %v11818 = vadd.f32 %v11799, %v11810
  %v11819 = vadd.f32 %v11800, %v11810
  %v11820 = vadd.f32 %v11801, %v11810
  %v11821 = vadd.f32 %v11802, %v11810
  %v11822 = vadd.f32 %v11803, %v11810
  %v11823 = vadd.f32 %v11804, %v11810
  %v11824 = vadd.f32 %v11805, %v11810
  %v11825 = vadd.f32 %v11806, %v11810
  %v11826 = vadd.f32 %v11807, %v11810
  %v11827 = vadd.f32 %v11808, %v11810
  %v11828 = vlaneseq
  %v11829 = vshrl.u32 %v11828, 7
  %v11830 = vadd.s32 %v11829, 8
  %v11831 = vadd.s32 %v11829, 16
  %v11832 = vadd.s32 %v11829, 24
  %v11833 = vadd.s32 %v11829, 32
  %v11834 = vadd.s32 %v11829, 40
  %v11835 = vadd.s32 %v11829, 48
  %v11836 = vadd.s32 %v11829, 56
  %v11837 = vand.u32 %v11829, 7
  %v11838 = vand.u32 %v11830, 7
  %v11839 = vand.u32 %v11831, 7
  %v11840 = vand.u32 %v11832, 7
  %v11841 = vand.u32 %v11833, 7
  %v11842 = vand.u32 %v11834, 7
  %v11843 = vand.u32 %v11835, 7
  %v11844 = vand.u32 %v11836, 7
  %vm11845 = vcmp.lt.s32.totalorder %v11837, 3
  %vm11846 = vcmp.lt.s32.totalorder %v11838, 3
  %vm11847 = vcmp.lt.s32.totalorder %v11839, 3
  %vm11848 = vcmp.lt.s32.totalorder %v11840, 3
  %vm11849 = vcmp.lt.s32.totalorder %v11841, 3
  %vm11850 = vcmp.lt.s32.totalorder %v11842, 3
  %vm11851 = vcmp.lt.s32.totalorder %v11843, 3
  %vm11852 = vcmp.lt.s32.totalorder %v11844, 3
  %v11853 = vsel %vm11845, 1, 0
  %v11854 = vsel %vm11846, 1, 0
  %v11855 = vsel %vm11847, 1, 0
  %v11856 = vsel %vm11848, 1, 0
  %v11857 = vsel %vm11849, 1, 0
  %v11858 = vsel %vm11850, 1, 0
  %v11859 = vsel %vm11851, 1, 0
  %v11860 = vsel %vm11852, 1, 0
  %v11861 = vcvt.s32.f32 %v11853
  %v11862 = vcvt.s32.f32 %v11854
  %v11863 = vcvt.s32.f32 %v11855
  %v11864 = vcvt.s32.f32 %v11856
  %v11865 = vcvt.s32.f32 %v11857
  %v11866 = vcvt.s32.f32 %v11858
  %v11867 = vcvt.s32.f32 %v11859
  %v11868 = vcvt.s32.f32 %v11860
  %v11869 = vsub.f32 %v11812, %v11820
  %v11870 = vsub.f32 %v11813, %v11821
  %v11871 = vsub.f32 %v11814, %v11822
  %v11872 = vsub.f32 %v11815, %v11823
  %v11873 = vsub.f32 %v11816, %v11824
  %v11874 = vsub.f32 %v11817, %v11825
  %v11875 = vsub.f32 %v11818, %v11826
  %v11876 = vsub.f32 %v11819, %v11827
  %v11877 = vmul.f32 %v11869, %v11861
  %v11878 = vmul.f32 %v11870, %v11862
  %v11879 = vmul.f32 %v11871, %v11863
  %v11880 = vmul.f32 %v11872, %v11864
  %v11881 = vmul.f32 %v11873, %v11865
  %v11882 = vmul.f32 %v11874, %v11866
  %v11883 = vmul.f32 %v11875, %v11867
  %v11884 = vmul.f32 %v11876, %v11868
  %v11885 = vmul.f32 %v11877, %v11877
  %v11886 = vmul.f32 %v11878, %v11878
  %v11887 = vmul.f32 %v11879, %v11879
  %v11888 = vmul.f32 %v11880, %v11880
  %v11889 = vmul.f32 %v11881, %v11881
  %v11890 = vmul.f32 %v11882, %v11882
  %v11891 = vmul.f32 %v11883, %v11883
  %v11892 = vmul.f32 %v11884, %v11884
  %v11893 = vadd.f32 %v11885, %v11886
  %v11894 = vadd.f32 %v11893, %v11887
  %v11895 = vadd.f32 %v11894, %v11888
  %v11896 = vadd.f32 %v11895, %v11889
  %v11897 = vadd.f32 %v11896, %v11890
  %v11898 = vadd.f32 %v11897, %v11891
  %v11899 = vadd.f32 %v11898, %v11892
  %11900 = vadd.xlane.f32.xlu0 %v11899
  %v11901 = vpop.xlane.xlu0 %11900
  %v11902 = vrot.slane %v11901, 4
  %v11903 = vadd.f32 %v11901, %v11902
  %v11904 = vrot.slane %v11903, 2
  %v11905 = vadd.f32 %v11903, %v11904
  %v11906 = vrot.slane %v11905, 1
  %v11907 = vadd.f32 %v11905, %v11906
  %s11908 = vtos %v11907
  %s11909 = smul.f32 %s11908, 0.00032552084
  %vm11910 = vcmp.eq.s32.totalorder %v1175, 0
  %v11911 = vstv %s191
  %v11912 = vsel %vm11910, %v11911, 0.0
  %vm11913 = vcmp.eq.s32.totalorder %v1175, 1
  %v11914 = vstv %s11909
  %v11915 = vsel %vm11913, %v11914, 0.0
  %v11916 = vadd.f32 %v11912, %v11915
  %11917 = vst [vmem:[%s19] sm:$0x1] %v11916
  // Predicated region
  $region78: #{reconstruct_perceptual_loss.1} parent=0 // pred_check
    _
  $region79: #{reconstruct_perceptual_loss.1} parent=0 // pred_check_branch
    %11919 = sbr.rel (0) target = $region81
  $region80: #{reconstruct_perceptual_loss.1} parent=0 // pred_region
    _
  $region81: #{reconstruct_perceptual_loss.1} parent=0 // pred_fallthru
    _
  // Predicated region
  $region82: #{reconstruct_perceptual_loss.1} parent=0 // pred_check
    _
  $region83: #{reconstruct_perceptual_loss.1} parent=0 // pred_check_branch
    %11921 = sbr.rel (0) target = $region85
  $region84: #{reconstruct_perceptual_loss.1} parent=0 // pred_region
    _
  $region85: #{reconstruct_perceptual_loss.1} parent=0 // pred_fallthru
    _

</llo_original>
